<compile_context>
chip_gen: v7x
topology: tpu7x:2x2x1
jax: 0.10.0
libtpu: 0.0.40
codegen_flags: <defaults>
</compile_context>

<pallas_src>
import functools

import jax
import jax.numpy as jnp
from jax.experimental import pallas as pl
from jax.experimental.pallas import tpu as pltpu


def _round_up(x, m):
    return ((x + m - 1) // m) * m


def _vmem_capacity_bytes():
    try:
        return int(pltpu.get_tpu_info().vmem_capacity_bytes)
    except Exception:                      # pragma: no cover
        return 64 * 1024 * 1024            # conservative: v7x per-TensorCore VMEM


def _layout(model_size):
    """Per-entity (emb_lane0, bias_lane, out_col_offset) and output width."""
    D = int(model_size)
    C = _round_up(D + 1, 128)              # per-entity table width (lane-dense)
    packed = (C == 128) and (3 * D + 3 <= 128)
    if packed:
        out_c = 128                        # single shared 128-lane slab
        ents = ((0, 3 * D, 0),             # user : emb [0,D),   bias 3D
                (D, 3 * D + 1, 0),         # pos  : emb [D,2D),  bias 3D+1
                (2 * D, 3 * D + 2, 0))     # neg  : emb [2D,3D), bias 3D+2
    else:
        out_c = 3 * C                      # one 128-aligned slab per entity
        ents = ((0, D, 0), (0, D, C), (0, D, 2 * C))
    return C, out_c, packed, ents


def _make_planes(emb_table, bias_table, width, emb_lane0, bias_lane):
    """Lane-placed augmented table, exactly split into 3 bf16 planes."""
    R, D = int(emb_table.shape[0]), int(emb_table.shape[1])
    r_pad = _round_up(R, 128)
    aug = jnp.zeros((r_pad, width), jnp.float32)
    aug = aug.at[:R, emb_lane0:emb_lane0 + D].set(emb_table.astype(jnp.float32))
    aug = aug.at[:R, bias_lane].set(bias_table.astype(jnp.float32).reshape(R))
    hi = aug.astype(jnp.bfloat16)
    rem = aug - hi.astype(jnp.float32)
    mid = rem.astype(jnp.bfloat16)
    lo = (rem - mid.astype(jnp.float32)).astype(jnp.bfloat16)
    return jnp.stack([hi, mid, lo], axis=0)            # (3, R_pad, width) bf16


def build_tables(user_table, item_table, user_bias_table, item_bias_table):
    """One-time layout transform — call once per parameter update, not per step."""
    D = int(user_table.shape[1])
    C, _, _, ents = _layout(D)
    u_ent, p_ent, n_ent = ents
    user_planes = _make_planes(user_table, user_bias_table, C, u_ent[0], u_ent[1])
    item_pos_planes = _make_planes(item_table, item_bias_table, C, p_ent[0], p_ent[1])
    if (n_ent[0], n_ent[1]) == (p_ent[0], p_ent[1]):
        item_neg_planes = item_pos_planes              # identical placement (fallback)
    else:
        item_neg_planes = _make_planes(item_table, item_bias_table, C,
                                       n_ent[0], n_ent[1])
    return user_planes, item_pos_planes, item_neg_planes


def _bpr_kernel(idx_ref, u_tab_ref, p_tab_ref, n_tab_ref, out_ref, *,
                bias_lanes, out_offsets, packed):
    """One grid step = TB batch rows.

    idx_ref   : (TB, 3)     int32  [user, pos_item, neg_item] row ids
    *_tab_ref : (3, R, C)   bf16   resident hi/mid/lo planes of the lane-placed
                                   [emb | bias | 0-pad] table
    out_ref   : (TB, OUT_C) f32    lane-dense output slab
    """
    tb = idx_ref.shape[0]
    c = u_tab_ref.shape[2]
    eps_sq = jnp.float32(1e-24)                       # (F.normalize eps=1e-12)**2
    col = jax.lax.broadcasted_iota(jnp.int32, (1, c), 1)
    idx = idx_ref[...]

    # Row-id iotas built once and shared between pos/neg (review: reuse iota).
    rid_u = jax.lax.broadcasted_iota(jnp.int32, (tb, u_tab_ref.shape[1]), 1)
    rid_i = jax.lax.broadcasted_iota(jnp.int32, (tb, p_tab_ref.shape[1]), 1)

    def slab(rid, idx_col, tab_ref, bias_lane):
        # Exact gather: 0/1 one-hot is exact in bf16; hi+mid+lo reconstructs the
        # f32 row, so 3 single-pass bf16 MXU matmuls (same pass count as
        # precision=HIGH) give ~2^-24-accurate rows deterministically.
        onehot = (rid == idx_col).astype(jnp.bfloat16)
        rows = jnp.dot(onehot, tab_ref[0], preferred_element_type=jnp.float32)
        rows = rows + jnp.dot(onehot, tab_ref[1], preferred_element_type=jnp.float32)
        rows = rows + jnp.dot(onehot, tab_ref[2], preferred_element_type=jnp.float32)
        # L2-normalize the embedding lanes; bias lane passes through unscaled.
        bias = jnp.where(col == bias_lane, rows, 0.0)
        emb = rows - bias                             # non-emb lanes already zero
        sq = jnp.sum(emb * emb, axis=-1, keepdims=True)
        inv = jax.lax.rsqrt(jnp.maximum(sq, eps_sq))  # == 1 / max(||x||, eps)
        return emb * inv + bias

    u = slab(rid_u, idx[:, 0:1], u_tab_ref, bias_lanes[0])
    p = slab(rid_i, idx[:, 1:2], p_tab_ref, bias_lanes[1])
    n = slab(rid_i, idx[:, 2:3], n_tab_ref, bias_lanes[2])

    if packed:
        out_ref[...] = u + p + n                      # disjoint lanes -> one store
    else:
        out_ref[:, out_offsets[0]:out_offsets[0] + c] = u
        out_ref[:, out_offsets[1]:out_offsets[1] + c] = p
        out_ref[:, out_offsets[2]:out_offsets[2] + c] = n


def mf_bpr_forward(user, pos_item, neg_item,
                   user_planes, item_pos_planes, item_neg_planes,
                   *, model_size, block_b=256):
    """Returns (user_emb, pos_item_emb, neg_item_emb,
                user_bias, pos_item_bias, neg_item_bias)."""
    B = int(user.shape[0])
    D = int(model_size)
    C, out_c, packed, ents = _layout(D)
    assert int(user_planes.shape[2]) == C, "tables built for a different model_size"
    bias_lanes = tuple(e[1] for e in ents)
    out_offsets = tuple(e[2] for e in ents)
    r_user = int(user_planes.shape[1])
    r_item = int(item_pos_planes.shape[1])

    # Tile size: fill the 256-row MXU M dimension whenever the batch allows it.
    TB = min(int(block_b), _round_up(max(B, 1), 16))
    B_pad = _round_up(B, TB)

    idx = jnp.stack([jnp.asarray(user, jnp.int32).reshape(-1),
                     jnp.asarray(pos_item, jnp.int32).reshape(-1),
                     jnp.asarray(neg_item, jnp.int32).reshape(-1)], axis=1)
    if B_pad != B:
        idx = jnp.pad(idx, ((0, B_pad - B), (0, 0)))   # padded rows gather row 0

    # ---- per-TensorCore VMEM budgeting (explicit vmem_limit) -------------------
    vmem_cap = _vmem_capacity_bytes()
    table_bytes = 2 * (user_planes.size + item_pos_planes.size
                       + item_neg_planes.size)          # bf16 planes
    # TODO(synk): beyond this budget switch to a scalar-prefetched, double-
    #             buffered per-row DMA gather (pattern P4) with tables in HBM.
    assert table_bytes <= vmem_cap // 2, (
        "resident embedding tables exceed the per-TensorCore VMEM budget")
    idx_block = _round_up(TB, 8) * 128 * 4
    out_block = TB * out_c * 4
    temp_bytes = 3 * TB * max(r_user, r_item) * 2 + 8 * TB * C * 4
    needed = table_bytes + 2 * (idx_block + out_block) + temp_bytes
    vmem_limit = int(min(max(2 * needed + (8 << 20), 32 << 20),
                         (vmem_cap * 9) // 10))

    kernel = functools.partial(_bpr_kernel, bias_lanes=bias_lanes,
                               out_offsets=out_offsets, packed=packed)

    def _invoke(table_mode):
        spec_kwargs = {} if table_mode is None else {"pipeline_mode": table_mode}
        table_spec = lambda arr: pl.BlockSpec(arr.shape, lambda i: (0, 0, 0),
                                              **spec_kwargs)
        out = pl.pallas_call(
            kernel,
            out_shape=jax.ShapeDtypeStruct((B_pad, out_c), jnp.float32),
            grid_spec=pltpu.PrefetchScalarGridSpec(
                num_scalar_prefetch=0,
                grid=(B_pad // TB,),
                in_specs=[pl.BlockSpec((TB, 3), lambda i: (i, 0)),
                          table_spec(user_planes),
                          table_spec(item_pos_planes),
                          table_spec(item_neg_planes)],
                out_specs=pl.BlockSpec((TB, out_c), lambda i: (i, 0)),
            ),
            compiler_params=pltpu.CompilerParams(
                dimension_semantics=("parallel",),      # batch tiles independent
                vmem_limit_bytes=vmem_limit),
        )(idx, user_planes, item_pos_planes, item_neg_planes)
        return jax.block_until_ready(out)

    try:
        # Resident tables have a constant index map -> single-buffer them.
        out = _invoke(pl.Buffered(buffer_count=1))
    except Exception:                       # pragma: no cover
        out = _invoke(None)                 # runtime without pipeline_mode support

    def pick(ent):
        emb_lane0, bias_lane, off = ent
        return (out[:B, off + emb_lane0: off + emb_lane0 + D],
                out[:B, off + bias_lane])

    (u_emb, u_b), (p_emb, p_b), (n_emb, n_b) = (pick(ents[0]), pick(ents[1]),
                                                pick(ents[2]))
    return u_emb, p_emb, n_emb, u_b, p_b, n_b


def _reference(user, pos_item, neg_item,
               user_table, item_table, user_bias_table, item_bias_table):
    def norm(x):
        return x / jnp.maximum(jnp.linalg.norm(x, axis=1, keepdims=True), 1e-12)
    ue = norm(user_table[user])
    pe = norm(item_table[pos_item])
    ne = norm(item_table[neg_item])
    ub = user_bias_table[user][:, 0]
    pb = item_bias_table[pos_item][:, 0]
    nb = item_bias_table[neg_item][:, 0]
    return ue, pe, ne, ub, pb, nb


def _run_case(*, model_size, num_users, num_items, batch, seed):
    key = jax.random.PRNGKey(seed)
    k_ue, k_ie, k_ub, k_ib, k_u, k_p, k_n = jax.random.split(key, 7)

    # Deterministic Embedding-like init; padding_idx=0 rows zeroed.
    user_table = jax.random.normal(k_ue, (num_users + 1, model_size), jnp.float32)
    item_table = jax.random.normal(k_ie, (num_items + 1, model_size), jnp.float32)
    user_bias_table = jax.random.normal(k_ub, (num_users + 1, 1), jnp.float32)
    item_bias_table = jax.random.normal(k_ib, (num_items + 1, 1), jnp.float32)
    user_table = user_table.at[0].set(0.0)
    item_table = item_table.at[0].set(0.0)
    user_bias_table = user_bias_table.at[0].set(0.0)
    item_bias_table = item_bias_table.at[0].set(0.0)

    user = jax.random.randint(k_u, (batch,), 0, num_users + 1, jnp.int32)
    pos_item = jax.random.randint(k_p, (batch,), 0, num_items + 1, jnp.int32)
    neg_item = jax.random.randint(k_n, (batch,), 0, num_items + 1, jnp.int32)

    # One-time layout transform (hoisted out of the per-step hot path).
    planes = build_tables(user_table, item_table,
                          user_bias_table, item_bias_table)

    outs = mf_bpr_forward(user, pos_item, neg_item, *planes,
                          model_size=model_size)
    outs = jax.block_until_ready(outs)

    refs = _reference(user, pos_item, neg_item,
                      user_table, item_table,
                      user_bias_table, item_bias_table)
    for o, r in zip(outs, refs):
        assert o.shape == r.shape, (o.shape, r.shape)
        err = float(jnp.max(jnp.abs(o - r)))
        assert jnp.allclose(o, r, atol=1e-5, rtol=1e-5), err


if __name__ == "__main__":
    # Case 1: model_size=32 -> packed single 128-lane output slab; batch not a
    # multiple of the tile (exercises the padding path).
    _run_case(model_size=32, num_users=50, num_items=40, batch=300, seed=0)
    # Case 2: model_size=48 -> 3*D+3 > 128, exercises the 3*C fallback layout
    # and a small batch that is not a multiple of 16.
    _run_case(model_size=48, num_users=30, num_items=25, batch=37, seed=1)
    print("KERNEL_OK")
</pallas_src>

<mosaic_0001>
module attributes {stable_mosaic.version = 11 : i64} {
  func.func @_bpr_kernel(%arg0: i32, %arg1: memref<256x3xi32, #tpu.memory_space<vmem>>, %arg2: memref<3x128x128xbf16, #tpu.memory_space<vmem>>, %arg3: memref<3x128x128xbf16, #tpu.memory_space<vmem>>, %arg4: memref<3x128x128xbf16, #tpu.memory_space<vmem>>, %arg5: memref<256x128xf32, #tpu.memory_space<vmem>>) attributes {dimension_semantics = [#tpu.dimension_semantics<parallel>], iteration_bounds = array<i64: 2>, scalar_prefetch = 0 : i64, scratch_operands = 0 : i64, tpu.core_type = #tpu.core_type<tc>, window_params = [{transform_indices = @transform_0, window_bounds = array<i64: 256, 3>}, {pipeline_mode = #tpu.pipeline_mode<synchronous>, transform_indices = @transform_1, window_bounds = array<i64: 3, 128, 128>}, {pipeline_mode = #tpu.pipeline_mode<synchronous>, transform_indices = @transform_2, window_bounds = array<i64: 3, 128, 128>}, {pipeline_mode = #tpu.pipeline_mode<synchronous>, transform_indices = @transform_3, window_bounds = array<i64: 3, 128, 128>}, {transform_indices = @transform_4, window_bounds = array<i64: 256, 128>}]} {
    %0 = tpu.iota {dimensions = array<i32: 1>} : vector<1x128xi32>
    %c0 = arith.constant 0 : index
    %c0_0 = arith.constant 0 : index
    %1 = vector.load %arg1[%c0, %c0_0] : memref<256x3xi32, #tpu.memory_space<vmem>>, vector<256x3xi32>
    %2 = tpu.iota {dimensions = array<i32: 1>} : vector<256x128xi32>
    %3 = tpu.iota {dimensions = array<i32: 1>} : vector<256x128xi32>
    %4 = vector.extract_strided_slice %1 {offsets = [0, 0], sizes = [256, 1], strides = [1, 1]} : vector<256x3xi32> to vector<256x1xi32>
    %5 = vector.broadcast %4 : vector<256x1xi32> to vector<256x128xi32>
    %6 = arith.cmpi eq, %2, %5 : vector<256x128xi32>
    %7 = arith.extui %6 : vector<256x128xi1> to vector<256x128xi32>
    %8 = arith.sitofp %7 : vector<256x128xi32> to vector<256x128xf32>
    %9 = arith.truncf %8 : vector<256x128xf32> to vector<256x128xbf16>
    %c0_1 = arith.constant 0 : index
    %c0_2 = arith.constant 0 : index
    %c0_3 = arith.constant 0 : index
    %10 = vector.load %arg2[%c0_1, %c0_2, %c0_3] : memref<3x128x128xbf16, #tpu.memory_space<vmem>>, vector<1x128x128xbf16>
    %11 = vector.shape_cast %10 : vector<1x128x128xbf16> to vector<128x128xbf16>
    %cst = arith.constant dense<0.000000e+00> : vector<256x128xf32>
    %12 = tpu.matmul %9, %11, %cst {dimension_numbers = #tpu.dot_dimension_numbers<[1], [0], [0], [1], [0, 0, 1, 1], [], []>} : vector<256x128xbf16>, vector<128x128xbf16>, vector<256x128xf32> -> vector<256x128xf32>
    %c1 = arith.constant 1 : index
    %c0_4 = arith.constant 0 : index
    %c0_5 = arith.constant 0 : index
    %13 = vector.load %arg2[%c1, %c0_4, %c0_5] : memref<3x128x128xbf16, #tpu.memory_space<vmem>>, vector<1x128x128xbf16>
    %14 = vector.shape_cast %13 : vector<1x128x128xbf16> to vector<128x128xbf16>
    %cst_6 = arith.constant dense<0.000000e+00> : vector<256x128xf32>
    %15 = tpu.matmul %9, %14, %cst_6 {dimension_numbers = #tpu.dot_dimension_numbers<[1], [0], [0], [1], [0, 0, 1, 1], [], []>} : vector<256x128xbf16>, vector<128x128xbf16>, vector<256x128xf32> -> vector<256x128xf32>
    %16 = arith.addf %12, %15 : vector<256x128xf32>
    %c2 = arith.constant 2 : index
    %c0_7 = arith.constant 0 : index
    %c0_8 = arith.constant 0 : index
    %17 = vector.load %arg2[%c2, %c0_7, %c0_8] : memref<3x128x128xbf16, #tpu.memory_space<vmem>>, vector<1x128x128xbf16>
    %18 = vector.shape_cast %17 : vector<1x128x128xbf16> to vector<128x128xbf16>
    %cst_9 = arith.constant dense<0.000000e+00> : vector<256x128xf32>
    %19 = tpu.matmul %9, %18, %cst_9 {dimension_numbers = #tpu.dot_dimension_numbers<[1], [0], [0], [1], [0, 0, 1, 1], [], []>} : vector<256x128xbf16>, vector<128x128xbf16>, vector<256x128xf32> -> vector<256x128xf32>
    %20 = arith.addf %16, %19 : vector<256x128xf32>
    %c96_i32 = arith.constant 96 : i32
    %21 = vector.broadcast %c96_i32 : i32 to vector<1x128xi32>
    %22 = arith.cmpi eq, %0, %21 : vector<1x128xi32>
    %cst_10 = arith.constant 0.000000e+00 : f32
    %23 = vector.shape_cast %22 : vector<1x128xi1> to vector<1x128xi1>
    %24 = vector.broadcast %23 : vector<1x128xi1> to vector<256x128xi1>
    %25 = vector.broadcast %cst_10 : f32 to vector<256x128xf32>
    %26 = arith.select %24, %20, %25 : vector<256x128xi1>, vector<256x128xf32>
    %27 = arith.subf %20, %26 : vector<256x128xf32>
    %28 = arith.mulf %27, %27 : vector<256x128xf32>
    %cst_11 = arith.constant dense<0.000000e+00> : vector<256xf32>
    %29 = vector.multi_reduction <add>, %28, %cst_11 [1] : vector<256x128xf32> to vector<256xf32>
    %30 = vector.shape_cast %29 : vector<256xf32> to vector<256x1xf32>
    %cst_12 = arith.constant 1.000000e-24 : f32
    %31 = vector.broadcast %cst_12 : f32 to vector<256x1xf32>
    %32 = arith.maximumf %30, %31 : vector<256x1xf32>
    %33 = math.rsqrt %32 : vector<256x1xf32>
    %34 = vector.broadcast %33 : vector<256x1xf32> to vector<256x128xf32>
    %35 = arith.mulf %27, %34 : vector<256x128xf32>
    %36 = arith.addf %35, %26 : vector<256x128xf32>
    %37 = vector.extract_strided_slice %1 {offsets = [0, 1], sizes = [256, 1], strides = [1, 1]} : vector<256x3xi32> to vector<256x1xi32>
    %38 = vector.broadcast %37 : vector<256x1xi32> to vector<256x128xi32>
    %39 = arith.cmpi eq, %3, %38 : vector<256x128xi32>
    %40 = arith.extui %39 : vector<256x128xi1> to vector<256x128xi32>
    %41 = arith.sitofp %40 : vector<256x128xi32> to vector<256x128xf32>
    %42 = arith.truncf %41 : vector<256x128xf32> to vector<256x128xbf16>
    %c0_13 = arith.constant 0 : index
    %c0_14 = arith.constant 0 : index
    %c0_15 = arith.constant 0 : index
    %43 = vector.load %arg3[%c0_13, %c0_14, %c0_15] : memref<3x128x128xbf16, #tpu.memory_space<vmem>>, vector<1x128x128xbf16>
    %44 = vector.shape_cast %43 : vector<1x128x128xbf16> to vector<128x128xbf16>
    %cst_16 = arith.constant dense<0.000000e+00> : vector<256x128xf32>
    %45 = tpu.matmul %42, %44, %cst_16 {dimension_numbers = #tpu.dot_dimension_numbers<[1], [0], [0], [1], [0, 0, 1, 1], [], []>} : vector<256x128xbf16>, vector<128x128xbf16>, vector<256x128xf32> -> vector<256x128xf32>
    %c1_17 = arith.constant 1 : index
    %c0_18 = arith.constant 0 : index
    %c0_19 = arith.constant 0 : index
    %46 = vector.load %arg3[%c1_17, %c0_18, %c0_19] : memref<3x128x128xbf16, #tpu.memory_space<vmem>>, vector<1x128x128xbf16>
    %47 = vector.shape_cast %46 : vector<1x128x128xbf16> to vector<128x128xbf16>
    %cst_20 = arith.constant dense<0.000000e+00> : vector<256x128xf32>
    %48 = tpu.matmul %42, %47, %cst_20 {dimension_numbers = #tpu.dot_dimension_numbers<[1], [0], [0], [1], [0, 0, 1, 1], [], []>} : vector<256x128xbf16>, vector<128x128xbf16>, vector<256x128xf32> -> vector<256x128xf32>
    %49 = arith.addf %45, %48 : vector<256x128xf32>
    %c2_21 = arith.constant 2 : index
    %c0_22 = arith.constant 0 : index
    %c0_23 = arith.constant 0 : index
    %50 = vector.load %arg3[%c2_21, %c0_22, %c0_23] : memref<3x128x128xbf16, #tpu.memory_space<vmem>>, vector<1x128x128xbf16>
    %51 = vector.shape_cast %50 : vector<1x128x128xbf16> to vector<128x128xbf16>
    %cst_24 = arith.constant dense<0.000000e+00> : vector<256x128xf32>
    %52 = tpu.matmul %42, %51, %cst_24 {dimension_numbers = #tpu.dot_dimension_numbers<[1], [0], [0], [1], [0, 0, 1, 1], [], []>} : vector<256x128xbf16>, vector<128x128xbf16>, vector<256x128xf32> -> vector<256x128xf32>
    %53 = arith.addf %49, %52 : vector<256x128xf32>
    %c97_i32 = arith.constant 97 : i32
    %54 = vector.broadcast %c97_i32 : i32 to vector<1x128xi32>
    %55 = arith.cmpi eq, %0, %54 : vector<1x128xi32>
    %cst_25 = arith.constant 0.000000e+00 : f32
    %56 = vector.shape_cast %55 : vector<1x128xi1> to vector<1x128xi1>
    %57 = vector.broadcast %56 : vector<1x128xi1> to vector<256x128xi1>
    %58 = vector.broadcast %cst_25 : f32 to vector<256x128xf32>
    %59 = arith.select %57, %53, %58 : vector<256x128xi1>, vector<256x128xf32>
    %60 = arith.subf %53, %59 : vector<256x128xf32>
    %61 = arith.mulf %60, %60 : vector<256x128xf32>
    %cst_26 = arith.constant dense<0.000000e+00> : vector<256xf32>
    %62 = vector.multi_reduction <add>, %61, %cst_26 [1] : vector<256x128xf32> to vector<256xf32>
    %63 = vector.shape_cast %62 : vector<256xf32> to vector<256x1xf32>
    %cst_27 = arith.constant 1.000000e-24 : f32
    %64 = vector.broadcast %cst_27 : f32 to vector<256x1xf32>
    %65 = arith.maximumf %63, %64 : vector<256x1xf32>
    %66 = math.rsqrt %65 : vector<256x1xf32>
    %67 = vector.broadcast %66 : vector<256x1xf32> to vector<256x128xf32>
    %68 = arith.mulf %60, %67 : vector<256x128xf32>
    %69 = arith.addf %68, %59 : vector<256x128xf32>
    %70 = vector.extract_strided_slice %1 {offsets = [0, 2], sizes = [256, 1], strides = [1, 1]} : vector<256x3xi32> to vector<256x1xi32>
    %71 = vector.broadcast %70 : vector<256x1xi32> to vector<256x128xi32>
    %72 = arith.cmpi eq, %3, %71 : vector<256x128xi32>
    %73 = arith.extui %72 : vector<256x128xi1> to vector<256x128xi32>
    %74 = arith.sitofp %73 : vector<256x128xi32> to vector<256x128xf32>
    %75 = arith.truncf %74 : vector<256x128xf32> to vector<256x128xbf16>
    %c0_28 = arith.constant 0 : index
    %c0_29 = arith.constant 0 : index
    %c0_30 = arith.constant 0 : index
    %76 = vector.load %arg4[%c0_28, %c0_29, %c0_30] : memref<3x128x128xbf16, #tpu.memory_space<vmem>>, vector<1x128x128xbf16>
    %77 = vector.shape_cast %76 : vector<1x128x128xbf16> to vector<128x128xbf16>
    %cst_31 = arith.constant dense<0.000000e+00> : vector<256x128xf32>
    %78 = tpu.matmul %75, %77, %cst_31 {dimension_numbers = #tpu.dot_dimension_numbers<[1], [0], [0], [1], [0, 0, 1, 1], [], []>} : vector<256x128xbf16>, vector<128x128xbf16>, vector<256x128xf32> -> vector<256x128xf32>
    %c1_32 = arith.constant 1 : index
    %c0_33 = arith.constant 0 : index
    %c0_34 = arith.constant 0 : index
    %79 = vector.load %arg4[%c1_32, %c0_33, %c0_34] : memref<3x128x128xbf16, #tpu.memory_space<vmem>>, vector<1x128x128xbf16>
    %80 = vector.shape_cast %79 : vector<1x128x128xbf16> to vector<128x128xbf16>
    %cst_35 = arith.constant dense<0.000000e+00> : vector<256x128xf32>
    %81 = tpu.matmul %75, %80, %cst_35 {dimension_numbers = #tpu.dot_dimension_numbers<[1], [0], [0], [1], [0, 0, 1, 1], [], []>} : vector<256x128xbf16>, vector<128x128xbf16>, vector<256x128xf32> -> vector<256x128xf32>
    %82 = arith.addf %78, %81 : vector<256x128xf32>
    %c2_36 = arith.constant 2 : index
    %c0_37 = arith.constant 0 : index
    %c0_38 = arith.constant 0 : index
    %83 = vector.load %arg4[%c2_36, %c0_37, %c0_38] : memref<3x128x128xbf16, #tpu.memory_space<vmem>>, vector<1x128x128xbf16>
    %84 = vector.shape_cast %83 : vector<1x128x128xbf16> to vector<128x128xbf16>
    %cst_39 = arith.constant dense<0.000000e+00> : vector<256x128xf32>
    %85 = tpu.matmul %75, %84, %cst_39 {dimension_numbers = #tpu.dot_dimension_numbers<[1], [0], [0], [1], [0, 0, 1, 1], [], []>} : vector<256x128xbf16>, vector<128x128xbf16>, vector<256x128xf32> -> vector<256x128xf32>
    %86 = arith.addf %82, %85 : vector<256x128xf32>
    %c98_i32 = arith.constant 98 : i32
    %87 = vector.broadcast %c98_i32 : i32 to vector<1x128xi32>
    %88 = arith.cmpi eq, %0, %87 : vector<1x128xi32>
    %cst_40 = arith.constant 0.000000e+00 : f32
    %89 = vector.shape_cast %88 : vector<1x128xi1> to vector<1x128xi1>
    %90 = vector.broadcast %89 : vector<1x128xi1> to vector<256x128xi1>
    %91 = vector.broadcast %cst_40 : f32 to vector<256x128xf32>
    %92 = arith.select %90, %86, %91 : vector<256x128xi1>, vector<256x128xf32>
    %93 = arith.subf %86, %92 : vector<256x128xf32>
    %94 = arith.mulf %93, %93 : vector<256x128xf32>
    %cst_41 = arith.constant dense<0.000000e+00> : vector<256xf32>
    %95 = vector.multi_reduction <add>, %94, %cst_41 [1] : vector<256x128xf32> to vector<256xf32>
    %96 = vector.shape_cast %95 : vector<256xf32> to vector<256x1xf32>
    %cst_42 = arith.constant 1.000000e-24 : f32
    %97 = vector.broadcast %cst_42 : f32 to vector<256x1xf32>
    %98 = arith.maximumf %96, %97 : vector<256x1xf32>
    %99 = math.rsqrt %98 : vector<256x1xf32>
    %100 = vector.broadcast %99 : vector<256x1xf32> to vector<256x128xf32>
    %101 = arith.mulf %93, %100 : vector<256x128xf32>
    %102 = arith.addf %101, %92 : vector<256x128xf32>
    %103 = arith.addf %36, %69 : vector<256x128xf32>
    %104 = arith.addf %103, %102 : vector<256x128xf32>
    %c0_43 = arith.constant 0 : index
    %c0_44 = arith.constant 0 : index
    %105 = vector.load %arg5[%c0_43, %c0_44] : memref<256x128xf32, #tpu.memory_space<vmem>>, vector<256x128xf32>
    tpu.vector_store %arg5[%c0_43, %c0_44], %104 {strides = array<i32>} : memref<256x128xf32, #tpu.memory_space<vmem>>, vector<256x128xf32>,
    return
  }
  func.func @transform_0(%arg0: i32) -> (i32, i32) {
    %c0_i32 = arith.constant 0 : i32
    %c0_i32_0 = arith.constant 0 : i32
    return %arg0, %c0_i32 : i32, i32
  }
  func.func @transform_1(%arg0: i32) -> (i32, i32, i32) {
    %c0_i32 = arith.constant 0 : i32
    %c0_i32_0 = arith.constant 0 : i32
    %c0_i32_1 = arith.constant 0 : i32
    %c0_i32_2 = arith.constant 0 : i32
    return %c0_i32, %c0_i32_0, %c0_i32_1 : i32, i32, i32
  }
  func.func @transform_2(%arg0: i32) -> (i32, i32, i32) {
    %c0_i32 = arith.constant 0 : i32
    %c0_i32_0 = arith.constant 0 : i32
    %c0_i32_1 = arith.constant 0 : i32
    %c0_i32_2 = arith.constant 0 : i32
    return %c0_i32, %c0_i32_0, %c0_i32_1 : i32, i32, i32
  }
  func.func @transform_3(%arg0: i32) -> (i32, i32, i32) {
    %c0_i32 = arith.constant 0 : i32
    %c0_i32_0 = arith.constant 0 : i32
    %c0_i32_1 = arith.constant 0 : i32
    %c0_i32_2 = arith.constant 0 : i32
    return %c0_i32, %c0_i32_0, %c0_i32_1 : i32, i32, i32
  }
  func.func @transform_4(%arg0: i32) -> (i32, i32) {
    %c0_i32 = arith.constant 0 : i32
    %c0_i32_0 = arith.constant 0 : i32
    return %arg0, %c0_i32 : i32, i32
  }
}

module attributes {stable_mosaic.version = 11 : i64} {
  func.func @_bpr_kernel(%arg0: i32, %arg1: memref<256x3xi32, #tpu.memory_space<vmem>>, %arg2: memref<3x128x128xbf16, #tpu.memory_space<vmem>>, %arg3: memref<3x128x128xbf16, #tpu.memory_space<vmem>>, %arg4: memref<3x128x128xbf16, #tpu.memory_space<vmem>>, %arg5: memref<256x128xf32, #tpu.memory_space<vmem>>) attributes {dimension_semantics = [#tpu.dimension_semantics<parallel>], iteration_bounds = array<i64: 2>, scalar_prefetch = 0 : i64, scratch_operands = 0 : i64, tpu.core_type = #tpu.core_type<tc>, window_params = [{transform_indices = @transform_0, window_bounds = array<i64: 256, 3>}, {pipeline_mode = #tpu.pipeline_mode<synchronous>, transform_indices = @transform_1, window_bounds = array<i64: 3, 128, 128>}, {pipeline_mode = #tpu.pipeline_mode<synchronous>, transform_indices = @transform_2, window_bounds = array<i64: 3, 128, 128>}, {pipeline_mode = #tpu.pipeline_mode<synchronous>, transform_indices = @transform_3, window_bounds = array<i64: 3, 128, 128>}, {transform_indices = @transform_4, window_bounds = array<i64: 256, 128>}]} {
    %0 = tpu.iota {dimensions = array<i32: 1>} : vector<1x128xi32>
    %c0 = arith.constant 0 : index
    %c0_0 = arith.constant 0 : index
    %1 = vector.load %arg1[%c0, %c0_0] : memref<256x3xi32, #tpu.memory_space<vmem>>, vector<256x3xi32>
    %2 = tpu.iota {dimensions = array<i32: 1>} : vector<256x128xi32>
    %3 = tpu.iota {dimensions = array<i32: 1>} : vector<256x128xi32>
    %4 = vector.extract_strided_slice %1 {offsets = [0, 0], sizes = [256, 1], strides = [1, 1]} : vector<256x3xi32> to vector<256x1xi32>
    %5 = vector.broadcast %4 : vector<256x1xi32> to vector<256x128xi32>
    %6 = arith.cmpi eq, %2, %5 : vector<256x128xi32>
    %7 = arith.extui %6 : vector<256x128xi1> to vector<256x128xi32>
    %8 = arith.sitofp %7 : vector<256x128xi32> to vector<256x128xf32>
    %9 = arith.truncf %8 : vector<256x128xf32> to vector<256x128xbf16>
    %c0_1 = arith.constant 0 : index
    %c0_2 = arith.constant 0 : index
    %c0_3 = arith.constant 0 : index
    %10 = vector.load %arg2[%c0_1, %c0_2, %c0_3] : memref<3x128x128xbf16, #tpu.memory_space<vmem>>, vector<1x128x128xbf16>
    %11 = vector.shape_cast %10 : vector<1x128x128xbf16> to vector<128x128xbf16>
    %cst = arith.constant dense<0.000000e+00> : vector<256x128xf32>
    %12 = tpu.matmul %9, %11, %cst {dimension_numbers = #tpu.dot_dimension_numbers<[1], [0], [0], [1], [0, 0, 1, 1], [], []>} : vector<256x128xbf16>, vector<128x128xbf16>, vector<256x128xf32> -> vector<256x128xf32>
    %c1 = arith.constant 1 : index
    %c0_4 = arith.constant 0 : index
    %c0_5 = arith.constant 0 : index
    %13 = vector.load %arg2[%c1, %c0_4, %c0_5] : memref<3x128x128xbf16, #tpu.memory_space<vmem>>, vector<1x128x128xbf16>
    %14 = vector.shape_cast %13 : vector<1x128x128xbf16> to vector<128x128xbf16>
    %cst_6 = arith.constant dense<0.000000e+00> : vector<256x128xf32>
    %15 = tpu.matmul %9, %14, %cst_6 {dimension_numbers = #tpu.dot_dimension_numbers<[1], [0], [0], [1], [0, 0, 1, 1], [], []>} : vector<256x128xbf16>, vector<128x128xbf16>, vector<256x128xf32> -> vector<256x128xf32>
    %16 = arith.addf %12, %15 : vector<256x128xf32>
    %c2 = arith.constant 2 : index
    %c0_7 = arith.constant 0 : index
    %c0_8 = arith.constant 0 : index
    %17 = vector.load %arg2[%c2, %c0_7, %c0_8] : memref<3x128x128xbf16, #tpu.memory_space<vmem>>, vector<1x128x128xbf16>
    %18 = vector.shape_cast %17 : vector<1x128x128xbf16> to vector<128x128xbf16>
    %cst_9 = arith.constant dense<0.000000e+00> : vector<256x128xf32>
    %19 = tpu.matmul %9, %18, %cst_9 {dimension_numbers = #tpu.dot_dimension_numbers<[1], [0], [0], [1], [0, 0, 1, 1], [], []>} : vector<256x128xbf16>, vector<128x128xbf16>, vector<256x128xf32> -> vector<256x128xf32>
    %20 = arith.addf %16, %19 : vector<256x128xf32>
    %c96_i32 = arith.constant 96 : i32
    %21 = vector.broadcast %c96_i32 : i32 to vector<1x128xi32>
    %22 = arith.cmpi eq, %0, %21 : vector<1x128xi32>
    %cst_10 = arith.constant 0.000000e+00 : f32
    %23 = vector.shape_cast %22 : vector<1x128xi1> to vector<1x128xi1>
    %24 = vector.broadcast %23 : vector<1x128xi1> to vector<256x128xi1>
    %25 = vector.broadcast %cst_10 : f32 to vector<256x128xf32>
    %26 = arith.select %24, %20, %25 : vector<256x128xi1>, vector<256x128xf32>
    %27 = arith.subf %20, %26 : vector<256x128xf32>
    %28 = arith.mulf %27, %27 : vector<256x128xf32>
    %cst_11 = arith.constant dense<0.000000e+00> : vector<256xf32>
    %29 = vector.multi_reduction <add>, %28, %cst_11 [1] : vector<256x128xf32> to vector<256xf32>
    %30 = vector.shape_cast %29 : vector<256xf32> to vector<256x1xf32>
    %cst_12 = arith.constant 1.000000e-24 : f32
    %31 = vector.broadcast %cst_12 : f32 to vector<256x1xf32>
    %32 = arith.maximumf %30, %31 : vector<256x1xf32>
    %33 = math.rsqrt %32 : vector<256x1xf32>
    %34 = vector.broadcast %33 : vector<256x1xf32> to vector<256x128xf32>
    %35 = arith.mulf %27, %34 : vector<256x128xf32>
    %36 = arith.addf %35, %26 : vector<256x128xf32>
    %37 = vector.extract_strided_slice %1 {offsets = [0, 1], sizes = [256, 1], strides = [1, 1]} : vector<256x3xi32> to vector<256x1xi32>
    %38 = vector.broadcast %37 : vector<256x1xi32> to vector<256x128xi32>
    %39 = arith.cmpi eq, %3, %38 : vector<256x128xi32>
    %40 = arith.extui %39 : vector<256x128xi1> to vector<256x128xi32>
    %41 = arith.sitofp %40 : vector<256x128xi32> to vector<256x128xf32>
    %42 = arith.truncf %41 : vector<256x128xf32> to vector<256x128xbf16>
    %c0_13 = arith.constant 0 : index
    %c0_14 = arith.constant 0 : index
    %c0_15 = arith.constant 0 : index
    %43 = vector.load %arg3[%c0_13, %c0_14, %c0_15] : memref<3x128x128xbf16, #tpu.memory_space<vmem>>, vector<1x128x128xbf16>
    %44 = vector.shape_cast %43 : vector<1x128x128xbf16> to vector<128x128xbf16>
    %cst_16 = arith.constant dense<0.000000e+00> : vector<256x128xf32>
    %45 = tpu.matmul %42, %44, %cst_16 {dimension_numbers = #tpu.dot_dimension_numbers<[1], [0], [0], [1], [0, 0, 1, 1], [], []>} : vector<256x128xbf16>, vector<128x128xbf16>, vector<256x128xf32> -> vector<256x128xf32>
    %c1_17 = arith.constant 1 : index
    %c0_18 = arith.constant 0 : index
    %c0_19 = arith.constant 0 : index
    %46 = vector.load %arg3[%c1_17, %c0_18, %c0_19] : memref<3x128x128xbf16, #tpu.memory_space<vmem>>, vector<1x128x128xbf16>
    %47 = vector.shape_cast %46 : vector<1x128x128xbf16> to vector<128x128xbf16>
    %cst_20 = arith.constant dense<0.000000e+00> : vector<256x128xf32>
    %48 = tpu.matmul %42, %47, %cst_20 {dimension_numbers = #tpu.dot_dimension_numbers<[1], [0], [0], [1], [0, 0, 1, 1], [], []>} : vector<256x128xbf16>, vector<128x128xbf16>, vector<256x128xf32> -> vector<256x128xf32>
    %49 = arith.addf %45, %48 : vector<256x128xf32>
    %c2_21 = arith.constant 2 : index
    %c0_22 = arith.constant 0 : index
    %c0_23 = arith.constant 0 : index
    %50 = vector.load %arg3[%c2_21, %c0_22, %c0_23] : memref<3x128x128xbf16, #tpu.memory_space<vmem>>, vector<1x128x128xbf16>
    %51 = vector.shape_cast %50 : vector<1x128x128xbf16> to vector<128x128xbf16>
    %cst_24 = arith.constant dense<0.000000e+00> : vector<256x128xf32>
    %52 = tpu.matmul %42, %51, %cst_24 {dimension_numbers = #tpu.dot_dimension_numbers<[1], [0], [0], [1], [0, 0, 1, 1], [], []>} : vector<256x128xbf16>, vector<128x128xbf16>, vector<256x128xf32> -> vector<256x128xf32>
    %53 = arith.addf %49, %52 : vector<256x128xf32>
    %c97_i32 = arith.constant 97 : i32
    %54 = vector.broadcast %c97_i32 : i32 to vector<1x128xi32>
    %55 = arith.cmpi eq, %0, %54 : vector<1x128xi32>
    %cst_25 = arith.constant 0.000000e+00 : f32
    %56 = vector.shape_cast %55 : vector<1x128xi1> to vector<1x128xi1>
    %57 = vector.broadcast %56 : vector<1x128xi1> to vector<256x128xi1>
    %58 = vector.broadcast %cst_25 : f32 to vector<256x128xf32>
    %59 = arith.select %57, %53, %58 : vector<256x128xi1>, vector<256x128xf32>
    %60 = arith.subf %53, %59 : vector<256x128xf32>
    %61 = arith.mulf %60, %60 : vector<256x128xf32>
    %cst_26 = arith.constant dense<0.000000e+00> : vector<256xf32>
    %62 = vector.multi_reduction <add>, %61, %cst_26 [1] : vector<256x128xf32> to vector<256xf32>
    %63 = vector.shape_cast %62 : vector<256xf32> to vector<256x1xf32>
    %cst_27 = arith.constant 1.000000e-24 : f32
    %64 = vector.broadcast %cst_27 : f32 to vector<256x1xf32>
    %65 = arith.maximumf %63, %64 : vector<256x1xf32>
    %66 = math.rsqrt %65 : vector<256x1xf32>
    %67 = vector.broadcast %66 : vector<256x1xf32> to vector<256x128xf32>
    %68 = arith.mulf %60, %67 : vector<256x128xf32>
    %69 = arith.addf %68, %59 : vector<256x128xf32>
    %70 = vector.extract_strided_slice %1 {offsets = [0, 2], sizes = [256, 1], strides = [1, 1]} : vector<256x3xi32> to vector<256x1xi32>
    %71 = vector.broadcast %70 : vector<256x1xi32> to vector<256x128xi32>
    %72 = arith.cmpi eq, %3, %71 : vector<256x128xi32>
    %73 = arith.extui %72 : vector<256x128xi1> to vector<256x128xi32>
    %74 = arith.sitofp %73 : vector<256x128xi32> to vector<256x128xf32>
    %75 = arith.truncf %74 : vector<256x128xf32> to vector<256x128xbf16>
    %c0_28 = arith.constant 0 : index
    %c0_29 = arith.constant 0 : index
    %c0_30 = arith.constant 0 : index
    %76 = vector.load %arg4[%c0_28, %c0_29, %c0_30] : memref<3x128x128xbf16, #tpu.memory_space<vmem>>, vector<1x128x128xbf16>
    %77 = vector.shape_cast %76 : vector<1x128x128xbf16> to vector<128x128xbf16>
    %cst_31 = arith.constant dense<0.000000e+00> : vector<256x128xf32>
    %78 = tpu.matmul %75, %77, %cst_31 {dimension_numbers = #tpu.dot_dimension_numbers<[1], [0], [0], [1], [0, 0, 1, 1], [], []>} : vector<256x128xbf16>, vector<128x128xbf16>, vector<256x128xf32> -> vector<256x128xf32>
    %c1_32 = arith.constant 1 : index
    %c0_33 = arith.constant 0 : index
    %c0_34 = arith.constant 0 : index
    %79 = vector.load %arg4[%c1_32, %c0_33, %c0_34] : memref<3x128x128xbf16, #tpu.memory_space<vmem>>, vector<1x128x128xbf16>
    %80 = vector.shape_cast %79 : vector<1x128x128xbf16> to vector<128x128xbf16>
    %cst_35 = arith.constant dense<0.000000e+00> : vector<256x128xf32>
    %81 = tpu.matmul %75, %80, %cst_35 {dimension_numbers = #tpu.dot_dimension_numbers<[1], [0], [0], [1], [0, 0, 1, 1], [], []>} : vector<256x128xbf16>, vector<128x128xbf16>, vector<256x128xf32> -> vector<256x128xf32>
    %82 = arith.addf %78, %81 : vector<256x128xf32>
    %c2_36 = arith.constant 2 : index
    %c0_37 = arith.constant 0 : index
    %c0_38 = arith.constant 0 : index
    %83 = vector.load %arg4[%c2_36, %c0_37, %c0_38] : memref<3x128x128xbf16, #tpu.memory_space<vmem>>, vector<1x128x128xbf16>
    %84 = vector.shape_cast %83 : vector<1x128x128xbf16> to vector<128x128xbf16>
    %cst_39 = arith.constant dense<0.000000e+00> : vector<256x128xf32>
    %85 = tpu.matmul %75, %84, %cst_39 {dimension_numbers = #tpu.dot_dimension_numbers<[1], [0], [0], [1], [0, 0, 1, 1], [], []>} : vector<256x128xbf16>, vector<128x128xbf16>, vector<256x128xf32> -> vector<256x128xf32>
    %86 = arith.addf %82, %85 : vector<256x128xf32>
    %c98_i32 = arith.constant 98 : i32
    %87 = vector.broadcast %c98_i32 : i32 to vector<1x128xi32>
    %88 = arith.cmpi eq, %0, %87 : vector<1x128xi32>
    %cst_40 = arith.constant 0.000000e+00 : f32
    %89 = vector.shape_cast %88 : vector<1x128xi1> to vector<1x128xi1>
    %90 = vector.broadcast %89 : vector<1x128xi1> to vector<256x128xi1>
    %91 = vector.broadcast %cst_40 : f32 to vector<256x128xf32>
    %92 = arith.select %90, %86, %91 : vector<256x128xi1>, vector<256x128xf32>
    %93 = arith.subf %86, %92 : vector<256x128xf32>
    %94 = arith.mulf %93, %93 : vector<256x128xf32>
    %cst_41 = arith.constant dense<0.000000e+00> : vector<256xf32>
    %95 = vector.multi_reduction <add>, %94, %cst_41 [1] : vector<256x128xf32> to vector<256xf32>
    %96 = vector.shape_cast %95 : vector<256xf32> to vector<256x1xf32>
    %cst_42 = arith.constant 1.000000e-24 : f32
    %97 = vector.broadcast %cst_42 : f32 to vector<256x1xf32>
    %98 = arith.maximumf %96, %97 : vector<256x1xf32>
    %99 = math.rsqrt %98 : vector<256x1xf32>
    %100 = vector.broadcast %99 : vector<256x1xf32> to vector<256x128xf32>
    %101 = arith.mulf %93, %100 : vector<256x128xf32>
    %102 = arith.addf %101, %92 : vector<256x128xf32>
    %103 = arith.addf %36, %69 : vector<256x128xf32>
    %104 = arith.addf %103, %102 : vector<256x128xf32>
    %c0_43 = arith.constant 0 : index
    %c0_44 = arith.constant 0 : index
    %105 = vector.load %arg5[%c0_43, %c0_44] : memref<256x128xf32, #tpu.memory_space<vmem>>, vector<256x128xf32>
    tpu.vector_store %arg5[%c0_43, %c0_44], %104 {strides = array<i32>} : memref<256x128xf32, #tpu.memory_space<vmem>>, vector<256x128xf32>,
    return
  }
  func.func @transform_0(%arg0: i32) -> (i32, i32) {
    %c0_i32 = arith.constant 0 : i32
    %c0_i32_0 = arith.constant 0 : i32
    return %arg0, %c0_i32 : i32, i32
  }
  func.func @transform_1(%arg0: i32) -> (i32, i32, i32) {
    %c0_i32 = arith.constant 0 : i32
    %c0_i32_0 = arith.constant 0 : i32
    %c0_i32_1 = arith.constant 0 : i32
    %c0_i32_2 = arith.constant 0 : i32
    return %c0_i32, %c0_i32_0, %c0_i32_1 : i32, i32, i32
  }
  func.func @transform_2(%arg0: i32) -> (i32, i32, i32) {
    %c0_i32 = arith.constant 0 : i32
    %c0_i32_0 = arith.constant 0 : i32
    %c0_i32_1 = arith.constant 0 : i32
    %c0_i32_2 = arith.constant 0 : i32
    return %c0_i32, %c0_i32_0, %c0_i32_1 : i32, i32, i32
  }
  func.func @transform_3(%arg0: i32) -> (i32, i32, i32) {
    %c0_i32 = arith.constant 0 : i32
    %c0_i32_0 = arith.constant 0 : i32
    %c0_i32_1 = arith.constant 0 : i32
    %c0_i32_2 = arith.constant 0 : i32
    return %c0_i32, %c0_i32_0, %c0_i32_1 : i32, i32, i32
  }
  func.func @transform_4(%arg0: i32) -> (i32, i32) {
    %c0_i32 = arith.constant 0 : i32
    %c0_i32_0 = arith.constant 0 : i32
    return %arg0, %c0_i32 : i32, i32
  }
}

</mosaic_0001>

<llo_original>
// kernel: tpu_custom_call.1
$region0: #{tpu_custom_call.1}
  #allocation0 [shape = 'u32[]', space=smem, size = 0x4, offset = 0x4, fixed_abs, tag = 'smem constant byte address 0x4 - core index']
  #allocation1 [shape = 'u32[144,128]{1,0:T(1,128)}', space=vmem, size = 0x12000, scoped, tag = 'internal scratch']
  %s0 = inlined_call_operand.vmem [shape: s32[512,3], index: 0, kind: input, shape index: {}]
  %s1 = inlined_call_operand.vmem [shape: bf16[3,128,128], index: 1, kind: input, shape index: {}]
  %s2 = inlined_call_operand.vmem [shape: bf16[3,128,128], index: 2, kind: input, shape index: {}]
  %s3 = inlined_call_operand.hbm [shape: bf16[3,128,128], index: 3, kind: input, shape index: {}]
  %s4 = inlined_call_operand.hbm [shape: f32[512,128], index: 4, kind: output, shape index: {}]
  %s5 = sld [smem:[#allocation0]]
  $region53: #{tpu_custom_call.1} parent=0
    _
  %s7 = ssub.s32 1, %s5
  %s8 = scalar_select 0, %s7, %s5
  $region1: #{tpu_custom_call.1} parent=0
    #allocation2 [shape = 'u8[98304]{0}', space=vmem, size = 0x18000, scoped, tag = 'input window, operand 3, single buffered']
    #allocation3 [shape = 's32[2]{0}', space=sflag, size = 0x8, scoped, tag = 'scoped memory for tpu_custom_call.1']
    #allocation4 [shape = 's32[2]{0}', space=sflag, size = 0x8, scoped, tag = 'scoped memory for tpu_custom_call.1']
    #allocation5 [shape = 'u8[262144]{0}', space=vmem, size = 0x40000, scoped, tag = 'output window, operand 0']
    %9 = vsyncpa [#allocation3], 0
    %10 = vsyncpa [#allocation4], 0
    %s11 = scalar_lea.sflag [#allocation4], 1
    %12 = vsyncpa %s11, 0
    loop: start=0, step=1, limit=4
    $region2: #{tpu_custom_call.1} parent=1 // loop_pre_header
      _
    $region3: #{tpu_custom_call.1} parent=1 // loop_header
      %s14 = sphi 0, %s18
      %p15 = scmp.ge.s32.totalorder %s14, 4
      %s24 = sphi 0, %s26
      %s27 = sphi 0, %s24
      %s28 = sphi 0, %s27
      %s44 = sphi 0, %s28
      %s48 = sphi 0, %s48
      %s50 = sphi 0, %s48
      %s51 = sphi 0, %s50
      %s65 = sphi 0, %s51
      %s69 = sphi 0, %s69
      %s71 = sphi 0, %s69
      %s72 = sphi 0, %s71
      %s86 = sphi 0, %s72
      %s90 = sphi 0, %s90
      %s92 = sphi 0, %s90
      %s93 = sphi 0, %s92
      %s107 = sphi 0, %s93
      %s113 = sphi 0, %s115
      %s116 = sphi 0, %s113
      %s117 = sphi 0, %s116
      %s133 = sphi 0, %s117
    $region4: #{tpu_custom_call.1} parent=1 // loop_header_branch
      %17 = sbr.rel (%p15) target = $region8
    $region5: #{tpu_custom_call.1} parent=1 // loop_body
      %s19 = ssub.s32 %s14, 1
      %s20 = ssub.s32 %s14, 2
      %s21 = sadd.s32 %s14, 1
      %s22 = ssub.s32 %s14, %s21
      %p23 = scmp.eq.s32.totalorder %s22, 0
      %s25 = sadd.s32 %s24, 1
      %s26 = scalar_select %p23, %s24, %s25
      %p29 = pneg %p23
      %p30 = scmp.eq.s32.totalorder %s14, 1
      %p31 = por %p29, %p30
      %p32 = scmp.ne.s32.totalorder %s24, %s27
      %p33 = scmp.eq.s32.totalorder %s14, 0
      %p34 = por %p32, %p33
      %p35 = scmp.ne.s32.totalorder %s24, %s27
      %p36 = scmp.eq.s32.totalorder %s19, 1
      %p37 = por %p35, %p36
      %p38 = scmp.ne.s32.totalorder %s27, %s28
      %p39 = scmp.eq.s32.totalorder %s19, 0
      %p40 = por %p38, %p39
      %p41 = scmp.ne.s32.totalorder %s27, %s28
      %p42 = scmp.eq.s32.totalorder %s20, 1
      %p43 = por %p41, %p42
      %p45 = scmp.ne.s32.totalorder %s28, %s44
      %p46 = scmp.eq.s32.totalorder %s20, 0
      %p47 = por %p45, %p46
      %s49 = sadd.s32 %s48, 1
      %p52 = scmp.eq.s32.totalorder %s14, 1
      %p53 = scmp.ne.s32.totalorder %s48, %s50
      %p54 = scmp.eq.s32.totalorder %s14, 0
      %p55 = por %p53, %p54
      %p56 = scmp.ne.s32.totalorder %s48, %s50
      %p57 = scmp.eq.s32.totalorder %s19, 1
      %p58 = por %p56, %p57
      %p59 = scmp.ne.s32.totalorder %s50, %s51
      %p60 = scmp.eq.s32.totalorder %s19, 0
      %p61 = por %p59, %p60
      %p62 = scmp.ne.s32.totalorder %s50, %s51
      %p63 = scmp.eq.s32.totalorder %s20, 1
      %p64 = por %p62, %p63
      %p66 = scmp.ne.s32.totalorder %s51, %s65
      %p67 = scmp.eq.s32.totalorder %s20, 0
      %p68 = por %p66, %p67
      %s70 = sadd.s32 %s69, 1
      %p73 = scmp.eq.s32.totalorder %s14, 1
      %p74 = scmp.ne.s32.totalorder %s69, %s71
      %p75 = scmp.eq.s32.totalorder %s14, 0
      %p76 = por %p74, %p75
      %p77 = scmp.ne.s32.totalorder %s69, %s71
      %p78 = scmp.eq.s32.totalorder %s19, 1
      %p79 = por %p77, %p78
      %p80 = scmp.ne.s32.totalorder %s71, %s72
      %p81 = scmp.eq.s32.totalorder %s19, 0
      %p82 = por %p80, %p81
      %p83 = scmp.ne.s32.totalorder %s71, %s72
      %p84 = scmp.eq.s32.totalorder %s20, 1
      %p85 = por %p83, %p84
      %p87 = scmp.ne.s32.totalorder %s72, %s86
      %p88 = scmp.eq.s32.totalorder %s20, 0
      %p89 = por %p87, %p88
      %s91 = sadd.s32 %s90, 1
      %p94 = scmp.eq.s32.totalorder %s14, 1
      %p95 = scmp.ne.s32.totalorder %s90, %s92
      %p96 = scmp.eq.s32.totalorder %s14, 0
      %p97 = por %p95, %p96
      %p98 = scmp.ne.s32.totalorder %s90, %s92
      %p99 = scmp.eq.s32.totalorder %s19, 1
      %p100 = por %p98, %p99
      %p101 = scmp.ne.s32.totalorder %s92, %s93
      %p102 = scmp.eq.s32.totalorder %s19, 0
      %p103 = por %p101, %p102
      %p104 = scmp.ne.s32.totalorder %s92, %s93
      %p105 = scmp.eq.s32.totalorder %s20, 1
      %p106 = por %p104, %p105
      %p108 = scmp.ne.s32.totalorder %s93, %s107
      %p109 = scmp.eq.s32.totalorder %s20, 0
      %p110 = por %p108, %p109
      %s111 = ssub.s32 %s14, %s21
      %p112 = scmp.eq.s32.totalorder %s111, 0
      %s114 = sadd.s32 %s113, 1
      %s115 = scalar_select %p112, %s113, %s114
      %p118 = pneg %p112
      %p119 = scmp.eq.s32.totalorder %s14, 1
      %p120 = por %p118, %p119
      %p121 = scmp.ne.s32.totalorder %s113, %s116
      %p122 = scmp.eq.s32.totalorder %s14, 0
      %p123 = por %p121, %p122
      %p124 = scmp.ne.s32.totalorder %s113, %s116
      %p125 = scmp.eq.s32.totalorder %s19, 1
      %p126 = por %p124, %p125
      %p127 = scmp.ne.s32.totalorder %s116, %s117
      %p128 = scmp.eq.s32.totalorder %s19, 0
      %p129 = por %p127, %p128
      %p130 = scmp.ne.s32.totalorder %s116, %s117
      %p131 = scmp.eq.s32.totalorder %s20, 1
      %p132 = por %p130, %p131
      %p134 = scmp.ne.s32.totalorder %s117, %s133
      %p135 = scmp.eq.s32.totalorder %s20, 0
      %p136 = por %p134, %p135
      %p137 = scmp.le.s32.totalorder 1, %s14
      %p138 = scmp.lt.s32.totalorder %s14, 3
      %p139 = pnand %p137, %p138
      %p140 = pneg %p139
      // Predicated region
      $region9: #{tpu_custom_call.1} parent=5 // pred_check
        _
      $region10: #{tpu_custom_call.1} parent=5 // pred_check_branch
        %142 = sbr.rel (%p139) target = $region12
      $region11: #{tpu_custom_call.1} parent=5 // pred_region
        %s143 = ssub.s32 %s14, 1
        // Predicated region
        $region13: #{tpu_custom_call.1} parent=11 // pred_check
          %p144 = pneg %p61
        $region14: #{tpu_custom_call.1} parent=11 // pred_check_branch
          %146 = sbr.rel (%p144) target = $region16
        $region15: #{tpu_custom_call.1} parent=11 // pred_region
          _
        $region16: #{tpu_custom_call.1} parent=11 // pred_fallthru
          _
        // Predicated region
        $region17: #{tpu_custom_call.1} parent=11 // pred_check
          %p147 = pneg %p82
        $region18: #{tpu_custom_call.1} parent=11 // pred_check_branch
          %149 = sbr.rel (%p147) target = $region20
        $region19: #{tpu_custom_call.1} parent=11 // pred_region
          _
        $region20: #{tpu_custom_call.1} parent=11 // pred_fallthru
          _
        // Predicated region
        $region21: #{tpu_custom_call.1} parent=11 // pred_check
          %p150 = pneg %p103
        $region22: #{tpu_custom_call.1} parent=11 // pred_check_branch
          %152 = sbr.rel (%p150) target = $region24
        $region23: #{tpu_custom_call.1} parent=11 // pred_region
          %s154 = ssub.s32 3072, 3072
          %155 = vsyncadd [#allocation3], %s154
          %s156 = sshll.u32 [#allocation2], 4
          %s157 = int_to_ptr.vmem [resolvable:$true] %s156
          %162 = dma.hbm_to_vmem [thread:$0]  %s3, 3072, %s157, [#allocation3], 64, 64, 4
        $region24: #{tpu_custom_call.1} parent=11 // pred_fallthru
          _
      $region12: #{tpu_custom_call.1} parent=5 // pred_fallthru
        _
      %p163 = scmp.lt.s32.totalorder %s14, 2
      // Predicated region
      $region25: #{tpu_custom_call.1} parent=5 // pred_check
        %p164 = pneg %p163
      $region26: #{tpu_custom_call.1} parent=5 // pred_check_branch
        %166 = sbr.rel (%p164) target = $region28
      $region27: #{tpu_custom_call.1} parent=5 // pred_region
        // Predicated region
        $region29: #{tpu_custom_call.1} parent=27 // pred_check
          %p167 = pneg %p34
        $region30: #{tpu_custom_call.1} parent=27 // pred_check_branch
          %169 = sbr.rel (%p167) target = $region32
        $region31: #{tpu_custom_call.1} parent=27 // pred_region
          %s170 = smul.u32 32, %s14
          %p171 = scmp.lt.s32.totalorder %s170, 63
          %s172 = scalar_select %p171, %s170, 63
          %s173 = smul.addr %s172, 8
          %s174 = scalar_lea.vmem %s0, %s173
          %s175 = smul.u32 32, %s14
        $region32: #{tpu_custom_call.1} parent=27 // pred_fallthru
          _
      $region28: #{tpu_custom_call.1} parent=5 // pred_fallthru
        _
      %p176 = scmp.le.s32.totalorder 1, %s14
      %p177 = scmp.lt.s32.totalorder %s14, 3
      %p178 = pnand %p176, %p177
      %p179 = pneg %p178
      // Predicated region
      $region33: #{tpu_custom_call.1} parent=5 // pred_check
        _
      $region34: #{tpu_custom_call.1} parent=5 // pred_check_branch
        %181 = sbr.rel (%p178) target = $region36
      $region35: #{tpu_custom_call.1} parent=5 // pred_region
        %s182 = ssub.s32 %s14, 1
        // Predicated region
        $region37: #{tpu_custom_call.1} parent=35 // pred_check
          %p183 = pneg %p103
        $region38: #{tpu_custom_call.1} parent=35 // pred_check_branch
          %185 = sbr.rel (%p183) target = $region40
        $region39: #{tpu_custom_call.1} parent=35 // pred_region
          %186 = dma.done [#allocation3], 3072
        $region40: #{tpu_custom_call.1} parent=35 // pred_fallthru
          _
        %s187 = smul.u32 32, %s19
        %p188 = scmp.lt.s32.totalorder %s187, 63
        %s189 = scalar_select %p188, %s187, 63
        %s190 = smul.addr %s189, 8
        %s191 = scalar_lea.vmem %s0, %s190
        %p192 = pneg %p40
        %p193 = pneg %p37
        %p194 = pneg %p61
        %p195 = pneg %p58
        %p196 = pneg %p82
        %p197 = pneg %p79
        %p198 = pneg %p103
        %p199 = pneg %p100
        %p200 = pneg %p129
        %p201 = pneg %p126
        %s202 = sand.u32 %s116, 1
        %s203 = scalar_lea.sflag [#allocation4], %s202
        %s204 = sand.u32 %s116, 1
        %s205 = smul.addr %s204, 256
        %s206 = scalar_lea.vmem [#allocation5], %s205
        %s207 = smul.u32 32, %s19
        %p208 = scmp.lt.s32.totalorder %s207, 63
        %s209 = scalar_select %p208, %s207, 63
        %s210 = smul.addr %s209, 8
        %s211 = scalar_lea.vmem %s0, %s210
        %s212 = smul.u32 32, %s19
        %s213 = smul.u32 32, %s19
        %v215 = vlaneseq
        %v216 = vand.u32 %v215, 127
        %v217 = vld [vmem:[%s211] sm:$0xff]
        %v218 = vld [vmem:[%s211 + $0x8] sm:$0xff]
        %v219 = vld [vmem:[%s211 + $0x10] sm:$0xff]
        %v220 = vld [vmem:[%s211 + $0x18] sm:$0xff]
        %v221 = vld [vmem:[%s211 + $0x20] sm:$0xff]
        %v222 = vld [vmem:[%s211 + $0x28] sm:$0xff]
        %v223 = vld [vmem:[%s211 + $0x30] sm:$0xff]
        %v224 = vld [vmem:[%s211 + $0x38] sm:$0xff]
        %v225 = vld [vmem:[%s211 + $0x40] sm:$0xff]
        %v226 = vld [vmem:[%s211 + $0x48] sm:$0xff]
        %v227 = vld [vmem:[%s211 + $0x50] sm:$0xff]
        %v228 = vld [vmem:[%s211 + $0x58] sm:$0xff]
        %v229 = vld [vmem:[%s211 + $0x60] sm:$0xff]
        %v230 = vld [vmem:[%s211 + $0x68] sm:$0xff]
        %v231 = vld [vmem:[%s211 + $0x70] sm:$0xff]
        %v232 = vld [vmem:[%s211 + $0x78] sm:$0xff]
        %v233 = vld [vmem:[%s211 + $0x80] sm:$0xff]
        %v234 = vld [vmem:[%s211 + $0x88] sm:$0xff]
        %v235 = vld [vmem:[%s211 + $0x90] sm:$0xff]
        %v236 = vld [vmem:[%s211 + $0x98] sm:$0xff]
        %v237 = vld [vmem:[%s211 + $0xa0] sm:$0xff]
        %v238 = vld [vmem:[%s211 + $0xa8] sm:$0xff]
        %v239 = vld [vmem:[%s211 + $0xb0] sm:$0xff]
        %v240 = vld [vmem:[%s211 + $0xb8] sm:$0xff]
        %v241 = vld [vmem:[%s211 + $0xc0] sm:$0xff]
        %v242 = vld [vmem:[%s211 + $0xc8] sm:$0xff]
        %v243 = vld [vmem:[%s211 + $0xd0] sm:$0xff]
        %v244 = vld [vmem:[%s211 + $0xd8] sm:$0xff]
        %v245 = vld [vmem:[%s211 + $0xe0] sm:$0xff]
        %v246 = vld [vmem:[%s211 + $0xe8] sm:$0xff]
        %v247 = vld [vmem:[%s211 + $0xf0] sm:$0xff]
        %v248 = vld [vmem:[%s211 + $0xf8] sm:$0xff]
        %249 = vset.pattern.permute.xlu0 0
        %250 = vperm.xlu0 %249, %v217
        %v251 = vpop.permute.xlu0 %250
        %252 = vset.pattern.permute.xlu0 0
        %253 = vperm.xlu0 %252, %v218
        %v254 = vpop.permute.xlu0 %253
        %255 = vset.pattern.permute.xlu0 0
        %256 = vperm.xlu0 %255, %v219
        %v257 = vpop.permute.xlu0 %256
        %258 = vset.pattern.permute.xlu0 0
        %259 = vperm.xlu0 %258, %v220
        %v260 = vpop.permute.xlu0 %259
        %261 = vset.pattern.permute.xlu0 0
        %262 = vperm.xlu0 %261, %v221
        %v263 = vpop.permute.xlu0 %262
        %264 = vset.pattern.permute.xlu0 0
        %265 = vperm.xlu0 %264, %v222
        %v266 = vpop.permute.xlu0 %265
        %267 = vset.pattern.permute.xlu0 0
        %268 = vperm.xlu0 %267, %v223
        %v269 = vpop.permute.xlu0 %268
        %270 = vset.pattern.permute.xlu0 0
        %271 = vperm.xlu0 %270, %v224
        %v272 = vpop.permute.xlu0 %271
        %273 = vset.pattern.permute.xlu0 0
        %274 = vperm.xlu0 %273, %v225
        %v275 = vpop.permute.xlu0 %274
        %276 = vset.pattern.permute.xlu0 0
        %277 = vperm.xlu0 %276, %v226
        %v278 = vpop.permute.xlu0 %277
        %279 = vset.pattern.permute.xlu0 0
        %280 = vperm.xlu0 %279, %v227
        %v281 = vpop.permute.xlu0 %280
        %282 = vset.pattern.permute.xlu0 0
        %283 = vperm.xlu0 %282, %v228
        %v284 = vpop.permute.xlu0 %283
        %285 = vset.pattern.permute.xlu0 0
        %286 = vperm.xlu0 %285, %v229
        %v287 = vpop.permute.xlu0 %286
        %288 = vset.pattern.permute.xlu0 0
        %289 = vperm.xlu0 %288, %v230
        %v290 = vpop.permute.xlu0 %289
        %291 = vset.pattern.permute.xlu0 0
        %292 = vperm.xlu0 %291, %v231
        %v293 = vpop.permute.xlu0 %292
        %294 = vset.pattern.permute.xlu0 0
        %295 = vperm.xlu0 %294, %v232
        %v296 = vpop.permute.xlu0 %295
        %297 = vset.pattern.permute.xlu0 0
        %298 = vperm.xlu0 %297, %v233
        %v299 = vpop.permute.xlu0 %298
        %300 = vset.pattern.permute.xlu0 0
        %301 = vperm.xlu0 %300, %v234
        %v302 = vpop.permute.xlu0 %301
        %303 = vset.pattern.permute.xlu0 0
        %304 = vperm.xlu0 %303, %v235
        %v305 = vpop.permute.xlu0 %304
        %306 = vset.pattern.permute.xlu0 0
        %307 = vperm.xlu0 %306, %v236
        %v308 = vpop.permute.xlu0 %307
        %309 = vset.pattern.permute.xlu0 0
        %310 = vperm.xlu0 %309, %v237
        %v311 = vpop.permute.xlu0 %310
        %312 = vset.pattern.permute.xlu0 0
        %313 = vperm.xlu0 %312, %v238
        %v314 = vpop.permute.xlu0 %313
        %315 = vset.pattern.permute.xlu0 0
        %316 = vperm.xlu0 %315, %v239
        %v317 = vpop.permute.xlu0 %316
        %318 = vset.pattern.permute.xlu0 0
        %319 = vperm.xlu0 %318, %v240
        %v320 = vpop.permute.xlu0 %319
        %321 = vset.pattern.permute.xlu0 0
        %322 = vperm.xlu0 %321, %v241
        %v323 = vpop.permute.xlu0 %322
        %324 = vset.pattern.permute.xlu0 0
        %325 = vperm.xlu0 %324, %v242
        %v326 = vpop.permute.xlu0 %325
        %327 = vset.pattern.permute.xlu0 0
        %328 = vperm.xlu0 %327, %v243
        %v329 = vpop.permute.xlu0 %328
        %330 = vset.pattern.permute.xlu0 0
        %331 = vperm.xlu0 %330, %v244
        %v332 = vpop.permute.xlu0 %331
        %333 = vset.pattern.permute.xlu0 0
        %334 = vperm.xlu0 %333, %v245
        %v335 = vpop.permute.xlu0 %334
        %336 = vset.pattern.permute.xlu0 0
        %337 = vperm.xlu0 %336, %v246
        %v338 = vpop.permute.xlu0 %337
        %339 = vset.pattern.permute.xlu0 0
        %340 = vperm.xlu0 %339, %v247
        %v341 = vpop.permute.xlu0 %340
        %342 = vset.pattern.permute.xlu0 0
        %343 = vperm.xlu0 %342, %v248
        %v344 = vpop.permute.xlu0 %343
        %vm345 = vcmp.eq.s32.totalorder %v216, %v251
        %vm346 = vcmp.eq.s32.totalorder %v216, %v254
        %vm347 = vcmp.eq.s32.totalorder %v216, %v257
        %vm348 = vcmp.eq.s32.totalorder %v216, %v260
        %vm349 = vcmp.eq.s32.totalorder %v216, %v263
        %vm350 = vcmp.eq.s32.totalorder %v216, %v266
        %vm351 = vcmp.eq.s32.totalorder %v216, %v269
        %vm352 = vcmp.eq.s32.totalorder %v216, %v272
        %vm353 = vcmp.eq.s32.totalorder %v216, %v275
        %vm354 = vcmp.eq.s32.totalorder %v216, %v278
        %vm355 = vcmp.eq.s32.totalorder %v216, %v281
        %vm356 = vcmp.eq.s32.totalorder %v216, %v284
        %vm357 = vcmp.eq.s32.totalorder %v216, %v287
        %vm358 = vcmp.eq.s32.totalorder %v216, %v290
        %vm359 = vcmp.eq.s32.totalorder %v216, %v293
        %vm360 = vcmp.eq.s32.totalorder %v216, %v296
        %vm361 = vcmp.eq.s32.totalorder %v216, %v299
        %vm362 = vcmp.eq.s32.totalorder %v216, %v302
        %vm363 = vcmp.eq.s32.totalorder %v216, %v305
        %vm364 = vcmp.eq.s32.totalorder %v216, %v308
        %vm365 = vcmp.eq.s32.totalorder %v216, %v311
        %vm366 = vcmp.eq.s32.totalorder %v216, %v314
        %vm367 = vcmp.eq.s32.totalorder %v216, %v317
        %vm368 = vcmp.eq.s32.totalorder %v216, %v320
        %vm369 = vcmp.eq.s32.totalorder %v216, %v323
        %vm370 = vcmp.eq.s32.totalorder %v216, %v326
        %vm371 = vcmp.eq.s32.totalorder %v216, %v329
        %vm372 = vcmp.eq.s32.totalorder %v216, %v332
        %vm373 = vcmp.eq.s32.totalorder %v216, %v335
        %vm374 = vcmp.eq.s32.totalorder %v216, %v338
        %vm375 = vcmp.eq.s32.totalorder %v216, %v341
        %vm376 = vcmp.eq.s32.totalorder %v216, %v344
        %v377 = vsel %vm345, 1, 0
        %v378 = vsel %vm346, 1, 0
        %v379 = vsel %vm347, 1, 0
        %v380 = vsel %vm348, 1, 0
        %v381 = vsel %vm349, 1, 0
        %v382 = vsel %vm350, 1, 0
        %v383 = vsel %vm351, 1, 0
        %v384 = vsel %vm352, 1, 0
        %v385 = vsel %vm353, 1, 0
        %v386 = vsel %vm354, 1, 0
        %v387 = vsel %vm355, 1, 0
        %v388 = vsel %vm356, 1, 0
        %v389 = vsel %vm357, 1, 0
        %v390 = vsel %vm358, 1, 0
        %v391 = vsel %vm359, 1, 0
        %v392 = vsel %vm360, 1, 0
        %v393 = vsel %vm361, 1, 0
        %v394 = vsel %vm362, 1, 0
        %v395 = vsel %vm363, 1, 0
        %v396 = vsel %vm364, 1, 0
        %v397 = vsel %vm365, 1, 0
        %v398 = vsel %vm366, 1, 0
        %v399 = vsel %vm367, 1, 0
        %v400 = vsel %vm368, 1, 0
        %v401 = vsel %vm369, 1, 0
        %v402 = vsel %vm370, 1, 0
        %v403 = vsel %vm371, 1, 0
        %v404 = vsel %vm372, 1, 0
        %v405 = vsel %vm373, 1, 0
        %v406 = vsel %vm374, 1, 0
        %v407 = vsel %vm375, 1, 0
        %v408 = vsel %vm376, 1, 0
        %v409 = vcvt.s32.f32 %v377
        %v410 = vcvt.s32.f32 %v378
        %v411 = vcvt.s32.f32 %v379
        %v412 = vcvt.s32.f32 %v380
        %v413 = vcvt.s32.f32 %v381
        %v414 = vcvt.s32.f32 %v382
        %v415 = vcvt.s32.f32 %v383
        %v416 = vcvt.s32.f32 %v384
        %v417 = vcvt.s32.f32 %v385
        %v418 = vcvt.s32.f32 %v386
        %v419 = vcvt.s32.f32 %v387
        %v420 = vcvt.s32.f32 %v388
        %v421 = vcvt.s32.f32 %v389
        %v422 = vcvt.s32.f32 %v390
        %v423 = vcvt.s32.f32 %v391
        %v424 = vcvt.s32.f32 %v392
        %v425 = vcvt.s32.f32 %v393
        %v426 = vcvt.s32.f32 %v394
        %v427 = vcvt.s32.f32 %v395
        %v428 = vcvt.s32.f32 %v396
        %v429 = vcvt.s32.f32 %v397
        %v430 = vcvt.s32.f32 %v398
        %v431 = vcvt.s32.f32 %v399
        %v432 = vcvt.s32.f32 %v400
        %v433 = vcvt.s32.f32 %v401
        %v434 = vcvt.s32.f32 %v402
        %v435 = vcvt.s32.f32 %v403
        %v436 = vcvt.s32.f32 %v404
        %v437 = vcvt.s32.f32 %v405
        %v438 = vcvt.s32.f32 %v406
        %v439 = vcvt.s32.f32 %v407
        %v440 = vcvt.s32.f32 %v408
        %v441 = vpack.c.bf16 %v410, %v409
        %v442 = vpack.c.bf16 %v412, %v411
        %v443 = vpack.c.bf16 %v414, %v413
        %v444 = vpack.c.bf16 %v416, %v415
        %v445 = vpack.c.bf16 %v418, %v417
        %v446 = vpack.c.bf16 %v420, %v419
        %v447 = vpack.c.bf16 %v422, %v421
        %v448 = vpack.c.bf16 %v424, %v423
        %v449 = vpack.c.bf16 %v426, %v425
        %v450 = vpack.c.bf16 %v428, %v427
        %v451 = vpack.c.bf16 %v430, %v429
        %v452 = vpack.c.bf16 %v432, %v431
        %v453 = vpack.c.bf16 %v434, %v433
        %v454 = vpack.c.bf16 %v436, %v435
        %v455 = vpack.c.bf16 %v438, %v437
        %v456 = vpack.c.bf16 %v440, %v439
        %v457 = vld [vmem:[%s1] sm:$0xf]
        %v458 = vld [vmem:[%s1 + $0x4] sm:$0xf]
        %v459 = vld [vmem:[%s1 + $0x8] sm:$0xf]
        %v460 = vld [vmem:[%s1 + $0xc] sm:$0xf]
        %v461 = vld [vmem:[%s1 + $0x10] sm:$0xf]
        %v462 = vld [vmem:[%s1 + $0x14] sm:$0xf]
        %v463 = vld [vmem:[%s1 + $0x18] sm:$0xf]
        %v464 = vld [vmem:[%s1 + $0x1c] sm:$0xf]
        %v465 = vld [vmem:[%s1 + $0x20] sm:$0xf]
        %v466 = vld [vmem:[%s1 + $0x24] sm:$0xf]
        %v467 = vld [vmem:[%s1 + $0x28] sm:$0xf]
        %v468 = vld [vmem:[%s1 + $0x2c] sm:$0xf]
        %v469 = vld [vmem:[%s1 + $0x30] sm:$0xf]
        %v470 = vld [vmem:[%s1 + $0x34] sm:$0xf]
        %v471 = vld [vmem:[%s1 + $0x38] sm:$0xf]
        %v472 = vld [vmem:[%s1 + $0x3c] sm:$0xf]
        %s473 = scalar_lea.vmem %s1, 64
        %v474 = vld [vmem:[%s473] sm:$0xf]
        %v475 = vld [vmem:[%s473 + $0x4] sm:$0xf]
        %v476 = vld [vmem:[%s473 + $0x8] sm:$0xf]
        %v477 = vld [vmem:[%s473 + $0xc] sm:$0xf]
        %v478 = vld [vmem:[%s473 + $0x10] sm:$0xf]
        %v479 = vld [vmem:[%s473 + $0x14] sm:$0xf]
        %v480 = vld [vmem:[%s473 + $0x18] sm:$0xf]
        %v481 = vld [vmem:[%s473 + $0x1c] sm:$0xf]
        %v482 = vld [vmem:[%s473 + $0x20] sm:$0xf]
        %v483 = vld [vmem:[%s473 + $0x24] sm:$0xf]
        %v484 = vld [vmem:[%s473 + $0x28] sm:$0xf]
        %v485 = vld [vmem:[%s473 + $0x2c] sm:$0xf]
        %v486 = vld [vmem:[%s473 + $0x30] sm:$0xf]
        %v487 = vld [vmem:[%s473 + $0x34] sm:$0xf]
        %v488 = vld [vmem:[%s473 + $0x38] sm:$0xf]
        %v489 = vld [vmem:[%s473 + $0x3c] sm:$0xf]
        %v506 = vunpack.c.l.b16 %v474
        %v507 = vunpack.c.l.b16 %v475
        %v508 = vunpack.c.l.b16 %v476
        %v509 = vunpack.c.l.b16 %v477
        %v510 = vunpack.c.l.b16 %v478
        %v511 = vunpack.c.l.b16 %v479
        %v512 = vunpack.c.l.b16 %v480
        %v513 = vunpack.c.l.b16 %v481
        %v514 = vunpack.c.l.b16 %v482
        %v515 = vunpack.c.l.b16 %v483
        %v516 = vunpack.c.l.b16 %v484
        %v517 = vunpack.c.l.b16 %v485
        %v518 = vunpack.c.l.b16 %v486
        %v519 = vunpack.c.l.b16 %v487
        %v520 = vunpack.c.l.b16 %v488
        %v521 = vunpack.c.l.b16 %v489
        %v522 = vpack.c.b16 %v507, %v506
        %v523 = vpack.c.b16 %v509, %v508
        %v524 = vpack.c.b16 %v511, %v510
        %v525 = vpack.c.b16 %v513, %v512
        %v526 = vpack.c.b16 %v515, %v514
        %v527 = vpack.c.b16 %v517, %v516
        %v528 = vpack.c.b16 %v519, %v518
        %v529 = vpack.c.b16 %v521, %v520
        %538 = vmatprep.subr.bf16.mxu0 0
        %539 = vmatpush1.bf16.msra.mxu0 %v522
        %540 = vmatprep.subr.bf16.mxu0 0
        %541 = vmatpush1.bf16.msra.mxu0 %v523
        %542 = vmatprep.subr.bf16.mxu0 0
        %543 = vmatpush1.bf16.msra.mxu0 %v524
        %544 = vmatprep.subr.bf16.mxu0 0
        %545 = vmatpush1.bf16.msra.mxu0 %v525
        %546 = vmatprep.subr.bf16.mxu0 0
        %547 = vmatpush1.bf16.msra.mxu0 %v526
        %548 = vmatprep.subr.bf16.mxu0 0
        %549 = vmatpush1.bf16.msra.mxu0 %v527
        %550 = vmatprep.subr.bf16.mxu0 0
        %551 = vmatpush1.bf16.msra.mxu0 %v528
        %552 = vmatprep.subr.bf16.mxu0 0
        %553 = vmatpush1.bf16.msra.mxu0 %v529
        %554 = vmatprep.subr.bf16.mxu0 0
        %555 = vmatpush1.bf16.msra.mxu0 0
        %556 = vmatprep.subr.bf16.mxu0 0
        %557 = vmatpush1.bf16.msra.mxu0 0
        %558 = vmatprep.subr.bf16.mxu0 0
        %559 = vmatpush1.bf16.msra.mxu0 0
        %560 = vmatprep.subr.bf16.mxu0 0
        %561 = vmatpush1.bf16.msra.mxu0 0
        %562 = vmatprep.subr.bf16.mxu0 0
        %563 = vmatpush1.bf16.msra.mxu0 0
        %564 = vmatprep.subr.bf16.mxu0 0
        %565 = vmatpush1.bf16.msra.mxu0 0
        %566 = vmatprep.subr.bf16.mxu0 0
        %567 = vmatpush1.bf16.msra.mxu0 0
        %568 = vmatprep.subr.bf16.mxu0 0
        %569 = vmatpush1.bf16.msra.mxu0 0
        %570 = vmatprep.mubr.bf16.mxu0 0
        %571 = vmatmul.mubr.bf16.gmra.mrb[0].mxu0 %v441
        %v572 = vpop.f32.mrb[0].mxu0
        %v573 = vadd.f32 0.0, %v572
        %v574 = vpop.f32.mrb[0].mxu0
        %v575 = vpop.f32.mrb[0].mxu0
        %v576 = vadd.f32 0.0, %v575
        %v577 = vpop.f32.mrb[0].mxu0
        %578 = vmatprep.mubr.bf16.mxu0 0
        %579 = vmatmul.mubr.bf16.gmra.mrb[0].mxu0 %v442
        %v580 = vpop.f32.mrb[0].mxu0
        %v581 = vadd.f32 0.0, %v580
        %v582 = vpop.f32.mrb[0].mxu0
        %v583 = vpop.f32.mrb[0].mxu0
        %v584 = vadd.f32 0.0, %v583
        %v585 = vpop.f32.mrb[0].mxu0
        %586 = vmatprep.mubr.bf16.mxu0 0
        %587 = vmatmul.mubr.bf16.gmra.mrb[0].mxu0 %v443
        %v588 = vpop.f32.mrb[0].mxu0
        %v589 = vadd.f32 0.0, %v588
        %v590 = vpop.f32.mrb[0].mxu0
        %v591 = vpop.f32.mrb[0].mxu0
        %v592 = vadd.f32 0.0, %v591
        %v593 = vpop.f32.mrb[0].mxu0
        %594 = vmatprep.mubr.bf16.mxu0 0
        %595 = vmatmul.mubr.bf16.gmra.mrb[0].mxu0 %v444
        %v596 = vpop.f32.mrb[0].mxu0
        %v597 = vadd.f32 0.0, %v596
        %v598 = vpop.f32.mrb[0].mxu0
        %v599 = vpop.f32.mrb[0].mxu0
        %v600 = vadd.f32 0.0, %v599
        %v601 = vpop.f32.mrb[0].mxu0
        %602 = vmatprep.mubr.bf16.mxu0 0
        %603 = vmatmul.mubr.bf16.gmra.mrb[0].mxu0 %v445
        %v604 = vpop.f32.mrb[0].mxu0
        %v605 = vadd.f32 0.0, %v604
        %v606 = vpop.f32.mrb[0].mxu0
        %v607 = vpop.f32.mrb[0].mxu0
        %v608 = vadd.f32 0.0, %v607
        %v609 = vpop.f32.mrb[0].mxu0
        %610 = vmatprep.mubr.bf16.mxu0 0
        %611 = vmatmul.mubr.bf16.gmra.mrb[0].mxu0 %v446
        %v612 = vpop.f32.mrb[0].mxu0
        %v613 = vadd.f32 0.0, %v612
        %v614 = vpop.f32.mrb[0].mxu0
        %v615 = vpop.f32.mrb[0].mxu0
        %v616 = vadd.f32 0.0, %v615
        %v617 = vpop.f32.mrb[0].mxu0
        %618 = vmatprep.mubr.bf16.mxu0 0
        %619 = vmatmul.mubr.bf16.gmra.mrb[0].mxu0 %v447
        %v620 = vpop.f32.mrb[0].mxu0
        %v621 = vadd.f32 0.0, %v620
        %v622 = vpop.f32.mrb[0].mxu0
        %v623 = vpop.f32.mrb[0].mxu0
        %v624 = vadd.f32 0.0, %v623
        %v625 = vpop.f32.mrb[0].mxu0
        %626 = vmatprep.mubr.bf16.mxu0 0
        %627 = vmatmul.mubr.bf16.gmra.mrb[0].mxu0 %v448
        %v628 = vpop.f32.mrb[0].mxu0
        %v629 = vadd.f32 0.0, %v628
        %v630 = vpop.f32.mrb[0].mxu0
        %v631 = vpop.f32.mrb[0].mxu0
        %v632 = vadd.f32 0.0, %v631
        %v633 = vpop.f32.mrb[0].mxu0
        %634 = vmatprep.mubr.bf16.mxu0 0
        %635 = vmatmul.mubr.bf16.gmra.mrb[0].mxu0 %v449
        %v636 = vpop.f32.mrb[0].mxu0
        %v637 = vadd.f32 0.0, %v636
        %v638 = vpop.f32.mrb[0].mxu0
        %v639 = vpop.f32.mrb[0].mxu0
        %v640 = vadd.f32 0.0, %v639
        %v641 = vpop.f32.mrb[0].mxu0
        %642 = vmatprep.mubr.bf16.mxu0 0
        %643 = vmatmul.mubr.bf16.gmra.mrb[0].mxu0 %v450
        %v644 = vpop.f32.mrb[0].mxu0
        %v645 = vadd.f32 0.0, %v644
        %v646 = vpop.f32.mrb[0].mxu0
        %v647 = vpop.f32.mrb[0].mxu0
        %v648 = vadd.f32 0.0, %v647
        %v649 = vpop.f32.mrb[0].mxu0
        %650 = vmatprep.mubr.bf16.mxu0 0
        %651 = vmatmul.mubr.bf16.gmra.mrb[0].mxu0 %v451
        %v652 = vpop.f32.mrb[0].mxu0
        %v653 = vadd.f32 0.0, %v652
        %v654 = vpop.f32.mrb[0].mxu0
        %v655 = vpop.f32.mrb[0].mxu0
        %v656 = vadd.f32 0.0, %v655
        %v657 = vpop.f32.mrb[0].mxu0
        %658 = vmatprep.mubr.bf16.mxu0 0
        %659 = vmatmul.mubr.bf16.gmra.mrb[0].mxu0 %v452
        %v660 = vpop.f32.mrb[0].mxu0
        %v661 = vadd.f32 0.0, %v660
        %v662 = vpop.f32.mrb[0].mxu0
        %v663 = vpop.f32.mrb[0].mxu0
        %v664 = vadd.f32 0.0, %v663
        %v665 = vpop.f32.mrb[0].mxu0
        %666 = vmatprep.mubr.bf16.mxu0 0
        %667 = vmatmul.mubr.bf16.gmra.mrb[0].mxu0 %v453
        %v668 = vpop.f32.mrb[0].mxu0
        %v669 = vadd.f32 0.0, %v668
        %v670 = vpop.f32.mrb[0].mxu0
        %v671 = vpop.f32.mrb[0].mxu0
        %v672 = vadd.f32 0.0, %v671
        %v673 = vpop.f32.mrb[0].mxu0
        %674 = vmatprep.mubr.bf16.mxu0 0
        %675 = vmatmul.mubr.bf16.gmra.mrb[0].mxu0 %v454
        %v676 = vpop.f32.mrb[0].mxu0
        %v677 = vadd.f32 0.0, %v676
        %v678 = vpop.f32.mrb[0].mxu0
        %v679 = vpop.f32.mrb[0].mxu0
        %v680 = vadd.f32 0.0, %v679
        %v681 = vpop.f32.mrb[0].mxu0
        %682 = vmatprep.mubr.bf16.mxu0 0
        %683 = vmatmul.mubr.bf16.gmra.mrb[0].mxu0 %v455
        %v684 = vpop.f32.mrb[0].mxu0
        %v685 = vadd.f32 0.0, %v684
        %v686 = vpop.f32.mrb[0].mxu0
        %v687 = vpop.f32.mrb[0].mxu0
        %v688 = vadd.f32 0.0, %v687
        %v689 = vpop.f32.mrb[0].mxu0
        %690 = vmatprep.mubr.bf16.mxu0 0
        %691 = vmatmul.mubr.bf16.gmra.mrb[0].mxu0 %v456
        %v692 = vpop.f32.mrb[0].mxu0
        %v693 = vadd.f32 0.0, %v692
        %v694 = vpop.f32.mrb[0].mxu0
        %v695 = vpop.f32.mrb[0].mxu0
        %v696 = vadd.f32 0.0, %v695
        %v697 = vpop.f32.mrb[0].mxu0
        %698 = vdwg.mxu0
        %v715 = vunpack.c.l.b16 %v457
        %v716 = vunpack.c.l.b16 %v458
        %v717 = vunpack.c.l.b16 %v459
        %v718 = vunpack.c.l.b16 %v460
        %v719 = vunpack.c.l.b16 %v461
        %v720 = vunpack.c.l.b16 %v462
        %v721 = vunpack.c.l.b16 %v463
        %v722 = vunpack.c.l.b16 %v464
        %v723 = vunpack.c.l.b16 %v465
        %v724 = vunpack.c.l.b16 %v466
        %v725 = vunpack.c.l.b16 %v467
        %v726 = vunpack.c.l.b16 %v468
        %v727 = vunpack.c.l.b16 %v469
        %v728 = vunpack.c.l.b16 %v470
        %v729 = vunpack.c.l.b16 %v471
        %v730 = vunpack.c.l.b16 %v472
        %v731 = vpack.c.b16 %v716, %v715
        %v732 = vpack.c.b16 %v718, %v717
        %v733 = vpack.c.b16 %v720, %v719
        %v734 = vpack.c.b16 %v722, %v721
        %v735 = vpack.c.b16 %v724, %v723
        %v736 = vpack.c.b16 %v726, %v725
        %v737 = vpack.c.b16 %v728, %v727
        %v738 = vpack.c.b16 %v730, %v729
        %747 = vmatprep.subr.bf16.mxu0 0
        %748 = vmatpush1.bf16.msra.mxu0 %v731
        %749 = vmatprep.subr.bf16.mxu0 0
        %750 = vmatpush1.bf16.msra.mxu0 %v732
        %751 = vmatprep.subr.bf16.mxu0 0
        %752 = vmatpush1.bf16.msra.mxu0 %v733
        %753 = vmatprep.subr.bf16.mxu0 0
        %754 = vmatpush1.bf16.msra.mxu0 %v734
        %755 = vmatprep.subr.bf16.mxu0 0
        %756 = vmatpush1.bf16.msra.mxu0 %v735
        %757 = vmatprep.subr.bf16.mxu0 0
        %758 = vmatpush1.bf16.msra.mxu0 %v736
        %759 = vmatprep.subr.bf16.mxu0 0
        %760 = vmatpush1.bf16.msra.mxu0 %v737
        %761 = vmatprep.subr.bf16.mxu0 0
        %762 = vmatpush1.bf16.msra.mxu0 %v738
        %763 = vmatprep.subr.bf16.mxu0 0
        %764 = vmatpush1.bf16.msra.mxu0 0
        %765 = vmatprep.subr.bf16.mxu0 0
        %766 = vmatpush1.bf16.msra.mxu0 0
        %767 = vmatprep.subr.bf16.mxu0 0
        %768 = vmatpush1.bf16.msra.mxu0 0
        %769 = vmatprep.subr.bf16.mxu0 0
        %770 = vmatpush1.bf16.msra.mxu0 0
        %771 = vmatprep.subr.bf16.mxu0 0
        %772 = vmatpush1.bf16.msra.mxu0 0
        %773 = vmatprep.subr.bf16.mxu0 0
        %774 = vmatpush1.bf16.msra.mxu0 0
        %775 = vmatprep.subr.bf16.mxu0 0
        %776 = vmatpush1.bf16.msra.mxu0 0
        %777 = vmatprep.subr.bf16.mxu0 0
        %778 = vmatpush1.bf16.msra.mxu0 0
        %779 = vmatprep.mubr.bf16.mxu0 0
        %780 = vmatmul.mubr.bf16.gmra.mrb[0].mxu0 %v441
        %v781 = vpop.f32.mrb[0].mxu0
        %v782 = vadd.f32 %v573, %v781
        %v783 = vpop.f32.mrb[0].mxu0
        %v784 = vpop.f32.mrb[0].mxu0
        %v785 = vadd.f32 %v576, %v784
        %v786 = vpop.f32.mrb[0].mxu0
        %787 = vmatprep.mubr.bf16.mxu0 0
        %788 = vmatmul.mubr.bf16.gmra.mrb[0].mxu0 %v442
        %v789 = vpop.f32.mrb[0].mxu0
        %v790 = vadd.f32 %v581, %v789
        %v791 = vpop.f32.mrb[0].mxu0
        %v792 = vpop.f32.mrb[0].mxu0
        %v793 = vadd.f32 %v584, %v792
        %v794 = vpop.f32.mrb[0].mxu0
        %795 = vmatprep.mubr.bf16.mxu0 0
        %796 = vmatmul.mubr.bf16.gmra.mrb[0].mxu0 %v443
        %v797 = vpop.f32.mrb[0].mxu0
        %v798 = vadd.f32 %v589, %v797
        %v799 = vpop.f32.mrb[0].mxu0
        %v800 = vpop.f32.mrb[0].mxu0
        %v801 = vadd.f32 %v592, %v800
        %v802 = vpop.f32.mrb[0].mxu0
        %803 = vmatprep.mubr.bf16.mxu0 0
        %804 = vmatmul.mubr.bf16.gmra.mrb[0].mxu0 %v444
        %v805 = vpop.f32.mrb[0].mxu0
        %v806 = vadd.f32 %v597, %v805
        %v807 = vpop.f32.mrb[0].mxu0
        %v808 = vpop.f32.mrb[0].mxu0
        %v809 = vadd.f32 %v600, %v808
        %v810 = vpop.f32.mrb[0].mxu0
        %811 = vmatprep.mubr.bf16.mxu0 0
        %812 = vmatmul.mubr.bf16.gmra.mrb[0].mxu0 %v445
        %v813 = vpop.f32.mrb[0].mxu0
        %v814 = vadd.f32 %v605, %v813
        %v815 = vpop.f32.mrb[0].mxu0
        %v816 = vpop.f32.mrb[0].mxu0
        %v817 = vadd.f32 %v608, %v816
        %v818 = vpop.f32.mrb[0].mxu0
        %819 = vmatprep.mubr.bf16.mxu0 0
        %820 = vmatmul.mubr.bf16.gmra.mrb[0].mxu0 %v446
        %v821 = vpop.f32.mrb[0].mxu0
        %v822 = vadd.f32 %v613, %v821
        %v823 = vpop.f32.mrb[0].mxu0
        %v824 = vpop.f32.mrb[0].mxu0
        %v825 = vadd.f32 %v616, %v824
        %v826 = vpop.f32.mrb[0].mxu0
        %827 = vmatprep.mubr.bf16.mxu0 0
        %828 = vmatmul.mubr.bf16.gmra.mrb[0].mxu0 %v447
        %v829 = vpop.f32.mrb[0].mxu0
        %v830 = vadd.f32 %v621, %v829
        %v831 = vpop.f32.mrb[0].mxu0
        %v832 = vpop.f32.mrb[0].mxu0
        %v833 = vadd.f32 %v624, %v832
        %v834 = vpop.f32.mrb[0].mxu0
        %835 = vmatprep.mubr.bf16.mxu0 0
        %836 = vmatmul.mubr.bf16.gmra.mrb[0].mxu0 %v448
        %v837 = vpop.f32.mrb[0].mxu0
        %v838 = vadd.f32 %v629, %v837
        %v839 = vpop.f32.mrb[0].mxu0
        %v840 = vpop.f32.mrb[0].mxu0
        %v841 = vadd.f32 %v632, %v840
        %v842 = vpop.f32.mrb[0].mxu0
        %843 = vmatprep.mubr.bf16.mxu0 0
        %844 = vmatmul.mubr.bf16.gmra.mrb[0].mxu0 %v449
        %v845 = vpop.f32.mrb[0].mxu0
        %v846 = vadd.f32 %v637, %v845
        %v847 = vpop.f32.mrb[0].mxu0
        %v848 = vpop.f32.mrb[0].mxu0
        %v849 = vadd.f32 %v640, %v848
        %v850 = vpop.f32.mrb[0].mxu0
        %851 = vmatprep.mubr.bf16.mxu0 0
        %852 = vmatmul.mubr.bf16.gmra.mrb[0].mxu0 %v450
        %v853 = vpop.f32.mrb[0].mxu0
        %v854 = vadd.f32 %v645, %v853
        %v855 = vpop.f32.mrb[0].mxu0
        %v856 = vpop.f32.mrb[0].mxu0
        %v857 = vadd.f32 %v648, %v856
        %v858 = vpop.f32.mrb[0].mxu0
        %859 = vmatprep.mubr.bf16.mxu0 0
        %860 = vmatmul.mubr.bf16.gmra.mrb[0].mxu0 %v451
        %v861 = vpop.f32.mrb[0].mxu0
        %v862 = vadd.f32 %v653, %v861
        %v863 = vpop.f32.mrb[0].mxu0
        %v864 = vpop.f32.mrb[0].mxu0
        %v865 = vadd.f32 %v656, %v864
        %v866 = vpop.f32.mrb[0].mxu0
        %867 = vmatprep.mubr.bf16.mxu0 0
        %868 = vmatmul.mubr.bf16.gmra.mrb[0].mxu0 %v452
        %v869 = vpop.f32.mrb[0].mxu0
        %v870 = vadd.f32 %v661, %v869
        %v871 = vpop.f32.mrb[0].mxu0
        %v872 = vpop.f32.mrb[0].mxu0
        %v873 = vadd.f32 %v664, %v872
        %v874 = vpop.f32.mrb[0].mxu0
        %875 = vmatprep.mubr.bf16.mxu0 0
        %876 = vmatmul.mubr.bf16.gmra.mrb[0].mxu0 %v453
        %v877 = vpop.f32.mrb[0].mxu0
        %v878 = vadd.f32 %v669, %v877
        %v879 = vpop.f32.mrb[0].mxu0
        %v880 = vpop.f32.mrb[0].mxu0
        %v881 = vadd.f32 %v672, %v880
        %v882 = vpop.f32.mrb[0].mxu0
        %883 = vmatprep.mubr.bf16.mxu0 0
        %884 = vmatmul.mubr.bf16.gmra.mrb[0].mxu0 %v454
        %v885 = vpop.f32.mrb[0].mxu0
        %v886 = vadd.f32 %v677, %v885
        %v887 = vpop.f32.mrb[0].mxu0
        %v888 = vpop.f32.mrb[0].mxu0
        %v889 = vadd.f32 %v680, %v888
        %v890 = vpop.f32.mrb[0].mxu0
        %891 = vmatprep.mubr.bf16.mxu0 0
        %892 = vmatmul.mubr.bf16.gmra.mrb[0].mxu0 %v455
        %v893 = vpop.f32.mrb[0].mxu0
        %v894 = vadd.f32 %v685, %v893
        %v895 = vpop.f32.mrb[0].mxu0
        %v896 = vpop.f32.mrb[0].mxu0
        %v897 = vadd.f32 %v688, %v896
        %v898 = vpop.f32.mrb[0].mxu0
        %899 = vmatprep.mubr.bf16.mxu0 0
        %900 = vmatmul.mubr.bf16.gmra.mrb[0].mxu0 %v456
        %v901 = vpop.f32.mrb[0].mxu0
        %v902 = vadd.f32 %v693, %v901
        %v903 = vpop.f32.mrb[0].mxu0
        %v904 = vpop.f32.mrb[0].mxu0
        %v905 = vadd.f32 %v696, %v904
        %v906 = vpop.f32.mrb[0].mxu0
        %907 = vdwg.mxu0
        %s908 = scalar_lea.vmem %s1, 128
        %v909 = vld [vmem:[%s908] sm:$0xf]
        %v910 = vld [vmem:[%s908 + $0x4] sm:$0xf]
        %v911 = vld [vmem:[%s908 + $0x8] sm:$0xf]
        %v912 = vld [vmem:[%s908 + $0xc] sm:$0xf]
        %v913 = vld [vmem:[%s908 + $0x10] sm:$0xf]
        %v914 = vld [vmem:[%s908 + $0x14] sm:$0xf]
        %v915 = vld [vmem:[%s908 + $0x18] sm:$0xf]
        %v916 = vld [vmem:[%s908 + $0x1c] sm:$0xf]
        %v917 = vld [vmem:[%s908 + $0x20] sm:$0xf]
        %v918 = vld [vmem:[%s908 + $0x24] sm:$0xf]
        %v919 = vld [vmem:[%s908 + $0x28] sm:$0xf]
        %v920 = vld [vmem:[%s908 + $0x2c] sm:$0xf]
        %v921 = vld [vmem:[%s908 + $0x30] sm:$0xf]
        %v922 = vld [vmem:[%s908 + $0x34] sm:$0xf]
        %v923 = vld [vmem:[%s908 + $0x38] sm:$0xf]
        %v924 = vld [vmem:[%s908 + $0x3c] sm:$0xf]
        %v941 = vunpack.c.l.b16 %v909
        %v942 = vunpack.c.l.b16 %v910
        %v943 = vunpack.c.l.b16 %v911
        %v944 = vunpack.c.l.b16 %v912
        %v945 = vunpack.c.l.b16 %v913
        %v946 = vunpack.c.l.b16 %v914
        %v947 = vunpack.c.l.b16 %v915
        %v948 = vunpack.c.l.b16 %v916
        %v949 = vunpack.c.l.b16 %v917
        %v950 = vunpack.c.l.b16 %v918
        %v951 = vunpack.c.l.b16 %v919
        %v952 = vunpack.c.l.b16 %v920
        %v953 = vunpack.c.l.b16 %v921
        %v954 = vunpack.c.l.b16 %v922
        %v955 = vunpack.c.l.b16 %v923
        %v956 = vunpack.c.l.b16 %v924
        %v957 = vpack.c.b16 %v942, %v941
        %v958 = vpack.c.b16 %v944, %v943
        %v959 = vpack.c.b16 %v946, %v945
        %v960 = vpack.c.b16 %v948, %v947
        %v961 = vpack.c.b16 %v950, %v949
        %v962 = vpack.c.b16 %v952, %v951
        %v963 = vpack.c.b16 %v954, %v953
        %v964 = vpack.c.b16 %v956, %v955
        %973 = vmatprep.subr.bf16.mxu0 0
        %974 = vmatpush1.bf16.msra.mxu0 %v957
        %975 = vmatprep.subr.bf16.mxu0 0
        %976 = vmatpush1.bf16.msra.mxu0 %v958
        %977 = vmatprep.subr.bf16.mxu0 0
        %978 = vmatpush1.bf16.msra.mxu0 %v959
        %979 = vmatprep.subr.bf16.mxu0 0
        %980 = vmatpush1.bf16.msra.mxu0 %v960
        %981 = vmatprep.subr.bf16.mxu0 0
        %982 = vmatpush1.bf16.msra.mxu0 %v961
        %983 = vmatprep.subr.bf16.mxu0 0
        %984 = vmatpush1.bf16.msra.mxu0 %v962
        %985 = vmatprep.subr.bf16.mxu0 0
        %986 = vmatpush1.bf16.msra.mxu0 %v963
        %987 = vmatprep.subr.bf16.mxu0 0
        %988 = vmatpush1.bf16.msra.mxu0 %v964
        %989 = vmatprep.subr.bf16.mxu0 0
        %990 = vmatpush1.bf16.msra.mxu0 0
        %991 = vmatprep.subr.bf16.mxu0 0
        %992 = vmatpush1.bf16.msra.mxu0 0
        %993 = vmatprep.subr.bf16.mxu0 0
        %994 = vmatpush1.bf16.msra.mxu0 0
        %995 = vmatprep.subr.bf16.mxu0 0
        %996 = vmatpush1.bf16.msra.mxu0 0
        %997 = vmatprep.subr.bf16.mxu0 0
        %998 = vmatpush1.bf16.msra.mxu0 0
        %999 = vmatprep.subr.bf16.mxu0 0
        %1000 = vmatpush1.bf16.msra.mxu0 0
        %1001 = vmatprep.subr.bf16.mxu0 0
        %1002 = vmatpush1.bf16.msra.mxu0 0
        %1003 = vmatprep.subr.bf16.mxu0 0
        %1004 = vmatpush1.bf16.msra.mxu0 0
        %1005 = vmatprep.mubr.bf16.mxu0 0
        %1006 = vmatmul.mubr.bf16.gmra.mrb[0].mxu0 %v441
        %v1007 = vpop.f32.mrb[0].mxu0
        %v1008 = vadd.f32 0.0, %v1007
        %v1009 = vpop.f32.mrb[0].mxu0
        %v1010 = vpop.f32.mrb[0].mxu0
        %v1011 = vadd.f32 0.0, %v1010
        %v1012 = vpop.f32.mrb[0].mxu0
        %1013 = vmatprep.mubr.bf16.mxu0 0
        %1014 = vmatmul.mubr.bf16.gmra.mrb[0].mxu0 %v442
        %v1015 = vpop.f32.mrb[0].mxu0
        %v1016 = vadd.f32 0.0, %v1015
        %v1017 = vpop.f32.mrb[0].mxu0
        %v1018 = vpop.f32.mrb[0].mxu0
        %v1019 = vadd.f32 0.0, %v1018
        %v1020 = vpop.f32.mrb[0].mxu0
        %1021 = vmatprep.mubr.bf16.mxu0 0
        %1022 = vmatmul.mubr.bf16.gmra.mrb[0].mxu0 %v443
        %v1023 = vpop.f32.mrb[0].mxu0
        %v1024 = vadd.f32 0.0, %v1023
        %v1025 = vpop.f32.mrb[0].mxu0
        %v1026 = vpop.f32.mrb[0].mxu0
        %v1027 = vadd.f32 0.0, %v1026
        %v1028 = vpop.f32.mrb[0].mxu0
        %1029 = vmatprep.mubr.bf16.mxu0 0
        %1030 = vmatmul.mubr.bf16.gmra.mrb[0].mxu0 %v444
        %v1031 = vpop.f32.mrb[0].mxu0
        %v1032 = vadd.f32 0.0, %v1031
        %v1033 = vpop.f32.mrb[0].mxu0
        %v1034 = vpop.f32.mrb[0].mxu0
        %v1035 = vadd.f32 0.0, %v1034
        %v1036 = vpop.f32.mrb[0].mxu0
        %1037 = vmatprep.mubr.bf16.mxu0 0
        %1038 = vmatmul.mubr.bf16.gmra.mrb[0].mxu0 %v445
        %v1039 = vpop.f32.mrb[0].mxu0
        %v1040 = vadd.f32 0.0, %v1039
        %v1041 = vpop.f32.mrb[0].mxu0
        %v1042 = vpop.f32.mrb[0].mxu0
        %v1043 = vadd.f32 0.0, %v1042
        %v1044 = vpop.f32.mrb[0].mxu0
        %1045 = vmatprep.mubr.bf16.mxu0 0
        %1046 = vmatmul.mubr.bf16.gmra.mrb[0].mxu0 %v446
        %v1047 = vpop.f32.mrb[0].mxu0
        %v1048 = vadd.f32 0.0, %v1047
        %v1049 = vpop.f32.mrb[0].mxu0
        %v1050 = vpop.f32.mrb[0].mxu0
        %v1051 = vadd.f32 0.0, %v1050
        %v1052 = vpop.f32.mrb[0].mxu0
        %1053 = vmatprep.mubr.bf16.mxu0 0
        %1054 = vmatmul.mubr.bf16.gmra.mrb[0].mxu0 %v447
        %v1055 = vpop.f32.mrb[0].mxu0
        %v1056 = vadd.f32 0.0, %v1055
        %v1057 = vpop.f32.mrb[0].mxu0
        %v1058 = vpop.f32.mrb[0].mxu0
        %v1059 = vadd.f32 0.0, %v1058
        %v1060 = vpop.f32.mrb[0].mxu0
        %1061 = vmatprep.mubr.bf16.mxu0 0
        %1062 = vmatmul.mubr.bf16.gmra.mrb[0].mxu0 %v448
        %v1063 = vpop.f32.mrb[0].mxu0
        %v1064 = vadd.f32 0.0, %v1063
        %v1065 = vpop.f32.mrb[0].mxu0
        %v1066 = vpop.f32.mrb[0].mxu0
        %v1067 = vadd.f32 0.0, %v1066
        %v1068 = vpop.f32.mrb[0].mxu0
        %1069 = vmatprep.mubr.bf16.mxu0 0
        %1070 = vmatmul.mubr.bf16.gmra.mrb[0].mxu0 %v449
        %v1071 = vpop.f32.mrb[0].mxu0
        %v1072 = vadd.f32 0.0, %v1071
        %v1073 = vpop.f32.mrb[0].mxu0
        %v1074 = vpop.f32.mrb[0].mxu0
        %v1075 = vadd.f32 0.0, %v1074
        %v1076 = vpop.f32.mrb[0].mxu0
        %1077 = vmatprep.mubr.bf16.mxu0 0
        %1078 = vmatmul.mubr.bf16.gmra.mrb[0].mxu0 %v450
        %v1079 = vpop.f32.mrb[0].mxu0
        %v1080 = vadd.f32 0.0, %v1079
        %v1081 = vpop.f32.mrb[0].mxu0
        %v1082 = vpop.f32.mrb[0].mxu0
        %v1083 = vadd.f32 0.0, %v1082
        %v1084 = vpop.f32.mrb[0].mxu0
        %1085 = vmatprep.mubr.bf16.mxu0 0
        %1086 = vmatmul.mubr.bf16.gmra.mrb[0].mxu0 %v451
        %v1087 = vpop.f32.mrb[0].mxu0
        %v1088 = vadd.f32 0.0, %v1087
        %v1089 = vpop.f32.mrb[0].mxu0
        %v1090 = vpop.f32.mrb[0].mxu0
        %v1091 = vadd.f32 0.0, %v1090
        %v1092 = vpop.f32.mrb[0].mxu0
        %1093 = vmatprep.mubr.bf16.mxu0 0
        %1094 = vmatmul.mubr.bf16.gmra.mrb[0].mxu0 %v452
        %v1095 = vpop.f32.mrb[0].mxu0
        %v1096 = vadd.f32 0.0, %v1095
        %v1097 = vpop.f32.mrb[0].mxu0
        %v1098 = vpop.f32.mrb[0].mxu0
        %v1099 = vadd.f32 0.0, %v1098
        %v1100 = vpop.f32.mrb[0].mxu0
        %1101 = vmatprep.mubr.bf16.mxu0 0
        %1102 = vmatmul.mubr.bf16.gmra.mrb[0].mxu0 %v453
        %v1103 = vpop.f32.mrb[0].mxu0
        %v1104 = vadd.f32 0.0, %v1103
        %v1105 = vpop.f32.mrb[0].mxu0
        %v1106 = vpop.f32.mrb[0].mxu0
        %v1107 = vadd.f32 0.0, %v1106
        %v1108 = vpop.f32.mrb[0].mxu0
        %1109 = vmatprep.mubr.bf16.mxu0 0
        %1110 = vmatmul.mubr.bf16.gmra.mrb[0].mxu0 %v454
        %v1111 = vpop.f32.mrb[0].mxu0
        %v1112 = vadd.f32 0.0, %v1111
        %v1113 = vpop.f32.mrb[0].mxu0
        %v1114 = vpop.f32.mrb[0].mxu0
        %v1115 = vadd.f32 0.0, %v1114
        %v1116 = vpop.f32.mrb[0].mxu0
        %1117 = vmatprep.mubr.bf16.mxu0 0
        %1118 = vmatmul.mubr.bf16.gmra.mrb[0].mxu0 %v455
        %v1119 = vpop.f32.mrb[0].mxu0
        %v1120 = vadd.f32 0.0, %v1119
        %v1121 = vpop.f32.mrb[0].mxu0
        %v1122 = vpop.f32.mrb[0].mxu0
        %v1123 = vadd.f32 0.0, %v1122
        %v1124 = vpop.f32.mrb[0].mxu0
        %1125 = vmatprep.mubr.bf16.mxu0 0
        %1126 = vmatmul.mubr.bf16.gmra.mrb[0].mxu0 %v456
        %v1127 = vpop.f32.mrb[0].mxu0
        %v1128 = vadd.f32 0.0, %v1127
        %v1129 = vpop.f32.mrb[0].mxu0
        %v1130 = vpop.f32.mrb[0].mxu0
        %v1131 = vadd.f32 0.0, %v1130
        %v1132 = vpop.f32.mrb[0].mxu0
        %1133 = vdwg.mxu0
        %v1134 = vadd.f32 %v782, %v1008
        %v1135 = vadd.f32 %v785, %v1011
        %v1136 = vadd.f32 %v790, %v1016
        %v1137 = vadd.f32 %v793, %v1019
        %v1138 = vadd.f32 %v798, %v1024
        %v1139 = vadd.f32 %v801, %v1027
        %v1140 = vadd.f32 %v806, %v1032
        %v1141 = vadd.f32 %v809, %v1035
        %v1142 = vadd.f32 %v814, %v1040
        %v1143 = vadd.f32 %v817, %v1043
        %v1144 = vadd.f32 %v822, %v1048
        %v1145 = vadd.f32 %v825, %v1051
        %v1146 = vadd.f32 %v830, %v1056
        %v1147 = vadd.f32 %v833, %v1059
        %v1148 = vadd.f32 %v838, %v1064
        %v1149 = vadd.f32 %v841, %v1067
        %v1150 = vadd.f32 %v846, %v1072
        %v1151 = vadd.f32 %v849, %v1075
        %v1152 = vadd.f32 %v854, %v1080
        %v1153 = vadd.f32 %v857, %v1083
        %v1154 = vadd.f32 %v862, %v1088
        %v1155 = vadd.f32 %v865, %v1091
        %v1156 = vadd.f32 %v870, %v1096
        %v1157 = vadd.f32 %v873, %v1099
        %v1158 = vadd.f32 %v878, %v1104
        %v1159 = vadd.f32 %v881, %v1107
        %v1160 = vadd.f32 %v886, %v1112
        %v1161 = vadd.f32 %v889, %v1115
        %v1162 = vadd.f32 %v894, %v1120
        %v1163 = vadd.f32 %v897, %v1123
        %v1164 = vadd.f32 %v902, %v1128
        %v1165 = vadd.f32 %v905, %v1131
        %vm1166 = vcmp.eq.s32.totalorder %v216, 96
        %v1167 = vsel %vm1166, 1, 0
        %vm1168 = vcmp.eq.s32.totalorder %v1167, 1
        %v1169 = vsel %vm1168, %v1134, 0.0
        %v1170 = vsel %vm1168, %v1135, 0.0
        %v1171 = vsel %vm1168, %v1136, 0.0
        %v1172 = vsel %vm1168, %v1137, 0.0
        %v1173 = vsel %vm1168, %v1138, 0.0
        %v1174 = vsel %vm1168, %v1139, 0.0
        %v1175 = vsel %vm1168, %v1140, 0.0
        %v1176 = vsel %vm1168, %v1141, 0.0
        %v1177 = vsel %vm1168, %v1142, 0.0
        %v1178 = vsel %vm1168, %v1143, 0.0
        %v1179 = vsel %vm1168, %v1144, 0.0
        %v1180 = vsel %vm1168, %v1145, 0.0
        %v1181 = vsel %vm1168, %v1146, 0.0
        %v1182 = vsel %vm1168, %v1147, 0.0
        %v1183 = vsel %vm1168, %v1148, 0.0
        %v1184 = vsel %vm1168, %v1149, 0.0
        %v1185 = vsel %vm1168, %v1150, 0.0
        %v1186 = vsel %vm1168, %v1151, 0.0
        %v1187 = vsel %vm1168, %v1152, 0.0
        %v1188 = vsel %vm1168, %v1153, 0.0
        %v1189 = vsel %vm1168, %v1154, 0.0
        %v1190 = vsel %vm1168, %v1155, 0.0
        %v1191 = vsel %vm1168, %v1156, 0.0
        %v1192 = vsel %vm1168, %v1157, 0.0
        %v1193 = vsel %vm1168, %v1158, 0.0
        %v1194 = vsel %vm1168, %v1159, 0.0
        %v1195 = vsel %vm1168, %v1160, 0.0
        %v1196 = vsel %vm1168, %v1161, 0.0
        %v1197 = vsel %vm1168, %v1162, 0.0
        %v1198 = vsel %vm1168, %v1163, 0.0
        %v1199 = vsel %vm1168, %v1164, 0.0
        %v1200 = vsel %vm1168, %v1165, 0.0
        %v1201 = vsub.f32 %v1134, %v1169
        %v1202 = vsub.f32 %v1135, %v1170
        %v1203 = vsub.f32 %v1136, %v1171
        %v1204 = vsub.f32 %v1137, %v1172
        %v1205 = vsub.f32 %v1138, %v1173
        %v1206 = vsub.f32 %v1139, %v1174
        %v1207 = vsub.f32 %v1140, %v1175
        %v1208 = vsub.f32 %v1141, %v1176
        %v1209 = vsub.f32 %v1142, %v1177
        %v1210 = vsub.f32 %v1143, %v1178
        %v1211 = vsub.f32 %v1144, %v1179
        %v1212 = vsub.f32 %v1145, %v1180
        %v1213 = vsub.f32 %v1146, %v1181
        %v1214 = vsub.f32 %v1147, %v1182
        %v1215 = vsub.f32 %v1148, %v1183
        %v1216 = vsub.f32 %v1149, %v1184
        %v1217 = vsub.f32 %v1150, %v1185
        %v1218 = vsub.f32 %v1151, %v1186
        %v1219 = vsub.f32 %v1152, %v1187
        %v1220 = vsub.f32 %v1153, %v1188
        %v1221 = vsub.f32 %v1154, %v1189
        %v1222 = vsub.f32 %v1155, %v1190
        %v1223 = vsub.f32 %v1156, %v1191
        %v1224 = vsub.f32 %v1157, %v1192
        %v1225 = vsub.f32 %v1158, %v1193
        %v1226 = vsub.f32 %v1159, %v1194
        %v1227 = vsub.f32 %v1160, %v1195
        %v1228 = vsub.f32 %v1161, %v1196
        %v1229 = vsub.f32 %v1162, %v1197
        %v1230 = vsub.f32 %v1163, %v1198
        %v1231 = vsub.f32 %v1164, %v1199
        %v1232 = vsub.f32 %v1165, %v1200
        %v1233 = vmul.f32 %v1201, %v1201
        %v1234 = vmul.f32 %v1202, %v1202
        %v1235 = vmul.f32 %v1203, %v1203
        %v1236 = vmul.f32 %v1204, %v1204
        %v1237 = vmul.f32 %v1205, %v1205
        %v1238 = vmul.f32 %v1206, %v1206
        %v1239 = vmul.f32 %v1207, %v1207
        %v1240 = vmul.f32 %v1208, %v1208
        %v1241 = vmul.f32 %v1209, %v1209
        %v1242 = vmul.f32 %v1210, %v1210
        %v1243 = vmul.f32 %v1211, %v1211
        %v1244 = vmul.f32 %v1212, %v1212
        %v1245 = vmul.f32 %v1213, %v1213
        %v1246 = vmul.f32 %v1214, %v1214
        %v1247 = vmul.f32 %v1215, %v1215
        %v1248 = vmul.f32 %v1216, %v1216
        %v1249 = vmul.f32 %v1217, %v1217
        %v1250 = vmul.f32 %v1218, %v1218
        %v1251 = vmul.f32 %v1219, %v1219
        %v1252 = vmul.f32 %v1220, %v1220
        %v1253 = vmul.f32 %v1221, %v1221
        %v1254 = vmul.f32 %v1222, %v1222
        %v1255 = vmul.f32 %v1223, %v1223
        %v1256 = vmul.f32 %v1224, %v1224
        %v1257 = vmul.f32 %v1225, %v1225
        %v1258 = vmul.f32 %v1226, %v1226
        %v1259 = vmul.f32 %v1227, %v1227
        %v1260 = vmul.f32 %v1228, %v1228
        %v1261 = vmul.f32 %v1229, %v1229
        %v1262 = vmul.f32 %v1230, %v1230
        %v1263 = vmul.f32 %v1231, %v1231
        %v1264 = vmul.f32 %v1232, %v1232
        %1265 = vadd.xlane.f32.xlu0 %v1233
        %v1266 = vpop.xlane.xlu0 %1265
        %1267 = vadd.xlane.f32.xlu0 %v1234
        %v1268 = vpop.xlane.xlu0 %1267
        %1269 = vadd.xlane.f32.xlu0 %v1235
        %v1270 = vpop.xlane.xlu0 %1269
        %1271 = vadd.xlane.f32.xlu0 %v1236
        %v1272 = vpop.xlane.xlu0 %1271
        %1273 = vadd.xlane.f32.xlu0 %v1237
        %v1274 = vpop.xlane.xlu0 %1273
        %1275 = vadd.xlane.f32.xlu0 %v1238
        %v1276 = vpop.xlane.xlu0 %1275
        %1277 = vadd.xlane.f32.xlu0 %v1239
        %v1278 = vpop.xlane.xlu0 %1277
        %1279 = vadd.xlane.f32.xlu0 %v1240
        %v1280 = vpop.xlane.xlu0 %1279
        %1281 = vadd.xlane.f32.xlu0 %v1241
        %v1282 = vpop.xlane.xlu0 %1281
        %1283 = vadd.xlane.f32.xlu0 %v1242
        %v1284 = vpop.xlane.xlu0 %1283
        %1285 = vadd.xlane.f32.xlu0 %v1243
        %v1286 = vpop.xlane.xlu0 %1285
        %1287 = vadd.xlane.f32.xlu0 %v1244
        %v1288 = vpop.xlane.xlu0 %1287
        %1289 = vadd.xlane.f32.xlu0 %v1245
        %v1290 = vpop.xlane.xlu0 %1289
        %1291 = vadd.xlane.f32.xlu0 %v1246
        %v1292 = vpop.xlane.xlu0 %1291
        %1293 = vadd.xlane.f32.xlu0 %v1247
        %v1294 = vpop.xlane.xlu0 %1293
        %1295 = vadd.xlane.f32.xlu0 %v1248
        %v1296 = vpop.xlane.xlu0 %1295
        %1297 = vadd.xlane.f32.xlu0 %v1249
        %v1298 = vpop.xlane.xlu0 %1297
        %1299 = vadd.xlane.f32.xlu0 %v1250
        %v1300 = vpop.xlane.xlu0 %1299
        %1301 = vadd.xlane.f32.xlu0 %v1251
        %v1302 = vpop.xlane.xlu0 %1301
        %1303 = vadd.xlane.f32.xlu0 %v1252
        %v1304 = vpop.xlane.xlu0 %1303
        %1305 = vadd.xlane.f32.xlu0 %v1253
        %v1306 = vpop.xlane.xlu0 %1305
        %1307 = vadd.xlane.f32.xlu0 %v1254
        %v1308 = vpop.xlane.xlu0 %1307
        %1309 = vadd.xlane.f32.xlu0 %v1255
        %v1310 = vpop.xlane.xlu0 %1309
        %1311 = vadd.xlane.f32.xlu0 %v1256
        %v1312 = vpop.xlane.xlu0 %1311
        %1313 = vadd.xlane.f32.xlu0 %v1257
        %v1314 = vpop.xlane.xlu0 %1313
        %1315 = vadd.xlane.f32.xlu0 %v1258
        %v1316 = vpop.xlane.xlu0 %1315
        %1317 = vadd.xlane.f32.xlu0 %v1259
        %v1318 = vpop.xlane.xlu0 %1317
        %1319 = vadd.xlane.f32.xlu0 %v1260
        %v1320 = vpop.xlane.xlu0 %1319
        %1321 = vadd.xlane.f32.xlu0 %v1261
        %v1322 = vpop.xlane.xlu0 %1321
        %1323 = vadd.xlane.f32.xlu0 %v1262
        %v1324 = vpop.xlane.xlu0 %1323
        %1325 = vadd.xlane.f32.xlu0 %v1263
        %v1326 = vpop.xlane.xlu0 %1325
        %1327 = vadd.xlane.f32.xlu0 %v1264
        %v1328 = vpop.xlane.xlu0 %1327
        %v1329 = vmax.f32 %v1266, 1e-24
        %v1330 = vmax.f32 %v1268, 1e-24
        %v1331 = vmax.f32 %v1270, 1e-24
        %v1332 = vmax.f32 %v1272, 1e-24
        %v1333 = vmax.f32 %v1274, 1e-24
        %v1334 = vmax.f32 %v1276, 1e-24
        %v1335 = vmax.f32 %v1278, 1e-24
        %v1336 = vmax.f32 %v1280, 1e-24
        %v1337 = vmax.f32 %v1282, 1e-24
        %v1338 = vmax.f32 %v1284, 1e-24
        %v1339 = vmax.f32 %v1286, 1e-24
        %v1340 = vmax.f32 %v1288, 1e-24
        %v1341 = vmax.f32 %v1290, 1e-24
        %v1342 = vmax.f32 %v1292, 1e-24
        %v1343 = vmax.f32 %v1294, 1e-24
        %v1344 = vmax.f32 %v1296, 1e-24
        %v1345 = vmax.f32 %v1298, 1e-24
        %v1346 = vmax.f32 %v1300, 1e-24
        %v1347 = vmax.f32 %v1302, 1e-24
        %v1348 = vmax.f32 %v1304, 1e-24
        %v1349 = vmax.f32 %v1306, 1e-24
        %v1350 = vmax.f32 %v1308, 1e-24
        %v1351 = vmax.f32 %v1310, 1e-24
        %v1352 = vmax.f32 %v1312, 1e-24
        %v1353 = vmax.f32 %v1314, 1e-24
        %v1354 = vmax.f32 %v1316, 1e-24
        %v1355 = vmax.f32 %v1318, 1e-24
        %v1356 = vmax.f32 %v1320, 1e-24
        %v1357 = vmax.f32 %v1322, 1e-24
        %v1358 = vmax.f32 %v1324, 1e-24
        %v1359 = vmax.f32 %v1326, 1e-24
        %v1360 = vmax.f32 %v1328, 1e-24
        %v1361 = vrsqrt.pop %v1329
        %v1362 = vrsqrt.pop %v1330
        %v1363 = vrsqrt.pop %v1331
        %v1364 = vrsqrt.pop %v1332
        %v1365 = vrsqrt.pop %v1333
        %v1366 = vrsqrt.pop %v1334
        %v1367 = vrsqrt.pop %v1335
        %v1368 = vrsqrt.pop %v1336
        %v1369 = vrsqrt.pop %v1337
        %v1370 = vrsqrt.pop %v1338
        %v1371 = vrsqrt.pop %v1339
        %v1372 = vrsqrt.pop %v1340
        %v1373 = vrsqrt.pop %v1341
        %v1374 = vrsqrt.pop %v1342
        %v1375 = vrsqrt.pop %v1343
        %v1376 = vrsqrt.pop %v1344
        %v1377 = vrsqrt.pop %v1345
        %v1378 = vrsqrt.pop %v1346
        %v1379 = vrsqrt.pop %v1347
        %v1380 = vrsqrt.pop %v1348
        %v1381 = vrsqrt.pop %v1349
        %v1382 = vrsqrt.pop %v1350
        %v1383 = vrsqrt.pop %v1351
        %v1384 = vrsqrt.pop %v1352
        %v1385 = vrsqrt.pop %v1353
        %v1386 = vrsqrt.pop %v1354
        %v1387 = vrsqrt.pop %v1355
        %v1388 = vrsqrt.pop %v1356
        %v1389 = vrsqrt.pop %v1357
        %v1390 = vrsqrt.pop %v1358
        %v1391 = vrsqrt.pop %v1359
        %v1392 = vrsqrt.pop %v1360
        %v1393 = vmul.f32 %v1201, %v1361
        %v1394 = vmul.f32 %v1202, %v1362
        %v1395 = vmul.f32 %v1203, %v1363
        %v1396 = vmul.f32 %v1204, %v1364
        %v1397 = vmul.f32 %v1205, %v1365
        %v1398 = vmul.f32 %v1206, %v1366
        %v1399 = vmul.f32 %v1207, %v1367
        %v1400 = vmul.f32 %v1208, %v1368
        %v1401 = vmul.f32 %v1209, %v1369
        %v1402 = vmul.f32 %v1210, %v1370
        %v1403 = vmul.f32 %v1211, %v1371
        %v1404 = vmul.f32 %v1212, %v1372
        %v1405 = vmul.f32 %v1213, %v1373
        %v1406 = vmul.f32 %v1214, %v1374
        %v1407 = vmul.f32 %v1215, %v1375
        %v1408 = vmul.f32 %v1216, %v1376
        %v1409 = vmul.f32 %v1217, %v1377
        %v1410 = vmul.f32 %v1218, %v1378
        %v1411 = vmul.f32 %v1219, %v1379
        %v1412 = vmul.f32 %v1220, %v1380
        %v1413 = vmul.f32 %v1221, %v1381
        %v1414 = vmul.f32 %v1222, %v1382
        %v1415 = vmul.f32 %v1223, %v1383
        %v1416 = vmul.f32 %v1224, %v1384
        %v1417 = vmul.f32 %v1225, %v1385
        %v1418 = vmul.f32 %v1226, %v1386
        %v1419 = vmul.f32 %v1227, %v1387
        %v1420 = vmul.f32 %v1228, %v1388
        %v1421 = vmul.f32 %v1229, %v1389
        %v1422 = vmul.f32 %v1230, %v1390
        %v1423 = vmul.f32 %v1231, %v1391
        %v1424 = vmul.f32 %v1232, %v1392
        %v1425 = vadd.f32 %v1393, %v1169
        %v1426 = vadd.f32 %v1394, %v1170
        %v1427 = vadd.f32 %v1395, %v1171
        %v1428 = vadd.f32 %v1396, %v1172
        %v1429 = vadd.f32 %v1397, %v1173
        %v1430 = vadd.f32 %v1398, %v1174
        %v1431 = vadd.f32 %v1399, %v1175
        %v1432 = vadd.f32 %v1400, %v1176
        %v1433 = vadd.f32 %v1401, %v1177
        %v1434 = vadd.f32 %v1402, %v1178
        %v1435 = vadd.f32 %v1403, %v1179
        %v1436 = vadd.f32 %v1404, %v1180
        %v1437 = vadd.f32 %v1405, %v1181
        %v1438 = vadd.f32 %v1406, %v1182
        %v1439 = vadd.f32 %v1407, %v1183
        %v1440 = vadd.f32 %v1408, %v1184
        %v1441 = vadd.f32 %v1409, %v1185
        %v1442 = vadd.f32 %v1410, %v1186
        %v1443 = vadd.f32 %v1411, %v1187
        %v1444 = vadd.f32 %v1412, %v1188
        %v1445 = vadd.f32 %v1413, %v1189
        %v1446 = vadd.f32 %v1414, %v1190
        %v1447 = vadd.f32 %v1415, %v1191
        %v1448 = vadd.f32 %v1416, %v1192
        %v1449 = vadd.f32 %v1417, %v1193
        %v1450 = vadd.f32 %v1418, %v1194
        %v1451 = vadd.f32 %v1419, %v1195
        %v1452 = vadd.f32 %v1420, %v1196
        %v1453 = vadd.f32 %v1421, %v1197
        %v1454 = vadd.f32 %v1422, %v1198
        %v1455 = vadd.f32 %v1423, %v1199
        %v1456 = vadd.f32 %v1424, %v1200
        %1457 = vset.pattern.permute.xlu0 1
        %1458 = vperm.xlu0 %1457, %v217
        %v1459 = vpop.permute.xlu0 %1458
        %1460 = vset.pattern.permute.xlu0 1
        %1461 = vperm.xlu0 %1460, %v218
        %v1462 = vpop.permute.xlu0 %1461
        %1463 = vset.pattern.permute.xlu0 1
        %1464 = vperm.xlu0 %1463, %v219
        %v1465 = vpop.permute.xlu0 %1464
        %1466 = vset.pattern.permute.xlu0 1
        %1467 = vperm.xlu0 %1466, %v220
        %v1468 = vpop.permute.xlu0 %1467
        %1469 = vset.pattern.permute.xlu0 1
        %1470 = vperm.xlu0 %1469, %v221
        %v1471 = vpop.permute.xlu0 %1470
        %1472 = vset.pattern.permute.xlu0 1
        %1473 = vperm.xlu0 %1472, %v222
        %v1474 = vpop.permute.xlu0 %1473
        %1475 = vset.pattern.permute.xlu0 1
        %1476 = vperm.xlu0 %1475, %v223
        %v1477 = vpop.permute.xlu0 %1476
        %1478 = vset.pattern.permute.xlu0 1
        %1479 = vperm.xlu0 %1478, %v224
        %v1480 = vpop.permute.xlu0 %1479
        %1481 = vset.pattern.permute.xlu0 1
        %1482 = vperm.xlu0 %1481, %v225
        %v1483 = vpop.permute.xlu0 %1482
        %1484 = vset.pattern.permute.xlu0 1
        %1485 = vperm.xlu0 %1484, %v226
        %v1486 = vpop.permute.xlu0 %1485
        %1487 = vset.pattern.permute.xlu0 1
        %1488 = vperm.xlu0 %1487, %v227
        %v1489 = vpop.permute.xlu0 %1488
        %1490 = vset.pattern.permute.xlu0 1
        %1491 = vperm.xlu0 %1490, %v228
        %v1492 = vpop.permute.xlu0 %1491
        %1493 = vset.pattern.permute.xlu0 1
        %1494 = vperm.xlu0 %1493, %v229
        %v1495 = vpop.permute.xlu0 %1494
        %1496 = vset.pattern.permute.xlu0 1
        %1497 = vperm.xlu0 %1496, %v230
        %v1498 = vpop.permute.xlu0 %1497
        %1499 = vset.pattern.permute.xlu0 1
        %1500 = vperm.xlu0 %1499, %v231
        %v1501 = vpop.permute.xlu0 %1500
        %1502 = vset.pattern.permute.xlu0 1
        %1503 = vperm.xlu0 %1502, %v232
        %v1504 = vpop.permute.xlu0 %1503
        %1505 = vset.pattern.permute.xlu0 1
        %1506 = vperm.xlu0 %1505, %v233
        %v1507 = vpop.permute.xlu0 %1506
        %1508 = vset.pattern.permute.xlu0 1
        %1509 = vperm.xlu0 %1508, %v234
        %v1510 = vpop.permute.xlu0 %1509
        %1511 = vset.pattern.permute.xlu0 1
        %1512 = vperm.xlu0 %1511, %v235
        %v1513 = vpop.permute.xlu0 %1512
        %1514 = vset.pattern.permute.xlu0 1
        %1515 = vperm.xlu0 %1514, %v236
        %v1516 = vpop.permute.xlu0 %1515
        %1517 = vset.pattern.permute.xlu0 1
        %1518 = vperm.xlu0 %1517, %v237
        %v1519 = vpop.permute.xlu0 %1518
        %1520 = vset.pattern.permute.xlu0 1
        %1521 = vperm.xlu0 %1520, %v238
        %v1522 = vpop.permute.xlu0 %1521
        %1523 = vset.pattern.permute.xlu0 1
        %1524 = vperm.xlu0 %1523, %v239
        %v1525 = vpop.permute.xlu0 %1524
        %1526 = vset.pattern.permute.xlu0 1
        %1527 = vperm.xlu0 %1526, %v240
        %v1528 = vpop.permute.xlu0 %1527
        %1529 = vset.pattern.permute.xlu0 1
        %1530 = vperm.xlu0 %1529, %v241
        %v1531 = vpop.permute.xlu0 %1530
        %1532 = vset.pattern.permute.xlu0 1
        %1533 = vperm.xlu0 %1532, %v242
        %v1534 = vpop.permute.xlu0 %1533
        %1535 = vset.pattern.permute.xlu0 1
        %1536 = vperm.xlu0 %1535, %v243
        %v1537 = vpop.permute.xlu0 %1536
        %1538 = vset.pattern.permute.xlu0 1
        %1539 = vperm.xlu0 %1538, %v244
        %v1540 = vpop.permute.xlu0 %1539
        %1541 = vset.pattern.permute.xlu0 1
        %1542 = vperm.xlu0 %1541, %v245
        %v1543 = vpop.permute.xlu0 %1542
        %1544 = vset.pattern.permute.xlu0 1
        %1545 = vperm.xlu0 %1544, %v246
        %v1546 = vpop.permute.xlu0 %1545
        %1547 = vset.pattern.permute.xlu0 1
        %1548 = vperm.xlu0 %1547, %v247
        %v1549 = vpop.permute.xlu0 %1548
        %1550 = vset.pattern.permute.xlu0 1
        %1551 = vperm.xlu0 %1550, %v248
        %v1552 = vpop.permute.xlu0 %1551
        %vm1553 = vcmp.eq.s32.totalorder %v216, %v1459
        %vm1554 = vcmp.eq.s32.totalorder %v216, %v1462
        %vm1555 = vcmp.eq.s32.totalorder %v216, %v1465
        %vm1556 = vcmp.eq.s32.totalorder %v216, %v1468
        %vm1557 = vcmp.eq.s32.totalorder %v216, %v1471
        %vm1558 = vcmp.eq.s32.totalorder %v216, %v1474
        %vm1559 = vcmp.eq.s32.totalorder %v216, %v1477
        %vm1560 = vcmp.eq.s32.totalorder %v216, %v1480
        %vm1561 = vcmp.eq.s32.totalorder %v216, %v1483
        %vm1562 = vcmp.eq.s32.totalorder %v216, %v1486
        %vm1563 = vcmp.eq.s32.totalorder %v216, %v1489
        %vm1564 = vcmp.eq.s32.totalorder %v216, %v1492
        %vm1565 = vcmp.eq.s32.totalorder %v216, %v1495
        %vm1566 = vcmp.eq.s32.totalorder %v216, %v1498
        %vm1567 = vcmp.eq.s32.totalorder %v216, %v1501
        %vm1568 = vcmp.eq.s32.totalorder %v216, %v1504
        %vm1569 = vcmp.eq.s32.totalorder %v216, %v1507
        %vm1570 = vcmp.eq.s32.totalorder %v216, %v1510
        %vm1571 = vcmp.eq.s32.totalorder %v216, %v1513
        %vm1572 = vcmp.eq.s32.totalorder %v216, %v1516
        %vm1573 = vcmp.eq.s32.totalorder %v216, %v1519
        %vm1574 = vcmp.eq.s32.totalorder %v216, %v1522
        %vm1575 = vcmp.eq.s32.totalorder %v216, %v1525
        %vm1576 = vcmp.eq.s32.totalorder %v216, %v1528
        %vm1577 = vcmp.eq.s32.totalorder %v216, %v1531
        %vm1578 = vcmp.eq.s32.totalorder %v216, %v1534
        %vm1579 = vcmp.eq.s32.totalorder %v216, %v1537
        %vm1580 = vcmp.eq.s32.totalorder %v216, %v1540
        %vm1581 = vcmp.eq.s32.totalorder %v216, %v1543
        %vm1582 = vcmp.eq.s32.totalorder %v216, %v1546
        %vm1583 = vcmp.eq.s32.totalorder %v216, %v1549
        %vm1584 = vcmp.eq.s32.totalorder %v216, %v1552
        %v1585 = vsel %vm1553, 1, 0
        %v1586 = vsel %vm1554, 1, 0
        %v1587 = vsel %vm1555, 1, 0
        %v1588 = vsel %vm1556, 1, 0
        %v1589 = vsel %vm1557, 1, 0
        %v1590 = vsel %vm1558, 1, 0
        %v1591 = vsel %vm1559, 1, 0
        %v1592 = vsel %vm1560, 1, 0
        %v1593 = vsel %vm1561, 1, 0
        %v1594 = vsel %vm1562, 1, 0
        %v1595 = vsel %vm1563, 1, 0
        %v1596 = vsel %vm1564, 1, 0
        %v1597 = vsel %vm1565, 1, 0
        %v1598 = vsel %vm1566, 1, 0
        %v1599 = vsel %vm1567, 1, 0
        %v1600 = vsel %vm1568, 1, 0
        %v1601 = vsel %vm1569, 1, 0
        %v1602 = vsel %vm1570, 1, 0
        %v1603 = vsel %vm1571, 1, 0
        %v1604 = vsel %vm1572, 1, 0
        %v1605 = vsel %vm1573, 1, 0
        %v1606 = vsel %vm1574, 1, 0
        %v1607 = vsel %vm1575, 1, 0
        %v1608 = vsel %vm1576, 1, 0
        %v1609 = vsel %vm1577, 1, 0
        %v1610 = vsel %vm1578, 1, 0
        %v1611 = vsel %vm1579, 1, 0
        %v1612 = vsel %vm1580, 1, 0
        %v1613 = vsel %vm1581, 1, 0
        %v1614 = vsel %vm1582, 1, 0
        %v1615 = vsel %vm1583, 1, 0
        %v1616 = vsel %vm1584, 1, 0
        %v1617 = vcvt.s32.f32 %v1585
        %v1618 = vcvt.s32.f32 %v1586
        %v1619 = vcvt.s32.f32 %v1587
        %v1620 = vcvt.s32.f32 %v1588
        %v1621 = vcvt.s32.f32 %v1589
        %v1622 = vcvt.s32.f32 %v1590
        %v1623 = vcvt.s32.f32 %v1591
        %v1624 = vcvt.s32.f32 %v1592
        %v1625 = vcvt.s32.f32 %v1593
        %v1626 = vcvt.s32.f32 %v1594
        %v1627 = vcvt.s32.f32 %v1595
        %v1628 = vcvt.s32.f32 %v1596
        %v1629 = vcvt.s32.f32 %v1597
        %v1630 = vcvt.s32.f32 %v1598
        %v1631 = vcvt.s32.f32 %v1599
        %v1632 = vcvt.s32.f32 %v1600
        %v1633 = vcvt.s32.f32 %v1601
        %v1634 = vcvt.s32.f32 %v1602
        %v1635 = vcvt.s32.f32 %v1603
        %v1636 = vcvt.s32.f32 %v1604
        %v1637 = vcvt.s32.f32 %v1605
        %v1638 = vcvt.s32.f32 %v1606
        %v1639 = vcvt.s32.f32 %v1607
        %v1640 = vcvt.s32.f32 %v1608
        %v1641 = vcvt.s32.f32 %v1609
        %v1642 = vcvt.s32.f32 %v1610
        %v1643 = vcvt.s32.f32 %v1611
        %v1644 = vcvt.s32.f32 %v1612
        %v1645 = vcvt.s32.f32 %v1613
        %v1646 = vcvt.s32.f32 %v1614
        %v1647 = vcvt.s32.f32 %v1615
        %v1648 = vcvt.s32.f32 %v1616
        %v1649 = vpack.c.bf16 %v1618, %v1617
        %v1650 = vpack.c.bf16 %v1620, %v1619
        %v1651 = vpack.c.bf16 %v1622, %v1621
        %v1652 = vpack.c.bf16 %v1624, %v1623
        %v1653 = vpack.c.bf16 %v1626, %v1625
        %v1654 = vpack.c.bf16 %v1628, %v1627
        %v1655 = vpack.c.bf16 %v1630, %v1629
        %v1656 = vpack.c.bf16 %v1632, %v1631
        %v1657 = vpack.c.bf16 %v1634, %v1633
        %v1658 = vpack.c.bf16 %v1636, %v1635
        %v1659 = vpack.c.bf16 %v1638, %v1637
        %v1660 = vpack.c.bf16 %v1640, %v1639
        %v1661 = vpack.c.bf16 %v1642, %v1641
        %v1662 = vpack.c.bf16 %v1644, %v1643
        %v1663 = vpack.c.bf16 %v1646, %v1645
        %v1664 = vpack.c.bf16 %v1648, %v1647
        %v1665 = vld [vmem:[%s2] sm:$0xf]
        %v1666 = vld [vmem:[%s2 + $0x4] sm:$0xf]
        %v1667 = vld [vmem:[%s2 + $0x8] sm:$0xf]
        %v1668 = vld [vmem:[%s2 + $0xc] sm:$0xf]
        %v1669 = vld [vmem:[%s2 + $0x10] sm:$0xf]
        %v1670 = vld [vmem:[%s2 + $0x14] sm:$0xf]
        %v1671 = vld [vmem:[%s2 + $0x18] sm:$0xf]
        %v1672 = vld [vmem:[%s2 + $0x1c] sm:$0xf]
        %v1673 = vld [vmem:[%s2 + $0x20] sm:$0xf]
        %v1674 = vld [vmem:[%s2 + $0x24] sm:$0xf]
        %v1675 = vld [vmem:[%s2 + $0x28] sm:$0xf]
        %v1676 = vld [vmem:[%s2 + $0x2c] sm:$0xf]
        %v1677 = vld [vmem:[%s2 + $0x30] sm:$0xf]
        %v1678 = vld [vmem:[%s2 + $0x34] sm:$0xf]
        %v1679 = vld [vmem:[%s2 + $0x38] sm:$0xf]
        %v1680 = vld [vmem:[%s2 + $0x3c] sm:$0xf]
        %s1681 = scalar_lea.vmem %s2, 64
        %v1682 = vld [vmem:[%s1681] sm:$0xf]
        %v1683 = vld [vmem:[%s1681 + $0x4] sm:$0xf]
        %v1684 = vld [vmem:[%s1681 + $0x8] sm:$0xf]
        %v1685 = vld [vmem:[%s1681 + $0xc] sm:$0xf]
        %v1686 = vld [vmem:[%s1681 + $0x10] sm:$0xf]
        %v1687 = vld [vmem:[%s1681 + $0x14] sm:$0xf]
        %v1688 = vld [vmem:[%s1681 + $0x18] sm:$0xf]
        %v1689 = vld [vmem:[%s1681 + $0x1c] sm:$0xf]
        %v1690 = vld [vmem:[%s1681 + $0x20] sm:$0xf]
        %v1691 = vld [vmem:[%s1681 + $0x24] sm:$0xf]
        %v1692 = vld [vmem:[%s1681 + $0x28] sm:$0xf]
        %v1693 = vld [vmem:[%s1681 + $0x2c] sm:$0xf]
        %v1694 = vld [vmem:[%s1681 + $0x30] sm:$0xf]
        %v1695 = vld [vmem:[%s1681 + $0x34] sm:$0xf]
        %v1696 = vld [vmem:[%s1681 + $0x38] sm:$0xf]
        %v1697 = vld [vmem:[%s1681 + $0x3c] sm:$0xf]
        %v1714 = vunpack.c.l.b16 %v1682
        %v1715 = vunpack.c.l.b16 %v1683
        %v1716 = vunpack.c.l.b16 %v1684
        %v1717 = vunpack.c.l.b16 %v1685
        %v1718 = vunpack.c.l.b16 %v1686
        %v1719 = vunpack.c.l.b16 %v1687
        %v1720 = vunpack.c.l.b16 %v1688
        %v1721 = vunpack.c.l.b16 %v1689
        %v1722 = vunpack.c.l.b16 %v1690
        %v1723 = vunpack.c.l.b16 %v1691
        %v1724 = vunpack.c.l.b16 %v1692
        %v1725 = vunpack.c.l.b16 %v1693
        %v1726 = vunpack.c.l.b16 %v1694
        %v1727 = vunpack.c.l.b16 %v1695
        %v1728 = vunpack.c.l.b16 %v1696
        %v1729 = vunpack.c.l.b16 %v1697
        %v1730 = vpack.c.b16 %v1715, %v1714
        %v1731 = vpack.c.b16 %v1717, %v1716
        %v1732 = vpack.c.b16 %v1719, %v1718
        %v1733 = vpack.c.b16 %v1721, %v1720
        %v1734 = vpack.c.b16 %v1723, %v1722
        %v1735 = vpack.c.b16 %v1725, %v1724
        %v1736 = vpack.c.b16 %v1727, %v1726
        %v1737 = vpack.c.b16 %v1729, %v1728
        %1746 = vmatprep.subr.bf16.mxu0 0
        %1747 = vmatpush1.bf16.msra.mxu0 %v1730
        %1748 = vmatprep.subr.bf16.mxu0 0
        %1749 = vmatpush1.bf16.msra.mxu0 %v1731
        %1750 = vmatprep.subr.bf16.mxu0 0
        %1751 = vmatpush1.bf16.msra.mxu0 %v1732
        %1752 = vmatprep.subr.bf16.mxu0 0
        %1753 = vmatpush1.bf16.msra.mxu0 %v1733
        %1754 = vmatprep.subr.bf16.mxu0 0
        %1755 = vmatpush1.bf16.msra.mxu0 %v1734
        %1756 = vmatprep.subr.bf16.mxu0 0
        %1757 = vmatpush1.bf16.msra.mxu0 %v1735
        %1758 = vmatprep.subr.bf16.mxu0 0
        %1759 = vmatpush1.bf16.msra.mxu0 %v1736
        %1760 = vmatprep.subr.bf16.mxu0 0
        %1761 = vmatpush1.bf16.msra.mxu0 %v1737
        %1762 = vmatprep.subr.bf16.mxu0 0
        %1763 = vmatpush1.bf16.msra.mxu0 0
        %1764 = vmatprep.subr.bf16.mxu0 0
        %1765 = vmatpush1.bf16.msra.mxu0 0
        %1766 = vmatprep.subr.bf16.mxu0 0
        %1767 = vmatpush1.bf16.msra.mxu0 0
        %1768 = vmatprep.subr.bf16.mxu0 0
        %1769 = vmatpush1.bf16.msra.mxu0 0
        %1770 = vmatprep.subr.bf16.mxu0 0
        %1771 = vmatpush1.bf16.msra.mxu0 0
        %1772 = vmatprep.subr.bf16.mxu0 0
        %1773 = vmatpush1.bf16.msra.mxu0 0
        %1774 = vmatprep.subr.bf16.mxu0 0
        %1775 = vmatpush1.bf16.msra.mxu0 0
        %1776 = vmatprep.subr.bf16.mxu0 0
        %1777 = vmatpush1.bf16.msra.mxu0 0
        %1778 = vmatprep.mubr.bf16.mxu0 0
        %1779 = vmatmul.mubr.bf16.gmra.mrb[0].mxu0 %v1649
        %v1780 = vpop.f32.mrb[0].mxu0
        %v1781 = vadd.f32 0.0, %v1780
        %v1782 = vpop.f32.mrb[0].mxu0
        %v1783 = vpop.f32.mrb[0].mxu0
        %v1784 = vadd.f32 0.0, %v1783
        %v1785 = vpop.f32.mrb[0].mxu0
        %1786 = vmatprep.mubr.bf16.mxu0 0
        %1787 = vmatmul.mubr.bf16.gmra.mrb[0].mxu0 %v1650
        %v1788 = vpop.f32.mrb[0].mxu0
        %v1789 = vadd.f32 0.0, %v1788
        %v1790 = vpop.f32.mrb[0].mxu0
        %v1791 = vpop.f32.mrb[0].mxu0
        %v1792 = vadd.f32 0.0, %v1791
        %v1793 = vpop.f32.mrb[0].mxu0
        %1794 = vmatprep.mubr.bf16.mxu0 0
        %1795 = vmatmul.mubr.bf16.gmra.mrb[0].mxu0 %v1651
        %v1796 = vpop.f32.mrb[0].mxu0
        %v1797 = vadd.f32 0.0, %v1796
        %v1798 = vpop.f32.mrb[0].mxu0
        %v1799 = vpop.f32.mrb[0].mxu0
        %v1800 = vadd.f32 0.0, %v1799
        %v1801 = vpop.f32.mrb[0].mxu0
        %1802 = vmatprep.mubr.bf16.mxu0 0
        %1803 = vmatmul.mubr.bf16.gmra.mrb[0].mxu0 %v1652
        %v1804 = vpop.f32.mrb[0].mxu0
        %v1805 = vadd.f32 0.0, %v1804
        %v1806 = vpop.f32.mrb[0].mxu0
        %v1807 = vpop.f32.mrb[0].mxu0
        %v1808 = vadd.f32 0.0, %v1807
        %v1809 = vpop.f32.mrb[0].mxu0
        %1810 = vmatprep.mubr.bf16.mxu0 0
        %1811 = vmatmul.mubr.bf16.gmra.mrb[0].mxu0 %v1653
        %v1812 = vpop.f32.mrb[0].mxu0
        %v1813 = vadd.f32 0.0, %v1812
        %v1814 = vpop.f32.mrb[0].mxu0
        %v1815 = vpop.f32.mrb[0].mxu0
        %v1816 = vadd.f32 0.0, %v1815
        %v1817 = vpop.f32.mrb[0].mxu0
        %1818 = vmatprep.mubr.bf16.mxu0 0
        %1819 = vmatmul.mubr.bf16.gmra.mrb[0].mxu0 %v1654
        %v1820 = vpop.f32.mrb[0].mxu0
        %v1821 = vadd.f32 0.0, %v1820
        %v1822 = vpop.f32.mrb[0].mxu0
        %v1823 = vpop.f32.mrb[0].mxu0
        %v1824 = vadd.f32 0.0, %v1823
        %v1825 = vpop.f32.mrb[0].mxu0
        %1826 = vmatprep.mubr.bf16.mxu0 0
        %1827 = vmatmul.mubr.bf16.gmra.mrb[0].mxu0 %v1655
        %v1828 = vpop.f32.mrb[0].mxu0
        %v1829 = vadd.f32 0.0, %v1828
        %v1830 = vpop.f32.mrb[0].mxu0
        %v1831 = vpop.f32.mrb[0].mxu0
        %v1832 = vadd.f32 0.0, %v1831
        %v1833 = vpop.f32.mrb[0].mxu0
        %1834 = vmatprep.mubr.bf16.mxu0 0
        %1835 = vmatmul.mubr.bf16.gmra.mrb[0].mxu0 %v1656
        %v1836 = vpop.f32.mrb[0].mxu0
        %v1837 = vadd.f32 0.0, %v1836
        %v1838 = vpop.f32.mrb[0].mxu0
        %v1839 = vpop.f32.mrb[0].mxu0
        %v1840 = vadd.f32 0.0, %v1839
        %v1841 = vpop.f32.mrb[0].mxu0
        %1842 = vmatprep.mubr.bf16.mxu0 0
        %1843 = vmatmul.mubr.bf16.gmra.mrb[0].mxu0 %v1657
        %v1844 = vpop.f32.mrb[0].mxu0
        %v1845 = vadd.f32 0.0, %v1844
        %v1846 = vpop.f32.mrb[0].mxu0
        %v1847 = vpop.f32.mrb[0].mxu0
        %v1848 = vadd.f32 0.0, %v1847
        %v1849 = vpop.f32.mrb[0].mxu0
        %1850 = vmatprep.mubr.bf16.mxu0 0
        %1851 = vmatmul.mubr.bf16.gmra.mrb[0].mxu0 %v1658
        %v1852 = vpop.f32.mrb[0].mxu0
        %v1853 = vadd.f32 0.0, %v1852
        %v1854 = vpop.f32.mrb[0].mxu0
        %v1855 = vpop.f32.mrb[0].mxu0
        %v1856 = vadd.f32 0.0, %v1855
        %v1857 = vpop.f32.mrb[0].mxu0
        %1858 = vmatprep.mubr.bf16.mxu0 0
        %1859 = vmatmul.mubr.bf16.gmra.mrb[0].mxu0 %v1659
        %v1860 = vpop.f32.mrb[0].mxu0
        %v1861 = vadd.f32 0.0, %v1860
        %v1862 = vpop.f32.mrb[0].mxu0
        %v1863 = vpop.f32.mrb[0].mxu0
        %v1864 = vadd.f32 0.0, %v1863
        %v1865 = vpop.f32.mrb[0].mxu0
        %1866 = vmatprep.mubr.bf16.mxu0 0
        %1867 = vmatmul.mubr.bf16.gmra.mrb[0].mxu0 %v1660
        %v1868 = vpop.f32.mrb[0].mxu0
        %v1869 = vadd.f32 0.0, %v1868
        %v1870 = vpop.f32.mrb[0].mxu0
        %v1871 = vpop.f32.mrb[0].mxu0
        %v1872 = vadd.f32 0.0, %v1871
        %v1873 = vpop.f32.mrb[0].mxu0
        %1874 = vmatprep.mubr.bf16.mxu0 0
        %1875 = vmatmul.mubr.bf16.gmra.mrb[0].mxu0 %v1661
        %v1876 = vpop.f32.mrb[0].mxu0
        %v1877 = vadd.f32 0.0, %v1876
        %v1878 = vpop.f32.mrb[0].mxu0
        %v1879 = vpop.f32.mrb[0].mxu0
        %v1880 = vadd.f32 0.0, %v1879
        %v1881 = vpop.f32.mrb[0].mxu0
        %1882 = vmatprep.mubr.bf16.mxu0 0
        %1883 = vmatmul.mubr.bf16.gmra.mrb[0].mxu0 %v1662
        %v1884 = vpop.f32.mrb[0].mxu0
        %v1885 = vadd.f32 0.0, %v1884
        %v1886 = vpop.f32.mrb[0].mxu0
        %v1887 = vpop.f32.mrb[0].mxu0
        %v1888 = vadd.f32 0.0, %v1887
        %v1889 = vpop.f32.mrb[0].mxu0
        %1890 = vmatprep.mubr.bf16.mxu0 0
        %1891 = vmatmul.mubr.bf16.gmra.mrb[0].mxu0 %v1663
        %v1892 = vpop.f32.mrb[0].mxu0
        %v1893 = vadd.f32 0.0, %v1892
        %v1894 = vpop.f32.mrb[0].mxu0
        %v1895 = vpop.f32.mrb[0].mxu0
        %v1896 = vadd.f32 0.0, %v1895
        %v1897 = vpop.f32.mrb[0].mxu0
        %1898 = vmatprep.mubr.bf16.mxu0 0
        %1899 = vmatmul.mubr.bf16.gmra.mrb[0].mxu0 %v1664
        %v1900 = vpop.f32.mrb[0].mxu0
        %v1901 = vadd.f32 0.0, %v1900
        %v1902 = vpop.f32.mrb[0].mxu0
        %v1903 = vpop.f32.mrb[0].mxu0
        %v1904 = vadd.f32 0.0, %v1903
        %v1905 = vpop.f32.mrb[0].mxu0
        %1906 = vdwg.mxu0
        %v1923 = vunpack.c.l.b16 %v1665
        %v1924 = vunpack.c.l.b16 %v1666
        %v1925 = vunpack.c.l.b16 %v1667
        %v1926 = vunpack.c.l.b16 %v1668
        %v1927 = vunpack.c.l.b16 %v1669
        %v1928 = vunpack.c.l.b16 %v1670
        %v1929 = vunpack.c.l.b16 %v1671
        %v1930 = vunpack.c.l.b16 %v1672
        %v1931 = vunpack.c.l.b16 %v1673
        %v1932 = vunpack.c.l.b16 %v1674
        %v1933 = vunpack.c.l.b16 %v1675
        %v1934 = vunpack.c.l.b16 %v1676
        %v1935 = vunpack.c.l.b16 %v1677
        %v1936 = vunpack.c.l.b16 %v1678
        %v1937 = vunpack.c.l.b16 %v1679
        %v1938 = vunpack.c.l.b16 %v1680
        %v1939 = vpack.c.b16 %v1924, %v1923
        %v1940 = vpack.c.b16 %v1926, %v1925
        %v1941 = vpack.c.b16 %v1928, %v1927
        %v1942 = vpack.c.b16 %v1930, %v1929
        %v1943 = vpack.c.b16 %v1932, %v1931
        %v1944 = vpack.c.b16 %v1934, %v1933
        %v1945 = vpack.c.b16 %v1936, %v1935
        %v1946 = vpack.c.b16 %v1938, %v1937
        %1955 = vmatprep.subr.bf16.mxu0 0
        %1956 = vmatpush1.bf16.msra.mxu0 %v1939
        %1957 = vmatprep.subr.bf16.mxu0 0
        %1958 = vmatpush1.bf16.msra.mxu0 %v1940
        %1959 = vmatprep.subr.bf16.mxu0 0
        %1960 = vmatpush1.bf16.msra.mxu0 %v1941
        %1961 = vmatprep.subr.bf16.mxu0 0
        %1962 = vmatpush1.bf16.msra.mxu0 %v1942
        %1963 = vmatprep.subr.bf16.mxu0 0
        %1964 = vmatpush1.bf16.msra.mxu0 %v1943
        %1965 = vmatprep.subr.bf16.mxu0 0
        %1966 = vmatpush1.bf16.msra.mxu0 %v1944
        %1967 = vmatprep.subr.bf16.mxu0 0
        %1968 = vmatpush1.bf16.msra.mxu0 %v1945
        %1969 = vmatprep.subr.bf16.mxu0 0
        %1970 = vmatpush1.bf16.msra.mxu0 %v1946
        %1971 = vmatprep.subr.bf16.mxu0 0
        %1972 = vmatpush1.bf16.msra.mxu0 0
        %1973 = vmatprep.subr.bf16.mxu0 0
        %1974 = vmatpush1.bf16.msra.mxu0 0
        %1975 = vmatprep.subr.bf16.mxu0 0
        %1976 = vmatpush1.bf16.msra.mxu0 0
        %1977 = vmatprep.subr.bf16.mxu0 0
        %1978 = vmatpush1.bf16.msra.mxu0 0
        %1979 = vmatprep.subr.bf16.mxu0 0
        %1980 = vmatpush1.bf16.msra.mxu0 0
        %1981 = vmatprep.subr.bf16.mxu0 0
        %1982 = vmatpush1.bf16.msra.mxu0 0
        %1983 = vmatprep.subr.bf16.mxu0 0
        %1984 = vmatpush1.bf16.msra.mxu0 0
        %1985 = vmatprep.subr.bf16.mxu0 0
        %1986 = vmatpush1.bf16.msra.mxu0 0
        %1987 = vmatprep.mubr.bf16.mxu0 0
        %1988 = vmatmul.mubr.bf16.gmra.mrb[0].mxu0 %v1649
        %v1989 = vpop.f32.mrb[0].mxu0
        %v1990 = vadd.f32 %v1781, %v1989
        %v1991 = vpop.f32.mrb[0].mxu0
        %v1992 = vpop.f32.mrb[0].mxu0
        %v1993 = vadd.f32 %v1784, %v1992
        %v1994 = vpop.f32.mrb[0].mxu0
        %1995 = vmatprep.mubr.bf16.mxu0 0
        %1996 = vmatmul.mubr.bf16.gmra.mrb[0].mxu0 %v1650
        %v1997 = vpop.f32.mrb[0].mxu0
        %v1998 = vadd.f32 %v1789, %v1997
        %v1999 = vpop.f32.mrb[0].mxu0
        %v2000 = vpop.f32.mrb[0].mxu0
        %v2001 = vadd.f32 %v1792, %v2000
        %v2002 = vpop.f32.mrb[0].mxu0
        %2003 = vmatprep.mubr.bf16.mxu0 0
        %2004 = vmatmul.mubr.bf16.gmra.mrb[0].mxu0 %v1651
        %v2005 = vpop.f32.mrb[0].mxu0
        %v2006 = vadd.f32 %v1797, %v2005
        %v2007 = vpop.f32.mrb[0].mxu0
        %v2008 = vpop.f32.mrb[0].mxu0
        %v2009 = vadd.f32 %v1800, %v2008
        %v2010 = vpop.f32.mrb[0].mxu0
        %2011 = vmatprep.mubr.bf16.mxu0 0
        %2012 = vmatmul.mubr.bf16.gmra.mrb[0].mxu0 %v1652
        %v2013 = vpop.f32.mrb[0].mxu0
        %v2014 = vadd.f32 %v1805, %v2013
        %v2015 = vpop.f32.mrb[0].mxu0
        %v2016 = vpop.f32.mrb[0].mxu0
        %v2017 = vadd.f32 %v1808, %v2016
        %v2018 = vpop.f32.mrb[0].mxu0
        %2019 = vmatprep.mubr.bf16.mxu0 0
        %2020 = vmatmul.mubr.bf16.gmra.mrb[0].mxu0 %v1653
        %v2021 = vpop.f32.mrb[0].mxu0
        %v2022 = vadd.f32 %v1813, %v2021
        %v2023 = vpop.f32.mrb[0].mxu0
        %v2024 = vpop.f32.mrb[0].mxu0
        %v2025 = vadd.f32 %v1816, %v2024
        %v2026 = vpop.f32.mrb[0].mxu0
        %2027 = vmatprep.mubr.bf16.mxu0 0
        %2028 = vmatmul.mubr.bf16.gmra.mrb[0].mxu0 %v1654
        %v2029 = vpop.f32.mrb[0].mxu0
        %v2030 = vadd.f32 %v1821, %v2029
        %v2031 = vpop.f32.mrb[0].mxu0
        %v2032 = vpop.f32.mrb[0].mxu0
        %v2033 = vadd.f32 %v1824, %v2032
        %v2034 = vpop.f32.mrb[0].mxu0
        %2035 = vmatprep.mubr.bf16.mxu0 0
        %2036 = vmatmul.mubr.bf16.gmra.mrb[0].mxu0 %v1655
        %v2037 = vpop.f32.mrb[0].mxu0
        %v2038 = vadd.f32 %v1829, %v2037
        %v2039 = vpop.f32.mrb[0].mxu0
        %v2040 = vpop.f32.mrb[0].mxu0
        %v2041 = vadd.f32 %v1832, %v2040
        %v2042 = vpop.f32.mrb[0].mxu0
        %2043 = vmatprep.mubr.bf16.mxu0 0
        %2044 = vmatmul.mubr.bf16.gmra.mrb[0].mxu0 %v1656
        %v2045 = vpop.f32.mrb[0].mxu0
        %v2046 = vadd.f32 %v1837, %v2045
        %v2047 = vpop.f32.mrb[0].mxu0
        %v2048 = vpop.f32.mrb[0].mxu0
        %v2049 = vadd.f32 %v1840, %v2048
        %v2050 = vpop.f32.mrb[0].mxu0
        %2051 = vmatprep.mubr.bf16.mxu0 0
        %2052 = vmatmul.mubr.bf16.gmra.mrb[0].mxu0 %v1657
        %v2053 = vpop.f32.mrb[0].mxu0
        %v2054 = vadd.f32 %v1845, %v2053
        %v2055 = vpop.f32.mrb[0].mxu0
        %v2056 = vpop.f32.mrb[0].mxu0
        %v2057 = vadd.f32 %v1848, %v2056
        %v2058 = vpop.f32.mrb[0].mxu0
        %2059 = vmatprep.mubr.bf16.mxu0 0
        %2060 = vmatmul.mubr.bf16.gmra.mrb[0].mxu0 %v1658
        %v2061 = vpop.f32.mrb[0].mxu0
        %v2062 = vadd.f32 %v1853, %v2061
        %v2063 = vpop.f32.mrb[0].mxu0
        %v2064 = vpop.f32.mrb[0].mxu0
        %v2065 = vadd.f32 %v1856, %v2064
        %v2066 = vpop.f32.mrb[0].mxu0
        %2067 = vmatprep.mubr.bf16.mxu0 0
        %2068 = vmatmul.mubr.bf16.gmra.mrb[0].mxu0 %v1659
        %v2069 = vpop.f32.mrb[0].mxu0
        %v2070 = vadd.f32 %v1861, %v2069
        %v2071 = vpop.f32.mrb[0].mxu0
        %v2072 = vpop.f32.mrb[0].mxu0
        %v2073 = vadd.f32 %v1864, %v2072
        %v2074 = vpop.f32.mrb[0].mxu0
        %2075 = vmatprep.mubr.bf16.mxu0 0
        %2076 = vmatmul.mubr.bf16.gmra.mrb[0].mxu0 %v1660
        %v2077 = vpop.f32.mrb[0].mxu0
        %v2078 = vadd.f32 %v1869, %v2077
        %v2079 = vpop.f32.mrb[0].mxu0
        %v2080 = vpop.f32.mrb[0].mxu0
        %v2081 = vadd.f32 %v1872, %v2080
        %v2082 = vpop.f32.mrb[0].mxu0
        %2083 = vmatprep.mubr.bf16.mxu0 0
        %2084 = vmatmul.mubr.bf16.gmra.mrb[0].mxu0 %v1661
        %v2085 = vpop.f32.mrb[0].mxu0
        %v2086 = vadd.f32 %v1877, %v2085
        %v2087 = vpop.f32.mrb[0].mxu0
        %v2088 = vpop.f32.mrb[0].mxu0
        %v2089 = vadd.f32 %v1880, %v2088
        %v2090 = vpop.f32.mrb[0].mxu0
        %2091 = vmatprep.mubr.bf16.mxu0 0
        %2092 = vmatmul.mubr.bf16.gmra.mrb[0].mxu0 %v1662
        %v2093 = vpop.f32.mrb[0].mxu0
        %v2094 = vadd.f32 %v1885, %v2093
        %v2095 = vpop.f32.mrb[0].mxu0
        %v2096 = vpop.f32.mrb[0].mxu0
        %v2097 = vadd.f32 %v1888, %v2096
        %v2098 = vpop.f32.mrb[0].mxu0
        %2099 = vmatprep.mubr.bf16.mxu0 0
        %2100 = vmatmul.mubr.bf16.gmra.mrb[0].mxu0 %v1663
        %v2101 = vpop.f32.mrb[0].mxu0
        %v2102 = vadd.f32 %v1893, %v2101
        %v2103 = vpop.f32.mrb[0].mxu0
        %v2104 = vpop.f32.mrb[0].mxu0
        %v2105 = vadd.f32 %v1896, %v2104
        %v2106 = vpop.f32.mrb[0].mxu0
        %2107 = vmatprep.mubr.bf16.mxu0 0
        %2108 = vmatmul.mubr.bf16.gmra.mrb[0].mxu0 %v1664
        %v2109 = vpop.f32.mrb[0].mxu0
        %v2110 = vadd.f32 %v1901, %v2109
        %v2111 = vpop.f32.mrb[0].mxu0
        %v2112 = vpop.f32.mrb[0].mxu0
        %v2113 = vadd.f32 %v1904, %v2112
        %v2114 = vpop.f32.mrb[0].mxu0
        %2115 = vdwg.mxu0
        %s2116 = scalar_lea.vmem %s2, 128
        %v2117 = vld [vmem:[%s2116] sm:$0xf]
        %v2118 = vld [vmem:[%s2116 + $0x4] sm:$0xf]
        %v2119 = vld [vmem:[%s2116 + $0x8] sm:$0xf]
        %v2120 = vld [vmem:[%s2116 + $0xc] sm:$0xf]
        %v2121 = vld [vmem:[%s2116 + $0x10] sm:$0xf]
        %v2122 = vld [vmem:[%s2116 + $0x14] sm:$0xf]
        %v2123 = vld [vmem:[%s2116 + $0x18] sm:$0xf]
        %v2124 = vld [vmem:[%s2116 + $0x1c] sm:$0xf]
        %v2125 = vld [vmem:[%s2116 + $0x20] sm:$0xf]
        %v2126 = vld [vmem:[%s2116 + $0x24] sm:$0xf]
        %v2127 = vld [vmem:[%s2116 + $0x28] sm:$0xf]
        %v2128 = vld [vmem:[%s2116 + $0x2c] sm:$0xf]
        %v2129 = vld [vmem:[%s2116 + $0x30] sm:$0xf]
        %v2130 = vld [vmem:[%s2116 + $0x34] sm:$0xf]
        %v2131 = vld [vmem:[%s2116 + $0x38] sm:$0xf]
        %v2132 = vld [vmem:[%s2116 + $0x3c] sm:$0xf]
        %v2149 = vunpack.c.l.b16 %v2117
        %v2150 = vunpack.c.l.b16 %v2118
        %v2151 = vunpack.c.l.b16 %v2119
        %v2152 = vunpack.c.l.b16 %v2120
        %v2153 = vunpack.c.l.b16 %v2121
        %v2154 = vunpack.c.l.b16 %v2122
        %v2155 = vunpack.c.l.b16 %v2123
        %v2156 = vunpack.c.l.b16 %v2124
        %v2157 = vunpack.c.l.b16 %v2125
        %v2158 = vunpack.c.l.b16 %v2126
        %v2159 = vunpack.c.l.b16 %v2127
        %v2160 = vunpack.c.l.b16 %v2128
        %v2161 = vunpack.c.l.b16 %v2129
        %v2162 = vunpack.c.l.b16 %v2130
        %v2163 = vunpack.c.l.b16 %v2131
        %v2164 = vunpack.c.l.b16 %v2132
        %v2165 = vpack.c.b16 %v2150, %v2149
        %v2166 = vpack.c.b16 %v2152, %v2151
        %v2167 = vpack.c.b16 %v2154, %v2153
        %v2168 = vpack.c.b16 %v2156, %v2155
        %v2169 = vpack.c.b16 %v2158, %v2157
        %v2170 = vpack.c.b16 %v2160, %v2159
        %v2171 = vpack.c.b16 %v2162, %v2161
        %v2172 = vpack.c.b16 %v2164, %v2163
        %2181 = vmatprep.subr.bf16.mxu0 0
        %2182 = vmatpush1.bf16.msra.mxu0 %v2165
        %2183 = vmatprep.subr.bf16.mxu0 0
        %2184 = vmatpush1.bf16.msra.mxu0 %v2166
        %2185 = vmatprep.subr.bf16.mxu0 0
        %2186 = vmatpush1.bf16.msra.mxu0 %v2167
        %2187 = vmatprep.subr.bf16.mxu0 0
        %2188 = vmatpush1.bf16.msra.mxu0 %v2168
        %2189 = vmatprep.subr.bf16.mxu0 0
        %2190 = vmatpush1.bf16.msra.mxu0 %v2169
        %2191 = vmatprep.subr.bf16.mxu0 0
        %2192 = vmatpush1.bf16.msra.mxu0 %v2170
        %2193 = vmatprep.subr.bf16.mxu0 0
        %2194 = vmatpush1.bf16.msra.mxu0 %v2171
        %2195 = vmatprep.subr.bf16.mxu0 0
        %2196 = vmatpush1.bf16.msra.mxu0 %v2172
        %2197 = vmatprep.subr.bf16.mxu0 0
        %2198 = vmatpush1.bf16.msra.mxu0 0
        %2199 = vmatprep.subr.bf16.mxu0 0
        %2200 = vmatpush1.bf16.msra.mxu0 0
        %2201 = vmatprep.subr.bf16.mxu0 0
        %2202 = vmatpush1.bf16.msra.mxu0 0
        %2203 = vmatprep.subr.bf16.mxu0 0
        %2204 = vmatpush1.bf16.msra.mxu0 0
        %2205 = vmatprep.subr.bf16.mxu0 0
        %2206 = vmatpush1.bf16.msra.mxu0 0
        %2207 = vmatprep.subr.bf16.mxu0 0
        %2208 = vmatpush1.bf16.msra.mxu0 0
        %2209 = vmatprep.subr.bf16.mxu0 0
        %2210 = vmatpush1.bf16.msra.mxu0 0
        %2211 = vmatprep.subr.bf16.mxu0 0
        %2212 = vmatpush1.bf16.msra.mxu0 0
        %2213 = vmatprep.mubr.bf16.mxu0 0
        %2214 = vmatmul.mubr.bf16.gmra.mrb[0].mxu0 %v1649
        %v2215 = vpop.f32.mrb[0].mxu0
        %v2216 = vadd.f32 0.0, %v2215
        %v2217 = vpop.f32.mrb[0].mxu0
        %v2218 = vpop.f32.mrb[0].mxu0
        %v2219 = vadd.f32 0.0, %v2218
        %v2220 = vpop.f32.mrb[0].mxu0
        %2221 = vmatprep.mubr.bf16.mxu0 0
        %2222 = vmatmul.mubr.bf16.gmra.mrb[0].mxu0 %v1650
        %v2223 = vpop.f32.mrb[0].mxu0
        %v2224 = vadd.f32 0.0, %v2223
        %v2225 = vpop.f32.mrb[0].mxu0
        %v2226 = vpop.f32.mrb[0].mxu0
        %v2227 = vadd.f32 0.0, %v2226
        %v2228 = vpop.f32.mrb[0].mxu0
        %2229 = vmatprep.mubr.bf16.mxu0 0
        %2230 = vmatmul.mubr.bf16.gmra.mrb[0].mxu0 %v1651
        %v2231 = vpop.f32.mrb[0].mxu0
        %v2232 = vadd.f32 0.0, %v2231
        %v2233 = vpop.f32.mrb[0].mxu0
        %v2234 = vpop.f32.mrb[0].mxu0
        %v2235 = vadd.f32 0.0, %v2234
        %v2236 = vpop.f32.mrb[0].mxu0
        %2237 = vmatprep.mubr.bf16.mxu0 0
        %2238 = vmatmul.mubr.bf16.gmra.mrb[0].mxu0 %v1652
        %v2239 = vpop.f32.mrb[0].mxu0
        %v2240 = vadd.f32 0.0, %v2239
        %v2241 = vpop.f32.mrb[0].mxu0
        %v2242 = vpop.f32.mrb[0].mxu0
        %v2243 = vadd.f32 0.0, %v2242
        %v2244 = vpop.f32.mrb[0].mxu0
        %2245 = vmatprep.mubr.bf16.mxu0 0
        %2246 = vmatmul.mubr.bf16.gmra.mrb[0].mxu0 %v1653
        %v2247 = vpop.f32.mrb[0].mxu0
        %v2248 = vadd.f32 0.0, %v2247
        %v2249 = vpop.f32.mrb[0].mxu0
        %v2250 = vpop.f32.mrb[0].mxu0
        %v2251 = vadd.f32 0.0, %v2250
        %v2252 = vpop.f32.mrb[0].mxu0
        %2253 = vmatprep.mubr.bf16.mxu0 0
        %2254 = vmatmul.mubr.bf16.gmra.mrb[0].mxu0 %v1654
        %v2255 = vpop.f32.mrb[0].mxu0
        %v2256 = vadd.f32 0.0, %v2255
        %v2257 = vpop.f32.mrb[0].mxu0
        %v2258 = vpop.f32.mrb[0].mxu0
        %v2259 = vadd.f32 0.0, %v2258
        %v2260 = vpop.f32.mrb[0].mxu0
        %2261 = vmatprep.mubr.bf16.mxu0 0
        %2262 = vmatmul.mubr.bf16.gmra.mrb[0].mxu0 %v1655
        %v2263 = vpop.f32.mrb[0].mxu0
        %v2264 = vadd.f32 0.0, %v2263
        %v2265 = vpop.f32.mrb[0].mxu0
        %v2266 = vpop.f32.mrb[0].mxu0
        %v2267 = vadd.f32 0.0, %v2266
        %v2268 = vpop.f32.mrb[0].mxu0
        %2269 = vmatprep.mubr.bf16.mxu0 0
        %2270 = vmatmul.mubr.bf16.gmra.mrb[0].mxu0 %v1656
        %v2271 = vpop.f32.mrb[0].mxu0
        %v2272 = vadd.f32 0.0, %v2271
        %v2273 = vpop.f32.mrb[0].mxu0
        %v2274 = vpop.f32.mrb[0].mxu0
        %v2275 = vadd.f32 0.0, %v2274
        %v2276 = vpop.f32.mrb[0].mxu0
        %2277 = vmatprep.mubr.bf16.mxu0 0
        %2278 = vmatmul.mubr.bf16.gmra.mrb[0].mxu0 %v1657
        %v2279 = vpop.f32.mrb[0].mxu0
        %v2280 = vadd.f32 0.0, %v2279
        %v2281 = vpop.f32.mrb[0].mxu0
        %v2282 = vpop.f32.mrb[0].mxu0
        %v2283 = vadd.f32 0.0, %v2282
        %v2284 = vpop.f32.mrb[0].mxu0
        %2285 = vmatprep.mubr.bf16.mxu0 0
        %2286 = vmatmul.mubr.bf16.gmra.mrb[0].mxu0 %v1658
        %v2287 = vpop.f32.mrb[0].mxu0
        %v2288 = vadd.f32 0.0, %v2287
        %v2289 = vpop.f32.mrb[0].mxu0
        %v2290 = vpop.f32.mrb[0].mxu0
        %v2291 = vadd.f32 0.0, %v2290
        %v2292 = vpop.f32.mrb[0].mxu0
        %2293 = vmatprep.mubr.bf16.mxu0 0
        %2294 = vmatmul.mubr.bf16.gmra.mrb[0].mxu0 %v1659
        %v2295 = vpop.f32.mrb[0].mxu0
        %v2296 = vadd.f32 0.0, %v2295
        %v2297 = vpop.f32.mrb[0].mxu0
        %v2298 = vpop.f32.mrb[0].mxu0
        %v2299 = vadd.f32 0.0, %v2298
        %v2300 = vpop.f32.mrb[0].mxu0
        %2301 = vmatprep.mubr.bf16.mxu0 0
        %2302 = vmatmul.mubr.bf16.gmra.mrb[0].mxu0 %v1660
        %v2303 = vpop.f32.mrb[0].mxu0
        %v2304 = vadd.f32 0.0, %v2303
        %v2305 = vpop.f32.mrb[0].mxu0
        %v2306 = vpop.f32.mrb[0].mxu0
        %v2307 = vadd.f32 0.0, %v2306
        %v2308 = vpop.f32.mrb[0].mxu0
        %2309 = vmatprep.mubr.bf16.mxu0 0
        %2310 = vmatmul.mubr.bf16.gmra.mrb[0].mxu0 %v1661
        %v2311 = vpop.f32.mrb[0].mxu0
        %v2312 = vadd.f32 0.0, %v2311
        %v2313 = vpop.f32.mrb[0].mxu0
        %v2314 = vpop.f32.mrb[0].mxu0
        %v2315 = vadd.f32 0.0, %v2314
        %v2316 = vpop.f32.mrb[0].mxu0
        %2317 = vmatprep.mubr.bf16.mxu0 0
        %2318 = vmatmul.mubr.bf16.gmra.mrb[0].mxu0 %v1662
        %v2319 = vpop.f32.mrb[0].mxu0
        %v2320 = vadd.f32 0.0, %v2319
        %v2321 = vpop.f32.mrb[0].mxu0
        %v2322 = vpop.f32.mrb[0].mxu0
        %v2323 = vadd.f32 0.0, %v2322
        %v2324 = vpop.f32.mrb[0].mxu0
        %2325 = vmatprep.mubr.bf16.mxu0 0
        %2326 = vmatmul.mubr.bf16.gmra.mrb[0].mxu0 %v1663
        %v2327 = vpop.f32.mrb[0].mxu0
        %v2328 = vadd.f32 0.0, %v2327
        %v2329 = vpop.f32.mrb[0].mxu0
        %v2330 = vpop.f32.mrb[0].mxu0
        %v2331 = vadd.f32 0.0, %v2330
        %v2332 = vpop.f32.mrb[0].mxu0
        %2333 = vmatprep.mubr.bf16.mxu0 0
        %2334 = vmatmul.mubr.bf16.gmra.mrb[0].mxu0 %v1664
        %v2335 = vpop.f32.mrb[0].mxu0
        %v2336 = vadd.f32 0.0, %v2335
        %v2337 = vpop.f32.mrb[0].mxu0
        %v2338 = vpop.f32.mrb[0].mxu0
        %v2339 = vadd.f32 0.0, %v2338
        %v2340 = vpop.f32.mrb[0].mxu0
        %2341 = vdwg.mxu0
        %v2342 = vadd.f32 %v1990, %v2216
        %v2343 = vadd.f32 %v1993, %v2219
        %v2344 = vadd.f32 %v1998, %v2224
        %v2345 = vadd.f32 %v2001, %v2227
        %v2346 = vadd.f32 %v2006, %v2232
        %v2347 = vadd.f32 %v2009, %v2235
        %v2348 = vadd.f32 %v2014, %v2240
        %v2349 = vadd.f32 %v2017, %v2243
        %v2350 = vadd.f32 %v2022, %v2248
        %v2351 = vadd.f32 %v2025, %v2251
        %v2352 = vadd.f32 %v2030, %v2256
        %v2353 = vadd.f32 %v2033, %v2259
        %v2354 = vadd.f32 %v2038, %v2264
        %v2355 = vadd.f32 %v2041, %v2267
        %v2356 = vadd.f32 %v2046, %v2272
        %v2357 = vadd.f32 %v2049, %v2275
        %v2358 = vadd.f32 %v2054, %v2280
        %v2359 = vadd.f32 %v2057, %v2283
        %v2360 = vadd.f32 %v2062, %v2288
        %v2361 = vadd.f32 %v2065, %v2291
        %v2362 = vadd.f32 %v2070, %v2296
        %v2363 = vadd.f32 %v2073, %v2299
        %v2364 = vadd.f32 %v2078, %v2304
        %v2365 = vadd.f32 %v2081, %v2307
        %v2366 = vadd.f32 %v2086, %v2312
        %v2367 = vadd.f32 %v2089, %v2315
        %v2368 = vadd.f32 %v2094, %v2320
        %v2369 = vadd.f32 %v2097, %v2323
        %v2370 = vadd.f32 %v2102, %v2328
        %v2371 = vadd.f32 %v2105, %v2331
        %v2372 = vadd.f32 %v2110, %v2336
        %v2373 = vadd.f32 %v2113, %v2339
        %vm2374 = vcmp.eq.s32.totalorder %v216, 97
        %v2375 = vsel %vm2374, 1, 0
        %vm2376 = vcmp.eq.s32.totalorder %v2375, 1
        %v2377 = vsel %vm2376, %v2342, 0.0
        %v2378 = vsel %vm2376, %v2343, 0.0
        %v2379 = vsel %vm2376, %v2344, 0.0
        %v2380 = vsel %vm2376, %v2345, 0.0
        %v2381 = vsel %vm2376, %v2346, 0.0
        %v2382 = vsel %vm2376, %v2347, 0.0
        %v2383 = vsel %vm2376, %v2348, 0.0
        %v2384 = vsel %vm2376, %v2349, 0.0
        %v2385 = vsel %vm2376, %v2350, 0.0
        %v2386 = vsel %vm2376, %v2351, 0.0
        %v2387 = vsel %vm2376, %v2352, 0.0
        %v2388 = vsel %vm2376, %v2353, 0.0
        %v2389 = vsel %vm2376, %v2354, 0.0
        %v2390 = vsel %vm2376, %v2355, 0.0
        %v2391 = vsel %vm2376, %v2356, 0.0
        %v2392 = vsel %vm2376, %v2357, 0.0
        %v2393 = vsel %vm2376, %v2358, 0.0
        %v2394 = vsel %vm2376, %v2359, 0.0
        %v2395 = vsel %vm2376, %v2360, 0.0
        %v2396 = vsel %vm2376, %v2361, 0.0
        %v2397 = vsel %vm2376, %v2362, 0.0
        %v2398 = vsel %vm2376, %v2363, 0.0
        %v2399 = vsel %vm2376, %v2364, 0.0
        %v2400 = vsel %vm2376, %v2365, 0.0
        %v2401 = vsel %vm2376, %v2366, 0.0
        %v2402 = vsel %vm2376, %v2367, 0.0
        %v2403 = vsel %vm2376, %v2368, 0.0
        %v2404 = vsel %vm2376, %v2369, 0.0
        %v2405 = vsel %vm2376, %v2370, 0.0
        %v2406 = vsel %vm2376, %v2371, 0.0
        %v2407 = vsel %vm2376, %v2372, 0.0
        %v2408 = vsel %vm2376, %v2373, 0.0
        %v2409 = vsub.f32 %v2342, %v2377
        %v2410 = vsub.f32 %v2343, %v2378
        %v2411 = vsub.f32 %v2344, %v2379
        %v2412 = vsub.f32 %v2345, %v2380
        %v2413 = vsub.f32 %v2346, %v2381
        %v2414 = vsub.f32 %v2347, %v2382
        %v2415 = vsub.f32 %v2348, %v2383
        %v2416 = vsub.f32 %v2349, %v2384
        %v2417 = vsub.f32 %v2350, %v2385
        %v2418 = vsub.f32 %v2351, %v2386
        %v2419 = vsub.f32 %v2352, %v2387
        %v2420 = vsub.f32 %v2353, %v2388
        %v2421 = vsub.f32 %v2354, %v2389
        %v2422 = vsub.f32 %v2355, %v2390
        %v2423 = vsub.f32 %v2356, %v2391
        %v2424 = vsub.f32 %v2357, %v2392
        %v2425 = vsub.f32 %v2358, %v2393
        %v2426 = vsub.f32 %v2359, %v2394
        %v2427 = vsub.f32 %v2360, %v2395
        %v2428 = vsub.f32 %v2361, %v2396
        %v2429 = vsub.f32 %v2362, %v2397
        %v2430 = vsub.f32 %v2363, %v2398
        %v2431 = vsub.f32 %v2364, %v2399
        %v2432 = vsub.f32 %v2365, %v2400
        %v2433 = vsub.f32 %v2366, %v2401
        %v2434 = vsub.f32 %v2367, %v2402
        %v2435 = vsub.f32 %v2368, %v2403
        %v2436 = vsub.f32 %v2369, %v2404
        %v2437 = vsub.f32 %v2370, %v2405
        %v2438 = vsub.f32 %v2371, %v2406
        %v2439 = vsub.f32 %v2372, %v2407
        %v2440 = vsub.f32 %v2373, %v2408
        %v2441 = vmul.f32 %v2409, %v2409
        %v2442 = vmul.f32 %v2410, %v2410
        %v2443 = vmul.f32 %v2411, %v2411
        %v2444 = vmul.f32 %v2412, %v2412
        %v2445 = vmul.f32 %v2413, %v2413
        %v2446 = vmul.f32 %v2414, %v2414
        %v2447 = vmul.f32 %v2415, %v2415
        %v2448 = vmul.f32 %v2416, %v2416
        %v2449 = vmul.f32 %v2417, %v2417
        %v2450 = vmul.f32 %v2418, %v2418
        %v2451 = vmul.f32 %v2419, %v2419
        %v2452 = vmul.f32 %v2420, %v2420
        %v2453 = vmul.f32 %v2421, %v2421
        %v2454 = vmul.f32 %v2422, %v2422
        %v2455 = vmul.f32 %v2423, %v2423
        %v2456 = vmul.f32 %v2424, %v2424
        %v2457 = vmul.f32 %v2425, %v2425
        %v2458 = vmul.f32 %v2426, %v2426
        %v2459 = vmul.f32 %v2427, %v2427
        %v2460 = vmul.f32 %v2428, %v2428
        %v2461 = vmul.f32 %v2429, %v2429
        %v2462 = vmul.f32 %v2430, %v2430
        %v2463 = vmul.f32 %v2431, %v2431
        %v2464 = vmul.f32 %v2432, %v2432
        %v2465 = vmul.f32 %v2433, %v2433
        %v2466 = vmul.f32 %v2434, %v2434
        %v2467 = vmul.f32 %v2435, %v2435
        %v2468 = vmul.f32 %v2436, %v2436
        %v2469 = vmul.f32 %v2437, %v2437
        %v2470 = vmul.f32 %v2438, %v2438
        %v2471 = vmul.f32 %v2439, %v2439
        %v2472 = vmul.f32 %v2440, %v2440
        %2473 = vadd.xlane.f32.xlu0 %v2441
        %v2474 = vpop.xlane.xlu0 %2473
        %2475 = vadd.xlane.f32.xlu0 %v2442
        %v2476 = vpop.xlane.xlu0 %2475
        %2477 = vadd.xlane.f32.xlu0 %v2443
        %v2478 = vpop.xlane.xlu0 %2477
        %2479 = vadd.xlane.f32.xlu0 %v2444
        %v2480 = vpop.xlane.xlu0 %2479
        %2481 = vadd.xlane.f32.xlu0 %v2445
        %v2482 = vpop.xlane.xlu0 %2481
        %2483 = vadd.xlane.f32.xlu0 %v2446
        %v2484 = vpop.xlane.xlu0 %2483
        %2485 = vadd.xlane.f32.xlu0 %v2447
        %v2486 = vpop.xlane.xlu0 %2485
        %2487 = vadd.xlane.f32.xlu0 %v2448
        %v2488 = vpop.xlane.xlu0 %2487
        %2489 = vadd.xlane.f32.xlu0 %v2449
        %v2490 = vpop.xlane.xlu0 %2489
        %2491 = vadd.xlane.f32.xlu0 %v2450
        %v2492 = vpop.xlane.xlu0 %2491
        %2493 = vadd.xlane.f32.xlu0 %v2451
        %v2494 = vpop.xlane.xlu0 %2493
        %2495 = vadd.xlane.f32.xlu0 %v2452
        %v2496 = vpop.xlane.xlu0 %2495
        %2497 = vadd.xlane.f32.xlu0 %v2453
        %v2498 = vpop.xlane.xlu0 %2497
        %2499 = vadd.xlane.f32.xlu0 %v2454
        %v2500 = vpop.xlane.xlu0 %2499
        %2501 = vadd.xlane.f32.xlu0 %v2455
        %v2502 = vpop.xlane.xlu0 %2501
        %2503 = vadd.xlane.f32.xlu0 %v2456
        %v2504 = vpop.xlane.xlu0 %2503
        %2505 = vadd.xlane.f32.xlu0 %v2457
        %v2506 = vpop.xlane.xlu0 %2505
        %2507 = vadd.xlane.f32.xlu0 %v2458
        %v2508 = vpop.xlane.xlu0 %2507
        %2509 = vadd.xlane.f32.xlu0 %v2459
        %v2510 = vpop.xlane.xlu0 %2509
        %2511 = vadd.xlane.f32.xlu0 %v2460
        %v2512 = vpop.xlane.xlu0 %2511
        %2513 = vadd.xlane.f32.xlu0 %v2461
        %v2514 = vpop.xlane.xlu0 %2513
        %2515 = vadd.xlane.f32.xlu0 %v2462
        %v2516 = vpop.xlane.xlu0 %2515
        %2517 = vadd.xlane.f32.xlu0 %v2463
        %v2518 = vpop.xlane.xlu0 %2517
        %2519 = vadd.xlane.f32.xlu0 %v2464
        %v2520 = vpop.xlane.xlu0 %2519
        %2521 = vadd.xlane.f32.xlu0 %v2465
        %v2522 = vpop.xlane.xlu0 %2521
        %2523 = vadd.xlane.f32.xlu0 %v2466
        %v2524 = vpop.xlane.xlu0 %2523
        %2525 = vadd.xlane.f32.xlu0 %v2467
        %v2526 = vpop.xlane.xlu0 %2525
        %2527 = vadd.xlane.f32.xlu0 %v2468
        %v2528 = vpop.xlane.xlu0 %2527
        %2529 = vadd.xlane.f32.xlu0 %v2469
        %v2530 = vpop.xlane.xlu0 %2529
        %2531 = vadd.xlane.f32.xlu0 %v2470
        %v2532 = vpop.xlane.xlu0 %2531
        %2533 = vadd.xlane.f32.xlu0 %v2471
        %v2534 = vpop.xlane.xlu0 %2533
        %2535 = vadd.xlane.f32.xlu0 %v2472
        %v2536 = vpop.xlane.xlu0 %2535
        %v2537 = vmax.f32 %v2474, 1e-24
        %v2538 = vmax.f32 %v2476, 1e-24
        %v2539 = vmax.f32 %v2478, 1e-24
        %v2540 = vmax.f32 %v2480, 1e-24
        %v2541 = vmax.f32 %v2482, 1e-24
        %v2542 = vmax.f32 %v2484, 1e-24
        %v2543 = vmax.f32 %v2486, 1e-24
        %v2544 = vmax.f32 %v2488, 1e-24
        %v2545 = vmax.f32 %v2490, 1e-24
        %v2546 = vmax.f32 %v2492, 1e-24
        %v2547 = vmax.f32 %v2494, 1e-24
        %v2548 = vmax.f32 %v2496, 1e-24
        %v2549 = vmax.f32 %v2498, 1e-24
        %v2550 = vmax.f32 %v2500, 1e-24
        %v2551 = vmax.f32 %v2502, 1e-24
        %v2552 = vmax.f32 %v2504, 1e-24
        %v2553 = vmax.f32 %v2506, 1e-24
        %v2554 = vmax.f32 %v2508, 1e-24
        %v2555 = vmax.f32 %v2510, 1e-24
        %v2556 = vmax.f32 %v2512, 1e-24
        %v2557 = vmax.f32 %v2514, 1e-24
        %v2558 = vmax.f32 %v2516, 1e-24
        %v2559 = vmax.f32 %v2518, 1e-24
        %v2560 = vmax.f32 %v2520, 1e-24
        %v2561 = vmax.f32 %v2522, 1e-24
        %v2562 = vmax.f32 %v2524, 1e-24
        %v2563 = vmax.f32 %v2526, 1e-24
        %v2564 = vmax.f32 %v2528, 1e-24
        %v2565 = vmax.f32 %v2530, 1e-24
        %v2566 = vmax.f32 %v2532, 1e-24
        %v2567 = vmax.f32 %v2534, 1e-24
        %v2568 = vmax.f32 %v2536, 1e-24
        %v2569 = vrsqrt.pop %v2537
        %v2570 = vrsqrt.pop %v2538
        %v2571 = vrsqrt.pop %v2539
        %v2572 = vrsqrt.pop %v2540
        %v2573 = vrsqrt.pop %v2541
        %v2574 = vrsqrt.pop %v2542
        %v2575 = vrsqrt.pop %v2543
        %v2576 = vrsqrt.pop %v2544
        %v2577 = vrsqrt.pop %v2545
        %v2578 = vrsqrt.pop %v2546
        %v2579 = vrsqrt.pop %v2547
        %v2580 = vrsqrt.pop %v2548
        %v2581 = vrsqrt.pop %v2549
        %v2582 = vrsqrt.pop %v2550
        %v2583 = vrsqrt.pop %v2551
        %v2584 = vrsqrt.pop %v2552
        %v2585 = vrsqrt.pop %v2553
        %v2586 = vrsqrt.pop %v2554
        %v2587 = vrsqrt.pop %v2555
        %v2588 = vrsqrt.pop %v2556
        %v2589 = vrsqrt.pop %v2557
        %v2590 = vrsqrt.pop %v2558
        %v2591 = vrsqrt.pop %v2559
        %v2592 = vrsqrt.pop %v2560
        %v2593 = vrsqrt.pop %v2561
        %v2594 = vrsqrt.pop %v2562
        %v2595 = vrsqrt.pop %v2563
        %v2596 = vrsqrt.pop %v2564
        %v2597 = vrsqrt.pop %v2565
        %v2598 = vrsqrt.pop %v2566
        %v2599 = vrsqrt.pop %v2567
        %v2600 = vrsqrt.pop %v2568
        %v2601 = vmul.f32 %v2409, %v2569
        %v2602 = vmul.f32 %v2410, %v2570
        %v2603 = vmul.f32 %v2411, %v2571
        %v2604 = vmul.f32 %v2412, %v2572
        %v2605 = vmul.f32 %v2413, %v2573
        %v2606 = vmul.f32 %v2414, %v2574
        %v2607 = vmul.f32 %v2415, %v2575
        %v2608 = vmul.f32 %v2416, %v2576
        %v2609 = vmul.f32 %v2417, %v2577
        %v2610 = vmul.f32 %v2418, %v2578
        %v2611 = vmul.f32 %v2419, %v2579
        %v2612 = vmul.f32 %v2420, %v2580
        %v2613 = vmul.f32 %v2421, %v2581
        %v2614 = vmul.f32 %v2422, %v2582
        %v2615 = vmul.f32 %v2423, %v2583
        %v2616 = vmul.f32 %v2424, %v2584
        %v2617 = vmul.f32 %v2425, %v2585
        %v2618 = vmul.f32 %v2426, %v2586
        %v2619 = vmul.f32 %v2427, %v2587
        %v2620 = vmul.f32 %v2428, %v2588
        %v2621 = vmul.f32 %v2429, %v2589
        %v2622 = vmul.f32 %v2430, %v2590
        %v2623 = vmul.f32 %v2431, %v2591
        %v2624 = vmul.f32 %v2432, %v2592
        %v2625 = vmul.f32 %v2433, %v2593
        %v2626 = vmul.f32 %v2434, %v2594
        %v2627 = vmul.f32 %v2435, %v2595
        %v2628 = vmul.f32 %v2436, %v2596
        %v2629 = vmul.f32 %v2437, %v2597
        %v2630 = vmul.f32 %v2438, %v2598
        %v2631 = vmul.f32 %v2439, %v2599
        %v2632 = vmul.f32 %v2440, %v2600
        %v2633 = vadd.f32 %v2601, %v2377
        %v2634 = vadd.f32 %v2602, %v2378
        %v2635 = vadd.f32 %v2603, %v2379
        %v2636 = vadd.f32 %v2604, %v2380
        %v2637 = vadd.f32 %v2605, %v2381
        %v2638 = vadd.f32 %v2606, %v2382
        %v2639 = vadd.f32 %v2607, %v2383
        %v2640 = vadd.f32 %v2608, %v2384
        %v2641 = vadd.f32 %v2609, %v2385
        %v2642 = vadd.f32 %v2610, %v2386
        %v2643 = vadd.f32 %v2611, %v2387
        %v2644 = vadd.f32 %v2612, %v2388
        %v2645 = vadd.f32 %v2613, %v2389
        %v2646 = vadd.f32 %v2614, %v2390
        %v2647 = vadd.f32 %v2615, %v2391
        %v2648 = vadd.f32 %v2616, %v2392
        %v2649 = vadd.f32 %v2617, %v2393
        %v2650 = vadd.f32 %v2618, %v2394
        %v2651 = vadd.f32 %v2619, %v2395
        %v2652 = vadd.f32 %v2620, %v2396
        %v2653 = vadd.f32 %v2621, %v2397
        %v2654 = vadd.f32 %v2622, %v2398
        %v2655 = vadd.f32 %v2623, %v2399
        %v2656 = vadd.f32 %v2624, %v2400
        %v2657 = vadd.f32 %v2625, %v2401
        %v2658 = vadd.f32 %v2626, %v2402
        %v2659 = vadd.f32 %v2627, %v2403
        %v2660 = vadd.f32 %v2628, %v2404
        %v2661 = vadd.f32 %v2629, %v2405
        %v2662 = vadd.f32 %v2630, %v2406
        %v2663 = vadd.f32 %v2631, %v2407
        %v2664 = vadd.f32 %v2632, %v2408
        %2665 = vset.pattern.permute.xlu0 2
        %2666 = vperm.xlu0 %2665, %v217
        %v2667 = vpop.permute.xlu0 %2666
        %2668 = vset.pattern.permute.xlu0 2
        %2669 = vperm.xlu0 %2668, %v218
        %v2670 = vpop.permute.xlu0 %2669
        %2671 = vset.pattern.permute.xlu0 2
        %2672 = vperm.xlu0 %2671, %v219
        %v2673 = vpop.permute.xlu0 %2672
        %2674 = vset.pattern.permute.xlu0 2
        %2675 = vperm.xlu0 %2674, %v220
        %v2676 = vpop.permute.xlu0 %2675
        %2677 = vset.pattern.permute.xlu0 2
        %2678 = vperm.xlu0 %2677, %v221
        %v2679 = vpop.permute.xlu0 %2678
        %2680 = vset.pattern.permute.xlu0 2
        %2681 = vperm.xlu0 %2680, %v222
        %v2682 = vpop.permute.xlu0 %2681
        %2683 = vset.pattern.permute.xlu0 2
        %2684 = vperm.xlu0 %2683, %v223
        %v2685 = vpop.permute.xlu0 %2684
        %2686 = vset.pattern.permute.xlu0 2
        %2687 = vperm.xlu0 %2686, %v224
        %v2688 = vpop.permute.xlu0 %2687
        %2689 = vset.pattern.permute.xlu0 2
        %2690 = vperm.xlu0 %2689, %v225
        %v2691 = vpop.permute.xlu0 %2690
        %2692 = vset.pattern.permute.xlu0 2
        %2693 = vperm.xlu0 %2692, %v226
        %v2694 = vpop.permute.xlu0 %2693
        %2695 = vset.pattern.permute.xlu0 2
        %2696 = vperm.xlu0 %2695, %v227
        %v2697 = vpop.permute.xlu0 %2696
        %2698 = vset.pattern.permute.xlu0 2
        %2699 = vperm.xlu0 %2698, %v228
        %v2700 = vpop.permute.xlu0 %2699
        %2701 = vset.pattern.permute.xlu0 2
        %2702 = vperm.xlu0 %2701, %v229
        %v2703 = vpop.permute.xlu0 %2702
        %2704 = vset.pattern.permute.xlu0 2
        %2705 = vperm.xlu0 %2704, %v230
        %v2706 = vpop.permute.xlu0 %2705
        %2707 = vset.pattern.permute.xlu0 2
        %2708 = vperm.xlu0 %2707, %v231
        %v2709 = vpop.permute.xlu0 %2708
        %2710 = vset.pattern.permute.xlu0 2
        %2711 = vperm.xlu0 %2710, %v232
        %v2712 = vpop.permute.xlu0 %2711
        %2713 = vset.pattern.permute.xlu0 2
        %2714 = vperm.xlu0 %2713, %v233
        %v2715 = vpop.permute.xlu0 %2714
        %2716 = vset.pattern.permute.xlu0 2
        %2717 = vperm.xlu0 %2716, %v234
        %v2718 = vpop.permute.xlu0 %2717
        %2719 = vset.pattern.permute.xlu0 2
        %2720 = vperm.xlu0 %2719, %v235
        %v2721 = vpop.permute.xlu0 %2720
        %2722 = vset.pattern.permute.xlu0 2
        %2723 = vperm.xlu0 %2722, %v236
        %v2724 = vpop.permute.xlu0 %2723
        %2725 = vset.pattern.permute.xlu0 2
        %2726 = vperm.xlu0 %2725, %v237
        %v2727 = vpop.permute.xlu0 %2726
        %2728 = vset.pattern.permute.xlu0 2
        %2729 = vperm.xlu0 %2728, %v238
        %v2730 = vpop.permute.xlu0 %2729
        %2731 = vset.pattern.permute.xlu0 2
        %2732 = vperm.xlu0 %2731, %v239
        %v2733 = vpop.permute.xlu0 %2732
        %2734 = vset.pattern.permute.xlu0 2
        %2735 = vperm.xlu0 %2734, %v240
        %v2736 = vpop.permute.xlu0 %2735
        %2737 = vset.pattern.permute.xlu0 2
        %2738 = vperm.xlu0 %2737, %v241
        %v2739 = vpop.permute.xlu0 %2738
        %2740 = vset.pattern.permute.xlu0 2
        %2741 = vperm.xlu0 %2740, %v242
        %v2742 = vpop.permute.xlu0 %2741
        %2743 = vset.pattern.permute.xlu0 2
        %2744 = vperm.xlu0 %2743, %v243
        %v2745 = vpop.permute.xlu0 %2744
        %2746 = vset.pattern.permute.xlu0 2
        %2747 = vperm.xlu0 %2746, %v244
        %v2748 = vpop.permute.xlu0 %2747
        %2749 = vset.pattern.permute.xlu0 2
        %2750 = vperm.xlu0 %2749, %v245
        %v2751 = vpop.permute.xlu0 %2750
        %2752 = vset.pattern.permute.xlu0 2
        %2753 = vperm.xlu0 %2752, %v246
        %v2754 = vpop.permute.xlu0 %2753
        %2755 = vset.pattern.permute.xlu0 2
        %2756 = vperm.xlu0 %2755, %v247
        %v2757 = vpop.permute.xlu0 %2756
        %2758 = vset.pattern.permute.xlu0 2
        %2759 = vperm.xlu0 %2758, %v248
        %v2760 = vpop.permute.xlu0 %2759
        %vm2761 = vcmp.eq.s32.totalorder %v216, %v2667
        %vm2762 = vcmp.eq.s32.totalorder %v216, %v2670
        %vm2763 = vcmp.eq.s32.totalorder %v216, %v2673
        %vm2764 = vcmp.eq.s32.totalorder %v216, %v2676
        %vm2765 = vcmp.eq.s32.totalorder %v216, %v2679
        %vm2766 = vcmp.eq.s32.totalorder %v216, %v2682
        %vm2767 = vcmp.eq.s32.totalorder %v216, %v2685
        %vm2768 = vcmp.eq.s32.totalorder %v216, %v2688
        %vm2769 = vcmp.eq.s32.totalorder %v216, %v2691
        %vm2770 = vcmp.eq.s32.totalorder %v216, %v2694
        %vm2771 = vcmp.eq.s32.totalorder %v216, %v2697
        %vm2772 = vcmp.eq.s32.totalorder %v216, %v2700
        %vm2773 = vcmp.eq.s32.totalorder %v216, %v2703
        %vm2774 = vcmp.eq.s32.totalorder %v216, %v2706
        %vm2775 = vcmp.eq.s32.totalorder %v216, %v2709
        %vm2776 = vcmp.eq.s32.totalorder %v216, %v2712
        %vm2777 = vcmp.eq.s32.totalorder %v216, %v2715
        %vm2778 = vcmp.eq.s32.totalorder %v216, %v2718
        %vm2779 = vcmp.eq.s32.totalorder %v216, %v2721
        %vm2780 = vcmp.eq.s32.totalorder %v216, %v2724
        %vm2781 = vcmp.eq.s32.totalorder %v216, %v2727
        %vm2782 = vcmp.eq.s32.totalorder %v216, %v2730
        %vm2783 = vcmp.eq.s32.totalorder %v216, %v2733
        %vm2784 = vcmp.eq.s32.totalorder %v216, %v2736
        %vm2785 = vcmp.eq.s32.totalorder %v216, %v2739
        %vm2786 = vcmp.eq.s32.totalorder %v216, %v2742
        %vm2787 = vcmp.eq.s32.totalorder %v216, %v2745
        %vm2788 = vcmp.eq.s32.totalorder %v216, %v2748
        %vm2789 = vcmp.eq.s32.totalorder %v216, %v2751
        %vm2790 = vcmp.eq.s32.totalorder %v216, %v2754
        %vm2791 = vcmp.eq.s32.totalorder %v216, %v2757
        %vm2792 = vcmp.eq.s32.totalorder %v216, %v2760
        %v2793 = vsel %vm2761, 1, 0
        %v2794 = vsel %vm2762, 1, 0
        %v2795 = vsel %vm2763, 1, 0
        %v2796 = vsel %vm2764, 1, 0
        %v2797 = vsel %vm2765, 1, 0
        %v2798 = vsel %vm2766, 1, 0
        %v2799 = vsel %vm2767, 1, 0
        %v2800 = vsel %vm2768, 1, 0
        %v2801 = vsel %vm2769, 1, 0
        %v2802 = vsel %vm2770, 1, 0
        %v2803 = vsel %vm2771, 1, 0
        %v2804 = vsel %vm2772, 1, 0
        %v2805 = vsel %vm2773, 1, 0
        %v2806 = vsel %vm2774, 1, 0
        %v2807 = vsel %vm2775, 1, 0
        %v2808 = vsel %vm2776, 1, 0
        %v2809 = vsel %vm2777, 1, 0
        %v2810 = vsel %vm2778, 1, 0
        %v2811 = vsel %vm2779, 1, 0
        %v2812 = vsel %vm2780, 1, 0
        %v2813 = vsel %vm2781, 1, 0
        %v2814 = vsel %vm2782, 1, 0
        %v2815 = vsel %vm2783, 1, 0
        %v2816 = vsel %vm2784, 1, 0
        %v2817 = vsel %vm2785, 1, 0
        %v2818 = vsel %vm2786, 1, 0
        %v2819 = vsel %vm2787, 1, 0
        %v2820 = vsel %vm2788, 1, 0
        %v2821 = vsel %vm2789, 1, 0
        %v2822 = vsel %vm2790, 1, 0
        %v2823 = vsel %vm2791, 1, 0
        %v2824 = vsel %vm2792, 1, 0
        %v2825 = vcvt.s32.f32 %v2793
        %v2826 = vcvt.s32.f32 %v2794
        %v2827 = vcvt.s32.f32 %v2795
        %v2828 = vcvt.s32.f32 %v2796
        %v2829 = vcvt.s32.f32 %v2797
        %v2830 = vcvt.s32.f32 %v2798
        %v2831 = vcvt.s32.f32 %v2799
        %v2832 = vcvt.s32.f32 %v2800
        %v2833 = vcvt.s32.f32 %v2801
        %v2834 = vcvt.s32.f32 %v2802
        %v2835 = vcvt.s32.f32 %v2803
        %v2836 = vcvt.s32.f32 %v2804
        %v2837 = vcvt.s32.f32 %v2805
        %v2838 = vcvt.s32.f32 %v2806
        %v2839 = vcvt.s32.f32 %v2807
        %v2840 = vcvt.s32.f32 %v2808
        %v2841 = vcvt.s32.f32 %v2809
        %v2842 = vcvt.s32.f32 %v2810
        %v2843 = vcvt.s32.f32 %v2811
        %v2844 = vcvt.s32.f32 %v2812
        %v2845 = vcvt.s32.f32 %v2813
        %v2846 = vcvt.s32.f32 %v2814
        %v2847 = vcvt.s32.f32 %v2815
        %v2848 = vcvt.s32.f32 %v2816
        %v2849 = vcvt.s32.f32 %v2817
        %v2850 = vcvt.s32.f32 %v2818
        %v2851 = vcvt.s32.f32 %v2819
        %v2852 = vcvt.s32.f32 %v2820
        %v2853 = vcvt.s32.f32 %v2821
        %v2854 = vcvt.s32.f32 %v2822
        %v2855 = vcvt.s32.f32 %v2823
        %v2856 = vcvt.s32.f32 %v2824
        %v2857 = vpack.c.bf16 %v2826, %v2825
        %v2858 = vpack.c.bf16 %v2828, %v2827
        %v2859 = vpack.c.bf16 %v2830, %v2829
        %v2860 = vpack.c.bf16 %v2832, %v2831
        %v2861 = vpack.c.bf16 %v2834, %v2833
        %v2862 = vpack.c.bf16 %v2836, %v2835
        %v2863 = vpack.c.bf16 %v2838, %v2837
        %v2864 = vpack.c.bf16 %v2840, %v2839
        %v2865 = vpack.c.bf16 %v2842, %v2841
        %v2866 = vpack.c.bf16 %v2844, %v2843
        %v2867 = vpack.c.bf16 %v2846, %v2845
        %v2868 = vpack.c.bf16 %v2848, %v2847
        %v2869 = vpack.c.bf16 %v2850, %v2849
        %v2870 = vpack.c.bf16 %v2852, %v2851
        %v2871 = vpack.c.bf16 %v2854, %v2853
        %v2872 = vpack.c.bf16 %v2856, %v2855
        %v2873 = vld [vmem:[#allocation2] sm:$0xf]
        %v2874 = vld [vmem:[#allocation2 + $0x4] sm:$0xf]
        %v2875 = vld [vmem:[#allocation2 + $0x8] sm:$0xf]
        %v2876 = vld [vmem:[#allocation2 + $0xc] sm:$0xf]
        %v2877 = vld [vmem:[#allocation2 + $0x10] sm:$0xf]
        %v2878 = vld [vmem:[#allocation2 + $0x14] sm:$0xf]
        %v2879 = vld [vmem:[#allocation2 + $0x18] sm:$0xf]
        %v2880 = vld [vmem:[#allocation2 + $0x1c] sm:$0xf]
        %v2881 = vld [vmem:[#allocation2 + $0x20] sm:$0xf]
        %v2882 = vld [vmem:[#allocation2 + $0x24] sm:$0xf]
        %v2883 = vld [vmem:[#allocation2 + $0x28] sm:$0xf]
        %v2884 = vld [vmem:[#allocation2 + $0x2c] sm:$0xf]
        %v2885 = vld [vmem:[#allocation2 + $0x30] sm:$0xf]
        %v2886 = vld [vmem:[#allocation2 + $0x34] sm:$0xf]
        %v2887 = vld [vmem:[#allocation2 + $0x38] sm:$0xf]
        %v2888 = vld [vmem:[#allocation2 + $0x3c] sm:$0xf]
        %s2889 = scalar_lea.vmem [#allocation2], 64
        %v2890 = vld [vmem:[%s2889] sm:$0xf]
        %v2891 = vld [vmem:[%s2889 + $0x4] sm:$0xf]
        %v2892 = vld [vmem:[%s2889 + $0x8] sm:$0xf]
        %v2893 = vld [vmem:[%s2889 + $0xc] sm:$0xf]
        %v2894 = vld [vmem:[%s2889 + $0x10] sm:$0xf]
        %v2895 = vld [vmem:[%s2889 + $0x14] sm:$0xf]
        %v2896 = vld [vmem:[%s2889 + $0x18] sm:$0xf]
        %v2897 = vld [vmem:[%s2889 + $0x1c] sm:$0xf]
        %v2898 = vld [vmem:[%s2889 + $0x20] sm:$0xf]
        %v2899 = vld [vmem:[%s2889 + $0x24] sm:$0xf]
        %v2900 = vld [vmem:[%s2889 + $0x28] sm:$0xf]
        %v2901 = vld [vmem:[%s2889 + $0x2c] sm:$0xf]
        %v2902 = vld [vmem:[%s2889 + $0x30] sm:$0xf]
        %v2903 = vld [vmem:[%s2889 + $0x34] sm:$0xf]
        %v2904 = vld [vmem:[%s2889 + $0x38] sm:$0xf]
        %v2905 = vld [vmem:[%s2889 + $0x3c] sm:$0xf]
        %v2922 = vunpack.c.l.b16 %v2890
        %v2923 = vunpack.c.l.b16 %v2891
        %v2924 = vunpack.c.l.b16 %v2892
        %v2925 = vunpack.c.l.b16 %v2893
        %v2926 = vunpack.c.l.b16 %v2894
        %v2927 = vunpack.c.l.b16 %v2895
        %v2928 = vunpack.c.l.b16 %v2896
        %v2929 = vunpack.c.l.b16 %v2897
        %v2930 = vunpack.c.l.b16 %v2898
        %v2931 = vunpack.c.l.b16 %v2899
        %v2932 = vunpack.c.l.b16 %v2900
        %v2933 = vunpack.c.l.b16 %v2901
        %v2934 = vunpack.c.l.b16 %v2902
        %v2935 = vunpack.c.l.b16 %v2903
        %v2936 = vunpack.c.l.b16 %v2904
        %v2937 = vunpack.c.l.b16 %v2905
        %v2938 = vpack.c.b16 %v2923, %v2922
        %v2939 = vpack.c.b16 %v2925, %v2924
        %v2940 = vpack.c.b16 %v2927, %v2926
        %v2941 = vpack.c.b16 %v2929, %v2928
        %v2942 = vpack.c.b16 %v2931, %v2930
        %v2943 = vpack.c.b16 %v2933, %v2932
        %v2944 = vpack.c.b16 %v2935, %v2934
        %v2945 = vpack.c.b16 %v2937, %v2936
        %2954 = vmatprep.subr.bf16.mxu0 0
        %2955 = vmatpush1.bf16.msra.mxu0 %v2938
        %2956 = vmatprep.subr.bf16.mxu0 0
        %2957 = vmatpush1.bf16.msra.mxu0 %v2939
        %2958 = vmatprep.subr.bf16.mxu0 0
        %2959 = vmatpush1.bf16.msra.mxu0 %v2940
        %2960 = vmatprep.subr.bf16.mxu0 0
        %2961 = vmatpush1.bf16.msra.mxu0 %v2941
        %2962 = vmatprep.subr.bf16.mxu0 0
        %2963 = vmatpush1.bf16.msra.mxu0 %v2942
        %2964 = vmatprep.subr.bf16.mxu0 0
        %2965 = vmatpush1.bf16.msra.mxu0 %v2943
        %2966 = vmatprep.subr.bf16.mxu0 0
        %2967 = vmatpush1.bf16.msra.mxu0 %v2944
        %2968 = vmatprep.subr.bf16.mxu0 0
        %2969 = vmatpush1.bf16.msra.mxu0 %v2945
        %2970 = vmatprep.subr.bf16.mxu0 0
        %2971 = vmatpush1.bf16.msra.mxu0 0
        %2972 = vmatprep.subr.bf16.mxu0 0
        %2973 = vmatpush1.bf16.msra.mxu0 0
        %2974 = vmatprep.subr.bf16.mxu0 0
        %2975 = vmatpush1.bf16.msra.mxu0 0
        %2976 = vmatprep.subr.bf16.mxu0 0
        %2977 = vmatpush1.bf16.msra.mxu0 0
        %2978 = vmatprep.subr.bf16.mxu0 0
        %2979 = vmatpush1.bf16.msra.mxu0 0
        %2980 = vmatprep.subr.bf16.mxu0 0
        %2981 = vmatpush1.bf16.msra.mxu0 0
        %2982 = vmatprep.subr.bf16.mxu0 0
        %2983 = vmatpush1.bf16.msra.mxu0 0
        %2984 = vmatprep.subr.bf16.mxu0 0
        %2985 = vmatpush1.bf16.msra.mxu0 0
        %2986 = vmatprep.mubr.bf16.mxu0 0
        %2987 = vmatmul.mubr.bf16.gmra.mrb[0].mxu0 %v2857
        %v2988 = vpop.f32.mrb[0].mxu0
        %v2989 = vadd.f32 0.0, %v2988
        %v2990 = vpop.f32.mrb[0].mxu0
        %v2991 = vpop.f32.mrb[0].mxu0
        %v2992 = vadd.f32 0.0, %v2991
        %v2993 = vpop.f32.mrb[0].mxu0
        %2994 = vmatprep.mubr.bf16.mxu0 0
        %2995 = vmatmul.mubr.bf16.gmra.mrb[0].mxu0 %v2858
        %v2996 = vpop.f32.mrb[0].mxu0
        %v2997 = vadd.f32 0.0, %v2996
        %v2998 = vpop.f32.mrb[0].mxu0
        %v2999 = vpop.f32.mrb[0].mxu0
        %v3000 = vadd.f32 0.0, %v2999
        %v3001 = vpop.f32.mrb[0].mxu0
        %3002 = vmatprep.mubr.bf16.mxu0 0
        %3003 = vmatmul.mubr.bf16.gmra.mrb[0].mxu0 %v2859
        %v3004 = vpop.f32.mrb[0].mxu0
        %v3005 = vadd.f32 0.0, %v3004
        %v3006 = vpop.f32.mrb[0].mxu0
        %v3007 = vpop.f32.mrb[0].mxu0
        %v3008 = vadd.f32 0.0, %v3007
        %v3009 = vpop.f32.mrb[0].mxu0
        %3010 = vmatprep.mubr.bf16.mxu0 0
        %3011 = vmatmul.mubr.bf16.gmra.mrb[0].mxu0 %v2860
        %v3012 = vpop.f32.mrb[0].mxu0
        %v3013 = vadd.f32 0.0, %v3012
        %v3014 = vpop.f32.mrb[0].mxu0
        %v3015 = vpop.f32.mrb[0].mxu0
        %v3016 = vadd.f32 0.0, %v3015
        %v3017 = vpop.f32.mrb[0].mxu0
        %3018 = vmatprep.mubr.bf16.mxu0 0
        %3019 = vmatmul.mubr.bf16.gmra.mrb[0].mxu0 %v2861
        %v3020 = vpop.f32.mrb[0].mxu0
        %v3021 = vadd.f32 0.0, %v3020
        %v3022 = vpop.f32.mrb[0].mxu0
        %v3023 = vpop.f32.mrb[0].mxu0
        %v3024 = vadd.f32 0.0, %v3023
        %v3025 = vpop.f32.mrb[0].mxu0
        %3026 = vmatprep.mubr.bf16.mxu0 0
        %3027 = vmatmul.mubr.bf16.gmra.mrb[0].mxu0 %v2862
        %v3028 = vpop.f32.mrb[0].mxu0
        %v3029 = vadd.f32 0.0, %v3028
        %v3030 = vpop.f32.mrb[0].mxu0
        %v3031 = vpop.f32.mrb[0].mxu0
        %v3032 = vadd.f32 0.0, %v3031
        %v3033 = vpop.f32.mrb[0].mxu0
        %3034 = vmatprep.mubr.bf16.mxu0 0
        %3035 = vmatmul.mubr.bf16.gmra.mrb[0].mxu0 %v2863
        %v3036 = vpop.f32.mrb[0].mxu0
        %v3037 = vadd.f32 0.0, %v3036
        %v3038 = vpop.f32.mrb[0].mxu0
        %v3039 = vpop.f32.mrb[0].mxu0
        %v3040 = vadd.f32 0.0, %v3039
        %v3041 = vpop.f32.mrb[0].mxu0
        %3042 = vmatprep.mubr.bf16.mxu0 0
        %3043 = vmatmul.mubr.bf16.gmra.mrb[0].mxu0 %v2864
        %v3044 = vpop.f32.mrb[0].mxu0
        %v3045 = vadd.f32 0.0, %v3044
        %v3046 = vpop.f32.mrb[0].mxu0
        %v3047 = vpop.f32.mrb[0].mxu0
        %v3048 = vadd.f32 0.0, %v3047
        %v3049 = vpop.f32.mrb[0].mxu0
        %3050 = vmatprep.mubr.bf16.mxu0 0
        %3051 = vmatmul.mubr.bf16.gmra.mrb[0].mxu0 %v2865
        %v3052 = vpop.f32.mrb[0].mxu0
        %v3053 = vadd.f32 0.0, %v3052
        %v3054 = vpop.f32.mrb[0].mxu0
        %v3055 = vpop.f32.mrb[0].mxu0
        %v3056 = vadd.f32 0.0, %v3055
        %v3057 = vpop.f32.mrb[0].mxu0
        %3058 = vmatprep.mubr.bf16.mxu0 0
        %3059 = vmatmul.mubr.bf16.gmra.mrb[0].mxu0 %v2866
        %v3060 = vpop.f32.mrb[0].mxu0
        %v3061 = vadd.f32 0.0, %v3060
        %v3062 = vpop.f32.mrb[0].mxu0
        %v3063 = vpop.f32.mrb[0].mxu0
        %v3064 = vadd.f32 0.0, %v3063
        %v3065 = vpop.f32.mrb[0].mxu0
        %3066 = vmatprep.mubr.bf16.mxu0 0
        %3067 = vmatmul.mubr.bf16.gmra.mrb[0].mxu0 %v2867
        %v3068 = vpop.f32.mrb[0].mxu0
        %v3069 = vadd.f32 0.0, %v3068
        %v3070 = vpop.f32.mrb[0].mxu0
        %v3071 = vpop.f32.mrb[0].mxu0
        %v3072 = vadd.f32 0.0, %v3071
        %v3073 = vpop.f32.mrb[0].mxu0
        %3074 = vmatprep.mubr.bf16.mxu0 0
        %3075 = vmatmul.mubr.bf16.gmra.mrb[0].mxu0 %v2868
        %v3076 = vpop.f32.mrb[0].mxu0
        %v3077 = vadd.f32 0.0, %v3076
        %v3078 = vpop.f32.mrb[0].mxu0
        %v3079 = vpop.f32.mrb[0].mxu0
        %v3080 = vadd.f32 0.0, %v3079
        %v3081 = vpop.f32.mrb[0].mxu0
        %3082 = vmatprep.mubr.bf16.mxu0 0
        %3083 = vmatmul.mubr.bf16.gmra.mrb[0].mxu0 %v2869
        %v3084 = vpop.f32.mrb[0].mxu0
        %v3085 = vadd.f32 0.0, %v3084
        %v3086 = vpop.f32.mrb[0].mxu0
        %v3087 = vpop.f32.mrb[0].mxu0
        %v3088 = vadd.f32 0.0, %v3087
        %v3089 = vpop.f32.mrb[0].mxu0
        %3090 = vmatprep.mubr.bf16.mxu0 0
        %3091 = vmatmul.mubr.bf16.gmra.mrb[0].mxu0 %v2870
        %v3092 = vpop.f32.mrb[0].mxu0
        %v3093 = vadd.f32 0.0, %v3092
        %v3094 = vpop.f32.mrb[0].mxu0
        %v3095 = vpop.f32.mrb[0].mxu0
        %v3096 = vadd.f32 0.0, %v3095
        %v3097 = vpop.f32.mrb[0].mxu0
        %3098 = vmatprep.mubr.bf16.mxu0 0
        %3099 = vmatmul.mubr.bf16.gmra.mrb[0].mxu0 %v2871
        %v3100 = vpop.f32.mrb[0].mxu0
        %v3101 = vadd.f32 0.0, %v3100
        %v3102 = vpop.f32.mrb[0].mxu0
        %v3103 = vpop.f32.mrb[0].mxu0
        %v3104 = vadd.f32 0.0, %v3103
        %v3105 = vpop.f32.mrb[0].mxu0
        %3106 = vmatprep.mubr.bf16.mxu0 0
        %3107 = vmatmul.mubr.bf16.gmra.mrb[0].mxu0 %v2872
        %v3108 = vpop.f32.mrb[0].mxu0
        %v3109 = vadd.f32 0.0, %v3108
        %v3110 = vpop.f32.mrb[0].mxu0
        %v3111 = vpop.f32.mrb[0].mxu0
        %v3112 = vadd.f32 0.0, %v3111
        %v3113 = vpop.f32.mrb[0].mxu0
        %3114 = vdwg.mxu0
        %v3131 = vunpack.c.l.b16 %v2873
        %v3132 = vunpack.c.l.b16 %v2874
        %v3133 = vunpack.c.l.b16 %v2875
        %v3134 = vunpack.c.l.b16 %v2876
        %v3135 = vunpack.c.l.b16 %v2877
        %v3136 = vunpack.c.l.b16 %v2878
        %v3137 = vunpack.c.l.b16 %v2879
        %v3138 = vunpack.c.l.b16 %v2880
        %v3139 = vunpack.c.l.b16 %v2881
        %v3140 = vunpack.c.l.b16 %v2882
        %v3141 = vunpack.c.l.b16 %v2883
        %v3142 = vunpack.c.l.b16 %v2884
        %v3143 = vunpack.c.l.b16 %v2885
        %v3144 = vunpack.c.l.b16 %v2886
        %v3145 = vunpack.c.l.b16 %v2887
        %v3146 = vunpack.c.l.b16 %v2888
        %v3147 = vpack.c.b16 %v3132, %v3131
        %v3148 = vpack.c.b16 %v3134, %v3133
        %v3149 = vpack.c.b16 %v3136, %v3135
        %v3150 = vpack.c.b16 %v3138, %v3137
        %v3151 = vpack.c.b16 %v3140, %v3139
        %v3152 = vpack.c.b16 %v3142, %v3141
        %v3153 = vpack.c.b16 %v3144, %v3143
        %v3154 = vpack.c.b16 %v3146, %v3145
        %3163 = vmatprep.subr.bf16.mxu0 0
        %3164 = vmatpush1.bf16.msra.mxu0 %v3147
        %3165 = vmatprep.subr.bf16.mxu0 0
        %3166 = vmatpush1.bf16.msra.mxu0 %v3148
        %3167 = vmatprep.subr.bf16.mxu0 0
        %3168 = vmatpush1.bf16.msra.mxu0 %v3149
        %3169 = vmatprep.subr.bf16.mxu0 0
        %3170 = vmatpush1.bf16.msra.mxu0 %v3150
        %3171 = vmatprep.subr.bf16.mxu0 0
        %3172 = vmatpush1.bf16.msra.mxu0 %v3151
        %3173 = vmatprep.subr.bf16.mxu0 0
        %3174 = vmatpush1.bf16.msra.mxu0 %v3152
        %3175 = vmatprep.subr.bf16.mxu0 0
        %3176 = vmatpush1.bf16.msra.mxu0 %v3153
        %3177 = vmatprep.subr.bf16.mxu0 0
        %3178 = vmatpush1.bf16.msra.mxu0 %v3154
        %3179 = vmatprep.subr.bf16.mxu0 0
        %3180 = vmatpush1.bf16.msra.mxu0 0
        %3181 = vmatprep.subr.bf16.mxu0 0
        %3182 = vmatpush1.bf16.msra.mxu0 0
        %3183 = vmatprep.subr.bf16.mxu0 0
        %3184 = vmatpush1.bf16.msra.mxu0 0
        %3185 = vmatprep.subr.bf16.mxu0 0
        %3186 = vmatpush1.bf16.msra.mxu0 0
        %3187 = vmatprep.subr.bf16.mxu0 0
        %3188 = vmatpush1.bf16.msra.mxu0 0
        %3189 = vmatprep.subr.bf16.mxu0 0
        %3190 = vmatpush1.bf16.msra.mxu0 0
        %3191 = vmatprep.subr.bf16.mxu0 0
        %3192 = vmatpush1.bf16.msra.mxu0 0
        %3193 = vmatprep.subr.bf16.mxu0 0
        %3194 = vmatpush1.bf16.msra.mxu0 0
        %3195 = vmatprep.mubr.bf16.mxu0 0
        %3196 = vmatmul.mubr.bf16.gmra.mrb[0].mxu0 %v2857
        %v3197 = vpop.f32.mrb[0].mxu0
        %v3198 = vadd.f32 %v2989, %v3197
        %v3199 = vpop.f32.mrb[0].mxu0
        %v3200 = vpop.f32.mrb[0].mxu0
        %v3201 = vadd.f32 %v2992, %v3200
        %v3202 = vpop.f32.mrb[0].mxu0
        %3203 = vmatprep.mubr.bf16.mxu0 0
        %3204 = vmatmul.mubr.bf16.gmra.mrb[0].mxu0 %v2858
        %v3205 = vpop.f32.mrb[0].mxu0
        %v3206 = vadd.f32 %v2997, %v3205
        %v3207 = vpop.f32.mrb[0].mxu0
        %v3208 = vpop.f32.mrb[0].mxu0
        %v3209 = vadd.f32 %v3000, %v3208
        %v3210 = vpop.f32.mrb[0].mxu0
        %3211 = vmatprep.mubr.bf16.mxu0 0
        %3212 = vmatmul.mubr.bf16.gmra.mrb[0].mxu0 %v2859
        %v3213 = vpop.f32.mrb[0].mxu0
        %v3214 = vadd.f32 %v3005, %v3213
        %v3215 = vpop.f32.mrb[0].mxu0
        %v3216 = vpop.f32.mrb[0].mxu0
        %v3217 = vadd.f32 %v3008, %v3216
        %v3218 = vpop.f32.mrb[0].mxu0
        %3219 = vmatprep.mubr.bf16.mxu0 0
        %3220 = vmatmul.mubr.bf16.gmra.mrb[0].mxu0 %v2860
        %v3221 = vpop.f32.mrb[0].mxu0
        %v3222 = vadd.f32 %v3013, %v3221
        %v3223 = vpop.f32.mrb[0].mxu0
        %v3224 = vpop.f32.mrb[0].mxu0
        %v3225 = vadd.f32 %v3016, %v3224
        %v3226 = vpop.f32.mrb[0].mxu0
        %3227 = vmatprep.mubr.bf16.mxu0 0
        %3228 = vmatmul.mubr.bf16.gmra.mrb[0].mxu0 %v2861
        %v3229 = vpop.f32.mrb[0].mxu0
        %v3230 = vadd.f32 %v3021, %v3229
        %v3231 = vpop.f32.mrb[0].mxu0
        %v3232 = vpop.f32.mrb[0].mxu0
        %v3233 = vadd.f32 %v3024, %v3232
        %v3234 = vpop.f32.mrb[0].mxu0
        %3235 = vmatprep.mubr.bf16.mxu0 0
        %3236 = vmatmul.mubr.bf16.gmra.mrb[0].mxu0 %v2862
        %v3237 = vpop.f32.mrb[0].mxu0
        %v3238 = vadd.f32 %v3029, %v3237
        %v3239 = vpop.f32.mrb[0].mxu0
        %v3240 = vpop.f32.mrb[0].mxu0
        %v3241 = vadd.f32 %v3032, %v3240
        %v3242 = vpop.f32.mrb[0].mxu0
        %3243 = vmatprep.mubr.bf16.mxu0 0
        %3244 = vmatmul.mubr.bf16.gmra.mrb[0].mxu0 %v2863
        %v3245 = vpop.f32.mrb[0].mxu0
        %v3246 = vadd.f32 %v3037, %v3245
        %v3247 = vpop.f32.mrb[0].mxu0
        %v3248 = vpop.f32.mrb[0].mxu0
        %v3249 = vadd.f32 %v3040, %v3248
        %v3250 = vpop.f32.mrb[0].mxu0
        %3251 = vmatprep.mubr.bf16.mxu0 0
        %3252 = vmatmul.mubr.bf16.gmra.mrb[0].mxu0 %v2864
        %v3253 = vpop.f32.mrb[0].mxu0
        %v3254 = vadd.f32 %v3045, %v3253
        %v3255 = vpop.f32.mrb[0].mxu0
        %v3256 = vpop.f32.mrb[0].mxu0
        %v3257 = vadd.f32 %v3048, %v3256
        %v3258 = vpop.f32.mrb[0].mxu0
        %3259 = vmatprep.mubr.bf16.mxu0 0
        %3260 = vmatmul.mubr.bf16.gmra.mrb[0].mxu0 %v2865
        %v3261 = vpop.f32.mrb[0].mxu0
        %v3262 = vadd.f32 %v3053, %v3261
        %v3263 = vpop.f32.mrb[0].mxu0
        %v3264 = vpop.f32.mrb[0].mxu0
        %v3265 = vadd.f32 %v3056, %v3264
        %v3266 = vpop.f32.mrb[0].mxu0
        %3267 = vmatprep.mubr.bf16.mxu0 0
        %3268 = vmatmul.mubr.bf16.gmra.mrb[0].mxu0 %v2866
        %v3269 = vpop.f32.mrb[0].mxu0
        %v3270 = vadd.f32 %v3061, %v3269
        %v3271 = vpop.f32.mrb[0].mxu0
        %v3272 = vpop.f32.mrb[0].mxu0
        %v3273 = vadd.f32 %v3064, %v3272
        %v3274 = vpop.f32.mrb[0].mxu0
        %3275 = vmatprep.mubr.bf16.mxu0 0
        %3276 = vmatmul.mubr.bf16.gmra.mrb[0].mxu0 %v2867
        %v3277 = vpop.f32.mrb[0].mxu0
        %v3278 = vadd.f32 %v3069, %v3277
        %v3279 = vpop.f32.mrb[0].mxu0
        %v3280 = vpop.f32.mrb[0].mxu0
        %v3281 = vadd.f32 %v3072, %v3280
        %v3282 = vpop.f32.mrb[0].mxu0
        %3283 = vmatprep.mubr.bf16.mxu0 0
        %3284 = vmatmul.mubr.bf16.gmra.mrb[0].mxu0 %v2868
        %v3285 = vpop.f32.mrb[0].mxu0
        %v3286 = vadd.f32 %v3077, %v3285
        %v3287 = vpop.f32.mrb[0].mxu0
        %v3288 = vpop.f32.mrb[0].mxu0
        %v3289 = vadd.f32 %v3080, %v3288
        %v3290 = vpop.f32.mrb[0].mxu0
        %3291 = vmatprep.mubr.bf16.mxu0 0
        %3292 = vmatmul.mubr.bf16.gmra.mrb[0].mxu0 %v2869
        %v3293 = vpop.f32.mrb[0].mxu0
        %v3294 = vadd.f32 %v3085, %v3293
        %v3295 = vpop.f32.mrb[0].mxu0
        %v3296 = vpop.f32.mrb[0].mxu0
        %v3297 = vadd.f32 %v3088, %v3296
        %v3298 = vpop.f32.mrb[0].mxu0
        %3299 = vmatprep.mubr.bf16.mxu0 0
        %3300 = vmatmul.mubr.bf16.gmra.mrb[0].mxu0 %v2870
        %v3301 = vpop.f32.mrb[0].mxu0
        %v3302 = vadd.f32 %v3093, %v3301
        %v3303 = vpop.f32.mrb[0].mxu0
        %v3304 = vpop.f32.mrb[0].mxu0
        %v3305 = vadd.f32 %v3096, %v3304
        %v3306 = vpop.f32.mrb[0].mxu0
        %3307 = vmatprep.mubr.bf16.mxu0 0
        %3308 = vmatmul.mubr.bf16.gmra.mrb[0].mxu0 %v2871
        %v3309 = vpop.f32.mrb[0].mxu0
        %v3310 = vadd.f32 %v3101, %v3309
        %v3311 = vpop.f32.mrb[0].mxu0
        %v3312 = vpop.f32.mrb[0].mxu0
        %v3313 = vadd.f32 %v3104, %v3312
        %v3314 = vpop.f32.mrb[0].mxu0
        %3315 = vmatprep.mubr.bf16.mxu0 0
        %3316 = vmatmul.mubr.bf16.gmra.mrb[0].mxu0 %v2872
        %v3317 = vpop.f32.mrb[0].mxu0
        %v3318 = vadd.f32 %v3109, %v3317
        %v3319 = vpop.f32.mrb[0].mxu0
        %v3320 = vpop.f32.mrb[0].mxu0
        %v3321 = vadd.f32 %v3112, %v3320
        %v3322 = vpop.f32.mrb[0].mxu0
        %3323 = vdwg.mxu0
        %s3324 = scalar_lea.vmem [#allocation2], 128
        %v3325 = vld [vmem:[%s3324] sm:$0xf]
        %v3326 = vld [vmem:[%s3324 + $0x4] sm:$0xf]
        %v3327 = vld [vmem:[%s3324 + $0x8] sm:$0xf]
        %v3328 = vld [vmem:[%s3324 + $0xc] sm:$0xf]
        %v3329 = vld [vmem:[%s3324 + $0x10] sm:$0xf]
        %v3330 = vld [vmem:[%s3324 + $0x14] sm:$0xf]
        %v3331 = vld [vmem:[%s3324 + $0x18] sm:$0xf]
        %v3332 = vld [vmem:[%s3324 + $0x1c] sm:$0xf]
        %v3333 = vld [vmem:[%s3324 + $0x20] sm:$0xf]
        %v3334 = vld [vmem:[%s3324 + $0x24] sm:$0xf]
        %v3335 = vld [vmem:[%s3324 + $0x28] sm:$0xf]
        %v3336 = vld [vmem:[%s3324 + $0x2c] sm:$0xf]
        %v3337 = vld [vmem:[%s3324 + $0x30] sm:$0xf]
        %v3338 = vld [vmem:[%s3324 + $0x34] sm:$0xf]
        %v3339 = vld [vmem:[%s3324 + $0x38] sm:$0xf]
        %v3340 = vld [vmem:[%s3324 + $0x3c] sm:$0xf]
        %v3357 = vunpack.c.l.b16 %v3325
        %v3358 = vunpack.c.l.b16 %v3326
        %v3359 = vunpack.c.l.b16 %v3327
        %v3360 = vunpack.c.l.b16 %v3328
        %v3361 = vunpack.c.l.b16 %v3329
        %v3362 = vunpack.c.l.b16 %v3330
        %v3363 = vunpack.c.l.b16 %v3331
        %v3364 = vunpack.c.l.b16 %v3332
        %v3365 = vunpack.c.l.b16 %v3333
        %v3366 = vunpack.c.l.b16 %v3334
        %v3367 = vunpack.c.l.b16 %v3335
        %v3368 = vunpack.c.l.b16 %v3336
        %v3369 = vunpack.c.l.b16 %v3337
        %v3370 = vunpack.c.l.b16 %v3338
        %v3371 = vunpack.c.l.b16 %v3339
        %v3372 = vunpack.c.l.b16 %v3340
        %v3373 = vpack.c.b16 %v3358, %v3357
        %v3374 = vpack.c.b16 %v3360, %v3359
        %v3375 = vpack.c.b16 %v3362, %v3361
        %v3376 = vpack.c.b16 %v3364, %v3363
        %v3377 = vpack.c.b16 %v3366, %v3365
        %v3378 = vpack.c.b16 %v3368, %v3367
        %v3379 = vpack.c.b16 %v3370, %v3369
        %v3380 = vpack.c.b16 %v3372, %v3371
        %3389 = vmatprep.subr.bf16.mxu0 0
        %3390 = vmatpush1.bf16.msra.mxu0 %v3373
        %3391 = vmatprep.subr.bf16.mxu0 0
        %3392 = vmatpush1.bf16.msra.mxu0 %v3374
        %3393 = vmatprep.subr.bf16.mxu0 0
        %3394 = vmatpush1.bf16.msra.mxu0 %v3375
        %3395 = vmatprep.subr.bf16.mxu0 0
        %3396 = vmatpush1.bf16.msra.mxu0 %v3376
        %3397 = vmatprep.subr.bf16.mxu0 0
        %3398 = vmatpush1.bf16.msra.mxu0 %v3377
        %3399 = vmatprep.subr.bf16.mxu0 0
        %3400 = vmatpush1.bf16.msra.mxu0 %v3378
        %3401 = vmatprep.subr.bf16.mxu0 0
        %3402 = vmatpush1.bf16.msra.mxu0 %v3379
        %3403 = vmatprep.subr.bf16.mxu0 0
        %3404 = vmatpush1.bf16.msra.mxu0 %v3380
        %3405 = vmatprep.subr.bf16.mxu0 0
        %3406 = vmatpush1.bf16.msra.mxu0 0
        %3407 = vmatprep.subr.bf16.mxu0 0
        %3408 = vmatpush1.bf16.msra.mxu0 0
        %3409 = vmatprep.subr.bf16.mxu0 0
        %3410 = vmatpush1.bf16.msra.mxu0 0
        %3411 = vmatprep.subr.bf16.mxu0 0
        %3412 = vmatpush1.bf16.msra.mxu0 0
        %3413 = vmatprep.subr.bf16.mxu0 0
        %3414 = vmatpush1.bf16.msra.mxu0 0
        %3415 = vmatprep.subr.bf16.mxu0 0
        %3416 = vmatpush1.bf16.msra.mxu0 0
        %3417 = vmatprep.subr.bf16.mxu0 0
        %3418 = vmatpush1.bf16.msra.mxu0 0
        %3419 = vmatprep.subr.bf16.mxu0 0
        %3420 = vmatpush1.bf16.msra.mxu0 0
        %3421 = vmatprep.mubr.bf16.mxu0 0
        %3422 = vmatmul.mubr.bf16.gmra.mrb[0].mxu0 %v2857
        %v3423 = vpop.f32.mrb[0].mxu0
        %v3424 = vadd.f32 0.0, %v3423
        %v3425 = vpop.f32.mrb[0].mxu0
        %v3426 = vpop.f32.mrb[0].mxu0
        %v3427 = vadd.f32 0.0, %v3426
        %v3428 = vpop.f32.mrb[0].mxu0
        %3429 = vmatprep.mubr.bf16.mxu0 0
        %3430 = vmatmul.mubr.bf16.gmra.mrb[0].mxu0 %v2858
        %v3431 = vpop.f32.mrb[0].mxu0
        %v3432 = vadd.f32 0.0, %v3431
        %v3433 = vpop.f32.mrb[0].mxu0
        %v3434 = vpop.f32.mrb[0].mxu0
        %v3435 = vadd.f32 0.0, %v3434
        %v3436 = vpop.f32.mrb[0].mxu0
        %3437 = vmatprep.mubr.bf16.mxu0 0
        %3438 = vmatmul.mubr.bf16.gmra.mrb[0].mxu0 %v2859
        %v3439 = vpop.f32.mrb[0].mxu0
        %v3440 = vadd.f32 0.0, %v3439
        %v3441 = vpop.f32.mrb[0].mxu0
        %v3442 = vpop.f32.mrb[0].mxu0
        %v3443 = vadd.f32 0.0, %v3442
        %v3444 = vpop.f32.mrb[0].mxu0
        %3445 = vmatprep.mubr.bf16.mxu0 0
        %3446 = vmatmul.mubr.bf16.gmra.mrb[0].mxu0 %v2860
        %v3447 = vpop.f32.mrb[0].mxu0
        %v3448 = vadd.f32 0.0, %v3447
        %v3449 = vpop.f32.mrb[0].mxu0
        %v3450 = vpop.f32.mrb[0].mxu0
        %v3451 = vadd.f32 0.0, %v3450
        %v3452 = vpop.f32.mrb[0].mxu0
        %3453 = vmatprep.mubr.bf16.mxu0 0
        %3454 = vmatmul.mubr.bf16.gmra.mrb[0].mxu0 %v2861
        %v3455 = vpop.f32.mrb[0].mxu0
        %v3456 = vadd.f32 0.0, %v3455
        %v3457 = vpop.f32.mrb[0].mxu0
        %v3458 = vpop.f32.mrb[0].mxu0
        %v3459 = vadd.f32 0.0, %v3458
        %v3460 = vpop.f32.mrb[0].mxu0
        %3461 = vmatprep.mubr.bf16.mxu0 0
        %3462 = vmatmul.mubr.bf16.gmra.mrb[0].mxu0 %v2862
        %v3463 = vpop.f32.mrb[0].mxu0
        %v3464 = vadd.f32 0.0, %v3463
        %v3465 = vpop.f32.mrb[0].mxu0
        %v3466 = vpop.f32.mrb[0].mxu0
        %v3467 = vadd.f32 0.0, %v3466
        %v3468 = vpop.f32.mrb[0].mxu0
        %3469 = vmatprep.mubr.bf16.mxu0 0
        %3470 = vmatmul.mubr.bf16.gmra.mrb[0].mxu0 %v2863
        %v3471 = vpop.f32.mrb[0].mxu0
        %v3472 = vadd.f32 0.0, %v3471
        %v3473 = vpop.f32.mrb[0].mxu0
        %v3474 = vpop.f32.mrb[0].mxu0
        %v3475 = vadd.f32 0.0, %v3474
        %v3476 = vpop.f32.mrb[0].mxu0
        %3477 = vmatprep.mubr.bf16.mxu0 0
        %3478 = vmatmul.mubr.bf16.gmra.mrb[0].mxu0 %v2864
        %v3479 = vpop.f32.mrb[0].mxu0
        %v3480 = vadd.f32 0.0, %v3479
        %v3481 = vpop.f32.mrb[0].mxu0
        %v3482 = vpop.f32.mrb[0].mxu0
        %v3483 = vadd.f32 0.0, %v3482
        %v3484 = vpop.f32.mrb[0].mxu0
        %3485 = vmatprep.mubr.bf16.mxu0 0
        %3486 = vmatmul.mubr.bf16.gmra.mrb[0].mxu0 %v2865
        %v3487 = vpop.f32.mrb[0].mxu0
        %v3488 = vadd.f32 0.0, %v3487
        %v3489 = vpop.f32.mrb[0].mxu0
        %v3490 = vpop.f32.mrb[0].mxu0
        %v3491 = vadd.f32 0.0, %v3490
        %v3492 = vpop.f32.mrb[0].mxu0
        %3493 = vmatprep.mubr.bf16.mxu0 0
        %3494 = vmatmul.mubr.bf16.gmra.mrb[0].mxu0 %v2866
        %v3495 = vpop.f32.mrb[0].mxu0
        %v3496 = vadd.f32 0.0, %v3495
        %v3497 = vpop.f32.mrb[0].mxu0
        %v3498 = vpop.f32.mrb[0].mxu0
        %v3499 = vadd.f32 0.0, %v3498
        %v3500 = vpop.f32.mrb[0].mxu0
        %3501 = vmatprep.mubr.bf16.mxu0 0
        %3502 = vmatmul.mubr.bf16.gmra.mrb[0].mxu0 %v2867
        %v3503 = vpop.f32.mrb[0].mxu0
        %v3504 = vadd.f32 0.0, %v3503
        %v3505 = vpop.f32.mrb[0].mxu0
        %v3506 = vpop.f32.mrb[0].mxu0
        %v3507 = vadd.f32 0.0, %v3506
        %v3508 = vpop.f32.mrb[0].mxu0
        %3509 = vmatprep.mubr.bf16.mxu0 0
        %3510 = vmatmul.mubr.bf16.gmra.mrb[0].mxu0 %v2868
        %v3511 = vpop.f32.mrb[0].mxu0
        %v3512 = vadd.f32 0.0, %v3511
        %v3513 = vpop.f32.mrb[0].mxu0
        %v3514 = vpop.f32.mrb[0].mxu0
        %v3515 = vadd.f32 0.0, %v3514
        %v3516 = vpop.f32.mrb[0].mxu0
        %3517 = vmatprep.mubr.bf16.mxu0 0
        %3518 = vmatmul.mubr.bf16.gmra.mrb[0].mxu0 %v2869
        %v3519 = vpop.f32.mrb[0].mxu0
        %v3520 = vadd.f32 0.0, %v3519
        %v3521 = vpop.f32.mrb[0].mxu0
        %v3522 = vpop.f32.mrb[0].mxu0
        %v3523 = vadd.f32 0.0, %v3522
        %v3524 = vpop.f32.mrb[0].mxu0
        %3525 = vmatprep.mubr.bf16.mxu0 0
        %3526 = vmatmul.mubr.bf16.gmra.mrb[0].mxu0 %v2870
        %v3527 = vpop.f32.mrb[0].mxu0
        %v3528 = vadd.f32 0.0, %v3527
        %v3529 = vpop.f32.mrb[0].mxu0
        %v3530 = vpop.f32.mrb[0].mxu0
        %v3531 = vadd.f32 0.0, %v3530
        %v3532 = vpop.f32.mrb[0].mxu0
        %3533 = vmatprep.mubr.bf16.mxu0 0
        %3534 = vmatmul.mubr.bf16.gmra.mrb[0].mxu0 %v2871
        %v3535 = vpop.f32.mrb[0].mxu0
        %v3536 = vadd.f32 0.0, %v3535
        %v3537 = vpop.f32.mrb[0].mxu0
        %v3538 = vpop.f32.mrb[0].mxu0
        %v3539 = vadd.f32 0.0, %v3538
        %v3540 = vpop.f32.mrb[0].mxu0
        %3541 = vmatprep.mubr.bf16.mxu0 0
        %3542 = vmatmul.mubr.bf16.gmra.mrb[0].mxu0 %v2872
        %v3543 = vpop.f32.mrb[0].mxu0
        %v3544 = vadd.f32 0.0, %v3543
        %v3545 = vpop.f32.mrb[0].mxu0
        %v3546 = vpop.f32.mrb[0].mxu0
        %v3547 = vadd.f32 0.0, %v3546
        %v3548 = vpop.f32.mrb[0].mxu0
        %3549 = vdwg.mxu0
        %v3550 = vadd.f32 %v3198, %v3424
        %v3551 = vadd.f32 %v3201, %v3427
        %v3552 = vadd.f32 %v3206, %v3432
        %v3553 = vadd.f32 %v3209, %v3435
        %v3554 = vadd.f32 %v3214, %v3440
        %v3555 = vadd.f32 %v3217, %v3443
        %v3556 = vadd.f32 %v3222, %v3448
        %v3557 = vadd.f32 %v3225, %v3451
        %v3558 = vadd.f32 %v3230, %v3456
        %v3559 = vadd.f32 %v3233, %v3459
        %v3560 = vadd.f32 %v3238, %v3464
        %v3561 = vadd.f32 %v3241, %v3467
        %v3562 = vadd.f32 %v3246, %v3472
        %v3563 = vadd.f32 %v3249, %v3475
        %v3564 = vadd.f32 %v3254, %v3480
        %v3565 = vadd.f32 %v3257, %v3483
        %v3566 = vadd.f32 %v3262, %v3488
        %v3567 = vadd.f32 %v3265, %v3491
        %v3568 = vadd.f32 %v3270, %v3496
        %v3569 = vadd.f32 %v3273, %v3499
        %v3570 = vadd.f32 %v3278, %v3504
        %v3571 = vadd.f32 %v3281, %v3507
        %v3572 = vadd.f32 %v3286, %v3512
        %v3573 = vadd.f32 %v3289, %v3515
        %v3574 = vadd.f32 %v3294, %v3520
        %v3575 = vadd.f32 %v3297, %v3523
        %v3576 = vadd.f32 %v3302, %v3528
        %v3577 = vadd.f32 %v3305, %v3531
        %v3578 = vadd.f32 %v3310, %v3536
        %v3579 = vadd.f32 %v3313, %v3539
        %v3580 = vadd.f32 %v3318, %v3544
        %v3581 = vadd.f32 %v3321, %v3547
        %vm3582 = vcmp.eq.s32.totalorder %v216, 98
        %v3583 = vsel %vm3582, 1, 0
        %vm3584 = vcmp.eq.s32.totalorder %v3583, 1
        %v3585 = vsel %vm3584, %v3550, 0.0
        %v3586 = vsel %vm3584, %v3551, 0.0
        %v3587 = vsel %vm3584, %v3552, 0.0
        %v3588 = vsel %vm3584, %v3553, 0.0
        %v3589 = vsel %vm3584, %v3554, 0.0
        %v3590 = vsel %vm3584, %v3555, 0.0
        %v3591 = vsel %vm3584, %v3556, 0.0
        %v3592 = vsel %vm3584, %v3557, 0.0
        %v3593 = vsel %vm3584, %v3558, 0.0
        %v3594 = vsel %vm3584, %v3559, 0.0
        %v3595 = vsel %vm3584, %v3560, 0.0
        %v3596 = vsel %vm3584, %v3561, 0.0
        %v3597 = vsel %vm3584, %v3562, 0.0
        %v3598 = vsel %vm3584, %v3563, 0.0
        %v3599 = vsel %vm3584, %v3564, 0.0
        %v3600 = vsel %vm3584, %v3565, 0.0
        %v3601 = vsel %vm3584, %v3566, 0.0
        %v3602 = vsel %vm3584, %v3567, 0.0
        %v3603 = vsel %vm3584, %v3568, 0.0
        %v3604 = vsel %vm3584, %v3569, 0.0
        %v3605 = vsel %vm3584, %v3570, 0.0
        %v3606 = vsel %vm3584, %v3571, 0.0
        %v3607 = vsel %vm3584, %v3572, 0.0
        %v3608 = vsel %vm3584, %v3573, 0.0
        %v3609 = vsel %vm3584, %v3574, 0.0
        %v3610 = vsel %vm3584, %v3575, 0.0
        %v3611 = vsel %vm3584, %v3576, 0.0
        %v3612 = vsel %vm3584, %v3577, 0.0
        %v3613 = vsel %vm3584, %v3578, 0.0
        %v3614 = vsel %vm3584, %v3579, 0.0
        %v3615 = vsel %vm3584, %v3580, 0.0
        %v3616 = vsel %vm3584, %v3581, 0.0
        %v3617 = vsub.f32 %v3550, %v3585
        %v3618 = vsub.f32 %v3551, %v3586
        %v3619 = vsub.f32 %v3552, %v3587
        %v3620 = vsub.f32 %v3553, %v3588
        %v3621 = vsub.f32 %v3554, %v3589
        %v3622 = vsub.f32 %v3555, %v3590
        %v3623 = vsub.f32 %v3556, %v3591
        %v3624 = vsub.f32 %v3557, %v3592
        %v3625 = vsub.f32 %v3558, %v3593
        %v3626 = vsub.f32 %v3559, %v3594
        %v3627 = vsub.f32 %v3560, %v3595
        %v3628 = vsub.f32 %v3561, %v3596
        %v3629 = vsub.f32 %v3562, %v3597
        %v3630 = vsub.f32 %v3563, %v3598
        %v3631 = vsub.f32 %v3564, %v3599
        %v3632 = vsub.f32 %v3565, %v3600
        %v3633 = vsub.f32 %v3566, %v3601
        %v3634 = vsub.f32 %v3567, %v3602
        %v3635 = vsub.f32 %v3568, %v3603
        %v3636 = vsub.f32 %v3569, %v3604
        %v3637 = vsub.f32 %v3570, %v3605
        %v3638 = vsub.f32 %v3571, %v3606
        %v3639 = vsub.f32 %v3572, %v3607
        %v3640 = vsub.f32 %v3573, %v3608
        %v3641 = vsub.f32 %v3574, %v3609
        %v3642 = vsub.f32 %v3575, %v3610
        %v3643 = vsub.f32 %v3576, %v3611
        %v3644 = vsub.f32 %v3577, %v3612
        %v3645 = vsub.f32 %v3578, %v3613
        %v3646 = vsub.f32 %v3579, %v3614
        %v3647 = vsub.f32 %v3580, %v3615
        %v3648 = vsub.f32 %v3581, %v3616
        %v3649 = vmul.f32 %v3617, %v3617
        %v3650 = vmul.f32 %v3618, %v3618
        %v3651 = vmul.f32 %v3619, %v3619
        %v3652 = vmul.f32 %v3620, %v3620
        %v3653 = vmul.f32 %v3621, %v3621
        %v3654 = vmul.f32 %v3622, %v3622
        %v3655 = vmul.f32 %v3623, %v3623
        %v3656 = vmul.f32 %v3624, %v3624
        %v3657 = vmul.f32 %v3625, %v3625
        %v3658 = vmul.f32 %v3626, %v3626
        %v3659 = vmul.f32 %v3627, %v3627
        %v3660 = vmul.f32 %v3628, %v3628
        %v3661 = vmul.f32 %v3629, %v3629
        %v3662 = vmul.f32 %v3630, %v3630
        %v3663 = vmul.f32 %v3631, %v3631
        %v3664 = vmul.f32 %v3632, %v3632
        %v3665 = vmul.f32 %v3633, %v3633
        %v3666 = vmul.f32 %v3634, %v3634
        %v3667 = vmul.f32 %v3635, %v3635
        %v3668 = vmul.f32 %v3636, %v3636
        %v3669 = vmul.f32 %v3637, %v3637
        %v3670 = vmul.f32 %v3638, %v3638
        %v3671 = vmul.f32 %v3639, %v3639
        %v3672 = vmul.f32 %v3640, %v3640
        %v3673 = vmul.f32 %v3641, %v3641
        %v3674 = vmul.f32 %v3642, %v3642
        %v3675 = vmul.f32 %v3643, %v3643
        %v3676 = vmul.f32 %v3644, %v3644
        %v3677 = vmul.f32 %v3645, %v3645
        %v3678 = vmul.f32 %v3646, %v3646
        %v3679 = vmul.f32 %v3647, %v3647
        %v3680 = vmul.f32 %v3648, %v3648
        %3681 = vadd.xlane.f32.xlu0 %v3649
        %v3682 = vpop.xlane.xlu0 %3681
        %3683 = vadd.xlane.f32.xlu0 %v3650
        %v3684 = vpop.xlane.xlu0 %3683
        %3685 = vadd.xlane.f32.xlu0 %v3651
        %v3686 = vpop.xlane.xlu0 %3685
        %3687 = vadd.xlane.f32.xlu0 %v3652
        %v3688 = vpop.xlane.xlu0 %3687
        %3689 = vadd.xlane.f32.xlu0 %v3653
        %v3690 = vpop.xlane.xlu0 %3689
        %3691 = vadd.xlane.f32.xlu0 %v3654
        %v3692 = vpop.xlane.xlu0 %3691
        %3693 = vadd.xlane.f32.xlu0 %v3655
        %v3694 = vpop.xlane.xlu0 %3693
        %3695 = vadd.xlane.f32.xlu0 %v3656
        %v3696 = vpop.xlane.xlu0 %3695
        %3697 = vadd.xlane.f32.xlu0 %v3657
        %v3698 = vpop.xlane.xlu0 %3697
        %3699 = vadd.xlane.f32.xlu0 %v3658
        %v3700 = vpop.xlane.xlu0 %3699
        %3701 = vadd.xlane.f32.xlu0 %v3659
        %v3702 = vpop.xlane.xlu0 %3701
        %3703 = vadd.xlane.f32.xlu0 %v3660
        %v3704 = vpop.xlane.xlu0 %3703
        %3705 = vadd.xlane.f32.xlu0 %v3661
        %v3706 = vpop.xlane.xlu0 %3705
        %3707 = vadd.xlane.f32.xlu0 %v3662
        %v3708 = vpop.xlane.xlu0 %3707
        %3709 = vadd.xlane.f32.xlu0 %v3663
        %v3710 = vpop.xlane.xlu0 %3709
        %3711 = vadd.xlane.f32.xlu0 %v3664
        %v3712 = vpop.xlane.xlu0 %3711
        %3713 = vadd.xlane.f32.xlu0 %v3665
        %v3714 = vpop.xlane.xlu0 %3713
        %3715 = vadd.xlane.f32.xlu0 %v3666
        %v3716 = vpop.xlane.xlu0 %3715
        %3717 = vadd.xlane.f32.xlu0 %v3667
        %v3718 = vpop.xlane.xlu0 %3717
        %3719 = vadd.xlane.f32.xlu0 %v3668
        %v3720 = vpop.xlane.xlu0 %3719
        %3721 = vadd.xlane.f32.xlu0 %v3669
        %v3722 = vpop.xlane.xlu0 %3721
        %3723 = vadd.xlane.f32.xlu0 %v3670
        %v3724 = vpop.xlane.xlu0 %3723
        %3725 = vadd.xlane.f32.xlu0 %v3671
        %v3726 = vpop.xlane.xlu0 %3725
        %3727 = vadd.xlane.f32.xlu0 %v3672
        %v3728 = vpop.xlane.xlu0 %3727
        %3729 = vadd.xlane.f32.xlu0 %v3673
        %v3730 = vpop.xlane.xlu0 %3729
        %3731 = vadd.xlane.f32.xlu0 %v3674
        %v3732 = vpop.xlane.xlu0 %3731
        %3733 = vadd.xlane.f32.xlu0 %v3675
        %v3734 = vpop.xlane.xlu0 %3733
        %3735 = vadd.xlane.f32.xlu0 %v3676
        %v3736 = vpop.xlane.xlu0 %3735
        %3737 = vadd.xlane.f32.xlu0 %v3677
        %v3738 = vpop.xlane.xlu0 %3737
        %3739 = vadd.xlane.f32.xlu0 %v3678
        %v3740 = vpop.xlane.xlu0 %3739
        %3741 = vadd.xlane.f32.xlu0 %v3679
        %v3742 = vpop.xlane.xlu0 %3741
        %3743 = vadd.xlane.f32.xlu0 %v3680
        %v3744 = vpop.xlane.xlu0 %3743
        %v3745 = vmax.f32 %v3682, 1e-24
        %v3746 = vmax.f32 %v3684, 1e-24
        %v3747 = vmax.f32 %v3686, 1e-24
        %v3748 = vmax.f32 %v3688, 1e-24
        %v3749 = vmax.f32 %v3690, 1e-24
        %v3750 = vmax.f32 %v3692, 1e-24
        %v3751 = vmax.f32 %v3694, 1e-24
        %v3752 = vmax.f32 %v3696, 1e-24
        %v3753 = vmax.f32 %v3698, 1e-24
        %v3754 = vmax.f32 %v3700, 1e-24
        %v3755 = vmax.f32 %v3702, 1e-24
        %v3756 = vmax.f32 %v3704, 1e-24
        %v3757 = vmax.f32 %v3706, 1e-24
        %v3758 = vmax.f32 %v3708, 1e-24
        %v3759 = vmax.f32 %v3710, 1e-24
        %v3760 = vmax.f32 %v3712, 1e-24
        %v3761 = vmax.f32 %v3714, 1e-24
        %v3762 = vmax.f32 %v3716, 1e-24
        %v3763 = vmax.f32 %v3718, 1e-24
        %v3764 = vmax.f32 %v3720, 1e-24
        %v3765 = vmax.f32 %v3722, 1e-24
        %v3766 = vmax.f32 %v3724, 1e-24
        %v3767 = vmax.f32 %v3726, 1e-24
        %v3768 = vmax.f32 %v3728, 1e-24
        %v3769 = vmax.f32 %v3730, 1e-24
        %v3770 = vmax.f32 %v3732, 1e-24
        %v3771 = vmax.f32 %v3734, 1e-24
        %v3772 = vmax.f32 %v3736, 1e-24
        %v3773 = vmax.f32 %v3738, 1e-24
        %v3774 = vmax.f32 %v3740, 1e-24
        %v3775 = vmax.f32 %v3742, 1e-24
        %v3776 = vmax.f32 %v3744, 1e-24
        %v3777 = vrsqrt.pop %v3745
        %v3778 = vrsqrt.pop %v3746
        %v3779 = vrsqrt.pop %v3747
        %v3780 = vrsqrt.pop %v3748
        %v3781 = vrsqrt.pop %v3749
        %v3782 = vrsqrt.pop %v3750
        %v3783 = vrsqrt.pop %v3751
        %v3784 = vrsqrt.pop %v3752
        %v3785 = vrsqrt.pop %v3753
        %v3786 = vrsqrt.pop %v3754
        %v3787 = vrsqrt.pop %v3755
        %v3788 = vrsqrt.pop %v3756
        %v3789 = vrsqrt.pop %v3757
        %v3790 = vrsqrt.pop %v3758
        %v3791 = vrsqrt.pop %v3759
        %v3792 = vrsqrt.pop %v3760
        %v3793 = vrsqrt.pop %v3761
        %v3794 = vrsqrt.pop %v3762
        %v3795 = vrsqrt.pop %v3763
        %v3796 = vrsqrt.pop %v3764
        %v3797 = vrsqrt.pop %v3765
        %v3798 = vrsqrt.pop %v3766
        %v3799 = vrsqrt.pop %v3767
        %v3800 = vrsqrt.pop %v3768
        %v3801 = vrsqrt.pop %v3769
        %v3802 = vrsqrt.pop %v3770
        %v3803 = vrsqrt.pop %v3771
        %v3804 = vrsqrt.pop %v3772
        %v3805 = vrsqrt.pop %v3773
        %v3806 = vrsqrt.pop %v3774
        %v3807 = vrsqrt.pop %v3775
        %v3808 = vrsqrt.pop %v3776
        %v3809 = vmul.f32 %v3617, %v3777
        %v3810 = vmul.f32 %v3618, %v3778
        %v3811 = vmul.f32 %v3619, %v3779
        %v3812 = vmul.f32 %v3620, %v3780
        %v3813 = vmul.f32 %v3621, %v3781
        %v3814 = vmul.f32 %v3622, %v3782
        %v3815 = vmul.f32 %v3623, %v3783
        %v3816 = vmul.f32 %v3624, %v3784
        %v3817 = vmul.f32 %v3625, %v3785
        %v3818 = vmul.f32 %v3626, %v3786
        %v3819 = vmul.f32 %v3627, %v3787
        %v3820 = vmul.f32 %v3628, %v3788
        %v3821 = vmul.f32 %v3629, %v3789
        %v3822 = vmul.f32 %v3630, %v3790
        %v3823 = vmul.f32 %v3631, %v3791
        %v3824 = vmul.f32 %v3632, %v3792
        %v3825 = vmul.f32 %v3633, %v3793
        %v3826 = vmul.f32 %v3634, %v3794
        %v3827 = vmul.f32 %v3635, %v3795
        %v3828 = vmul.f32 %v3636, %v3796
        %v3829 = vmul.f32 %v3637, %v3797
        %v3830 = vmul.f32 %v3638, %v3798
        %v3831 = vmul.f32 %v3639, %v3799
        %v3832 = vmul.f32 %v3640, %v3800
        %v3833 = vmul.f32 %v3641, %v3801
        %v3834 = vmul.f32 %v3642, %v3802
        %v3835 = vmul.f32 %v3643, %v3803
        %v3836 = vmul.f32 %v3644, %v3804
        %v3837 = vmul.f32 %v3645, %v3805
        %v3838 = vmul.f32 %v3646, %v3806
        %v3839 = vmul.f32 %v3647, %v3807
        %v3840 = vmul.f32 %v3648, %v3808
        %v3841 = vadd.f32 %v3809, %v3585
        %v3842 = vadd.f32 %v3810, %v3586
        %v3843 = vadd.f32 %v3811, %v3587
        %v3844 = vadd.f32 %v3812, %v3588
        %v3845 = vadd.f32 %v3813, %v3589
        %v3846 = vadd.f32 %v3814, %v3590
        %v3847 = vadd.f32 %v3815, %v3591
        %v3848 = vadd.f32 %v3816, %v3592
        %v3849 = vadd.f32 %v3817, %v3593
        %v3850 = vadd.f32 %v3818, %v3594
        %v3851 = vadd.f32 %v3819, %v3595
        %v3852 = vadd.f32 %v3820, %v3596
        %v3853 = vadd.f32 %v3821, %v3597
        %v3854 = vadd.f32 %v3822, %v3598
        %v3855 = vadd.f32 %v3823, %v3599
        %v3856 = vadd.f32 %v3824, %v3600
        %v3857 = vadd.f32 %v3825, %v3601
        %v3858 = vadd.f32 %v3826, %v3602
        %v3859 = vadd.f32 %v3827, %v3603
        %v3860 = vadd.f32 %v3828, %v3604
        %v3861 = vadd.f32 %v3829, %v3605
        %v3862 = vadd.f32 %v3830, %v3606
        %v3863 = vadd.f32 %v3831, %v3607
        %v3864 = vadd.f32 %v3832, %v3608
        %v3865 = vadd.f32 %v3833, %v3609
        %v3866 = vadd.f32 %v3834, %v3610
        %v3867 = vadd.f32 %v3835, %v3611
        %v3868 = vadd.f32 %v3836, %v3612
        %v3869 = vadd.f32 %v3837, %v3613
        %v3870 = vadd.f32 %v3838, %v3614
        %v3871 = vadd.f32 %v3839, %v3615
        %v3872 = vadd.f32 %v3840, %v3616
        %v3873 = vadd.f32 %v1425, %v2633
        %v3874 = vadd.f32 %v1426, %v2634
        %v3875 = vadd.f32 %v1427, %v2635
        %v3876 = vadd.f32 %v1428, %v2636
        %v3877 = vadd.f32 %v1429, %v2637
        %v3878 = vadd.f32 %v1430, %v2638
        %v3879 = vadd.f32 %v1431, %v2639
        %v3880 = vadd.f32 %v1432, %v2640
        %v3881 = vadd.f32 %v1433, %v2641
        %v3882 = vadd.f32 %v1434, %v2642
        %v3883 = vadd.f32 %v1435, %v2643
        %v3884 = vadd.f32 %v1436, %v2644
        %v3885 = vadd.f32 %v1437, %v2645
        %v3886 = vadd.f32 %v1438, %v2646
        %v3887 = vadd.f32 %v1439, %v2647
        %v3888 = vadd.f32 %v1440, %v2648
        %v3889 = vadd.f32 %v1441, %v2649
        %v3890 = vadd.f32 %v1442, %v2650
        %v3891 = vadd.f32 %v1443, %v2651
        %v3892 = vadd.f32 %v1444, %v2652
        %v3893 = vadd.f32 %v1445, %v2653
        %v3894 = vadd.f32 %v1446, %v2654
        %v3895 = vadd.f32 %v1447, %v2655
        %v3896 = vadd.f32 %v1448, %v2656
        %v3897 = vadd.f32 %v1449, %v2657
        %v3898 = vadd.f32 %v1450, %v2658
        %v3899 = vadd.f32 %v1451, %v2659
        %v3900 = vadd.f32 %v1452, %v2660
        %v3901 = vadd.f32 %v1453, %v2661
        %v3902 = vadd.f32 %v1454, %v2662
        %v3903 = vadd.f32 %v1455, %v2663
        %v3904 = vadd.f32 %v1456, %v2664
        %v3905 = vadd.f32 %v3873, %v3841
        %v3906 = vadd.f32 %v3874, %v3842
        %v3907 = vadd.f32 %v3875, %v3843
        %v3908 = vadd.f32 %v3876, %v3844
        %v3909 = vadd.f32 %v3877, %v3845
        %v3910 = vadd.f32 %v3878, %v3846
        %v3911 = vadd.f32 %v3879, %v3847
        %v3912 = vadd.f32 %v3880, %v3848
        %v3913 = vadd.f32 %v3881, %v3849
        %v3914 = vadd.f32 %v3882, %v3850
        %v3915 = vadd.f32 %v3883, %v3851
        %v3916 = vadd.f32 %v3884, %v3852
        %v3917 = vadd.f32 %v3885, %v3853
        %v3918 = vadd.f32 %v3886, %v3854
        %v3919 = vadd.f32 %v3887, %v3855
        %v3920 = vadd.f32 %v3888, %v3856
        %v3921 = vadd.f32 %v3889, %v3857
        %v3922 = vadd.f32 %v3890, %v3858
        %v3923 = vadd.f32 %v3891, %v3859
        %v3924 = vadd.f32 %v3892, %v3860
        %v3925 = vadd.f32 %v3893, %v3861
        %v3926 = vadd.f32 %v3894, %v3862
        %v3927 = vadd.f32 %v3895, %v3863
        %v3928 = vadd.f32 %v3896, %v3864
        %v3929 = vadd.f32 %v3897, %v3865
        %v3930 = vadd.f32 %v3898, %v3866
        %v3931 = vadd.f32 %v3899, %v3867
        %v3932 = vadd.f32 %v3900, %v3868
        %v3933 = vadd.f32 %v3901, %v3869
        %v3934 = vadd.f32 %v3902, %v3870
        %v3935 = vadd.f32 %v3903, %v3871
        %v3936 = vadd.f32 %v3904, %v3872
        %3937 = vst [vmem:[%s206] sm:$0xff] %v3905
        %3938 = vst [vmem:[%s206 + $0x8] sm:$0xff] %v3906
        %3939 = vst [vmem:[%s206 + $0x10] sm:$0xff] %v3907
        %3940 = vst [vmem:[%s206 + $0x18] sm:$0xff] %v3908
        %3941 = vst [vmem:[%s206 + $0x20] sm:$0xff] %v3909
        %3942 = vst [vmem:[%s206 + $0x28] sm:$0xff] %v3910
        %3943 = vst [vmem:[%s206 + $0x30] sm:$0xff] %v3911
        %3944 = vst [vmem:[%s206 + $0x38] sm:$0xff] %v3912
        %3945 = vst [vmem:[%s206 + $0x40] sm:$0xff] %v3913
        %3946 = vst [vmem:[%s206 + $0x48] sm:$0xff] %v3914
        %3947 = vst [vmem:[%s206 + $0x50] sm:$0xff] %v3915
        %3948 = vst [vmem:[%s206 + $0x58] sm:$0xff] %v3916
        %3949 = vst [vmem:[%s206 + $0x60] sm:$0xff] %v3917
        %3950 = vst [vmem:[%s206 + $0x68] sm:$0xff] %v3918
        %3951 = vst [vmem:[%s206 + $0x70] sm:$0xff] %v3919
        %3952 = vst [vmem:[%s206 + $0x78] sm:$0xff] %v3920
        %3953 = vst [vmem:[%s206 + $0x80] sm:$0xff] %v3921
        %3954 = vst [vmem:[%s206 + $0x88] sm:$0xff] %v3922
        %3955 = vst [vmem:[%s206 + $0x90] sm:$0xff] %v3923
        %3956 = vst [vmem:[%s206 + $0x98] sm:$0xff] %v3924
        %3957 = vst [vmem:[%s206 + $0xa0] sm:$0xff] %v3925
        %3958 = vst [vmem:[%s206 + $0xa8] sm:$0xff] %v3926
        %3959 = vst [vmem:[%s206 + $0xb0] sm:$0xff] %v3927
        %3960 = vst [vmem:[%s206 + $0xb8] sm:$0xff] %v3928
        %3961 = vst [vmem:[%s206 + $0xc0] sm:$0xff] %v3929
        %3962 = vst [vmem:[%s206 + $0xc8] sm:$0xff] %v3930
        %3963 = vst [vmem:[%s206 + $0xd0] sm:$0xff] %v3931
        %3964 = vst [vmem:[%s206 + $0xd8] sm:$0xff] %v3932
        %3965 = vst [vmem:[%s206 + $0xe0] sm:$0xff] %v3933
        %3966 = vst [vmem:[%s206 + $0xe8] sm:$0xff] %v3934
        %3967 = vst [vmem:[%s206 + $0xf0] sm:$0xff] %v3935
        %3968 = vst [vmem:[%s206 + $0xf8] sm:$0xff] %v3936
        %s3969 = sand.u32 %s116, 1
        %s3970 = scalar_lea.sflag [#allocation4], %s3969
        %s3971 = sand.u32 %s116, 1
        %s3972 = smul.addr %s3971, 256
        %s3973 = scalar_lea.vmem [#allocation5], %s3972
        // Predicated region
        $region41: #{tpu_custom_call.1} parent=35 // pred_check
          %p3974 = pneg %p126
        $region42: #{tpu_custom_call.1} parent=35 // pred_check_branch
          %3976 = sbr.rel (%p3974) target = $region44
        $region43: #{tpu_custom_call.1} parent=35 // pred_region
          %s3977 = smul.u32 32, %s19
          %s3979 = ssub.s32 4096, 4096
          %3980 = vsyncadd %s3970, %s3979
          %s3981 = smul.addr %s3977, 128
          %s3982 = scalar_lea.hbm %s4, %s3981
          %s3983 = sshll.u32 %s3973, 4
          %s3984 = int_to_ptr.vmem [resolvable:$true] %s3983
          %3989 = dma.vmem_to_hbm [thread:$0]  %s3984, 4096, %s3982, %s3970, 128, 128, 8
        $region44: #{tpu_custom_call.1} parent=35 // pred_fallthru
          _
      $region36: #{tpu_custom_call.1} parent=5 // pred_fallthru
        _
      %p3990 = scmp.le.s32.totalorder 2, %s14
      // Predicated region
      $region45: #{tpu_custom_call.1} parent=5 // pred_check
        %p3991 = pneg %p3990
      $region46: #{tpu_custom_call.1} parent=5 // pred_check_branch
        %3993 = sbr.rel (%p3991) target = $region48
      $region47: #{tpu_custom_call.1} parent=5 // pred_region
        %s3994 = ssub.s32 %s14, 2
        // Predicated region
        $region49: #{tpu_custom_call.1} parent=47 // pred_check
          %p3995 = pneg %p132
        $region50: #{tpu_custom_call.1} parent=47 // pred_check_branch
          %3997 = sbr.rel (%p3995) target = $region52
        $region51: #{tpu_custom_call.1} parent=47 // pred_region
          %s3998 = sand.u32 %s117, 1
          %s3999 = scalar_lea.sflag [#allocation4], %s3998
          %s4000 = sand.u32 %s117, 1
          %s4001 = smul.addr %s4000, 256
          %s4002 = scalar_lea.vmem [#allocation5], %s4001
          %4003 = dma.done %s3999, 4096
        $region52: #{tpu_custom_call.1} parent=47 // pred_fallthru
          _
      $region48: #{tpu_custom_call.1} parent=5 // pred_fallthru
        _
    $region6: #{tpu_custom_call.1} parent=1 // loop_footer
      %s18 = sadd.s32 1, %s14
    $region7: #{tpu_custom_call.1} parent=1 // loop_footer_branch
      %13 = sbr.rel target = $region3
    $region8: #{tpu_custom_call.1} parent=1 // loop_exit
      _
    %4004 = vsyncpa [#allocation3], 1
    %s4005 = scalar_lea.sflag [#allocation3], 1
    %4006 = vsyncpa %s4005, 1
    %4007 = vsyncpa [#allocation4], 1
    %s4008 = scalar_lea.sflag [#allocation4], 1
    %4009 = vsyncpa %s4008, 1

// kernel: tpu_custom_call.1
$region0: #{tpu_custom_call.1}
  #allocation0 [shape = 'u32[]', space=smem, size = 0x4, offset = 0x4, fixed_abs, tag = 'smem constant byte address 0x4 - core index']
  #allocation1 [shape = 'u32[144,128]{1,0:T(1,128)}', space=vmem, size = 0x12000, scoped, tag = 'internal scratch']
  %s0 = inlined_call_operand.vmem [shape: s32[512,3], index: 0, kind: input, shape index: {}]
  %s1 = inlined_call_operand.vmem [shape: bf16[3,128,128], index: 1, kind: input, shape index: {}]
  %s2 = inlined_call_operand.vmem [shape: bf16[3,128,128], index: 2, kind: input, shape index: {}]
  %s3 = inlined_call_operand.hbm [shape: bf16[3,128,128], index: 3, kind: input, shape index: {}]
  %s4 = inlined_call_operand.hbm [shape: f32[512,128], index: 4, kind: output, shape index: {}]
  %s5 = sld [smem:[#allocation0]]
  $region53: #{tpu_custom_call.1} parent=0
    _
  %s7 = ssub.s32 1, %s5
  %s8 = scalar_select 0, %s7, %s5
  $region1: #{tpu_custom_call.1} parent=0
    #allocation2 [shape = 'u8[98304]{0}', space=vmem, size = 0x18000, scoped, tag = 'input window, operand 3, single buffered']
    #allocation3 [shape = 's32[2]{0}', space=sflag, size = 0x8, scoped, tag = 'scoped memory for tpu_custom_call.1']
    #allocation4 [shape = 's32[2]{0}', space=sflag, size = 0x8, scoped, tag = 'scoped memory for tpu_custom_call.1']
    #allocation5 [shape = 'u8[262144]{0}', space=vmem, size = 0x40000, scoped, tag = 'output window, operand 0']
    %9 = vsyncpa [#allocation3], 0
    %10 = vsyncpa [#allocation4], 0
    %s11 = scalar_lea.sflag [#allocation4], 1
    %12 = vsyncpa %s11, 0
    loop: start=0, step=1, limit=4
    $region2: #{tpu_custom_call.1} parent=1 // loop_pre_header
      _
    $region3: #{tpu_custom_call.1} parent=1 // loop_header
      %s14 = sphi 0, %s18
      %p15 = scmp.ge.s32.totalorder %s14, 4
      %s24 = sphi 0, %s26
      %s27 = sphi 0, %s24
      %s28 = sphi 0, %s27
      %s44 = sphi 0, %s28
      %s48 = sphi 0, %s48
      %s50 = sphi 0, %s48
      %s51 = sphi 0, %s50
      %s65 = sphi 0, %s51
      %s69 = sphi 0, %s69
      %s71 = sphi 0, %s69
      %s72 = sphi 0, %s71
      %s86 = sphi 0, %s72
      %s90 = sphi 0, %s90
      %s92 = sphi 0, %s90
      %s93 = sphi 0, %s92
      %s107 = sphi 0, %s93
      %s113 = sphi 0, %s115
      %s116 = sphi 0, %s113
      %s117 = sphi 0, %s116
      %s133 = sphi 0, %s117
    $region4: #{tpu_custom_call.1} parent=1 // loop_header_branch
      %17 = sbr.rel (%p15) target = $region8
    $region5: #{tpu_custom_call.1} parent=1 // loop_body
      %s19 = ssub.s32 %s14, 1
      %s20 = ssub.s32 %s14, 2
      %s21 = sadd.s32 %s14, 1
      %s22 = ssub.s32 %s14, %s21
      %p23 = scmp.eq.s32.totalorder %s22, 0
      %s25 = sadd.s32 %s24, 1
      %s26 = scalar_select %p23, %s24, %s25
      %p29 = pneg %p23
      %p30 = scmp.eq.s32.totalorder %s14, 1
      %p31 = por %p29, %p30
      %p32 = scmp.ne.s32.totalorder %s24, %s27
      %p33 = scmp.eq.s32.totalorder %s14, 0
      %p34 = por %p32, %p33
      %p35 = scmp.ne.s32.totalorder %s24, %s27
      %p36 = scmp.eq.s32.totalorder %s19, 1
      %p37 = por %p35, %p36
      %p38 = scmp.ne.s32.totalorder %s27, %s28
      %p39 = scmp.eq.s32.totalorder %s19, 0
      %p40 = por %p38, %p39
      %p41 = scmp.ne.s32.totalorder %s27, %s28
      %p42 = scmp.eq.s32.totalorder %s20, 1
      %p43 = por %p41, %p42
      %p45 = scmp.ne.s32.totalorder %s28, %s44
      %p46 = scmp.eq.s32.totalorder %s20, 0
      %p47 = por %p45, %p46
      %s49 = sadd.s32 %s48, 1
      %p52 = scmp.eq.s32.totalorder %s14, 1
      %p53 = scmp.ne.s32.totalorder %s48, %s50
      %p54 = scmp.eq.s32.totalorder %s14, 0
      %p55 = por %p53, %p54
      %p56 = scmp.ne.s32.totalorder %s48, %s50
      %p57 = scmp.eq.s32.totalorder %s19, 1
      %p58 = por %p56, %p57
      %p59 = scmp.ne.s32.totalorder %s50, %s51
      %p60 = scmp.eq.s32.totalorder %s19, 0
      %p61 = por %p59, %p60
      %p62 = scmp.ne.s32.totalorder %s50, %s51
      %p63 = scmp.eq.s32.totalorder %s20, 1
      %p64 = por %p62, %p63
      %p66 = scmp.ne.s32.totalorder %s51, %s65
      %p67 = scmp.eq.s32.totalorder %s20, 0
      %p68 = por %p66, %p67
      %s70 = sadd.s32 %s69, 1
      %p73 = scmp.eq.s32.totalorder %s14, 1
      %p74 = scmp.ne.s32.totalorder %s69, %s71
      %p75 = scmp.eq.s32.totalorder %s14, 0
      %p76 = por %p74, %p75
      %p77 = scmp.ne.s32.totalorder %s69, %s71
      %p78 = scmp.eq.s32.totalorder %s19, 1
      %p79 = por %p77, %p78
      %p80 = scmp.ne.s32.totalorder %s71, %s72
      %p81 = scmp.eq.s32.totalorder %s19, 0
      %p82 = por %p80, %p81
      %p83 = scmp.ne.s32.totalorder %s71, %s72
      %p84 = scmp.eq.s32.totalorder %s20, 1
      %p85 = por %p83, %p84
      %p87 = scmp.ne.s32.totalorder %s72, %s86
      %p88 = scmp.eq.s32.totalorder %s20, 0
      %p89 = por %p87, %p88
      %s91 = sadd.s32 %s90, 1
      %p94 = scmp.eq.s32.totalorder %s14, 1
      %p95 = scmp.ne.s32.totalorder %s90, %s92
      %p96 = scmp.eq.s32.totalorder %s14, 0
      %p97 = por %p95, %p96
      %p98 = scmp.ne.s32.totalorder %s90, %s92
      %p99 = scmp.eq.s32.totalorder %s19, 1
      %p100 = por %p98, %p99
      %p101 = scmp.ne.s32.totalorder %s92, %s93
      %p102 = scmp.eq.s32.totalorder %s19, 0
      %p103 = por %p101, %p102
      %p104 = scmp.ne.s32.totalorder %s92, %s93
      %p105 = scmp.eq.s32.totalorder %s20, 1
      %p106 = por %p104, %p105
      %p108 = scmp.ne.s32.totalorder %s93, %s107
      %p109 = scmp.eq.s32.totalorder %s20, 0
      %p110 = por %p108, %p109
      %s111 = ssub.s32 %s14, %s21
      %p112 = scmp.eq.s32.totalorder %s111, 0
      %s114 = sadd.s32 %s113, 1
      %s115 = scalar_select %p112, %s113, %s114
      %p118 = pneg %p112
      %p119 = scmp.eq.s32.totalorder %s14, 1
      %p120 = por %p118, %p119
      %p121 = scmp.ne.s32.totalorder %s113, %s116
      %p122 = scmp.eq.s32.totalorder %s14, 0
      %p123 = por %p121, %p122
      %p124 = scmp.ne.s32.totalorder %s113, %s116
      %p125 = scmp.eq.s32.totalorder %s19, 1
      %p126 = por %p124, %p125
      %p127 = scmp.ne.s32.totalorder %s116, %s117
      %p128 = scmp.eq.s32.totalorder %s19, 0
      %p129 = por %p127, %p128
      %p130 = scmp.ne.s32.totalorder %s116, %s117
      %p131 = scmp.eq.s32.totalorder %s20, 1
      %p132 = por %p130, %p131
      %p134 = scmp.ne.s32.totalorder %s117, %s133
      %p135 = scmp.eq.s32.totalorder %s20, 0
      %p136 = por %p134, %p135
      %p137 = scmp.le.s32.totalorder 1, %s14
      %p138 = scmp.lt.s32.totalorder %s14, 3
      %p139 = pnand %p137, %p138
      %p140 = pneg %p139
      // Predicated region
      $region9: #{tpu_custom_call.1} parent=5 // pred_check
        _
      $region10: #{tpu_custom_call.1} parent=5 // pred_check_branch
        %142 = sbr.rel (%p139) target = $region12
      $region11: #{tpu_custom_call.1} parent=5 // pred_region
        %s143 = ssub.s32 %s14, 1
        // Predicated region
        $region13: #{tpu_custom_call.1} parent=11 // pred_check
          %p144 = pneg %p61
        $region14: #{tpu_custom_call.1} parent=11 // pred_check_branch
          %146 = sbr.rel (%p144) target = $region16
        $region15: #{tpu_custom_call.1} parent=11 // pred_region
          _
        $region16: #{tpu_custom_call.1} parent=11 // pred_fallthru
          _
        // Predicated region
        $region17: #{tpu_custom_call.1} parent=11 // pred_check
          %p147 = pneg %p82
        $region18: #{tpu_custom_call.1} parent=11 // pred_check_branch
          %149 = sbr.rel (%p147) target = $region20
        $region19: #{tpu_custom_call.1} parent=11 // pred_region
          _
        $region20: #{tpu_custom_call.1} parent=11 // pred_fallthru
          _
        // Predicated region
        $region21: #{tpu_custom_call.1} parent=11 // pred_check
          %p150 = pneg %p103
        $region22: #{tpu_custom_call.1} parent=11 // pred_check_branch
          %152 = sbr.rel (%p150) target = $region24
        $region23: #{tpu_custom_call.1} parent=11 // pred_region
          %s154 = ssub.s32 3072, 3072
          %155 = vsyncadd [#allocation3], %s154
          %s156 = sshll.u32 [#allocation2], 4
          %s157 = int_to_ptr.vmem [resolvable:$true] %s156
          %162 = dma.hbm_to_vmem [thread:$0]  %s3, 3072, %s157, [#allocation3], 64, 64, 4
        $region24: #{tpu_custom_call.1} parent=11 // pred_fallthru
          _
      $region12: #{tpu_custom_call.1} parent=5 // pred_fallthru
        _
      %p163 = scmp.lt.s32.totalorder %s14, 2
      // Predicated region
      $region25: #{tpu_custom_call.1} parent=5 // pred_check
        %p164 = pneg %p163
      $region26: #{tpu_custom_call.1} parent=5 // pred_check_branch
        %166 = sbr.rel (%p164) target = $region28
      $region27: #{tpu_custom_call.1} parent=5 // pred_region
        // Predicated region
        $region29: #{tpu_custom_call.1} parent=27 // pred_check
          %p167 = pneg %p34
        $region30: #{tpu_custom_call.1} parent=27 // pred_check_branch
          %169 = sbr.rel (%p167) target = $region32
        $region31: #{tpu_custom_call.1} parent=27 // pred_region
          %s170 = smul.u32 32, %s14
          %p171 = scmp.lt.s32.totalorder %s170, 63
          %s172 = scalar_select %p171, %s170, 63
          %s173 = smul.addr %s172, 8
          %s174 = scalar_lea.vmem %s0, %s173
          %s175 = smul.u32 32, %s14
        $region32: #{tpu_custom_call.1} parent=27 // pred_fallthru
          _
      $region28: #{tpu_custom_call.1} parent=5 // pred_fallthru
        _
      %p176 = scmp.le.s32.totalorder 1, %s14
      %p177 = scmp.lt.s32.totalorder %s14, 3
      %p178 = pnand %p176, %p177
      %p179 = pneg %p178
      // Predicated region
      $region33: #{tpu_custom_call.1} parent=5 // pred_check
        _
      $region34: #{tpu_custom_call.1} parent=5 // pred_check_branch
        %181 = sbr.rel (%p178) target = $region36
      $region35: #{tpu_custom_call.1} parent=5 // pred_region
        %s182 = ssub.s32 %s14, 1
        // Predicated region
        $region37: #{tpu_custom_call.1} parent=35 // pred_check
          %p183 = pneg %p103
        $region38: #{tpu_custom_call.1} parent=35 // pred_check_branch
          %185 = sbr.rel (%p183) target = $region40
        $region39: #{tpu_custom_call.1} parent=35 // pred_region
          %186 = dma.done [#allocation3], 3072
        $region40: #{tpu_custom_call.1} parent=35 // pred_fallthru
          _
        %s187 = smul.u32 32, %s19
        %p188 = scmp.lt.s32.totalorder %s187, 63
        %s189 = scalar_select %p188, %s187, 63
        %s190 = smul.addr %s189, 8
        %s191 = scalar_lea.vmem %s0, %s190
        %p192 = pneg %p40
        %p193 = pneg %p37
        %p194 = pneg %p61
        %p195 = pneg %p58
        %p196 = pneg %p82
        %p197 = pneg %p79
        %p198 = pneg %p103
        %p199 = pneg %p100
        %p200 = pneg %p129
        %p201 = pneg %p126
        %s202 = sand.u32 %s116, 1
        %s203 = scalar_lea.sflag [#allocation4], %s202
        %s204 = sand.u32 %s116, 1
        %s205 = smul.addr %s204, 256
        %s206 = scalar_lea.vmem [#allocation5], %s205
        %s207 = smul.u32 32, %s19
        %p208 = scmp.lt.s32.totalorder %s207, 63
        %s209 = scalar_select %p208, %s207, 63
        %s210 = smul.addr %s209, 8
        %s211 = scalar_lea.vmem %s0, %s210
        %s212 = smul.u32 32, %s19
        %s213 = smul.u32 32, %s19
        %v215 = vlaneseq
        %v216 = vand.u32 %v215, 127
        %v217 = vld [vmem:[%s211] sm:$0xff]
        %v218 = vld [vmem:[%s211 + $0x8] sm:$0xff]
        %v219 = vld [vmem:[%s211 + $0x10] sm:$0xff]
        %v220 = vld [vmem:[%s211 + $0x18] sm:$0xff]
        %v221 = vld [vmem:[%s211 + $0x20] sm:$0xff]
        %v222 = vld [vmem:[%s211 + $0x28] sm:$0xff]
        %v223 = vld [vmem:[%s211 + $0x30] sm:$0xff]
        %v224 = vld [vmem:[%s211 + $0x38] sm:$0xff]
        %v225 = vld [vmem:[%s211 + $0x40] sm:$0xff]
        %v226 = vld [vmem:[%s211 + $0x48] sm:$0xff]
        %v227 = vld [vmem:[%s211 + $0x50] sm:$0xff]
        %v228 = vld [vmem:[%s211 + $0x58] sm:$0xff]
        %v229 = vld [vmem:[%s211 + $0x60] sm:$0xff]
        %v230 = vld [vmem:[%s211 + $0x68] sm:$0xff]
        %v231 = vld [vmem:[%s211 + $0x70] sm:$0xff]
        %v232 = vld [vmem:[%s211 + $0x78] sm:$0xff]
        %v233 = vld [vmem:[%s211 + $0x80] sm:$0xff]
        %v234 = vld [vmem:[%s211 + $0x88] sm:$0xff]
        %v235 = vld [vmem:[%s211 + $0x90] sm:$0xff]
        %v236 = vld [vmem:[%s211 + $0x98] sm:$0xff]
        %v237 = vld [vmem:[%s211 + $0xa0] sm:$0xff]
        %v238 = vld [vmem:[%s211 + $0xa8] sm:$0xff]
        %v239 = vld [vmem:[%s211 + $0xb0] sm:$0xff]
        %v240 = vld [vmem:[%s211 + $0xb8] sm:$0xff]
        %v241 = vld [vmem:[%s211 + $0xc0] sm:$0xff]
        %v242 = vld [vmem:[%s211 + $0xc8] sm:$0xff]
        %v243 = vld [vmem:[%s211 + $0xd0] sm:$0xff]
        %v244 = vld [vmem:[%s211 + $0xd8] sm:$0xff]
        %v245 = vld [vmem:[%s211 + $0xe0] sm:$0xff]
        %v246 = vld [vmem:[%s211 + $0xe8] sm:$0xff]
        %v247 = vld [vmem:[%s211 + $0xf0] sm:$0xff]
        %v248 = vld [vmem:[%s211 + $0xf8] sm:$0xff]
        %249 = vset.pattern.permute.xlu0 0
        %250 = vperm.xlu0 %249, %v217
        %v251 = vpop.permute.xlu0 %250
        %252 = vset.pattern.permute.xlu0 0
        %253 = vperm.xlu0 %252, %v218
        %v254 = vpop.permute.xlu0 %253
        %255 = vset.pattern.permute.xlu0 0
        %256 = vperm.xlu0 %255, %v219
        %v257 = vpop.permute.xlu0 %256
        %258 = vset.pattern.permute.xlu0 0
        %259 = vperm.xlu0 %258, %v220
        %v260 = vpop.permute.xlu0 %259
        %261 = vset.pattern.permute.xlu0 0
        %262 = vperm.xlu0 %261, %v221
        %v263 = vpop.permute.xlu0 %262
        %264 = vset.pattern.permute.xlu0 0
        %265 = vperm.xlu0 %264, %v222
        %v266 = vpop.permute.xlu0 %265
        %267 = vset.pattern.permute.xlu0 0
        %268 = vperm.xlu0 %267, %v223
        %v269 = vpop.permute.xlu0 %268
        %270 = vset.pattern.permute.xlu0 0
        %271 = vperm.xlu0 %270, %v224
        %v272 = vpop.permute.xlu0 %271
        %273 = vset.pattern.permute.xlu0 0
        %274 = vperm.xlu0 %273, %v225
        %v275 = vpop.permute.xlu0 %274
        %276 = vset.pattern.permute.xlu0 0
        %277 = vperm.xlu0 %276, %v226
        %v278 = vpop.permute.xlu0 %277
        %279 = vset.pattern.permute.xlu0 0
        %280 = vperm.xlu0 %279, %v227
        %v281 = vpop.permute.xlu0 %280
        %282 = vset.pattern.permute.xlu0 0
        %283 = vperm.xlu0 %282, %v228
        %v284 = vpop.permute.xlu0 %283
        %285 = vset.pattern.permute.xlu0 0
        %286 = vperm.xlu0 %285, %v229
        %v287 = vpop.permute.xlu0 %286
        %288 = vset.pattern.permute.xlu0 0
        %289 = vperm.xlu0 %288, %v230
        %v290 = vpop.permute.xlu0 %289
        %291 = vset.pattern.permute.xlu0 0
        %292 = vperm.xlu0 %291, %v231
        %v293 = vpop.permute.xlu0 %292
        %294 = vset.pattern.permute.xlu0 0
        %295 = vperm.xlu0 %294, %v232
        %v296 = vpop.permute.xlu0 %295
        %297 = vset.pattern.permute.xlu0 0
        %298 = vperm.xlu0 %297, %v233
        %v299 = vpop.permute.xlu0 %298
        %300 = vset.pattern.permute.xlu0 0
        %301 = vperm.xlu0 %300, %v234
        %v302 = vpop.permute.xlu0 %301
        %303 = vset.pattern.permute.xlu0 0
        %304 = vperm.xlu0 %303, %v235
        %v305 = vpop.permute.xlu0 %304
        %306 = vset.pattern.permute.xlu0 0
        %307 = vperm.xlu0 %306, %v236
        %v308 = vpop.permute.xlu0 %307
        %309 = vset.pattern.permute.xlu0 0
        %310 = vperm.xlu0 %309, %v237
        %v311 = vpop.permute.xlu0 %310
        %312 = vset.pattern.permute.xlu0 0
        %313 = vperm.xlu0 %312, %v238
        %v314 = vpop.permute.xlu0 %313
        %315 = vset.pattern.permute.xlu0 0
        %316 = vperm.xlu0 %315, %v239
        %v317 = vpop.permute.xlu0 %316
        %318 = vset.pattern.permute.xlu0 0
        %319 = vperm.xlu0 %318, %v240
        %v320 = vpop.permute.xlu0 %319
        %321 = vset.pattern.permute.xlu0 0
        %322 = vperm.xlu0 %321, %v241
        %v323 = vpop.permute.xlu0 %322
        %324 = vset.pattern.permute.xlu0 0
        %325 = vperm.xlu0 %324, %v242
        %v326 = vpop.permute.xlu0 %325
        %327 = vset.pattern.permute.xlu0 0
        %328 = vperm.xlu0 %327, %v243
        %v329 = vpop.permute.xlu0 %328
        %330 = vset.pattern.permute.xlu0 0
        %331 = vperm.xlu0 %330, %v244
        %v332 = vpop.permute.xlu0 %331
        %333 = vset.pattern.permute.xlu0 0
        %334 = vperm.xlu0 %333, %v245
        %v335 = vpop.permute.xlu0 %334
        %336 = vset.pattern.permute.xlu0 0
        %337 = vperm.xlu0 %336, %v246
        %v338 = vpop.permute.xlu0 %337
        %339 = vset.pattern.permute.xlu0 0
        %340 = vperm.xlu0 %339, %v247
        %v341 = vpop.permute.xlu0 %340
        %342 = vset.pattern.permute.xlu0 0
        %343 = vperm.xlu0 %342, %v248
        %v344 = vpop.permute.xlu0 %343
        %vm345 = vcmp.eq.s32.totalorder %v216, %v251
        %vm346 = vcmp.eq.s32.totalorder %v216, %v254
        %vm347 = vcmp.eq.s32.totalorder %v216, %v257
        %vm348 = vcmp.eq.s32.totalorder %v216, %v260
        %vm349 = vcmp.eq.s32.totalorder %v216, %v263
        %vm350 = vcmp.eq.s32.totalorder %v216, %v266
        %vm351 = vcmp.eq.s32.totalorder %v216, %v269
        %vm352 = vcmp.eq.s32.totalorder %v216, %v272
        %vm353 = vcmp.eq.s32.totalorder %v216, %v275
        %vm354 = vcmp.eq.s32.totalorder %v216, %v278
        %vm355 = vcmp.eq.s32.totalorder %v216, %v281
        %vm356 = vcmp.eq.s32.totalorder %v216, %v284
        %vm357 = vcmp.eq.s32.totalorder %v216, %v287
        %vm358 = vcmp.eq.s32.totalorder %v216, %v290
        %vm359 = vcmp.eq.s32.totalorder %v216, %v293
        %vm360 = vcmp.eq.s32.totalorder %v216, %v296
        %vm361 = vcmp.eq.s32.totalorder %v216, %v299
        %vm362 = vcmp.eq.s32.totalorder %v216, %v302
        %vm363 = vcmp.eq.s32.totalorder %v216, %v305
        %vm364 = vcmp.eq.s32.totalorder %v216, %v308
        %vm365 = vcmp.eq.s32.totalorder %v216, %v311
        %vm366 = vcmp.eq.s32.totalorder %v216, %v314
        %vm367 = vcmp.eq.s32.totalorder %v216, %v317
        %vm368 = vcmp.eq.s32.totalorder %v216, %v320
        %vm369 = vcmp.eq.s32.totalorder %v216, %v323
        %vm370 = vcmp.eq.s32.totalorder %v216, %v326
        %vm371 = vcmp.eq.s32.totalorder %v216, %v329
        %vm372 = vcmp.eq.s32.totalorder %v216, %v332
        %vm373 = vcmp.eq.s32.totalorder %v216, %v335
        %vm374 = vcmp.eq.s32.totalorder %v216, %v338
        %vm375 = vcmp.eq.s32.totalorder %v216, %v341
        %vm376 = vcmp.eq.s32.totalorder %v216, %v344
        %v377 = vsel %vm345, 1, 0
        %v378 = vsel %vm346, 1, 0
        %v379 = vsel %vm347, 1, 0
        %v380 = vsel %vm348, 1, 0
        %v381 = vsel %vm349, 1, 0
        %v382 = vsel %vm350, 1, 0
        %v383 = vsel %vm351, 1, 0
        %v384 = vsel %vm352, 1, 0
        %v385 = vsel %vm353, 1, 0
        %v386 = vsel %vm354, 1, 0
        %v387 = vsel %vm355, 1, 0
        %v388 = vsel %vm356, 1, 0
        %v389 = vsel %vm357, 1, 0
        %v390 = vsel %vm358, 1, 0
        %v391 = vsel %vm359, 1, 0
        %v392 = vsel %vm360, 1, 0
        %v393 = vsel %vm361, 1, 0
        %v394 = vsel %vm362, 1, 0
        %v395 = vsel %vm363, 1, 0
        %v396 = vsel %vm364, 1, 0
        %v397 = vsel %vm365, 1, 0
        %v398 = vsel %vm366, 1, 0
        %v399 = vsel %vm367, 1, 0
        %v400 = vsel %vm368, 1, 0
        %v401 = vsel %vm369, 1, 0
        %v402 = vsel %vm370, 1, 0
        %v403 = vsel %vm371, 1, 0
        %v404 = vsel %vm372, 1, 0
        %v405 = vsel %vm373, 1, 0
        %v406 = vsel %vm374, 1, 0
        %v407 = vsel %vm375, 1, 0
        %v408 = vsel %vm376, 1, 0
        %v409 = vcvt.s32.f32 %v377
        %v410 = vcvt.s32.f32 %v378
        %v411 = vcvt.s32.f32 %v379
        %v412 = vcvt.s32.f32 %v380
        %v413 = vcvt.s32.f32 %v381
        %v414 = vcvt.s32.f32 %v382
        %v415 = vcvt.s32.f32 %v383
        %v416 = vcvt.s32.f32 %v384
        %v417 = vcvt.s32.f32 %v385
        %v418 = vcvt.s32.f32 %v386
        %v419 = vcvt.s32.f32 %v387
        %v420 = vcvt.s32.f32 %v388
        %v421 = vcvt.s32.f32 %v389
        %v422 = vcvt.s32.f32 %v390
        %v423 = vcvt.s32.f32 %v391
        %v424 = vcvt.s32.f32 %v392
        %v425 = vcvt.s32.f32 %v393
        %v426 = vcvt.s32.f32 %v394
        %v427 = vcvt.s32.f32 %v395
        %v428 = vcvt.s32.f32 %v396
        %v429 = vcvt.s32.f32 %v397
        %v430 = vcvt.s32.f32 %v398
        %v431 = vcvt.s32.f32 %v399
        %v432 = vcvt.s32.f32 %v400
        %v433 = vcvt.s32.f32 %v401
        %v434 = vcvt.s32.f32 %v402
        %v435 = vcvt.s32.f32 %v403
        %v436 = vcvt.s32.f32 %v404
        %v437 = vcvt.s32.f32 %v405
        %v438 = vcvt.s32.f32 %v406
        %v439 = vcvt.s32.f32 %v407
        %v440 = vcvt.s32.f32 %v408
        %v441 = vpack.c.bf16 %v410, %v409
        %v442 = vpack.c.bf16 %v412, %v411
        %v443 = vpack.c.bf16 %v414, %v413
        %v444 = vpack.c.bf16 %v416, %v415
        %v445 = vpack.c.bf16 %v418, %v417
        %v446 = vpack.c.bf16 %v420, %v419
        %v447 = vpack.c.bf16 %v422, %v421
        %v448 = vpack.c.bf16 %v424, %v423
        %v449 = vpack.c.bf16 %v426, %v425
        %v450 = vpack.c.bf16 %v428, %v427
        %v451 = vpack.c.bf16 %v430, %v429
        %v452 = vpack.c.bf16 %v432, %v431
        %v453 = vpack.c.bf16 %v434, %v433
        %v454 = vpack.c.bf16 %v436, %v435
        %v455 = vpack.c.bf16 %v438, %v437
        %v456 = vpack.c.bf16 %v440, %v439
        %v457 = vld [vmem:[%s1] sm:$0xf]
        %v458 = vld [vmem:[%s1 + $0x4] sm:$0xf]
        %v459 = vld [vmem:[%s1 + $0x8] sm:$0xf]
        %v460 = vld [vmem:[%s1 + $0xc] sm:$0xf]
        %v461 = vld [vmem:[%s1 + $0x10] sm:$0xf]
        %v462 = vld [vmem:[%s1 + $0x14] sm:$0xf]
        %v463 = vld [vmem:[%s1 + $0x18] sm:$0xf]
        %v464 = vld [vmem:[%s1 + $0x1c] sm:$0xf]
        %v465 = vld [vmem:[%s1 + $0x20] sm:$0xf]
        %v466 = vld [vmem:[%s1 + $0x24] sm:$0xf]
        %v467 = vld [vmem:[%s1 + $0x28] sm:$0xf]
        %v468 = vld [vmem:[%s1 + $0x2c] sm:$0xf]
        %v469 = vld [vmem:[%s1 + $0x30] sm:$0xf]
        %v470 = vld [vmem:[%s1 + $0x34] sm:$0xf]
        %v471 = vld [vmem:[%s1 + $0x38] sm:$0xf]
        %v472 = vld [vmem:[%s1 + $0x3c] sm:$0xf]
        %s473 = scalar_lea.vmem %s1, 64
        %v474 = vld [vmem:[%s473] sm:$0xf]
        %v475 = vld [vmem:[%s473 + $0x4] sm:$0xf]
        %v476 = vld [vmem:[%s473 + $0x8] sm:$0xf]
        %v477 = vld [vmem:[%s473 + $0xc] sm:$0xf]
        %v478 = vld [vmem:[%s473 + $0x10] sm:$0xf]
        %v479 = vld [vmem:[%s473 + $0x14] sm:$0xf]
        %v480 = vld [vmem:[%s473 + $0x18] sm:$0xf]
        %v481 = vld [vmem:[%s473 + $0x1c] sm:$0xf]
        %v482 = vld [vmem:[%s473 + $0x20] sm:$0xf]
        %v483 = vld [vmem:[%s473 + $0x24] sm:$0xf]
        %v484 = vld [vmem:[%s473 + $0x28] sm:$0xf]
        %v485 = vld [vmem:[%s473 + $0x2c] sm:$0xf]
        %v486 = vld [vmem:[%s473 + $0x30] sm:$0xf]
        %v487 = vld [vmem:[%s473 + $0x34] sm:$0xf]
        %v488 = vld [vmem:[%s473 + $0x38] sm:$0xf]
        %v489 = vld [vmem:[%s473 + $0x3c] sm:$0xf]
        %v506 = vunpack.c.l.b16 %v474
        %v507 = vunpack.c.l.b16 %v475
        %v508 = vunpack.c.l.b16 %v476
        %v509 = vunpack.c.l.b16 %v477
        %v510 = vunpack.c.l.b16 %v478
        %v511 = vunpack.c.l.b16 %v479
        %v512 = vunpack.c.l.b16 %v480
        %v513 = vunpack.c.l.b16 %v481
        %v514 = vunpack.c.l.b16 %v482
        %v515 = vunpack.c.l.b16 %v483
        %v516 = vunpack.c.l.b16 %v484
        %v517 = vunpack.c.l.b16 %v485
        %v518 = vunpack.c.l.b16 %v486
        %v519 = vunpack.c.l.b16 %v487
        %v520 = vunpack.c.l.b16 %v488
        %v521 = vunpack.c.l.b16 %v489
        %v522 = vpack.c.b16 %v507, %v506
        %v523 = vpack.c.b16 %v509, %v508
        %v524 = vpack.c.b16 %v511, %v510
        %v525 = vpack.c.b16 %v513, %v512
        %v526 = vpack.c.b16 %v515, %v514
        %v527 = vpack.c.b16 %v517, %v516
        %v528 = vpack.c.b16 %v519, %v518
        %v529 = vpack.c.b16 %v521, %v520
        %538 = vmatprep.subr.bf16.mxu0 0
        %539 = vmatpush1.bf16.msra.mxu0 %v522
        %540 = vmatprep.subr.bf16.mxu0 0
        %541 = vmatpush1.bf16.msra.mxu0 %v523
        %542 = vmatprep.subr.bf16.mxu0 0
        %543 = vmatpush1.bf16.msra.mxu0 %v524
        %544 = vmatprep.subr.bf16.mxu0 0
        %545 = vmatpush1.bf16.msra.mxu0 %v525
        %546 = vmatprep.subr.bf16.mxu0 0
        %547 = vmatpush1.bf16.msra.mxu0 %v526
        %548 = vmatprep.subr.bf16.mxu0 0
        %549 = vmatpush1.bf16.msra.mxu0 %v527
        %550 = vmatprep.subr.bf16.mxu0 0
        %551 = vmatpush1.bf16.msra.mxu0 %v528
        %552 = vmatprep.subr.bf16.mxu0 0
        %553 = vmatpush1.bf16.msra.mxu0 %v529
        %554 = vmatprep.subr.bf16.mxu0 0
        %555 = vmatpush1.bf16.msra.mxu0 0
        %556 = vmatprep.subr.bf16.mxu0 0
        %557 = vmatpush1.bf16.msra.mxu0 0
        %558 = vmatprep.subr.bf16.mxu0 0
        %559 = vmatpush1.bf16.msra.mxu0 0
        %560 = vmatprep.subr.bf16.mxu0 0
        %561 = vmatpush1.bf16.msra.mxu0 0
        %562 = vmatprep.subr.bf16.mxu0 0
        %563 = vmatpush1.bf16.msra.mxu0 0
        %564 = vmatprep.subr.bf16.mxu0 0
        %565 = vmatpush1.bf16.msra.mxu0 0
        %566 = vmatprep.subr.bf16.mxu0 0
        %567 = vmatpush1.bf16.msra.mxu0 0
        %568 = vmatprep.subr.bf16.mxu0 0
        %569 = vmatpush1.bf16.msra.mxu0 0
        %570 = vmatprep.mubr.bf16.mxu0 0
        %571 = vmatmul.mubr.bf16.gmra.mrb[0].mxu0 %v441
        %v572 = vpop.f32.mrb[0].mxu0
        %v573 = vadd.f32 0.0, %v572
        %v574 = vpop.f32.mrb[0].mxu0
        %v575 = vpop.f32.mrb[0].mxu0
        %v576 = vadd.f32 0.0, %v575
        %v577 = vpop.f32.mrb[0].mxu0
        %578 = vmatprep.mubr.bf16.mxu0 0
        %579 = vmatmul.mubr.bf16.gmra.mrb[0].mxu0 %v442
        %v580 = vpop.f32.mrb[0].mxu0
        %v581 = vadd.f32 0.0, %v580
        %v582 = vpop.f32.mrb[0].mxu0
        %v583 = vpop.f32.mrb[0].mxu0
        %v584 = vadd.f32 0.0, %v583
        %v585 = vpop.f32.mrb[0].mxu0
        %586 = vmatprep.mubr.bf16.mxu0 0
        %587 = vmatmul.mubr.bf16.gmra.mrb[0].mxu0 %v443
        %v588 = vpop.f32.mrb[0].mxu0
        %v589 = vadd.f32 0.0, %v588
        %v590 = vpop.f32.mrb[0].mxu0
        %v591 = vpop.f32.mrb[0].mxu0
        %v592 = vadd.f32 0.0, %v591
        %v593 = vpop.f32.mrb[0].mxu0
        %594 = vmatprep.mubr.bf16.mxu0 0
        %595 = vmatmul.mubr.bf16.gmra.mrb[0].mxu0 %v444
        %v596 = vpop.f32.mrb[0].mxu0
        %v597 = vadd.f32 0.0, %v596
        %v598 = vpop.f32.mrb[0].mxu0
        %v599 = vpop.f32.mrb[0].mxu0
        %v600 = vadd.f32 0.0, %v599
        %v601 = vpop.f32.mrb[0].mxu0
        %602 = vmatprep.mubr.bf16.mxu0 0
        %603 = vmatmul.mubr.bf16.gmra.mrb[0].mxu0 %v445
        %v604 = vpop.f32.mrb[0].mxu0
        %v605 = vadd.f32 0.0, %v604
        %v606 = vpop.f32.mrb[0].mxu0
        %v607 = vpop.f32.mrb[0].mxu0
        %v608 = vadd.f32 0.0, %v607
        %v609 = vpop.f32.mrb[0].mxu0
        %610 = vmatprep.mubr.bf16.mxu0 0
        %611 = vmatmul.mubr.bf16.gmra.mrb[0].mxu0 %v446
        %v612 = vpop.f32.mrb[0].mxu0
        %v613 = vadd.f32 0.0, %v612
        %v614 = vpop.f32.mrb[0].mxu0
        %v615 = vpop.f32.mrb[0].mxu0
        %v616 = vadd.f32 0.0, %v615
        %v617 = vpop.f32.mrb[0].mxu0
        %618 = vmatprep.mubr.bf16.mxu0 0
        %619 = vmatmul.mubr.bf16.gmra.mrb[0].mxu0 %v447
        %v620 = vpop.f32.mrb[0].mxu0
        %v621 = vadd.f32 0.0, %v620
        %v622 = vpop.f32.mrb[0].mxu0
        %v623 = vpop.f32.mrb[0].mxu0
        %v624 = vadd.f32 0.0, %v623
        %v625 = vpop.f32.mrb[0].mxu0
        %626 = vmatprep.mubr.bf16.mxu0 0
        %627 = vmatmul.mubr.bf16.gmra.mrb[0].mxu0 %v448
        %v628 = vpop.f32.mrb[0].mxu0
        %v629 = vadd.f32 0.0, %v628
        %v630 = vpop.f32.mrb[0].mxu0
        %v631 = vpop.f32.mrb[0].mxu0
        %v632 = vadd.f32 0.0, %v631
        %v633 = vpop.f32.mrb[0].mxu0
        %634 = vmatprep.mubr.bf16.mxu0 0
        %635 = vmatmul.mubr.bf16.gmra.mrb[0].mxu0 %v449
        %v636 = vpop.f32.mrb[0].mxu0
        %v637 = vadd.f32 0.0, %v636
        %v638 = vpop.f32.mrb[0].mxu0
        %v639 = vpop.f32.mrb[0].mxu0
        %v640 = vadd.f32 0.0, %v639
        %v641 = vpop.f32.mrb[0].mxu0
        %642 = vmatprep.mubr.bf16.mxu0 0
        %643 = vmatmul.mubr.bf16.gmra.mrb[0].mxu0 %v450
        %v644 = vpop.f32.mrb[0].mxu0
        %v645 = vadd.f32 0.0, %v644
        %v646 = vpop.f32.mrb[0].mxu0
        %v647 = vpop.f32.mrb[0].mxu0
        %v648 = vadd.f32 0.0, %v647
        %v649 = vpop.f32.mrb[0].mxu0
        %650 = vmatprep.mubr.bf16.mxu0 0
        %651 = vmatmul.mubr.bf16.gmra.mrb[0].mxu0 %v451
        %v652 = vpop.f32.mrb[0].mxu0
        %v653 = vadd.f32 0.0, %v652
        %v654 = vpop.f32.mrb[0].mxu0
        %v655 = vpop.f32.mrb[0].mxu0
        %v656 = vadd.f32 0.0, %v655
        %v657 = vpop.f32.mrb[0].mxu0
        %658 = vmatprep.mubr.bf16.mxu0 0
        %659 = vmatmul.mubr.bf16.gmra.mrb[0].mxu0 %v452
        %v660 = vpop.f32.mrb[0].mxu0
        %v661 = vadd.f32 0.0, %v660
        %v662 = vpop.f32.mrb[0].mxu0
        %v663 = vpop.f32.mrb[0].mxu0
        %v664 = vadd.f32 0.0, %v663
        %v665 = vpop.f32.mrb[0].mxu0
        %666 = vmatprep.mubr.bf16.mxu0 0
        %667 = vmatmul.mubr.bf16.gmra.mrb[0].mxu0 %v453
        %v668 = vpop.f32.mrb[0].mxu0
        %v669 = vadd.f32 0.0, %v668
        %v670 = vpop.f32.mrb[0].mxu0
        %v671 = vpop.f32.mrb[0].mxu0
        %v672 = vadd.f32 0.0, %v671
        %v673 = vpop.f32.mrb[0].mxu0
        %674 = vmatprep.mubr.bf16.mxu0 0
        %675 = vmatmul.mubr.bf16.gmra.mrb[0].mxu0 %v454
        %v676 = vpop.f32.mrb[0].mxu0
        %v677 = vadd.f32 0.0, %v676
        %v678 = vpop.f32.mrb[0].mxu0
        %v679 = vpop.f32.mrb[0].mxu0
        %v680 = vadd.f32 0.0, %v679
        %v681 = vpop.f32.mrb[0].mxu0
        %682 = vmatprep.mubr.bf16.mxu0 0
        %683 = vmatmul.mubr.bf16.gmra.mrb[0].mxu0 %v455
        %v684 = vpop.f32.mrb[0].mxu0
        %v685 = vadd.f32 0.0, %v684
        %v686 = vpop.f32.mrb[0].mxu0
        %v687 = vpop.f32.mrb[0].mxu0
        %v688 = vadd.f32 0.0, %v687
        %v689 = vpop.f32.mrb[0].mxu0
        %690 = vmatprep.mubr.bf16.mxu0 0
        %691 = vmatmul.mubr.bf16.gmra.mrb[0].mxu0 %v456
        %v692 = vpop.f32.mrb[0].mxu0
        %v693 = vadd.f32 0.0, %v692
        %v694 = vpop.f32.mrb[0].mxu0
        %v695 = vpop.f32.mrb[0].mxu0
        %v696 = vadd.f32 0.0, %v695
        %v697 = vpop.f32.mrb[0].mxu0
        %698 = vdwg.mxu0
        %v715 = vunpack.c.l.b16 %v457
        %v716 = vunpack.c.l.b16 %v458
        %v717 = vunpack.c.l.b16 %v459
        %v718 = vunpack.c.l.b16 %v460
        %v719 = vunpack.c.l.b16 %v461
        %v720 = vunpack.c.l.b16 %v462
        %v721 = vunpack.c.l.b16 %v463
        %v722 = vunpack.c.l.b16 %v464
        %v723 = vunpack.c.l.b16 %v465
        %v724 = vunpack.c.l.b16 %v466
        %v725 = vunpack.c.l.b16 %v467
        %v726 = vunpack.c.l.b16 %v468
        %v727 = vunpack.c.l.b16 %v469
        %v728 = vunpack.c.l.b16 %v470
        %v729 = vunpack.c.l.b16 %v471
        %v730 = vunpack.c.l.b16 %v472
        %v731 = vpack.c.b16 %v716, %v715
        %v732 = vpack.c.b16 %v718, %v717
        %v733 = vpack.c.b16 %v720, %v719
        %v734 = vpack.c.b16 %v722, %v721
        %v735 = vpack.c.b16 %v724, %v723
        %v736 = vpack.c.b16 %v726, %v725
        %v737 = vpack.c.b16 %v728, %v727
        %v738 = vpack.c.b16 %v730, %v729
        %747 = vmatprep.subr.bf16.mxu0 0
        %748 = vmatpush1.bf16.msra.mxu0 %v731
        %749 = vmatprep.subr.bf16.mxu0 0
        %750 = vmatpush1.bf16.msra.mxu0 %v732
        %751 = vmatprep.subr.bf16.mxu0 0
        %752 = vmatpush1.bf16.msra.mxu0 %v733
        %753 = vmatprep.subr.bf16.mxu0 0
        %754 = vmatpush1.bf16.msra.mxu0 %v734
        %755 = vmatprep.subr.bf16.mxu0 0
        %756 = vmatpush1.bf16.msra.mxu0 %v735
        %757 = vmatprep.subr.bf16.mxu0 0
        %758 = vmatpush1.bf16.msra.mxu0 %v736
        %759 = vmatprep.subr.bf16.mxu0 0
        %760 = vmatpush1.bf16.msra.mxu0 %v737
        %761 = vmatprep.subr.bf16.mxu0 0
        %762 = vmatpush1.bf16.msra.mxu0 %v738
        %763 = vmatprep.subr.bf16.mxu0 0
        %764 = vmatpush1.bf16.msra.mxu0 0
        %765 = vmatprep.subr.bf16.mxu0 0
        %766 = vmatpush1.bf16.msra.mxu0 0
        %767 = vmatprep.subr.bf16.mxu0 0
        %768 = vmatpush1.bf16.msra.mxu0 0
        %769 = vmatprep.subr.bf16.mxu0 0
        %770 = vmatpush1.bf16.msra.mxu0 0
        %771 = vmatprep.subr.bf16.mxu0 0
        %772 = vmatpush1.bf16.msra.mxu0 0
        %773 = vmatprep.subr.bf16.mxu0 0
        %774 = vmatpush1.bf16.msra.mxu0 0
        %775 = vmatprep.subr.bf16.mxu0 0
        %776 = vmatpush1.bf16.msra.mxu0 0
        %777 = vmatprep.subr.bf16.mxu0 0
        %778 = vmatpush1.bf16.msra.mxu0 0
        %779 = vmatprep.mubr.bf16.mxu0 0
        %780 = vmatmul.mubr.bf16.gmra.mrb[0].mxu0 %v441
        %v781 = vpop.f32.mrb[0].mxu0
        %v782 = vadd.f32 %v573, %v781
        %v783 = vpop.f32.mrb[0].mxu0
        %v784 = vpop.f32.mrb[0].mxu0
        %v785 = vadd.f32 %v576, %v784
        %v786 = vpop.f32.mrb[0].mxu0
        %787 = vmatprep.mubr.bf16.mxu0 0
        %788 = vmatmul.mubr.bf16.gmra.mrb[0].mxu0 %v442
        %v789 = vpop.f32.mrb[0].mxu0
        %v790 = vadd.f32 %v581, %v789
        %v791 = vpop.f32.mrb[0].mxu0
        %v792 = vpop.f32.mrb[0].mxu0
        %v793 = vadd.f32 %v584, %v792
        %v794 = vpop.f32.mrb[0].mxu0
        %795 = vmatprep.mubr.bf16.mxu0 0
        %796 = vmatmul.mubr.bf16.gmra.mrb[0].mxu0 %v443
        %v797 = vpop.f32.mrb[0].mxu0
        %v798 = vadd.f32 %v589, %v797
        %v799 = vpop.f32.mrb[0].mxu0
        %v800 = vpop.f32.mrb[0].mxu0
        %v801 = vadd.f32 %v592, %v800
        %v802 = vpop.f32.mrb[0].mxu0
        %803 = vmatprep.mubr.bf16.mxu0 0
        %804 = vmatmul.mubr.bf16.gmra.mrb[0].mxu0 %v444
        %v805 = vpop.f32.mrb[0].mxu0
        %v806 = vadd.f32 %v597, %v805
        %v807 = vpop.f32.mrb[0].mxu0
        %v808 = vpop.f32.mrb[0].mxu0
        %v809 = vadd.f32 %v600, %v808
        %v810 = vpop.f32.mrb[0].mxu0
        %811 = vmatprep.mubr.bf16.mxu0 0
        %812 = vmatmul.mubr.bf16.gmra.mrb[0].mxu0 %v445
        %v813 = vpop.f32.mrb[0].mxu0
        %v814 = vadd.f32 %v605, %v813
        %v815 = vpop.f32.mrb[0].mxu0
        %v816 = vpop.f32.mrb[0].mxu0
        %v817 = vadd.f32 %v608, %v816
        %v818 = vpop.f32.mrb[0].mxu0
        %819 = vmatprep.mubr.bf16.mxu0 0
        %820 = vmatmul.mubr.bf16.gmra.mrb[0].mxu0 %v446
        %v821 = vpop.f32.mrb[0].mxu0
        %v822 = vadd.f32 %v613, %v821
        %v823 = vpop.f32.mrb[0].mxu0
        %v824 = vpop.f32.mrb[0].mxu0
        %v825 = vadd.f32 %v616, %v824
        %v826 = vpop.f32.mrb[0].mxu0
        %827 = vmatprep.mubr.bf16.mxu0 0
        %828 = vmatmul.mubr.bf16.gmra.mrb[0].mxu0 %v447
        %v829 = vpop.f32.mrb[0].mxu0
        %v830 = vadd.f32 %v621, %v829
        %v831 = vpop.f32.mrb[0].mxu0
        %v832 = vpop.f32.mrb[0].mxu0
        %v833 = vadd.f32 %v624, %v832
        %v834 = vpop.f32.mrb[0].mxu0
        %835 = vmatprep.mubr.bf16.mxu0 0
        %836 = vmatmul.mubr.bf16.gmra.mrb[0].mxu0 %v448
        %v837 = vpop.f32.mrb[0].mxu0
        %v838 = vadd.f32 %v629, %v837
        %v839 = vpop.f32.mrb[0].mxu0
        %v840 = vpop.f32.mrb[0].mxu0
        %v841 = vadd.f32 %v632, %v840
        %v842 = vpop.f32.mrb[0].mxu0
        %843 = vmatprep.mubr.bf16.mxu0 0
        %844 = vmatmul.mubr.bf16.gmra.mrb[0].mxu0 %v449
        %v845 = vpop.f32.mrb[0].mxu0
        %v846 = vadd.f32 %v637, %v845
        %v847 = vpop.f32.mrb[0].mxu0
        %v848 = vpop.f32.mrb[0].mxu0
        %v849 = vadd.f32 %v640, %v848
        %v850 = vpop.f32.mrb[0].mxu0
        %851 = vmatprep.mubr.bf16.mxu0 0
        %852 = vmatmul.mubr.bf16.gmra.mrb[0].mxu0 %v450
        %v853 = vpop.f32.mrb[0].mxu0
        %v854 = vadd.f32 %v645, %v853
        %v855 = vpop.f32.mrb[0].mxu0
        %v856 = vpop.f32.mrb[0].mxu0
        %v857 = vadd.f32 %v648, %v856
        %v858 = vpop.f32.mrb[0].mxu0
        %859 = vmatprep.mubr.bf16.mxu0 0
        %860 = vmatmul.mubr.bf16.gmra.mrb[0].mxu0 %v451
        %v861 = vpop.f32.mrb[0].mxu0
        %v862 = vadd.f32 %v653, %v861
        %v863 = vpop.f32.mrb[0].mxu0
        %v864 = vpop.f32.mrb[0].mxu0
        %v865 = vadd.f32 %v656, %v864
        %v866 = vpop.f32.mrb[0].mxu0
        %867 = vmatprep.mubr.bf16.mxu0 0
        %868 = vmatmul.mubr.bf16.gmra.mrb[0].mxu0 %v452
        %v869 = vpop.f32.mrb[0].mxu0
        %v870 = vadd.f32 %v661, %v869
        %v871 = vpop.f32.mrb[0].mxu0
        %v872 = vpop.f32.mrb[0].mxu0
        %v873 = vadd.f32 %v664, %v872
        %v874 = vpop.f32.mrb[0].mxu0
        %875 = vmatprep.mubr.bf16.mxu0 0
        %876 = vmatmul.mubr.bf16.gmra.mrb[0].mxu0 %v453
        %v877 = vpop.f32.mrb[0].mxu0
        %v878 = vadd.f32 %v669, %v877
        %v879 = vpop.f32.mrb[0].mxu0
        %v880 = vpop.f32.mrb[0].mxu0
        %v881 = vadd.f32 %v672, %v880
        %v882 = vpop.f32.mrb[0].mxu0
        %883 = vmatprep.mubr.bf16.mxu0 0
        %884 = vmatmul.mubr.bf16.gmra.mrb[0].mxu0 %v454
        %v885 = vpop.f32.mrb[0].mxu0
        %v886 = vadd.f32 %v677, %v885
        %v887 = vpop.f32.mrb[0].mxu0
        %v888 = vpop.f32.mrb[0].mxu0
        %v889 = vadd.f32 %v680, %v888
        %v890 = vpop.f32.mrb[0].mxu0
        %891 = vmatprep.mubr.bf16.mxu0 0
        %892 = vmatmul.mubr.bf16.gmra.mrb[0].mxu0 %v455
        %v893 = vpop.f32.mrb[0].mxu0
        %v894 = vadd.f32 %v685, %v893
        %v895 = vpop.f32.mrb[0].mxu0
        %v896 = vpop.f32.mrb[0].mxu0
        %v897 = vadd.f32 %v688, %v896
        %v898 = vpop.f32.mrb[0].mxu0
        %899 = vmatprep.mubr.bf16.mxu0 0
        %900 = vmatmul.mubr.bf16.gmra.mrb[0].mxu0 %v456
        %v901 = vpop.f32.mrb[0].mxu0
        %v902 = vadd.f32 %v693, %v901
        %v903 = vpop.f32.mrb[0].mxu0
        %v904 = vpop.f32.mrb[0].mxu0
        %v905 = vadd.f32 %v696, %v904
        %v906 = vpop.f32.mrb[0].mxu0
        %907 = vdwg.mxu0
        %s908 = scalar_lea.vmem %s1, 128
        %v909 = vld [vmem:[%s908] sm:$0xf]
        %v910 = vld [vmem:[%s908 + $0x4] sm:$0xf]
        %v911 = vld [vmem:[%s908 + $0x8] sm:$0xf]
        %v912 = vld [vmem:[%s908 + $0xc] sm:$0xf]
        %v913 = vld [vmem:[%s908 + $0x10] sm:$0xf]
        %v914 = vld [vmem:[%s908 + $0x14] sm:$0xf]
        %v915 = vld [vmem:[%s908 + $0x18] sm:$0xf]
        %v916 = vld [vmem:[%s908 + $0x1c] sm:$0xf]
        %v917 = vld [vmem:[%s908 + $0x20] sm:$0xf]
        %v918 = vld [vmem:[%s908 + $0x24] sm:$0xf]
        %v919 = vld [vmem:[%s908 + $0x28] sm:$0xf]
        %v920 = vld [vmem:[%s908 + $0x2c] sm:$0xf]
        %v921 = vld [vmem:[%s908 + $0x30] sm:$0xf]
        %v922 = vld [vmem:[%s908 + $0x34] sm:$0xf]
        %v923 = vld [vmem:[%s908 + $0x38] sm:$0xf]
        %v924 = vld [vmem:[%s908 + $0x3c] sm:$0xf]
        %v941 = vunpack.c.l.b16 %v909
        %v942 = vunpack.c.l.b16 %v910
        %v943 = vunpack.c.l.b16 %v911
        %v944 = vunpack.c.l.b16 %v912
        %v945 = vunpack.c.l.b16 %v913
        %v946 = vunpack.c.l.b16 %v914
        %v947 = vunpack.c.l.b16 %v915
        %v948 = vunpack.c.l.b16 %v916
        %v949 = vunpack.c.l.b16 %v917
        %v950 = vunpack.c.l.b16 %v918
        %v951 = vunpack.c.l.b16 %v919
        %v952 = vunpack.c.l.b16 %v920
        %v953 = vunpack.c.l.b16 %v921
        %v954 = vunpack.c.l.b16 %v922
        %v955 = vunpack.c.l.b16 %v923
        %v956 = vunpack.c.l.b16 %v924
        %v957 = vpack.c.b16 %v942, %v941
        %v958 = vpack.c.b16 %v944, %v943
        %v959 = vpack.c.b16 %v946, %v945
        %v960 = vpack.c.b16 %v948, %v947
        %v961 = vpack.c.b16 %v950, %v949
        %v962 = vpack.c.b16 %v952, %v951
        %v963 = vpack.c.b16 %v954, %v953
        %v964 = vpack.c.b16 %v956, %v955
        %973 = vmatprep.subr.bf16.mxu0 0
        %974 = vmatpush1.bf16.msra.mxu0 %v957
        %975 = vmatprep.subr.bf16.mxu0 0
        %976 = vmatpush1.bf16.msra.mxu0 %v958
        %977 = vmatprep.subr.bf16.mxu0 0
        %978 = vmatpush1.bf16.msra.mxu0 %v959
        %979 = vmatprep.subr.bf16.mxu0 0
        %980 = vmatpush1.bf16.msra.mxu0 %v960
        %981 = vmatprep.subr.bf16.mxu0 0
        %982 = vmatpush1.bf16.msra.mxu0 %v961
        %983 = vmatprep.subr.bf16.mxu0 0
        %984 = vmatpush1.bf16.msra.mxu0 %v962
        %985 = vmatprep.subr.bf16.mxu0 0
        %986 = vmatpush1.bf16.msra.mxu0 %v963
        %987 = vmatprep.subr.bf16.mxu0 0
        %988 = vmatpush1.bf16.msra.mxu0 %v964
        %989 = vmatprep.subr.bf16.mxu0 0
        %990 = vmatpush1.bf16.msra.mxu0 0
        %991 = vmatprep.subr.bf16.mxu0 0
        %992 = vmatpush1.bf16.msra.mxu0 0
        %993 = vmatprep.subr.bf16.mxu0 0
        %994 = vmatpush1.bf16.msra.mxu0 0
        %995 = vmatprep.subr.bf16.mxu0 0
        %996 = vmatpush1.bf16.msra.mxu0 0
        %997 = vmatprep.subr.bf16.mxu0 0
        %998 = vmatpush1.bf16.msra.mxu0 0
        %999 = vmatprep.subr.bf16.mxu0 0
        %1000 = vmatpush1.bf16.msra.mxu0 0
        %1001 = vmatprep.subr.bf16.mxu0 0
        %1002 = vmatpush1.bf16.msra.mxu0 0
        %1003 = vmatprep.subr.bf16.mxu0 0
        %1004 = vmatpush1.bf16.msra.mxu0 0
        %1005 = vmatprep.mubr.bf16.mxu0 0
        %1006 = vmatmul.mubr.bf16.gmra.mrb[0].mxu0 %v441
        %v1007 = vpop.f32.mrb[0].mxu0
        %v1008 = vadd.f32 0.0, %v1007
        %v1009 = vpop.f32.mrb[0].mxu0
        %v1010 = vpop.f32.mrb[0].mxu0
        %v1011 = vadd.f32 0.0, %v1010
        %v1012 = vpop.f32.mrb[0].mxu0
        %1013 = vmatprep.mubr.bf16.mxu0 0
        %1014 = vmatmul.mubr.bf16.gmra.mrb[0].mxu0 %v442
        %v1015 = vpop.f32.mrb[0].mxu0
        %v1016 = vadd.f32 0.0, %v1015
        %v1017 = vpop.f32.mrb[0].mxu0
        %v1018 = vpop.f32.mrb[0].mxu0
        %v1019 = vadd.f32 0.0, %v1018
        %v1020 = vpop.f32.mrb[0].mxu0
        %1021 = vmatprep.mubr.bf16.mxu0 0
        %1022 = vmatmul.mubr.bf16.gmra.mrb[0].mxu0 %v443
        %v1023 = vpop.f32.mrb[0].mxu0
        %v1024 = vadd.f32 0.0, %v1023
        %v1025 = vpop.f32.mrb[0].mxu0
        %v1026 = vpop.f32.mrb[0].mxu0
        %v1027 = vadd.f32 0.0, %v1026
        %v1028 = vpop.f32.mrb[0].mxu0
        %1029 = vmatprep.mubr.bf16.mxu0 0
        %1030 = vmatmul.mubr.bf16.gmra.mrb[0].mxu0 %v444
        %v1031 = vpop.f32.mrb[0].mxu0
        %v1032 = vadd.f32 0.0, %v1031
        %v1033 = vpop.f32.mrb[0].mxu0
        %v1034 = vpop.f32.mrb[0].mxu0
        %v1035 = vadd.f32 0.0, %v1034
        %v1036 = vpop.f32.mrb[0].mxu0
        %1037 = vmatprep.mubr.bf16.mxu0 0
        %1038 = vmatmul.mubr.bf16.gmra.mrb[0].mxu0 %v445
        %v1039 = vpop.f32.mrb[0].mxu0
        %v1040 = vadd.f32 0.0, %v1039
        %v1041 = vpop.f32.mrb[0].mxu0
        %v1042 = vpop.f32.mrb[0].mxu0
        %v1043 = vadd.f32 0.0, %v1042
        %v1044 = vpop.f32.mrb[0].mxu0
        %1045 = vmatprep.mubr.bf16.mxu0 0
        %1046 = vmatmul.mubr.bf16.gmra.mrb[0].mxu0 %v446
        %v1047 = vpop.f32.mrb[0].mxu0
        %v1048 = vadd.f32 0.0, %v1047
        %v1049 = vpop.f32.mrb[0].mxu0
        %v1050 = vpop.f32.mrb[0].mxu0
        %v1051 = vadd.f32 0.0, %v1050
        %v1052 = vpop.f32.mrb[0].mxu0
        %1053 = vmatprep.mubr.bf16.mxu0 0
        %1054 = vmatmul.mubr.bf16.gmra.mrb[0].mxu0 %v447
        %v1055 = vpop.f32.mrb[0].mxu0
        %v1056 = vadd.f32 0.0, %v1055
        %v1057 = vpop.f32.mrb[0].mxu0
        %v1058 = vpop.f32.mrb[0].mxu0
        %v1059 = vadd.f32 0.0, %v1058
        %v1060 = vpop.f32.mrb[0].mxu0
        %1061 = vmatprep.mubr.bf16.mxu0 0
        %1062 = vmatmul.mubr.bf16.gmra.mrb[0].mxu0 %v448
        %v1063 = vpop.f32.mrb[0].mxu0
        %v1064 = vadd.f32 0.0, %v1063
        %v1065 = vpop.f32.mrb[0].mxu0
        %v1066 = vpop.f32.mrb[0].mxu0
        %v1067 = vadd.f32 0.0, %v1066
        %v1068 = vpop.f32.mrb[0].mxu0
        %1069 = vmatprep.mubr.bf16.mxu0 0
        %1070 = vmatmul.mubr.bf16.gmra.mrb[0].mxu0 %v449
        %v1071 = vpop.f32.mrb[0].mxu0
        %v1072 = vadd.f32 0.0, %v1071
        %v1073 = vpop.f32.mrb[0].mxu0
        %v1074 = vpop.f32.mrb[0].mxu0
        %v1075 = vadd.f32 0.0, %v1074
        %v1076 = vpop.f32.mrb[0].mxu0
        %1077 = vmatprep.mubr.bf16.mxu0 0
        %1078 = vmatmul.mubr.bf16.gmra.mrb[0].mxu0 %v450
        %v1079 = vpop.f32.mrb[0].mxu0
        %v1080 = vadd.f32 0.0, %v1079
        %v1081 = vpop.f32.mrb[0].mxu0
        %v1082 = vpop.f32.mrb[0].mxu0
        %v1083 = vadd.f32 0.0, %v1082
        %v1084 = vpop.f32.mrb[0].mxu0
        %1085 = vmatprep.mubr.bf16.mxu0 0
        %1086 = vmatmul.mubr.bf16.gmra.mrb[0].mxu0 %v451
        %v1087 = vpop.f32.mrb[0].mxu0
        %v1088 = vadd.f32 0.0, %v1087
        %v1089 = vpop.f32.mrb[0].mxu0
        %v1090 = vpop.f32.mrb[0].mxu0
        %v1091 = vadd.f32 0.0, %v1090
        %v1092 = vpop.f32.mrb[0].mxu0
        %1093 = vmatprep.mubr.bf16.mxu0 0
        %1094 = vmatmul.mubr.bf16.gmra.mrb[0].mxu0 %v452
        %v1095 = vpop.f32.mrb[0].mxu0
        %v1096 = vadd.f32 0.0, %v1095
        %v1097 = vpop.f32.mrb[0].mxu0
        %v1098 = vpop.f32.mrb[0].mxu0
        %v1099 = vadd.f32 0.0, %v1098
        %v1100 = vpop.f32.mrb[0].mxu0
        %1101 = vmatprep.mubr.bf16.mxu0 0
        %1102 = vmatmul.mubr.bf16.gmra.mrb[0].mxu0 %v453
        %v1103 = vpop.f32.mrb[0].mxu0
        %v1104 = vadd.f32 0.0, %v1103
        %v1105 = vpop.f32.mrb[0].mxu0
        %v1106 = vpop.f32.mrb[0].mxu0
        %v1107 = vadd.f32 0.0, %v1106
        %v1108 = vpop.f32.mrb[0].mxu0
        %1109 = vmatprep.mubr.bf16.mxu0 0
        %1110 = vmatmul.mubr.bf16.gmra.mrb[0].mxu0 %v454
        %v1111 = vpop.f32.mrb[0].mxu0
        %v1112 = vadd.f32 0.0, %v1111
        %v1113 = vpop.f32.mrb[0].mxu0
        %v1114 = vpop.f32.mrb[0].mxu0
        %v1115 = vadd.f32 0.0, %v1114
        %v1116 = vpop.f32.mrb[0].mxu0
        %1117 = vmatprep.mubr.bf16.mxu0 0
        %1118 = vmatmul.mubr.bf16.gmra.mrb[0].mxu0 %v455
        %v1119 = vpop.f32.mrb[0].mxu0
        %v1120 = vadd.f32 0.0, %v1119
        %v1121 = vpop.f32.mrb[0].mxu0
        %v1122 = vpop.f32.mrb[0].mxu0
        %v1123 = vadd.f32 0.0, %v1122
        %v1124 = vpop.f32.mrb[0].mxu0
        %1125 = vmatprep.mubr.bf16.mxu0 0
        %1126 = vmatmul.mubr.bf16.gmra.mrb[0].mxu0 %v456
        %v1127 = vpop.f32.mrb[0].mxu0
        %v1128 = vadd.f32 0.0, %v1127
        %v1129 = vpop.f32.mrb[0].mxu0
        %v1130 = vpop.f32.mrb[0].mxu0
        %v1131 = vadd.f32 0.0, %v1130
        %v1132 = vpop.f32.mrb[0].mxu0
        %1133 = vdwg.mxu0
        %v1134 = vadd.f32 %v782, %v1008
        %v1135 = vadd.f32 %v785, %v1011
        %v1136 = vadd.f32 %v790, %v1016
        %v1137 = vadd.f32 %v793, %v1019
        %v1138 = vadd.f32 %v798, %v1024
        %v1139 = vadd.f32 %v801, %v1027
        %v1140 = vadd.f32 %v806, %v1032
        %v1141 = vadd.f32 %v809, %v1035
        %v1142 = vadd.f32 %v814, %v1040
        %v1143 = vadd.f32 %v817, %v1043
        %v1144 = vadd.f32 %v822, %v1048
        %v1145 = vadd.f32 %v825, %v1051
        %v1146 = vadd.f32 %v830, %v1056
        %v1147 = vadd.f32 %v833, %v1059
        %v1148 = vadd.f32 %v838, %v1064
        %v1149 = vadd.f32 %v841, %v1067
        %v1150 = vadd.f32 %v846, %v1072
        %v1151 = vadd.f32 %v849, %v1075
        %v1152 = vadd.f32 %v854, %v1080
        %v1153 = vadd.f32 %v857, %v1083
        %v1154 = vadd.f32 %v862, %v1088
        %v1155 = vadd.f32 %v865, %v1091
        %v1156 = vadd.f32 %v870, %v1096
        %v1157 = vadd.f32 %v873, %v1099
        %v1158 = vadd.f32 %v878, %v1104
        %v1159 = vadd.f32 %v881, %v1107
        %v1160 = vadd.f32 %v886, %v1112
        %v1161 = vadd.f32 %v889, %v1115
        %v1162 = vadd.f32 %v894, %v1120
        %v1163 = vadd.f32 %v897, %v1123
        %v1164 = vadd.f32 %v902, %v1128
        %v1165 = vadd.f32 %v905, %v1131
        %vm1166 = vcmp.eq.s32.totalorder %v216, 96
        %v1167 = vsel %vm1166, 1, 0
        %vm1168 = vcmp.eq.s32.totalorder %v1167, 1
        %v1169 = vsel %vm1168, %v1134, 0.0
        %v1170 = vsel %vm1168, %v1135, 0.0
        %v1171 = vsel %vm1168, %v1136, 0.0
        %v1172 = vsel %vm1168, %v1137, 0.0
        %v1173 = vsel %vm1168, %v1138, 0.0
        %v1174 = vsel %vm1168, %v1139, 0.0
        %v1175 = vsel %vm1168, %v1140, 0.0
        %v1176 = vsel %vm1168, %v1141, 0.0
        %v1177 = vsel %vm1168, %v1142, 0.0
        %v1178 = vsel %vm1168, %v1143, 0.0
        %v1179 = vsel %vm1168, %v1144, 0.0
        %v1180 = vsel %vm1168, %v1145, 0.0
        %v1181 = vsel %vm1168, %v1146, 0.0
        %v1182 = vsel %vm1168, %v1147, 0.0
        %v1183 = vsel %vm1168, %v1148, 0.0
        %v1184 = vsel %vm1168, %v1149, 0.0
        %v1185 = vsel %vm1168, %v1150, 0.0
        %v1186 = vsel %vm1168, %v1151, 0.0
        %v1187 = vsel %vm1168, %v1152, 0.0
        %v1188 = vsel %vm1168, %v1153, 0.0
        %v1189 = vsel %vm1168, %v1154, 0.0
        %v1190 = vsel %vm1168, %v1155, 0.0
        %v1191 = vsel %vm1168, %v1156, 0.0
        %v1192 = vsel %vm1168, %v1157, 0.0
        %v1193 = vsel %vm1168, %v1158, 0.0
        %v1194 = vsel %vm1168, %v1159, 0.0
        %v1195 = vsel %vm1168, %v1160, 0.0
        %v1196 = vsel %vm1168, %v1161, 0.0
        %v1197 = vsel %vm1168, %v1162, 0.0
        %v1198 = vsel %vm1168, %v1163, 0.0
        %v1199 = vsel %vm1168, %v1164, 0.0
        %v1200 = vsel %vm1168, %v1165, 0.0
        %v1201 = vsub.f32 %v1134, %v1169
        %v1202 = vsub.f32 %v1135, %v1170
        %v1203 = vsub.f32 %v1136, %v1171
        %v1204 = vsub.f32 %v1137, %v1172
        %v1205 = vsub.f32 %v1138, %v1173
        %v1206 = vsub.f32 %v1139, %v1174
        %v1207 = vsub.f32 %v1140, %v1175
        %v1208 = vsub.f32 %v1141, %v1176
        %v1209 = vsub.f32 %v1142, %v1177
        %v1210 = vsub.f32 %v1143, %v1178
        %v1211 = vsub.f32 %v1144, %v1179
        %v1212 = vsub.f32 %v1145, %v1180
        %v1213 = vsub.f32 %v1146, %v1181
        %v1214 = vsub.f32 %v1147, %v1182
        %v1215 = vsub.f32 %v1148, %v1183
        %v1216 = vsub.f32 %v1149, %v1184
        %v1217 = vsub.f32 %v1150, %v1185
        %v1218 = vsub.f32 %v1151, %v1186
        %v1219 = vsub.f32 %v1152, %v1187
        %v1220 = vsub.f32 %v1153, %v1188
        %v1221 = vsub.f32 %v1154, %v1189
        %v1222 = vsub.f32 %v1155, %v1190
        %v1223 = vsub.f32 %v1156, %v1191
        %v1224 = vsub.f32 %v1157, %v1192
        %v1225 = vsub.f32 %v1158, %v1193
        %v1226 = vsub.f32 %v1159, %v1194
        %v1227 = vsub.f32 %v1160, %v1195
        %v1228 = vsub.f32 %v1161, %v1196
        %v1229 = vsub.f32 %v1162, %v1197
        %v1230 = vsub.f32 %v1163, %v1198
        %v1231 = vsub.f32 %v1164, %v1199
        %v1232 = vsub.f32 %v1165, %v1200
        %v1233 = vmul.f32 %v1201, %v1201
        %v1234 = vmul.f32 %v1202, %v1202
        %v1235 = vmul.f32 %v1203, %v1203
        %v1236 = vmul.f32 %v1204, %v1204
        %v1237 = vmul.f32 %v1205, %v1205
        %v1238 = vmul.f32 %v1206, %v1206
        %v1239 = vmul.f32 %v1207, %v1207
        %v1240 = vmul.f32 %v1208, %v1208
        %v1241 = vmul.f32 %v1209, %v1209
        %v1242 = vmul.f32 %v1210, %v1210
        %v1243 = vmul.f32 %v1211, %v1211
        %v1244 = vmul.f32 %v1212, %v1212
        %v1245 = vmul.f32 %v1213, %v1213
        %v1246 = vmul.f32 %v1214, %v1214
        %v1247 = vmul.f32 %v1215, %v1215
        %v1248 = vmul.f32 %v1216, %v1216
        %v1249 = vmul.f32 %v1217, %v1217
        %v1250 = vmul.f32 %v1218, %v1218
        %v1251 = vmul.f32 %v1219, %v1219
        %v1252 = vmul.f32 %v1220, %v1220
        %v1253 = vmul.f32 %v1221, %v1221
        %v1254 = vmul.f32 %v1222, %v1222
        %v1255 = vmul.f32 %v1223, %v1223
        %v1256 = vmul.f32 %v1224, %v1224
        %v1257 = vmul.f32 %v1225, %v1225
        %v1258 = vmul.f32 %v1226, %v1226
        %v1259 = vmul.f32 %v1227, %v1227
        %v1260 = vmul.f32 %v1228, %v1228
        %v1261 = vmul.f32 %v1229, %v1229
        %v1262 = vmul.f32 %v1230, %v1230
        %v1263 = vmul.f32 %v1231, %v1231
        %v1264 = vmul.f32 %v1232, %v1232
        %1265 = vadd.xlane.f32.xlu0 %v1233
        %v1266 = vpop.xlane.xlu0 %1265
        %1267 = vadd.xlane.f32.xlu0 %v1234
        %v1268 = vpop.xlane.xlu0 %1267
        %1269 = vadd.xlane.f32.xlu0 %v1235
        %v1270 = vpop.xlane.xlu0 %1269
        %1271 = vadd.xlane.f32.xlu0 %v1236
        %v1272 = vpop.xlane.xlu0 %1271
        %1273 = vadd.xlane.f32.xlu0 %v1237
        %v1274 = vpop.xlane.xlu0 %1273
        %1275 = vadd.xlane.f32.xlu0 %v1238
        %v1276 = vpop.xlane.xlu0 %1275
        %1277 = vadd.xlane.f32.xlu0 %v1239
        %v1278 = vpop.xlane.xlu0 %1277
        %1279 = vadd.xlane.f32.xlu0 %v1240
        %v1280 = vpop.xlane.xlu0 %1279
        %1281 = vadd.xlane.f32.xlu0 %v1241
        %v1282 = vpop.xlane.xlu0 %1281
        %1283 = vadd.xlane.f32.xlu0 %v1242
        %v1284 = vpop.xlane.xlu0 %1283
        %1285 = vadd.xlane.f32.xlu0 %v1243
        %v1286 = vpop.xlane.xlu0 %1285
        %1287 = vadd.xlane.f32.xlu0 %v1244
        %v1288 = vpop.xlane.xlu0 %1287
        %1289 = vadd.xlane.f32.xlu0 %v1245
        %v1290 = vpop.xlane.xlu0 %1289
        %1291 = vadd.xlane.f32.xlu0 %v1246
        %v1292 = vpop.xlane.xlu0 %1291
        %1293 = vadd.xlane.f32.xlu0 %v1247
        %v1294 = vpop.xlane.xlu0 %1293
        %1295 = vadd.xlane.f32.xlu0 %v1248
        %v1296 = vpop.xlane.xlu0 %1295
        %1297 = vadd.xlane.f32.xlu0 %v1249
        %v1298 = vpop.xlane.xlu0 %1297
        %1299 = vadd.xlane.f32.xlu0 %v1250
        %v1300 = vpop.xlane.xlu0 %1299
        %1301 = vadd.xlane.f32.xlu0 %v1251
        %v1302 = vpop.xlane.xlu0 %1301
        %1303 = vadd.xlane.f32.xlu0 %v1252
        %v1304 = vpop.xlane.xlu0 %1303
        %1305 = vadd.xlane.f32.xlu0 %v1253
        %v1306 = vpop.xlane.xlu0 %1305
        %1307 = vadd.xlane.f32.xlu0 %v1254
        %v1308 = vpop.xlane.xlu0 %1307
        %1309 = vadd.xlane.f32.xlu0 %v1255
        %v1310 = vpop.xlane.xlu0 %1309
        %1311 = vadd.xlane.f32.xlu0 %v1256
        %v1312 = vpop.xlane.xlu0 %1311
        %1313 = vadd.xlane.f32.xlu0 %v1257
        %v1314 = vpop.xlane.xlu0 %1313
        %1315 = vadd.xlane.f32.xlu0 %v1258
        %v1316 = vpop.xlane.xlu0 %1315
        %1317 = vadd.xlane.f32.xlu0 %v1259
        %v1318 = vpop.xlane.xlu0 %1317
        %1319 = vadd.xlane.f32.xlu0 %v1260
        %v1320 = vpop.xlane.xlu0 %1319
        %1321 = vadd.xlane.f32.xlu0 %v1261
        %v1322 = vpop.xlane.xlu0 %1321
        %1323 = vadd.xlane.f32.xlu0 %v1262
        %v1324 = vpop.xlane.xlu0 %1323
        %1325 = vadd.xlane.f32.xlu0 %v1263
        %v1326 = vpop.xlane.xlu0 %1325
        %1327 = vadd.xlane.f32.xlu0 %v1264
        %v1328 = vpop.xlane.xlu0 %1327
        %v1329 = vmax.f32 %v1266, 1e-24
        %v1330 = vmax.f32 %v1268, 1e-24
        %v1331 = vmax.f32 %v1270, 1e-24
        %v1332 = vmax.f32 %v1272, 1e-24
        %v1333 = vmax.f32 %v1274, 1e-24
        %v1334 = vmax.f32 %v1276, 1e-24
        %v1335 = vmax.f32 %v1278, 1e-24
        %v1336 = vmax.f32 %v1280, 1e-24
        %v1337 = vmax.f32 %v1282, 1e-24
        %v1338 = vmax.f32 %v1284, 1e-24
        %v1339 = vmax.f32 %v1286, 1e-24
        %v1340 = vmax.f32 %v1288, 1e-24
        %v1341 = vmax.f32 %v1290, 1e-24
        %v1342 = vmax.f32 %v1292, 1e-24
        %v1343 = vmax.f32 %v1294, 1e-24
        %v1344 = vmax.f32 %v1296, 1e-24
        %v1345 = vmax.f32 %v1298, 1e-24
        %v1346 = vmax.f32 %v1300, 1e-24
        %v1347 = vmax.f32 %v1302, 1e-24
        %v1348 = vmax.f32 %v1304, 1e-24
        %v1349 = vmax.f32 %v1306, 1e-24
        %v1350 = vmax.f32 %v1308, 1e-24
        %v1351 = vmax.f32 %v1310, 1e-24
        %v1352 = vmax.f32 %v1312, 1e-24
        %v1353 = vmax.f32 %v1314, 1e-24
        %v1354 = vmax.f32 %v1316, 1e-24
        %v1355 = vmax.f32 %v1318, 1e-24
        %v1356 = vmax.f32 %v1320, 1e-24
        %v1357 = vmax.f32 %v1322, 1e-24
        %v1358 = vmax.f32 %v1324, 1e-24
        %v1359 = vmax.f32 %v1326, 1e-24
        %v1360 = vmax.f32 %v1328, 1e-24
        %v1361 = vrsqrt.pop %v1329
        %v1362 = vrsqrt.pop %v1330
        %v1363 = vrsqrt.pop %v1331
        %v1364 = vrsqrt.pop %v1332
        %v1365 = vrsqrt.pop %v1333
        %v1366 = vrsqrt.pop %v1334
        %v1367 = vrsqrt.pop %v1335
        %v1368 = vrsqrt.pop %v1336
        %v1369 = vrsqrt.pop %v1337
        %v1370 = vrsqrt.pop %v1338
        %v1371 = vrsqrt.pop %v1339
        %v1372 = vrsqrt.pop %v1340
        %v1373 = vrsqrt.pop %v1341
        %v1374 = vrsqrt.pop %v1342
        %v1375 = vrsqrt.pop %v1343
        %v1376 = vrsqrt.pop %v1344
        %v1377 = vrsqrt.pop %v1345
        %v1378 = vrsqrt.pop %v1346
        %v1379 = vrsqrt.pop %v1347
        %v1380 = vrsqrt.pop %v1348
        %v1381 = vrsqrt.pop %v1349
        %v1382 = vrsqrt.pop %v1350
        %v1383 = vrsqrt.pop %v1351
        %v1384 = vrsqrt.pop %v1352
        %v1385 = vrsqrt.pop %v1353
        %v1386 = vrsqrt.pop %v1354
        %v1387 = vrsqrt.pop %v1355
        %v1388 = vrsqrt.pop %v1356
        %v1389 = vrsqrt.pop %v1357
        %v1390 = vrsqrt.pop %v1358
        %v1391 = vrsqrt.pop %v1359
        %v1392 = vrsqrt.pop %v1360
        %v1393 = vmul.f32 %v1201, %v1361
        %v1394 = vmul.f32 %v1202, %v1362
        %v1395 = vmul.f32 %v1203, %v1363
        %v1396 = vmul.f32 %v1204, %v1364
        %v1397 = vmul.f32 %v1205, %v1365
        %v1398 = vmul.f32 %v1206, %v1366
        %v1399 = vmul.f32 %v1207, %v1367
        %v1400 = vmul.f32 %v1208, %v1368
        %v1401 = vmul.f32 %v1209, %v1369
        %v1402 = vmul.f32 %v1210, %v1370
        %v1403 = vmul.f32 %v1211, %v1371
        %v1404 = vmul.f32 %v1212, %v1372
        %v1405 = vmul.f32 %v1213, %v1373
        %v1406 = vmul.f32 %v1214, %v1374
        %v1407 = vmul.f32 %v1215, %v1375
        %v1408 = vmul.f32 %v1216, %v1376
        %v1409 = vmul.f32 %v1217, %v1377
        %v1410 = vmul.f32 %v1218, %v1378
        %v1411 = vmul.f32 %v1219, %v1379
        %v1412 = vmul.f32 %v1220, %v1380
        %v1413 = vmul.f32 %v1221, %v1381
        %v1414 = vmul.f32 %v1222, %v1382
        %v1415 = vmul.f32 %v1223, %v1383
        %v1416 = vmul.f32 %v1224, %v1384
        %v1417 = vmul.f32 %v1225, %v1385
        %v1418 = vmul.f32 %v1226, %v1386
        %v1419 = vmul.f32 %v1227, %v1387
        %v1420 = vmul.f32 %v1228, %v1388
        %v1421 = vmul.f32 %v1229, %v1389
        %v1422 = vmul.f32 %v1230, %v1390
        %v1423 = vmul.f32 %v1231, %v1391
        %v1424 = vmul.f32 %v1232, %v1392
        %v1425 = vadd.f32 %v1393, %v1169
        %v1426 = vadd.f32 %v1394, %v1170
        %v1427 = vadd.f32 %v1395, %v1171
        %v1428 = vadd.f32 %v1396, %v1172
        %v1429 = vadd.f32 %v1397, %v1173
        %v1430 = vadd.f32 %v1398, %v1174
        %v1431 = vadd.f32 %v1399, %v1175
        %v1432 = vadd.f32 %v1400, %v1176
        %v1433 = vadd.f32 %v1401, %v1177
        %v1434 = vadd.f32 %v1402, %v1178
        %v1435 = vadd.f32 %v1403, %v1179
        %v1436 = vadd.f32 %v1404, %v1180
        %v1437 = vadd.f32 %v1405, %v1181
        %v1438 = vadd.f32 %v1406, %v1182
        %v1439 = vadd.f32 %v1407, %v1183
        %v1440 = vadd.f32 %v1408, %v1184
        %v1441 = vadd.f32 %v1409, %v1185
        %v1442 = vadd.f32 %v1410, %v1186
        %v1443 = vadd.f32 %v1411, %v1187
        %v1444 = vadd.f32 %v1412, %v1188
        %v1445 = vadd.f32 %v1413, %v1189
        %v1446 = vadd.f32 %v1414, %v1190
        %v1447 = vadd.f32 %v1415, %v1191
        %v1448 = vadd.f32 %v1416, %v1192
        %v1449 = vadd.f32 %v1417, %v1193
        %v1450 = vadd.f32 %v1418, %v1194
        %v1451 = vadd.f32 %v1419, %v1195
        %v1452 = vadd.f32 %v1420, %v1196
        %v1453 = vadd.f32 %v1421, %v1197
        %v1454 = vadd.f32 %v1422, %v1198
        %v1455 = vadd.f32 %v1423, %v1199
        %v1456 = vadd.f32 %v1424, %v1200
        %1457 = vset.pattern.permute.xlu0 1
        %1458 = vperm.xlu0 %1457, %v217
        %v1459 = vpop.permute.xlu0 %1458
        %1460 = vset.pattern.permute.xlu0 1
        %1461 = vperm.xlu0 %1460, %v218
        %v1462 = vpop.permute.xlu0 %1461
        %1463 = vset.pattern.permute.xlu0 1
        %1464 = vperm.xlu0 %1463, %v219
        %v1465 = vpop.permute.xlu0 %1464
        %1466 = vset.pattern.permute.xlu0 1
        %1467 = vperm.xlu0 %1466, %v220
        %v1468 = vpop.permute.xlu0 %1467
        %1469 = vset.pattern.permute.xlu0 1
        %1470 = vperm.xlu0 %1469, %v221
        %v1471 = vpop.permute.xlu0 %1470
        %1472 = vset.pattern.permute.xlu0 1
        %1473 = vperm.xlu0 %1472, %v222
        %v1474 = vpop.permute.xlu0 %1473
        %1475 = vset.pattern.permute.xlu0 1
        %1476 = vperm.xlu0 %1475, %v223
        %v1477 = vpop.permute.xlu0 %1476
        %1478 = vset.pattern.permute.xlu0 1
        %1479 = vperm.xlu0 %1478, %v224
        %v1480 = vpop.permute.xlu0 %1479
        %1481 = vset.pattern.permute.xlu0 1
        %1482 = vperm.xlu0 %1481, %v225
        %v1483 = vpop.permute.xlu0 %1482
        %1484 = vset.pattern.permute.xlu0 1
        %1485 = vperm.xlu0 %1484, %v226
        %v1486 = vpop.permute.xlu0 %1485
        %1487 = vset.pattern.permute.xlu0 1
        %1488 = vperm.xlu0 %1487, %v227
        %v1489 = vpop.permute.xlu0 %1488
        %1490 = vset.pattern.permute.xlu0 1
        %1491 = vperm.xlu0 %1490, %v228
        %v1492 = vpop.permute.xlu0 %1491
        %1493 = vset.pattern.permute.xlu0 1
        %1494 = vperm.xlu0 %1493, %v229
        %v1495 = vpop.permute.xlu0 %1494
        %1496 = vset.pattern.permute.xlu0 1
        %1497 = vperm.xlu0 %1496, %v230
        %v1498 = vpop.permute.xlu0 %1497
        %1499 = vset.pattern.permute.xlu0 1
        %1500 = vperm.xlu0 %1499, %v231
        %v1501 = vpop.permute.xlu0 %1500
        %1502 = vset.pattern.permute.xlu0 1
        %1503 = vperm.xlu0 %1502, %v232
        %v1504 = vpop.permute.xlu0 %1503
        %1505 = vset.pattern.permute.xlu0 1
        %1506 = vperm.xlu0 %1505, %v233
        %v1507 = vpop.permute.xlu0 %1506
        %1508 = vset.pattern.permute.xlu0 1
        %1509 = vperm.xlu0 %1508, %v234
        %v1510 = vpop.permute.xlu0 %1509
        %1511 = vset.pattern.permute.xlu0 1
        %1512 = vperm.xlu0 %1511, %v235
        %v1513 = vpop.permute.xlu0 %1512
        %1514 = vset.pattern.permute.xlu0 1
        %1515 = vperm.xlu0 %1514, %v236
        %v1516 = vpop.permute.xlu0 %1515
        %1517 = vset.pattern.permute.xlu0 1
        %1518 = vperm.xlu0 %1517, %v237
        %v1519 = vpop.permute.xlu0 %1518
        %1520 = vset.pattern.permute.xlu0 1
        %1521 = vperm.xlu0 %1520, %v238
        %v1522 = vpop.permute.xlu0 %1521
        %1523 = vset.pattern.permute.xlu0 1
        %1524 = vperm.xlu0 %1523, %v239
        %v1525 = vpop.permute.xlu0 %1524
        %1526 = vset.pattern.permute.xlu0 1
        %1527 = vperm.xlu0 %1526, %v240
        %v1528 = vpop.permute.xlu0 %1527
        %1529 = vset.pattern.permute.xlu0 1
        %1530 = vperm.xlu0 %1529, %v241
        %v1531 = vpop.permute.xlu0 %1530
        %1532 = vset.pattern.permute.xlu0 1
        %1533 = vperm.xlu0 %1532, %v242
        %v1534 = vpop.permute.xlu0 %1533
        %1535 = vset.pattern.permute.xlu0 1
        %1536 = vperm.xlu0 %1535, %v243
        %v1537 = vpop.permute.xlu0 %1536
        %1538 = vset.pattern.permute.xlu0 1
        %1539 = vperm.xlu0 %1538, %v244
        %v1540 = vpop.permute.xlu0 %1539
        %1541 = vset.pattern.permute.xlu0 1
        %1542 = vperm.xlu0 %1541, %v245
        %v1543 = vpop.permute.xlu0 %1542
        %1544 = vset.pattern.permute.xlu0 1
        %1545 = vperm.xlu0 %1544, %v246
        %v1546 = vpop.permute.xlu0 %1545
        %1547 = vset.pattern.permute.xlu0 1
        %1548 = vperm.xlu0 %1547, %v247
        %v1549 = vpop.permute.xlu0 %1548
        %1550 = vset.pattern.permute.xlu0 1
        %1551 = vperm.xlu0 %1550, %v248
        %v1552 = vpop.permute.xlu0 %1551
        %vm1553 = vcmp.eq.s32.totalorder %v216, %v1459
        %vm1554 = vcmp.eq.s32.totalorder %v216, %v1462
        %vm1555 = vcmp.eq.s32.totalorder %v216, %v1465
        %vm1556 = vcmp.eq.s32.totalorder %v216, %v1468
        %vm1557 = vcmp.eq.s32.totalorder %v216, %v1471
        %vm1558 = vcmp.eq.s32.totalorder %v216, %v1474
        %vm1559 = vcmp.eq.s32.totalorder %v216, %v1477
        %vm1560 = vcmp.eq.s32.totalorder %v216, %v1480
        %vm1561 = vcmp.eq.s32.totalorder %v216, %v1483
        %vm1562 = vcmp.eq.s32.totalorder %v216, %v1486
        %vm1563 = vcmp.eq.s32.totalorder %v216, %v1489
        %vm1564 = vcmp.eq.s32.totalorder %v216, %v1492
        %vm1565 = vcmp.eq.s32.totalorder %v216, %v1495
        %vm1566 = vcmp.eq.s32.totalorder %v216, %v1498
        %vm1567 = vcmp.eq.s32.totalorder %v216, %v1501
        %vm1568 = vcmp.eq.s32.totalorder %v216, %v1504
        %vm1569 = vcmp.eq.s32.totalorder %v216, %v1507
        %vm1570 = vcmp.eq.s32.totalorder %v216, %v1510
        %vm1571 = vcmp.eq.s32.totalorder %v216, %v1513
        %vm1572 = vcmp.eq.s32.totalorder %v216, %v1516
        %vm1573 = vcmp.eq.s32.totalorder %v216, %v1519
        %vm1574 = vcmp.eq.s32.totalorder %v216, %v1522
        %vm1575 = vcmp.eq.s32.totalorder %v216, %v1525
        %vm1576 = vcmp.eq.s32.totalorder %v216, %v1528
        %vm1577 = vcmp.eq.s32.totalorder %v216, %v1531
        %vm1578 = vcmp.eq.s32.totalorder %v216, %v1534
        %vm1579 = vcmp.eq.s32.totalorder %v216, %v1537
        %vm1580 = vcmp.eq.s32.totalorder %v216, %v1540
        %vm1581 = vcmp.eq.s32.totalorder %v216, %v1543
        %vm1582 = vcmp.eq.s32.totalorder %v216, %v1546
        %vm1583 = vcmp.eq.s32.totalorder %v216, %v1549
        %vm1584 = vcmp.eq.s32.totalorder %v216, %v1552
        %v1585 = vsel %vm1553, 1, 0
        %v1586 = vsel %vm1554, 1, 0
        %v1587 = vsel %vm1555, 1, 0
        %v1588 = vsel %vm1556, 1, 0
        %v1589 = vsel %vm1557, 1, 0
        %v1590 = vsel %vm1558, 1, 0
        %v1591 = vsel %vm1559, 1, 0
        %v1592 = vsel %vm1560, 1, 0
        %v1593 = vsel %vm1561, 1, 0
        %v1594 = vsel %vm1562, 1, 0
        %v1595 = vsel %vm1563, 1, 0
        %v1596 = vsel %vm1564, 1, 0
        %v1597 = vsel %vm1565, 1, 0
        %v1598 = vsel %vm1566, 1, 0
        %v1599 = vsel %vm1567, 1, 0
        %v1600 = vsel %vm1568, 1, 0
        %v1601 = vsel %vm1569, 1, 0
        %v1602 = vsel %vm1570, 1, 0
        %v1603 = vsel %vm1571, 1, 0
        %v1604 = vsel %vm1572, 1, 0
        %v1605 = vsel %vm1573, 1, 0
        %v1606 = vsel %vm1574, 1, 0
        %v1607 = vsel %vm1575, 1, 0
        %v1608 = vsel %vm1576, 1, 0
        %v1609 = vsel %vm1577, 1, 0
        %v1610 = vsel %vm1578, 1, 0
        %v1611 = vsel %vm1579, 1, 0
        %v1612 = vsel %vm1580, 1, 0
        %v1613 = vsel %vm1581, 1, 0
        %v1614 = vsel %vm1582, 1, 0
        %v1615 = vsel %vm1583, 1, 0
        %v1616 = vsel %vm1584, 1, 0
        %v1617 = vcvt.s32.f32 %v1585
        %v1618 = vcvt.s32.f32 %v1586
        %v1619 = vcvt.s32.f32 %v1587
        %v1620 = vcvt.s32.f32 %v1588
        %v1621 = vcvt.s32.f32 %v1589
        %v1622 = vcvt.s32.f32 %v1590
        %v1623 = vcvt.s32.f32 %v1591
        %v1624 = vcvt.s32.f32 %v1592
        %v1625 = vcvt.s32.f32 %v1593
        %v1626 = vcvt.s32.f32 %v1594
        %v1627 = vcvt.s32.f32 %v1595
        %v1628 = vcvt.s32.f32 %v1596
        %v1629 = vcvt.s32.f32 %v1597
        %v1630 = vcvt.s32.f32 %v1598
        %v1631 = vcvt.s32.f32 %v1599
        %v1632 = vcvt.s32.f32 %v1600
        %v1633 = vcvt.s32.f32 %v1601
        %v1634 = vcvt.s32.f32 %v1602
        %v1635 = vcvt.s32.f32 %v1603
        %v1636 = vcvt.s32.f32 %v1604
        %v1637 = vcvt.s32.f32 %v1605
        %v1638 = vcvt.s32.f32 %v1606
        %v1639 = vcvt.s32.f32 %v1607
        %v1640 = vcvt.s32.f32 %v1608
        %v1641 = vcvt.s32.f32 %v1609
        %v1642 = vcvt.s32.f32 %v1610
        %v1643 = vcvt.s32.f32 %v1611
        %v1644 = vcvt.s32.f32 %v1612
        %v1645 = vcvt.s32.f32 %v1613
        %v1646 = vcvt.s32.f32 %v1614
        %v1647 = vcvt.s32.f32 %v1615
        %v1648 = vcvt.s32.f32 %v1616
        %v1649 = vpack.c.bf16 %v1618, %v1617
        %v1650 = vpack.c.bf16 %v1620, %v1619
        %v1651 = vpack.c.bf16 %v1622, %v1621
        %v1652 = vpack.c.bf16 %v1624, %v1623
        %v1653 = vpack.c.bf16 %v1626, %v1625
        %v1654 = vpack.c.bf16 %v1628, %v1627
        %v1655 = vpack.c.bf16 %v1630, %v1629
        %v1656 = vpack.c.bf16 %v1632, %v1631
        %v1657 = vpack.c.bf16 %v1634, %v1633
        %v1658 = vpack.c.bf16 %v1636, %v1635
        %v1659 = vpack.c.bf16 %v1638, %v1637
        %v1660 = vpack.c.bf16 %v1640, %v1639
        %v1661 = vpack.c.bf16 %v1642, %v1641
        %v1662 = vpack.c.bf16 %v1644, %v1643
        %v1663 = vpack.c.bf16 %v1646, %v1645
        %v1664 = vpack.c.bf16 %v1648, %v1647
        %v1665 = vld [vmem:[%s2] sm:$0xf]
        %v1666 = vld [vmem:[%s2 + $0x4] sm:$0xf]
        %v1667 = vld [vmem:[%s2 + $0x8] sm:$0xf]
        %v1668 = vld [vmem:[%s2 + $0xc] sm:$0xf]
        %v1669 = vld [vmem:[%s2 + $0x10] sm:$0xf]
        %v1670 = vld [vmem:[%s2 + $0x14] sm:$0xf]
        %v1671 = vld [vmem:[%s2 + $0x18] sm:$0xf]
        %v1672 = vld [vmem:[%s2 + $0x1c] sm:$0xf]
        %v1673 = vld [vmem:[%s2 + $0x20] sm:$0xf]
        %v1674 = vld [vmem:[%s2 + $0x24] sm:$0xf]
        %v1675 = vld [vmem:[%s2 + $0x28] sm:$0xf]
        %v1676 = vld [vmem:[%s2 + $0x2c] sm:$0xf]
        %v1677 = vld [vmem:[%s2 + $0x30] sm:$0xf]
        %v1678 = vld [vmem:[%s2 + $0x34] sm:$0xf]
        %v1679 = vld [vmem:[%s2 + $0x38] sm:$0xf]
        %v1680 = vld [vmem:[%s2 + $0x3c] sm:$0xf]
        %s1681 = scalar_lea.vmem %s2, 64
        %v1682 = vld [vmem:[%s1681] sm:$0xf]
        %v1683 = vld [vmem:[%s1681 + $0x4] sm:$0xf]
        %v1684 = vld [vmem:[%s1681 + $0x8] sm:$0xf]
        %v1685 = vld [vmem:[%s1681 + $0xc] sm:$0xf]
        %v1686 = vld [vmem:[%s1681 + $0x10] sm:$0xf]
        %v1687 = vld [vmem:[%s1681 + $0x14] sm:$0xf]
        %v1688 = vld [vmem:[%s1681 + $0x18] sm:$0xf]
        %v1689 = vld [vmem:[%s1681 + $0x1c] sm:$0xf]
        %v1690 = vld [vmem:[%s1681 + $0x20] sm:$0xf]
        %v1691 = vld [vmem:[%s1681 + $0x24] sm:$0xf]
        %v1692 = vld [vmem:[%s1681 + $0x28] sm:$0xf]
        %v1693 = vld [vmem:[%s1681 + $0x2c] sm:$0xf]
        %v1694 = vld [vmem:[%s1681 + $0x30] sm:$0xf]
        %v1695 = vld [vmem:[%s1681 + $0x34] sm:$0xf]
        %v1696 = vld [vmem:[%s1681 + $0x38] sm:$0xf]
        %v1697 = vld [vmem:[%s1681 + $0x3c] sm:$0xf]
        %v1714 = vunpack.c.l.b16 %v1682
        %v1715 = vunpack.c.l.b16 %v1683
        %v1716 = vunpack.c.l.b16 %v1684
        %v1717 = vunpack.c.l.b16 %v1685
        %v1718 = vunpack.c.l.b16 %v1686
        %v1719 = vunpack.c.l.b16 %v1687
        %v1720 = vunpack.c.l.b16 %v1688
        %v1721 = vunpack.c.l.b16 %v1689
        %v1722 = vunpack.c.l.b16 %v1690
        %v1723 = vunpack.c.l.b16 %v1691
        %v1724 = vunpack.c.l.b16 %v1692
        %v1725 = vunpack.c.l.b16 %v1693
        %v1726 = vunpack.c.l.b16 %v1694
        %v1727 = vunpack.c.l.b16 %v1695
        %v1728 = vunpack.c.l.b16 %v1696
        %v1729 = vunpack.c.l.b16 %v1697
        %v1730 = vpack.c.b16 %v1715, %v1714
        %v1731 = vpack.c.b16 %v1717, %v1716
        %v1732 = vpack.c.b16 %v1719, %v1718
        %v1733 = vpack.c.b16 %v1721, %v1720
        %v1734 = vpack.c.b16 %v1723, %v1722
        %v1735 = vpack.c.b16 %v1725, %v1724
        %v1736 = vpack.c.b16 %v1727, %v1726
        %v1737 = vpack.c.b16 %v1729, %v1728
        %1746 = vmatprep.subr.bf16.mxu0 0
        %1747 = vmatpush1.bf16.msra.mxu0 %v1730
        %1748 = vmatprep.subr.bf16.mxu0 0
        %1749 = vmatpush1.bf16.msra.mxu0 %v1731
        %1750 = vmatprep.subr.bf16.mxu0 0
        %1751 = vmatpush1.bf16.msra.mxu0 %v1732
        %1752 = vmatprep.subr.bf16.mxu0 0
        %1753 = vmatpush1.bf16.msra.mxu0 %v1733
        %1754 = vmatprep.subr.bf16.mxu0 0
        %1755 = vmatpush1.bf16.msra.mxu0 %v1734
        %1756 = vmatprep.subr.bf16.mxu0 0
        %1757 = vmatpush1.bf16.msra.mxu0 %v1735
        %1758 = vmatprep.subr.bf16.mxu0 0
        %1759 = vmatpush1.bf16.msra.mxu0 %v1736
        %1760 = vmatprep.subr.bf16.mxu0 0
        %1761 = vmatpush1.bf16.msra.mxu0 %v1737
        %1762 = vmatprep.subr.bf16.mxu0 0
        %1763 = vmatpush1.bf16.msra.mxu0 0
        %1764 = vmatprep.subr.bf16.mxu0 0
        %1765 = vmatpush1.bf16.msra.mxu0 0
        %1766 = vmatprep.subr.bf16.mxu0 0
        %1767 = vmatpush1.bf16.msra.mxu0 0
        %1768 = vmatprep.subr.bf16.mxu0 0
        %1769 = vmatpush1.bf16.msra.mxu0 0
        %1770 = vmatprep.subr.bf16.mxu0 0
        %1771 = vmatpush1.bf16.msra.mxu0 0
        %1772 = vmatprep.subr.bf16.mxu0 0
        %1773 = vmatpush1.bf16.msra.mxu0 0
        %1774 = vmatprep.subr.bf16.mxu0 0
        %1775 = vmatpush1.bf16.msra.mxu0 0
        %1776 = vmatprep.subr.bf16.mxu0 0
        %1777 = vmatpush1.bf16.msra.mxu0 0
        %1778 = vmatprep.mubr.bf16.mxu0 0
        %1779 = vmatmul.mubr.bf16.gmra.mrb[0].mxu0 %v1649
        %v1780 = vpop.f32.mrb[0].mxu0
        %v1781 = vadd.f32 0.0, %v1780
        %v1782 = vpop.f32.mrb[0].mxu0
        %v1783 = vpop.f32.mrb[0].mxu0
        %v1784 = vadd.f32 0.0, %v1783
        %v1785 = vpop.f32.mrb[0].mxu0
        %1786 = vmatprep.mubr.bf16.mxu0 0
        %1787 = vmatmul.mubr.bf16.gmra.mrb[0].mxu0 %v1650
        %v1788 = vpop.f32.mrb[0].mxu0
        %v1789 = vadd.f32 0.0, %v1788
        %v1790 = vpop.f32.mrb[0].mxu0
        %v1791 = vpop.f32.mrb[0].mxu0
        %v1792 = vadd.f32 0.0, %v1791
        %v1793 = vpop.f32.mrb[0].mxu0
        %1794 = vmatprep.mubr.bf16.mxu0 0
        %1795 = vmatmul.mubr.bf16.gmra.mrb[0].mxu0 %v1651
        %v1796 = vpop.f32.mrb[0].mxu0
        %v1797 = vadd.f32 0.0, %v1796
        %v1798 = vpop.f32.mrb[0].mxu0
        %v1799 = vpop.f32.mrb[0].mxu0
        %v1800 = vadd.f32 0.0, %v1799
        %v1801 = vpop.f32.mrb[0].mxu0
        %1802 = vmatprep.mubr.bf16.mxu0 0
        %1803 = vmatmul.mubr.bf16.gmra.mrb[0].mxu0 %v1652
        %v1804 = vpop.f32.mrb[0].mxu0
        %v1805 = vadd.f32 0.0, %v1804
        %v1806 = vpop.f32.mrb[0].mxu0
        %v1807 = vpop.f32.mrb[0].mxu0
        %v1808 = vadd.f32 0.0, %v1807
        %v1809 = vpop.f32.mrb[0].mxu0
        %1810 = vmatprep.mubr.bf16.mxu0 0
        %1811 = vmatmul.mubr.bf16.gmra.mrb[0].mxu0 %v1653
        %v1812 = vpop.f32.mrb[0].mxu0
        %v1813 = vadd.f32 0.0, %v1812
        %v1814 = vpop.f32.mrb[0].mxu0
        %v1815 = vpop.f32.mrb[0].mxu0
        %v1816 = vadd.f32 0.0, %v1815
        %v1817 = vpop.f32.mrb[0].mxu0
        %1818 = vmatprep.mubr.bf16.mxu0 0
        %1819 = vmatmul.mubr.bf16.gmra.mrb[0].mxu0 %v1654
        %v1820 = vpop.f32.mrb[0].mxu0
        %v1821 = vadd.f32 0.0, %v1820
        %v1822 = vpop.f32.mrb[0].mxu0
        %v1823 = vpop.f32.mrb[0].mxu0
        %v1824 = vadd.f32 0.0, %v1823
        %v1825 = vpop.f32.mrb[0].mxu0
        %1826 = vmatprep.mubr.bf16.mxu0 0
        %1827 = vmatmul.mubr.bf16.gmra.mrb[0].mxu0 %v1655
        %v1828 = vpop.f32.mrb[0].mxu0
        %v1829 = vadd.f32 0.0, %v1828
        %v1830 = vpop.f32.mrb[0].mxu0
        %v1831 = vpop.f32.mrb[0].mxu0
        %v1832 = vadd.f32 0.0, %v1831
        %v1833 = vpop.f32.mrb[0].mxu0
        %1834 = vmatprep.mubr.bf16.mxu0 0
        %1835 = vmatmul.mubr.bf16.gmra.mrb[0].mxu0 %v1656
        %v1836 = vpop.f32.mrb[0].mxu0
        %v1837 = vadd.f32 0.0, %v1836
        %v1838 = vpop.f32.mrb[0].mxu0
        %v1839 = vpop.f32.mrb[0].mxu0
        %v1840 = vadd.f32 0.0, %v1839
        %v1841 = vpop.f32.mrb[0].mxu0
        %1842 = vmatprep.mubr.bf16.mxu0 0
        %1843 = vmatmul.mubr.bf16.gmra.mrb[0].mxu0 %v1657
        %v1844 = vpop.f32.mrb[0].mxu0
        %v1845 = vadd.f32 0.0, %v1844
        %v1846 = vpop.f32.mrb[0].mxu0
        %v1847 = vpop.f32.mrb[0].mxu0
        %v1848 = vadd.f32 0.0, %v1847
        %v1849 = vpop.f32.mrb[0].mxu0
        %1850 = vmatprep.mubr.bf16.mxu0 0
        %1851 = vmatmul.mubr.bf16.gmra.mrb[0].mxu0 %v1658
        %v1852 = vpop.f32.mrb[0].mxu0
        %v1853 = vadd.f32 0.0, %v1852
        %v1854 = vpop.f32.mrb[0].mxu0
        %v1855 = vpop.f32.mrb[0].mxu0
        %v1856 = vadd.f32 0.0, %v1855
        %v1857 = vpop.f32.mrb[0].mxu0
        %1858 = vmatprep.mubr.bf16.mxu0 0
        %1859 = vmatmul.mubr.bf16.gmra.mrb[0].mxu0 %v1659
        %v1860 = vpop.f32.mrb[0].mxu0
        %v1861 = vadd.f32 0.0, %v1860
        %v1862 = vpop.f32.mrb[0].mxu0
        %v1863 = vpop.f32.mrb[0].mxu0
        %v1864 = vadd.f32 0.0, %v1863
        %v1865 = vpop.f32.mrb[0].mxu0
        %1866 = vmatprep.mubr.bf16.mxu0 0
        %1867 = vmatmul.mubr.bf16.gmra.mrb[0].mxu0 %v1660
        %v1868 = vpop.f32.mrb[0].mxu0
        %v1869 = vadd.f32 0.0, %v1868
        %v1870 = vpop.f32.mrb[0].mxu0
        %v1871 = vpop.f32.mrb[0].mxu0
        %v1872 = vadd.f32 0.0, %v1871
        %v1873 = vpop.f32.mrb[0].mxu0
        %1874 = vmatprep.mubr.bf16.mxu0 0
        %1875 = vmatmul.mubr.bf16.gmra.mrb[0].mxu0 %v1661
        %v1876 = vpop.f32.mrb[0].mxu0
        %v1877 = vadd.f32 0.0, %v1876
        %v1878 = vpop.f32.mrb[0].mxu0
        %v1879 = vpop.f32.mrb[0].mxu0
        %v1880 = vadd.f32 0.0, %v1879
        %v1881 = vpop.f32.mrb[0].mxu0
        %1882 = vmatprep.mubr.bf16.mxu0 0
        %1883 = vmatmul.mubr.bf16.gmra.mrb[0].mxu0 %v1662
        %v1884 = vpop.f32.mrb[0].mxu0
        %v1885 = vadd.f32 0.0, %v1884
        %v1886 = vpop.f32.mrb[0].mxu0
        %v1887 = vpop.f32.mrb[0].mxu0
        %v1888 = vadd.f32 0.0, %v1887
        %v1889 = vpop.f32.mrb[0].mxu0
        %1890 = vmatprep.mubr.bf16.mxu0 0
        %1891 = vmatmul.mubr.bf16.gmra.mrb[0].mxu0 %v1663
        %v1892 = vpop.f32.mrb[0].mxu0
        %v1893 = vadd.f32 0.0, %v1892
        %v1894 = vpop.f32.mrb[0].mxu0
        %v1895 = vpop.f32.mrb[0].mxu0
        %v1896 = vadd.f32 0.0, %v1895
        %v1897 = vpop.f32.mrb[0].mxu0
        %1898 = vmatprep.mubr.bf16.mxu0 0
        %1899 = vmatmul.mubr.bf16.gmra.mrb[0].mxu0 %v1664
        %v1900 = vpop.f32.mrb[0].mxu0
        %v1901 = vadd.f32 0.0, %v1900
        %v1902 = vpop.f32.mrb[0].mxu0
        %v1903 = vpop.f32.mrb[0].mxu0
        %v1904 = vadd.f32 0.0, %v1903
        %v1905 = vpop.f32.mrb[0].mxu0
        %1906 = vdwg.mxu0
        %v1923 = vunpack.c.l.b16 %v1665
        %v1924 = vunpack.c.l.b16 %v1666
        %v1925 = vunpack.c.l.b16 %v1667
        %v1926 = vunpack.c.l.b16 %v1668
        %v1927 = vunpack.c.l.b16 %v1669
        %v1928 = vunpack.c.l.b16 %v1670
        %v1929 = vunpack.c.l.b16 %v1671
        %v1930 = vunpack.c.l.b16 %v1672
        %v1931 = vunpack.c.l.b16 %v1673
        %v1932 = vunpack.c.l.b16 %v1674
        %v1933 = vunpack.c.l.b16 %v1675
        %v1934 = vunpack.c.l.b16 %v1676
        %v1935 = vunpack.c.l.b16 %v1677
        %v1936 = vunpack.c.l.b16 %v1678
        %v1937 = vunpack.c.l.b16 %v1679
        %v1938 = vunpack.c.l.b16 %v1680
        %v1939 = vpack.c.b16 %v1924, %v1923
        %v1940 = vpack.c.b16 %v1926, %v1925
        %v1941 = vpack.c.b16 %v1928, %v1927
        %v1942 = vpack.c.b16 %v1930, %v1929
        %v1943 = vpack.c.b16 %v1932, %v1931
        %v1944 = vpack.c.b16 %v1934, %v1933
        %v1945 = vpack.c.b16 %v1936, %v1935
        %v1946 = vpack.c.b16 %v1938, %v1937
        %1955 = vmatprep.subr.bf16.mxu0 0
        %1956 = vmatpush1.bf16.msra.mxu0 %v1939
        %1957 = vmatprep.subr.bf16.mxu0 0
        %1958 = vmatpush1.bf16.msra.mxu0 %v1940
        %1959 = vmatprep.subr.bf16.mxu0 0
        %1960 = vmatpush1.bf16.msra.mxu0 %v1941
        %1961 = vmatprep.subr.bf16.mxu0 0
        %1962 = vmatpush1.bf16.msra.mxu0 %v1942
        %1963 = vmatprep.subr.bf16.mxu0 0
        %1964 = vmatpush1.bf16.msra.mxu0 %v1943
        %1965 = vmatprep.subr.bf16.mxu0 0
        %1966 = vmatpush1.bf16.msra.mxu0 %v1944
        %1967 = vmatprep.subr.bf16.mxu0 0
        %1968 = vmatpush1.bf16.msra.mxu0 %v1945
        %1969 = vmatprep.subr.bf16.mxu0 0
        %1970 = vmatpush1.bf16.msra.mxu0 %v1946
        %1971 = vmatprep.subr.bf16.mxu0 0
        %1972 = vmatpush1.bf16.msra.mxu0 0
        %1973 = vmatprep.subr.bf16.mxu0 0
        %1974 = vmatpush1.bf16.msra.mxu0 0
        %1975 = vmatprep.subr.bf16.mxu0 0
        %1976 = vmatpush1.bf16.msra.mxu0 0
        %1977 = vmatprep.subr.bf16.mxu0 0
        %1978 = vmatpush1.bf16.msra.mxu0 0
        %1979 = vmatprep.subr.bf16.mxu0 0
        %1980 = vmatpush1.bf16.msra.mxu0 0
        %1981 = vmatprep.subr.bf16.mxu0 0
        %1982 = vmatpush1.bf16.msra.mxu0 0
        %1983 = vmatprep.subr.bf16.mxu0 0
        %1984 = vmatpush1.bf16.msra.mxu0 0
        %1985 = vmatprep.subr.bf16.mxu0 0
        %1986 = vmatpush1.bf16.msra.mxu0 0
        %1987 = vmatprep.mubr.bf16.mxu0 0
        %1988 = vmatmul.mubr.bf16.gmra.mrb[0].mxu0 %v1649
        %v1989 = vpop.f32.mrb[0].mxu0
        %v1990 = vadd.f32 %v1781, %v1989
        %v1991 = vpop.f32.mrb[0].mxu0
        %v1992 = vpop.f32.mrb[0].mxu0
        %v1993 = vadd.f32 %v1784, %v1992
        %v1994 = vpop.f32.mrb[0].mxu0
        %1995 = vmatprep.mubr.bf16.mxu0 0
        %1996 = vmatmul.mubr.bf16.gmra.mrb[0].mxu0 %v1650
        %v1997 = vpop.f32.mrb[0].mxu0
        %v1998 = vadd.f32 %v1789, %v1997
        %v1999 = vpop.f32.mrb[0].mxu0
        %v2000 = vpop.f32.mrb[0].mxu0
        %v2001 = vadd.f32 %v1792, %v2000
        %v2002 = vpop.f32.mrb[0].mxu0
        %2003 = vmatprep.mubr.bf16.mxu0 0
        %2004 = vmatmul.mubr.bf16.gmra.mrb[0].mxu0 %v1651
        %v2005 = vpop.f32.mrb[0].mxu0
        %v2006 = vadd.f32 %v1797, %v2005
        %v2007 = vpop.f32.mrb[0].mxu0
        %v2008 = vpop.f32.mrb[0].mxu0
        %v2009 = vadd.f32 %v1800, %v2008
        %v2010 = vpop.f32.mrb[0].mxu0
        %2011 = vmatprep.mubr.bf16.mxu0 0
        %2012 = vmatmul.mubr.bf16.gmra.mrb[0].mxu0 %v1652
        %v2013 = vpop.f32.mrb[0].mxu0
        %v2014 = vadd.f32 %v1805, %v2013
        %v2015 = vpop.f32.mrb[0].mxu0
        %v2016 = vpop.f32.mrb[0].mxu0
        %v2017 = vadd.f32 %v1808, %v2016
        %v2018 = vpop.f32.mrb[0].mxu0
        %2019 = vmatprep.mubr.bf16.mxu0 0
        %2020 = vmatmul.mubr.bf16.gmra.mrb[0].mxu0 %v1653
        %v2021 = vpop.f32.mrb[0].mxu0
        %v2022 = vadd.f32 %v1813, %v2021
        %v2023 = vpop.f32.mrb[0].mxu0
        %v2024 = vpop.f32.mrb[0].mxu0
        %v2025 = vadd.f32 %v1816, %v2024
        %v2026 = vpop.f32.mrb[0].mxu0
        %2027 = vmatprep.mubr.bf16.mxu0 0
        %2028 = vmatmul.mubr.bf16.gmra.mrb[0].mxu0 %v1654
        %v2029 = vpop.f32.mrb[0].mxu0
        %v2030 = vadd.f32 %v1821, %v2029
        %v2031 = vpop.f32.mrb[0].mxu0
        %v2032 = vpop.f32.mrb[0].mxu0
        %v2033 = vadd.f32 %v1824, %v2032
        %v2034 = vpop.f32.mrb[0].mxu0
        %2035 = vmatprep.mubr.bf16.mxu0 0
        %2036 = vmatmul.mubr.bf16.gmra.mrb[0].mxu0 %v1655
        %v2037 = vpop.f32.mrb[0].mxu0
        %v2038 = vadd.f32 %v1829, %v2037
        %v2039 = vpop.f32.mrb[0].mxu0
        %v2040 = vpop.f32.mrb[0].mxu0
        %v2041 = vadd.f32 %v1832, %v2040
        %v2042 = vpop.f32.mrb[0].mxu0
        %2043 = vmatprep.mubr.bf16.mxu0 0
        %2044 = vmatmul.mubr.bf16.gmra.mrb[0].mxu0 %v1656
        %v2045 = vpop.f32.mrb[0].mxu0
        %v2046 = vadd.f32 %v1837, %v2045
        %v2047 = vpop.f32.mrb[0].mxu0
        %v2048 = vpop.f32.mrb[0].mxu0
        %v2049 = vadd.f32 %v1840, %v2048
        %v2050 = vpop.f32.mrb[0].mxu0
        %2051 = vmatprep.mubr.bf16.mxu0 0
        %2052 = vmatmul.mubr.bf16.gmra.mrb[0].mxu0 %v1657
        %v2053 = vpop.f32.mrb[0].mxu0
        %v2054 = vadd.f32 %v1845, %v2053
        %v2055 = vpop.f32.mrb[0].mxu0
        %v2056 = vpop.f32.mrb[0].mxu0
        %v2057 = vadd.f32 %v1848, %v2056
        %v2058 = vpop.f32.mrb[0].mxu0
        %2059 = vmatprep.mubr.bf16.mxu0 0
        %2060 = vmatmul.mubr.bf16.gmra.mrb[0].mxu0 %v1658
        %v2061 = vpop.f32.mrb[0].mxu0
        %v2062 = vadd.f32 %v1853, %v2061
        %v2063 = vpop.f32.mrb[0].mxu0
        %v2064 = vpop.f32.mrb[0].mxu0
        %v2065 = vadd.f32 %v1856, %v2064
        %v2066 = vpop.f32.mrb[0].mxu0
        %2067 = vmatprep.mubr.bf16.mxu0 0
        %2068 = vmatmul.mubr.bf16.gmra.mrb[0].mxu0 %v1659
        %v2069 = vpop.f32.mrb[0].mxu0
        %v2070 = vadd.f32 %v1861, %v2069
        %v2071 = vpop.f32.mrb[0].mxu0
        %v2072 = vpop.f32.mrb[0].mxu0
        %v2073 = vadd.f32 %v1864, %v2072
        %v2074 = vpop.f32.mrb[0].mxu0
        %2075 = vmatprep.mubr.bf16.mxu0 0
        %2076 = vmatmul.mubr.bf16.gmra.mrb[0].mxu0 %v1660
        %v2077 = vpop.f32.mrb[0].mxu0
        %v2078 = vadd.f32 %v1869, %v2077
        %v2079 = vpop.f32.mrb[0].mxu0
        %v2080 = vpop.f32.mrb[0].mxu0
        %v2081 = vadd.f32 %v1872, %v2080
        %v2082 = vpop.f32.mrb[0].mxu0
        %2083 = vmatprep.mubr.bf16.mxu0 0
        %2084 = vmatmul.mubr.bf16.gmra.mrb[0].mxu0 %v1661
        %v2085 = vpop.f32.mrb[0].mxu0
        %v2086 = vadd.f32 %v1877, %v2085
        %v2087 = vpop.f32.mrb[0].mxu0
        %v2088 = vpop.f32.mrb[0].mxu0
        %v2089 = vadd.f32 %v1880, %v2088
        %v2090 = vpop.f32.mrb[0].mxu0
        %2091 = vmatprep.mubr.bf16.mxu0 0
        %2092 = vmatmul.mubr.bf16.gmra.mrb[0].mxu0 %v1662
        %v2093 = vpop.f32.mrb[0].mxu0
        %v2094 = vadd.f32 %v1885, %v2093
        %v2095 = vpop.f32.mrb[0].mxu0
        %v2096 = vpop.f32.mrb[0].mxu0
        %v2097 = vadd.f32 %v1888, %v2096
        %v2098 = vpop.f32.mrb[0].mxu0
        %2099 = vmatprep.mubr.bf16.mxu0 0
        %2100 = vmatmul.mubr.bf16.gmra.mrb[0].mxu0 %v1663
        %v2101 = vpop.f32.mrb[0].mxu0
        %v2102 = vadd.f32 %v1893, %v2101
        %v2103 = vpop.f32.mrb[0].mxu0
        %v2104 = vpop.f32.mrb[0].mxu0
        %v2105 = vadd.f32 %v1896, %v2104
        %v2106 = vpop.f32.mrb[0].mxu0
        %2107 = vmatprep.mubr.bf16.mxu0 0
        %2108 = vmatmul.mubr.bf16.gmra.mrb[0].mxu0 %v1664
        %v2109 = vpop.f32.mrb[0].mxu0
        %v2110 = vadd.f32 %v1901, %v2109
        %v2111 = vpop.f32.mrb[0].mxu0
        %v2112 = vpop.f32.mrb[0].mxu0
        %v2113 = vadd.f32 %v1904, %v2112
        %v2114 = vpop.f32.mrb[0].mxu0
        %2115 = vdwg.mxu0
        %s2116 = scalar_lea.vmem %s2, 128
        %v2117 = vld [vmem:[%s2116] sm:$0xf]
        %v2118 = vld [vmem:[%s2116 + $0x4] sm:$0xf]
        %v2119 = vld [vmem:[%s2116 + $0x8] sm:$0xf]
        %v2120 = vld [vmem:[%s2116 + $0xc] sm:$0xf]
        %v2121 = vld [vmem:[%s2116 + $0x10] sm:$0xf]
        %v2122 = vld [vmem:[%s2116 + $0x14] sm:$0xf]
        %v2123 = vld [vmem:[%s2116 + $0x18] sm:$0xf]
        %v2124 = vld [vmem:[%s2116 + $0x1c] sm:$0xf]
        %v2125 = vld [vmem:[%s2116 + $0x20] sm:$0xf]
        %v2126 = vld [vmem:[%s2116 + $0x24] sm:$0xf]
        %v2127 = vld [vmem:[%s2116 + $0x28] sm:$0xf]
        %v2128 = vld [vmem:[%s2116 + $0x2c] sm:$0xf]
        %v2129 = vld [vmem:[%s2116 + $0x30] sm:$0xf]
        %v2130 = vld [vmem:[%s2116 + $0x34] sm:$0xf]
        %v2131 = vld [vmem:[%s2116 + $0x38] sm:$0xf]
        %v2132 = vld [vmem:[%s2116 + $0x3c] sm:$0xf]
        %v2149 = vunpack.c.l.b16 %v2117
        %v2150 = vunpack.c.l.b16 %v2118
        %v2151 = vunpack.c.l.b16 %v2119
        %v2152 = vunpack.c.l.b16 %v2120
        %v2153 = vunpack.c.l.b16 %v2121
        %v2154 = vunpack.c.l.b16 %v2122
        %v2155 = vunpack.c.l.b16 %v2123
        %v2156 = vunpack.c.l.b16 %v2124
        %v2157 = vunpack.c.l.b16 %v2125
        %v2158 = vunpack.c.l.b16 %v2126
        %v2159 = vunpack.c.l.b16 %v2127
        %v2160 = vunpack.c.l.b16 %v2128
        %v2161 = vunpack.c.l.b16 %v2129
        %v2162 = vunpack.c.l.b16 %v2130
        %v2163 = vunpack.c.l.b16 %v2131
        %v2164 = vunpack.c.l.b16 %v2132
        %v2165 = vpack.c.b16 %v2150, %v2149
        %v2166 = vpack.c.b16 %v2152, %v2151
        %v2167 = vpack.c.b16 %v2154, %v2153
        %v2168 = vpack.c.b16 %v2156, %v2155
        %v2169 = vpack.c.b16 %v2158, %v2157
        %v2170 = vpack.c.b16 %v2160, %v2159
        %v2171 = vpack.c.b16 %v2162, %v2161
        %v2172 = vpack.c.b16 %v2164, %v2163
        %2181 = vmatprep.subr.bf16.mxu0 0
        %2182 = vmatpush1.bf16.msra.mxu0 %v2165
        %2183 = vmatprep.subr.bf16.mxu0 0
        %2184 = vmatpush1.bf16.msra.mxu0 %v2166
        %2185 = vmatprep.subr.bf16.mxu0 0
        %2186 = vmatpush1.bf16.msra.mxu0 %v2167
        %2187 = vmatprep.subr.bf16.mxu0 0
        %2188 = vmatpush1.bf16.msra.mxu0 %v2168
        %2189 = vmatprep.subr.bf16.mxu0 0
        %2190 = vmatpush1.bf16.msra.mxu0 %v2169
        %2191 = vmatprep.subr.bf16.mxu0 0
        %2192 = vmatpush1.bf16.msra.mxu0 %v2170
        %2193 = vmatprep.subr.bf16.mxu0 0
        %2194 = vmatpush1.bf16.msra.mxu0 %v2171
        %2195 = vmatprep.subr.bf16.mxu0 0
        %2196 = vmatpush1.bf16.msra.mxu0 %v2172
        %2197 = vmatprep.subr.bf16.mxu0 0
        %2198 = vmatpush1.bf16.msra.mxu0 0
        %2199 = vmatprep.subr.bf16.mxu0 0
        %2200 = vmatpush1.bf16.msra.mxu0 0
        %2201 = vmatprep.subr.bf16.mxu0 0
        %2202 = vmatpush1.bf16.msra.mxu0 0
        %2203 = vmatprep.subr.bf16.mxu0 0
        %2204 = vmatpush1.bf16.msra.mxu0 0
        %2205 = vmatprep.subr.bf16.mxu0 0
        %2206 = vmatpush1.bf16.msra.mxu0 0
        %2207 = vmatprep.subr.bf16.mxu0 0
        %2208 = vmatpush1.bf16.msra.mxu0 0
        %2209 = vmatprep.subr.bf16.mxu0 0
        %2210 = vmatpush1.bf16.msra.mxu0 0
        %2211 = vmatprep.subr.bf16.mxu0 0
        %2212 = vmatpush1.bf16.msra.mxu0 0
        %2213 = vmatprep.mubr.bf16.mxu0 0
        %2214 = vmatmul.mubr.bf16.gmra.mrb[0].mxu0 %v1649
        %v2215 = vpop.f32.mrb[0].mxu0
        %v2216 = vadd.f32 0.0, %v2215
        %v2217 = vpop.f32.mrb[0].mxu0
        %v2218 = vpop.f32.mrb[0].mxu0
        %v2219 = vadd.f32 0.0, %v2218
        %v2220 = vpop.f32.mrb[0].mxu0
        %2221 = vmatprep.mubr.bf16.mxu0 0
        %2222 = vmatmul.mubr.bf16.gmra.mrb[0].mxu0 %v1650
        %v2223 = vpop.f32.mrb[0].mxu0
        %v2224 = vadd.f32 0.0, %v2223
        %v2225 = vpop.f32.mrb[0].mxu0
        %v2226 = vpop.f32.mrb[0].mxu0
        %v2227 = vadd.f32 0.0, %v2226
        %v2228 = vpop.f32.mrb[0].mxu0
        %2229 = vmatprep.mubr.bf16.mxu0 0
        %2230 = vmatmul.mubr.bf16.gmra.mrb[0].mxu0 %v1651
        %v2231 = vpop.f32.mrb[0].mxu0
        %v2232 = vadd.f32 0.0, %v2231
        %v2233 = vpop.f32.mrb[0].mxu0
        %v2234 = vpop.f32.mrb[0].mxu0
        %v2235 = vadd.f32 0.0, %v2234
        %v2236 = vpop.f32.mrb[0].mxu0
        %2237 = vmatprep.mubr.bf16.mxu0 0
        %2238 = vmatmul.mubr.bf16.gmra.mrb[0].mxu0 %v1652
        %v2239 = vpop.f32.mrb[0].mxu0
        %v2240 = vadd.f32 0.0, %v2239
        %v2241 = vpop.f32.mrb[0].mxu0
        %v2242 = vpop.f32.mrb[0].mxu0
        %v2243 = vadd.f32 0.0, %v2242
        %v2244 = vpop.f32.mrb[0].mxu0
        %2245 = vmatprep.mubr.bf16.mxu0 0
        %2246 = vmatmul.mubr.bf16.gmra.mrb[0].mxu0 %v1653
        %v2247 = vpop.f32.mrb[0].mxu0
        %v2248 = vadd.f32 0.0, %v2247
        %v2249 = vpop.f32.mrb[0].mxu0
        %v2250 = vpop.f32.mrb[0].mxu0
        %v2251 = vadd.f32 0.0, %v2250
        %v2252 = vpop.f32.mrb[0].mxu0
        %2253 = vmatprep.mubr.bf16.mxu0 0
        %2254 = vmatmul.mubr.bf16.gmra.mrb[0].mxu0 %v1654
        %v2255 = vpop.f32.mrb[0].mxu0
        %v2256 = vadd.f32 0.0, %v2255
        %v2257 = vpop.f32.mrb[0].mxu0
        %v2258 = vpop.f32.mrb[0].mxu0
        %v2259 = vadd.f32 0.0, %v2258
        %v2260 = vpop.f32.mrb[0].mxu0
        %2261 = vmatprep.mubr.bf16.mxu0 0
        %2262 = vmatmul.mubr.bf16.gmra.mrb[0].mxu0 %v1655
        %v2263 = vpop.f32.mrb[0].mxu0
        %v2264 = vadd.f32 0.0, %v2263
        %v2265 = vpop.f32.mrb[0].mxu0
        %v2266 = vpop.f32.mrb[0].mxu0
        %v2267 = vadd.f32 0.0, %v2266
        %v2268 = vpop.f32.mrb[0].mxu0
        %2269 = vmatprep.mubr.bf16.mxu0 0
        %2270 = vmatmul.mubr.bf16.gmra.mrb[0].mxu0 %v1656
        %v2271 = vpop.f32.mrb[0].mxu0
        %v2272 = vadd.f32 0.0, %v2271
        %v2273 = vpop.f32.mrb[0].mxu0
        %v2274 = vpop.f32.mrb[0].mxu0
        %v2275 = vadd.f32 0.0, %v2274
        %v2276 = vpop.f32.mrb[0].mxu0
        %2277 = vmatprep.mubr.bf16.mxu0 0
        %2278 = vmatmul.mubr.bf16.gmra.mrb[0].mxu0 %v1657
        %v2279 = vpop.f32.mrb[0].mxu0
        %v2280 = vadd.f32 0.0, %v2279
        %v2281 = vpop.f32.mrb[0].mxu0
        %v2282 = vpop.f32.mrb[0].mxu0
        %v2283 = vadd.f32 0.0, %v2282
        %v2284 = vpop.f32.mrb[0].mxu0
        %2285 = vmatprep.mubr.bf16.mxu0 0
        %2286 = vmatmul.mubr.bf16.gmra.mrb[0].mxu0 %v1658
        %v2287 = vpop.f32.mrb[0].mxu0
        %v2288 = vadd.f32 0.0, %v2287
        %v2289 = vpop.f32.mrb[0].mxu0
        %v2290 = vpop.f32.mrb[0].mxu0
        %v2291 = vadd.f32 0.0, %v2290
        %v2292 = vpop.f32.mrb[0].mxu0
        %2293 = vmatprep.mubr.bf16.mxu0 0
        %2294 = vmatmul.mubr.bf16.gmra.mrb[0].mxu0 %v1659
        %v2295 = vpop.f32.mrb[0].mxu0
        %v2296 = vadd.f32 0.0, %v2295
        %v2297 = vpop.f32.mrb[0].mxu0
        %v2298 = vpop.f32.mrb[0].mxu0
        %v2299 = vadd.f32 0.0, %v2298
        %v2300 = vpop.f32.mrb[0].mxu0
        %2301 = vmatprep.mubr.bf16.mxu0 0
        %2302 = vmatmul.mubr.bf16.gmra.mrb[0].mxu0 %v1660
        %v2303 = vpop.f32.mrb[0].mxu0
        %v2304 = vadd.f32 0.0, %v2303
        %v2305 = vpop.f32.mrb[0].mxu0
        %v2306 = vpop.f32.mrb[0].mxu0
        %v2307 = vadd.f32 0.0, %v2306
        %v2308 = vpop.f32.mrb[0].mxu0
        %2309 = vmatprep.mubr.bf16.mxu0 0
        %2310 = vmatmul.mubr.bf16.gmra.mrb[0].mxu0 %v1661
        %v2311 = vpop.f32.mrb[0].mxu0
        %v2312 = vadd.f32 0.0, %v2311
        %v2313 = vpop.f32.mrb[0].mxu0
        %v2314 = vpop.f32.mrb[0].mxu0
        %v2315 = vadd.f32 0.0, %v2314
        %v2316 = vpop.f32.mrb[0].mxu0
        %2317 = vmatprep.mubr.bf16.mxu0 0
        %2318 = vmatmul.mubr.bf16.gmra.mrb[0].mxu0 %v1662
        %v2319 = vpop.f32.mrb[0].mxu0
        %v2320 = vadd.f32 0.0, %v2319
        %v2321 = vpop.f32.mrb[0].mxu0
        %v2322 = vpop.f32.mrb[0].mxu0
        %v2323 = vadd.f32 0.0, %v2322
        %v2324 = vpop.f32.mrb[0].mxu0
        %2325 = vmatprep.mubr.bf16.mxu0 0
        %2326 = vmatmul.mubr.bf16.gmra.mrb[0].mxu0 %v1663
        %v2327 = vpop.f32.mrb[0].mxu0
        %v2328 = vadd.f32 0.0, %v2327
        %v2329 = vpop.f32.mrb[0].mxu0
        %v2330 = vpop.f32.mrb[0].mxu0
        %v2331 = vadd.f32 0.0, %v2330
        %v2332 = vpop.f32.mrb[0].mxu0
        %2333 = vmatprep.mubr.bf16.mxu0 0
        %2334 = vmatmul.mubr.bf16.gmra.mrb[0].mxu0 %v1664
        %v2335 = vpop.f32.mrb[0].mxu0
        %v2336 = vadd.f32 0.0, %v2335
        %v2337 = vpop.f32.mrb[0].mxu0
        %v2338 = vpop.f32.mrb[0].mxu0
        %v2339 = vadd.f32 0.0, %v2338
        %v2340 = vpop.f32.mrb[0].mxu0
        %2341 = vdwg.mxu0
        %v2342 = vadd.f32 %v1990, %v2216
        %v2343 = vadd.f32 %v1993, %v2219
        %v2344 = vadd.f32 %v1998, %v2224
        %v2345 = vadd.f32 %v2001, %v2227
        %v2346 = vadd.f32 %v2006, %v2232
        %v2347 = vadd.f32 %v2009, %v2235
        %v2348 = vadd.f32 %v2014, %v2240
        %v2349 = vadd.f32 %v2017, %v2243
        %v2350 = vadd.f32 %v2022, %v2248
        %v2351 = vadd.f32 %v2025, %v2251
        %v2352 = vadd.f32 %v2030, %v2256
        %v2353 = vadd.f32 %v2033, %v2259
        %v2354 = vadd.f32 %v2038, %v2264
        %v2355 = vadd.f32 %v2041, %v2267
        %v2356 = vadd.f32 %v2046, %v2272
        %v2357 = vadd.f32 %v2049, %v2275
        %v2358 = vadd.f32 %v2054, %v2280
        %v2359 = vadd.f32 %v2057, %v2283
        %v2360 = vadd.f32 %v2062, %v2288
        %v2361 = vadd.f32 %v2065, %v2291
        %v2362 = vadd.f32 %v2070, %v2296
        %v2363 = vadd.f32 %v2073, %v2299
        %v2364 = vadd.f32 %v2078, %v2304
        %v2365 = vadd.f32 %v2081, %v2307
        %v2366 = vadd.f32 %v2086, %v2312
        %v2367 = vadd.f32 %v2089, %v2315
        %v2368 = vadd.f32 %v2094, %v2320
        %v2369 = vadd.f32 %v2097, %v2323
        %v2370 = vadd.f32 %v2102, %v2328
        %v2371 = vadd.f32 %v2105, %v2331
        %v2372 = vadd.f32 %v2110, %v2336
        %v2373 = vadd.f32 %v2113, %v2339
        %vm2374 = vcmp.eq.s32.totalorder %v216, 97
        %v2375 = vsel %vm2374, 1, 0
        %vm2376 = vcmp.eq.s32.totalorder %v2375, 1
        %v2377 = vsel %vm2376, %v2342, 0.0
        %v2378 = vsel %vm2376, %v2343, 0.0
        %v2379 = vsel %vm2376, %v2344, 0.0
        %v2380 = vsel %vm2376, %v2345, 0.0
        %v2381 = vsel %vm2376, %v2346, 0.0
        %v2382 = vsel %vm2376, %v2347, 0.0
        %v2383 = vsel %vm2376, %v2348, 0.0
        %v2384 = vsel %vm2376, %v2349, 0.0
        %v2385 = vsel %vm2376, %v2350, 0.0
        %v2386 = vsel %vm2376, %v2351, 0.0
        %v2387 = vsel %vm2376, %v2352, 0.0
        %v2388 = vsel %vm2376, %v2353, 0.0
        %v2389 = vsel %vm2376, %v2354, 0.0
        %v2390 = vsel %vm2376, %v2355, 0.0
        %v2391 = vsel %vm2376, %v2356, 0.0
        %v2392 = vsel %vm2376, %v2357, 0.0
        %v2393 = vsel %vm2376, %v2358, 0.0
        %v2394 = vsel %vm2376, %v2359, 0.0
        %v2395 = vsel %vm2376, %v2360, 0.0
        %v2396 = vsel %vm2376, %v2361, 0.0
        %v2397 = vsel %vm2376, %v2362, 0.0
        %v2398 = vsel %vm2376, %v2363, 0.0
        %v2399 = vsel %vm2376, %v2364, 0.0
        %v2400 = vsel %vm2376, %v2365, 0.0
        %v2401 = vsel %vm2376, %v2366, 0.0
        %v2402 = vsel %vm2376, %v2367, 0.0
        %v2403 = vsel %vm2376, %v2368, 0.0
        %v2404 = vsel %vm2376, %v2369, 0.0
        %v2405 = vsel %vm2376, %v2370, 0.0
        %v2406 = vsel %vm2376, %v2371, 0.0
        %v2407 = vsel %vm2376, %v2372, 0.0
        %v2408 = vsel %vm2376, %v2373, 0.0
        %v2409 = vsub.f32 %v2342, %v2377
        %v2410 = vsub.f32 %v2343, %v2378
        %v2411 = vsub.f32 %v2344, %v2379
        %v2412 = vsub.f32 %v2345, %v2380
        %v2413 = vsub.f32 %v2346, %v2381
        %v2414 = vsub.f32 %v2347, %v2382
        %v2415 = vsub.f32 %v2348, %v2383
        %v2416 = vsub.f32 %v2349, %v2384
        %v2417 = vsub.f32 %v2350, %v2385
        %v2418 = vsub.f32 %v2351, %v2386
        %v2419 = vsub.f32 %v2352, %v2387
        %v2420 = vsub.f32 %v2353, %v2388
        %v2421 = vsub.f32 %v2354, %v2389
        %v2422 = vsub.f32 %v2355, %v2390
        %v2423 = vsub.f32 %v2356, %v2391
        %v2424 = vsub.f32 %v2357, %v2392
        %v2425 = vsub.f32 %v2358, %v2393
        %v2426 = vsub.f32 %v2359, %v2394
        %v2427 = vsub.f32 %v2360, %v2395
        %v2428 = vsub.f32 %v2361, %v2396
        %v2429 = vsub.f32 %v2362, %v2397
        %v2430 = vsub.f32 %v2363, %v2398
        %v2431 = vsub.f32 %v2364, %v2399
        %v2432 = vsub.f32 %v2365, %v2400
        %v2433 = vsub.f32 %v2366, %v2401
        %v2434 = vsub.f32 %v2367, %v2402
        %v2435 = vsub.f32 %v2368, %v2403
        %v2436 = vsub.f32 %v2369, %v2404
        %v2437 = vsub.f32 %v2370, %v2405
        %v2438 = vsub.f32 %v2371, %v2406
        %v2439 = vsub.f32 %v2372, %v2407
        %v2440 = vsub.f32 %v2373, %v2408
        %v2441 = vmul.f32 %v2409, %v2409
        %v2442 = vmul.f32 %v2410, %v2410
        %v2443 = vmul.f32 %v2411, %v2411
        %v2444 = vmul.f32 %v2412, %v2412
        %v2445 = vmul.f32 %v2413, %v2413
        %v2446 = vmul.f32 %v2414, %v2414
        %v2447 = vmul.f32 %v2415, %v2415
        %v2448 = vmul.f32 %v2416, %v2416
        %v2449 = vmul.f32 %v2417, %v2417
        %v2450 = vmul.f32 %v2418, %v2418
        %v2451 = vmul.f32 %v2419, %v2419
        %v2452 = vmul.f32 %v2420, %v2420
        %v2453 = vmul.f32 %v2421, %v2421
        %v2454 = vmul.f32 %v2422, %v2422
        %v2455 = vmul.f32 %v2423, %v2423
        %v2456 = vmul.f32 %v2424, %v2424
        %v2457 = vmul.f32 %v2425, %v2425
        %v2458 = vmul.f32 %v2426, %v2426
        %v2459 = vmul.f32 %v2427, %v2427
        %v2460 = vmul.f32 %v2428, %v2428
        %v2461 = vmul.f32 %v2429, %v2429
        %v2462 = vmul.f32 %v2430, %v2430
        %v2463 = vmul.f32 %v2431, %v2431
        %v2464 = vmul.f32 %v2432, %v2432
        %v2465 = vmul.f32 %v2433, %v2433
        %v2466 = vmul.f32 %v2434, %v2434
        %v2467 = vmul.f32 %v2435, %v2435
        %v2468 = vmul.f32 %v2436, %v2436
        %v2469 = vmul.f32 %v2437, %v2437
        %v2470 = vmul.f32 %v2438, %v2438
        %v2471 = vmul.f32 %v2439, %v2439
        %v2472 = vmul.f32 %v2440, %v2440
        %2473 = vadd.xlane.f32.xlu0 %v2441
        %v2474 = vpop.xlane.xlu0 %2473
        %2475 = vadd.xlane.f32.xlu0 %v2442
        %v2476 = vpop.xlane.xlu0 %2475
        %2477 = vadd.xlane.f32.xlu0 %v2443
        %v2478 = vpop.xlane.xlu0 %2477
        %2479 = vadd.xlane.f32.xlu0 %v2444
        %v2480 = vpop.xlane.xlu0 %2479
        %2481 = vadd.xlane.f32.xlu0 %v2445
        %v2482 = vpop.xlane.xlu0 %2481
        %2483 = vadd.xlane.f32.xlu0 %v2446
        %v2484 = vpop.xlane.xlu0 %2483
        %2485 = vadd.xlane.f32.xlu0 %v2447
        %v2486 = vpop.xlane.xlu0 %2485
        %2487 = vadd.xlane.f32.xlu0 %v2448
        %v2488 = vpop.xlane.xlu0 %2487
        %2489 = vadd.xlane.f32.xlu0 %v2449
        %v2490 = vpop.xlane.xlu0 %2489
        %2491 = vadd.xlane.f32.xlu0 %v2450
        %v2492 = vpop.xlane.xlu0 %2491
        %2493 = vadd.xlane.f32.xlu0 %v2451
        %v2494 = vpop.xlane.xlu0 %2493
        %2495 = vadd.xlane.f32.xlu0 %v2452
        %v2496 = vpop.xlane.xlu0 %2495
        %2497 = vadd.xlane.f32.xlu0 %v2453
        %v2498 = vpop.xlane.xlu0 %2497
        %2499 = vadd.xlane.f32.xlu0 %v2454
        %v2500 = vpop.xlane.xlu0 %2499
        %2501 = vadd.xlane.f32.xlu0 %v2455
        %v2502 = vpop.xlane.xlu0 %2501
        %2503 = vadd.xlane.f32.xlu0 %v2456
        %v2504 = vpop.xlane.xlu0 %2503
        %2505 = vadd.xlane.f32.xlu0 %v2457
        %v2506 = vpop.xlane.xlu0 %2505
        %2507 = vadd.xlane.f32.xlu0 %v2458
        %v2508 = vpop.xlane.xlu0 %2507
        %2509 = vadd.xlane.f32.xlu0 %v2459
        %v2510 = vpop.xlane.xlu0 %2509
        %2511 = vadd.xlane.f32.xlu0 %v2460
        %v2512 = vpop.xlane.xlu0 %2511
        %2513 = vadd.xlane.f32.xlu0 %v2461
        %v2514 = vpop.xlane.xlu0 %2513
        %2515 = vadd.xlane.f32.xlu0 %v2462
        %v2516 = vpop.xlane.xlu0 %2515
        %2517 = vadd.xlane.f32.xlu0 %v2463
        %v2518 = vpop.xlane.xlu0 %2517
        %2519 = vadd.xlane.f32.xlu0 %v2464
        %v2520 = vpop.xlane.xlu0 %2519
        %2521 = vadd.xlane.f32.xlu0 %v2465
        %v2522 = vpop.xlane.xlu0 %2521
        %2523 = vadd.xlane.f32.xlu0 %v2466
        %v2524 = vpop.xlane.xlu0 %2523
        %2525 = vadd.xlane.f32.xlu0 %v2467
        %v2526 = vpop.xlane.xlu0 %2525
        %2527 = vadd.xlane.f32.xlu0 %v2468
        %v2528 = vpop.xlane.xlu0 %2527
        %2529 = vadd.xlane.f32.xlu0 %v2469
        %v2530 = vpop.xlane.xlu0 %2529
        %2531 = vadd.xlane.f32.xlu0 %v2470
        %v2532 = vpop.xlane.xlu0 %2531
        %2533 = vadd.xlane.f32.xlu0 %v2471
        %v2534 = vpop.xlane.xlu0 %2533
        %2535 = vadd.xlane.f32.xlu0 %v2472
        %v2536 = vpop.xlane.xlu0 %2535
        %v2537 = vmax.f32 %v2474, 1e-24
        %v2538 = vmax.f32 %v2476, 1e-24
        %v2539 = vmax.f32 %v2478, 1e-24
        %v2540 = vmax.f32 %v2480, 1e-24
        %v2541 = vmax.f32 %v2482, 1e-24
        %v2542 = vmax.f32 %v2484, 1e-24
        %v2543 = vmax.f32 %v2486, 1e-24
        %v2544 = vmax.f32 %v2488, 1e-24
        %v2545 = vmax.f32 %v2490, 1e-24
        %v2546 = vmax.f32 %v2492, 1e-24
        %v2547 = vmax.f32 %v2494, 1e-24
        %v2548 = vmax.f32 %v2496, 1e-24
        %v2549 = vmax.f32 %v2498, 1e-24
        %v2550 = vmax.f32 %v2500, 1e-24
        %v2551 = vmax.f32 %v2502, 1e-24
        %v2552 = vmax.f32 %v2504, 1e-24
        %v2553 = vmax.f32 %v2506, 1e-24
        %v2554 = vmax.f32 %v2508, 1e-24
        %v2555 = vmax.f32 %v2510, 1e-24
        %v2556 = vmax.f32 %v2512, 1e-24
        %v2557 = vmax.f32 %v2514, 1e-24
        %v2558 = vmax.f32 %v2516, 1e-24
        %v2559 = vmax.f32 %v2518, 1e-24
        %v2560 = vmax.f32 %v2520, 1e-24
        %v2561 = vmax.f32 %v2522, 1e-24
        %v2562 = vmax.f32 %v2524, 1e-24
        %v2563 = vmax.f32 %v2526, 1e-24
        %v2564 = vmax.f32 %v2528, 1e-24
        %v2565 = vmax.f32 %v2530, 1e-24
        %v2566 = vmax.f32 %v2532, 1e-24
        %v2567 = vmax.f32 %v2534, 1e-24
        %v2568 = vmax.f32 %v2536, 1e-24
        %v2569 = vrsqrt.pop %v2537
        %v2570 = vrsqrt.pop %v2538
        %v2571 = vrsqrt.pop %v2539
        %v2572 = vrsqrt.pop %v2540
        %v2573 = vrsqrt.pop %v2541
        %v2574 = vrsqrt.pop %v2542
        %v2575 = vrsqrt.pop %v2543
        %v2576 = vrsqrt.pop %v2544
        %v2577 = vrsqrt.pop %v2545
        %v2578 = vrsqrt.pop %v2546
        %v2579 = vrsqrt.pop %v2547
        %v2580 = vrsqrt.pop %v2548
        %v2581 = vrsqrt.pop %v2549
        %v2582 = vrsqrt.pop %v2550
        %v2583 = vrsqrt.pop %v2551
        %v2584 = vrsqrt.pop %v2552
        %v2585 = vrsqrt.pop %v2553
        %v2586 = vrsqrt.pop %v2554
        %v2587 = vrsqrt.pop %v2555
        %v2588 = vrsqrt.pop %v2556
        %v2589 = vrsqrt.pop %v2557
        %v2590 = vrsqrt.pop %v2558
        %v2591 = vrsqrt.pop %v2559
        %v2592 = vrsqrt.pop %v2560
        %v2593 = vrsqrt.pop %v2561
        %v2594 = vrsqrt.pop %v2562
        %v2595 = vrsqrt.pop %v2563
        %v2596 = vrsqrt.pop %v2564
        %v2597 = vrsqrt.pop %v2565
        %v2598 = vrsqrt.pop %v2566
        %v2599 = vrsqrt.pop %v2567
        %v2600 = vrsqrt.pop %v2568
        %v2601 = vmul.f32 %v2409, %v2569
        %v2602 = vmul.f32 %v2410, %v2570
        %v2603 = vmul.f32 %v2411, %v2571
        %v2604 = vmul.f32 %v2412, %v2572
        %v2605 = vmul.f32 %v2413, %v2573
        %v2606 = vmul.f32 %v2414, %v2574
        %v2607 = vmul.f32 %v2415, %v2575
        %v2608 = vmul.f32 %v2416, %v2576
        %v2609 = vmul.f32 %v2417, %v2577
        %v2610 = vmul.f32 %v2418, %v2578
        %v2611 = vmul.f32 %v2419, %v2579
        %v2612 = vmul.f32 %v2420, %v2580
        %v2613 = vmul.f32 %v2421, %v2581
        %v2614 = vmul.f32 %v2422, %v2582
        %v2615 = vmul.f32 %v2423, %v2583
        %v2616 = vmul.f32 %v2424, %v2584
        %v2617 = vmul.f32 %v2425, %v2585
        %v2618 = vmul.f32 %v2426, %v2586
        %v2619 = vmul.f32 %v2427, %v2587
        %v2620 = vmul.f32 %v2428, %v2588
        %v2621 = vmul.f32 %v2429, %v2589
        %v2622 = vmul.f32 %v2430, %v2590
        %v2623 = vmul.f32 %v2431, %v2591
        %v2624 = vmul.f32 %v2432, %v2592
        %v2625 = vmul.f32 %v2433, %v2593
        %v2626 = vmul.f32 %v2434, %v2594
        %v2627 = vmul.f32 %v2435, %v2595
        %v2628 = vmul.f32 %v2436, %v2596
        %v2629 = vmul.f32 %v2437, %v2597
        %v2630 = vmul.f32 %v2438, %v2598
        %v2631 = vmul.f32 %v2439, %v2599
        %v2632 = vmul.f32 %v2440, %v2600
        %v2633 = vadd.f32 %v2601, %v2377
        %v2634 = vadd.f32 %v2602, %v2378
        %v2635 = vadd.f32 %v2603, %v2379
        %v2636 = vadd.f32 %v2604, %v2380
        %v2637 = vadd.f32 %v2605, %v2381
        %v2638 = vadd.f32 %v2606, %v2382
        %v2639 = vadd.f32 %v2607, %v2383
        %v2640 = vadd.f32 %v2608, %v2384
        %v2641 = vadd.f32 %v2609, %v2385
        %v2642 = vadd.f32 %v2610, %v2386
        %v2643 = vadd.f32 %v2611, %v2387
        %v2644 = vadd.f32 %v2612, %v2388
        %v2645 = vadd.f32 %v2613, %v2389
        %v2646 = vadd.f32 %v2614, %v2390
        %v2647 = vadd.f32 %v2615, %v2391
        %v2648 = vadd.f32 %v2616, %v2392
        %v2649 = vadd.f32 %v2617, %v2393
        %v2650 = vadd.f32 %v2618, %v2394
        %v2651 = vadd.f32 %v2619, %v2395
        %v2652 = vadd.f32 %v2620, %v2396
        %v2653 = vadd.f32 %v2621, %v2397
        %v2654 = vadd.f32 %v2622, %v2398
        %v2655 = vadd.f32 %v2623, %v2399
        %v2656 = vadd.f32 %v2624, %v2400
        %v2657 = vadd.f32 %v2625, %v2401
        %v2658 = vadd.f32 %v2626, %v2402
        %v2659 = vadd.f32 %v2627, %v2403
        %v2660 = vadd.f32 %v2628, %v2404
        %v2661 = vadd.f32 %v2629, %v2405
        %v2662 = vadd.f32 %v2630, %v2406
        %v2663 = vadd.f32 %v2631, %v2407
        %v2664 = vadd.f32 %v2632, %v2408
        %2665 = vset.pattern.permute.xlu0 2
        %2666 = vperm.xlu0 %2665, %v217
        %v2667 = vpop.permute.xlu0 %2666
        %2668 = vset.pattern.permute.xlu0 2
        %2669 = vperm.xlu0 %2668, %v218
        %v2670 = vpop.permute.xlu0 %2669
        %2671 = vset.pattern.permute.xlu0 2
        %2672 = vperm.xlu0 %2671, %v219
        %v2673 = vpop.permute.xlu0 %2672
        %2674 = vset.pattern.permute.xlu0 2
        %2675 = vperm.xlu0 %2674, %v220
        %v2676 = vpop.permute.xlu0 %2675
        %2677 = vset.pattern.permute.xlu0 2
        %2678 = vperm.xlu0 %2677, %v221
        %v2679 = vpop.permute.xlu0 %2678
        %2680 = vset.pattern.permute.xlu0 2
        %2681 = vperm.xlu0 %2680, %v222
        %v2682 = vpop.permute.xlu0 %2681
        %2683 = vset.pattern.permute.xlu0 2
        %2684 = vperm.xlu0 %2683, %v223
        %v2685 = vpop.permute.xlu0 %2684
        %2686 = vset.pattern.permute.xlu0 2
        %2687 = vperm.xlu0 %2686, %v224
        %v2688 = vpop.permute.xlu0 %2687
        %2689 = vset.pattern.permute.xlu0 2
        %2690 = vperm.xlu0 %2689, %v225
        %v2691 = vpop.permute.xlu0 %2690
        %2692 = vset.pattern.permute.xlu0 2
        %2693 = vperm.xlu0 %2692, %v226
        %v2694 = vpop.permute.xlu0 %2693
        %2695 = vset.pattern.permute.xlu0 2
        %2696 = vperm.xlu0 %2695, %v227
        %v2697 = vpop.permute.xlu0 %2696
        %2698 = vset.pattern.permute.xlu0 2
        %2699 = vperm.xlu0 %2698, %v228
        %v2700 = vpop.permute.xlu0 %2699
        %2701 = vset.pattern.permute.xlu0 2
        %2702 = vperm.xlu0 %2701, %v229
        %v2703 = vpop.permute.xlu0 %2702
        %2704 = vset.pattern.permute.xlu0 2
        %2705 = vperm.xlu0 %2704, %v230
        %v2706 = vpop.permute.xlu0 %2705
        %2707 = vset.pattern.permute.xlu0 2
        %2708 = vperm.xlu0 %2707, %v231
        %v2709 = vpop.permute.xlu0 %2708
        %2710 = vset.pattern.permute.xlu0 2
        %2711 = vperm.xlu0 %2710, %v232
        %v2712 = vpop.permute.xlu0 %2711
        %2713 = vset.pattern.permute.xlu0 2
        %2714 = vperm.xlu0 %2713, %v233
        %v2715 = vpop.permute.xlu0 %2714
        %2716 = vset.pattern.permute.xlu0 2
        %2717 = vperm.xlu0 %2716, %v234
        %v2718 = vpop.permute.xlu0 %2717
        %2719 = vset.pattern.permute.xlu0 2
        %2720 = vperm.xlu0 %2719, %v235
        %v2721 = vpop.permute.xlu0 %2720
        %2722 = vset.pattern.permute.xlu0 2
        %2723 = vperm.xlu0 %2722, %v236
        %v2724 = vpop.permute.xlu0 %2723
        %2725 = vset.pattern.permute.xlu0 2
        %2726 = vperm.xlu0 %2725, %v237
        %v2727 = vpop.permute.xlu0 %2726
        %2728 = vset.pattern.permute.xlu0 2
        %2729 = vperm.xlu0 %2728, %v238
        %v2730 = vpop.permute.xlu0 %2729
        %2731 = vset.pattern.permute.xlu0 2
        %2732 = vperm.xlu0 %2731, %v239
        %v2733 = vpop.permute.xlu0 %2732
        %2734 = vset.pattern.permute.xlu0 2
        %2735 = vperm.xlu0 %2734, %v240
        %v2736 = vpop.permute.xlu0 %2735
        %2737 = vset.pattern.permute.xlu0 2
        %2738 = vperm.xlu0 %2737, %v241
        %v2739 = vpop.permute.xlu0 %2738
        %2740 = vset.pattern.permute.xlu0 2
        %2741 = vperm.xlu0 %2740, %v242
        %v2742 = vpop.permute.xlu0 %2741
        %2743 = vset.pattern.permute.xlu0 2
        %2744 = vperm.xlu0 %2743, %v243
        %v2745 = vpop.permute.xlu0 %2744
        %2746 = vset.pattern.permute.xlu0 2
        %2747 = vperm.xlu0 %2746, %v244
        %v2748 = vpop.permute.xlu0 %2747
        %2749 = vset.pattern.permute.xlu0 2
        %2750 = vperm.xlu0 %2749, %v245
        %v2751 = vpop.permute.xlu0 %2750
        %2752 = vset.pattern.permute.xlu0 2
        %2753 = vperm.xlu0 %2752, %v246
        %v2754 = vpop.permute.xlu0 %2753
        %2755 = vset.pattern.permute.xlu0 2
        %2756 = vperm.xlu0 %2755, %v247
        %v2757 = vpop.permute.xlu0 %2756
        %2758 = vset.pattern.permute.xlu0 2
        %2759 = vperm.xlu0 %2758, %v248
        %v2760 = vpop.permute.xlu0 %2759
        %vm2761 = vcmp.eq.s32.totalorder %v216, %v2667
        %vm2762 = vcmp.eq.s32.totalorder %v216, %v2670
        %vm2763 = vcmp.eq.s32.totalorder %v216, %v2673
        %vm2764 = vcmp.eq.s32.totalorder %v216, %v2676
        %vm2765 = vcmp.eq.s32.totalorder %v216, %v2679
        %vm2766 = vcmp.eq.s32.totalorder %v216, %v2682
        %vm2767 = vcmp.eq.s32.totalorder %v216, %v2685
        %vm2768 = vcmp.eq.s32.totalorder %v216, %v2688
        %vm2769 = vcmp.eq.s32.totalorder %v216, %v2691
        %vm2770 = vcmp.eq.s32.totalorder %v216, %v2694
        %vm2771 = vcmp.eq.s32.totalorder %v216, %v2697
        %vm2772 = vcmp.eq.s32.totalorder %v216, %v2700
        %vm2773 = vcmp.eq.s32.totalorder %v216, %v2703
        %vm2774 = vcmp.eq.s32.totalorder %v216, %v2706
        %vm2775 = vcmp.eq.s32.totalorder %v216, %v2709
        %vm2776 = vcmp.eq.s32.totalorder %v216, %v2712
        %vm2777 = vcmp.eq.s32.totalorder %v216, %v2715
        %vm2778 = vcmp.eq.s32.totalorder %v216, %v2718
        %vm2779 = vcmp.eq.s32.totalorder %v216, %v2721
        %vm2780 = vcmp.eq.s32.totalorder %v216, %v2724
        %vm2781 = vcmp.eq.s32.totalorder %v216, %v2727
        %vm2782 = vcmp.eq.s32.totalorder %v216, %v2730
        %vm2783 = vcmp.eq.s32.totalorder %v216, %v2733
        %vm2784 = vcmp.eq.s32.totalorder %v216, %v2736
        %vm2785 = vcmp.eq.s32.totalorder %v216, %v2739
        %vm2786 = vcmp.eq.s32.totalorder %v216, %v2742
        %vm2787 = vcmp.eq.s32.totalorder %v216, %v2745
        %vm2788 = vcmp.eq.s32.totalorder %v216, %v2748
        %vm2789 = vcmp.eq.s32.totalorder %v216, %v2751
        %vm2790 = vcmp.eq.s32.totalorder %v216, %v2754
        %vm2791 = vcmp.eq.s32.totalorder %v216, %v2757
        %vm2792 = vcmp.eq.s32.totalorder %v216, %v2760
        %v2793 = vsel %vm2761, 1, 0
        %v2794 = vsel %vm2762, 1, 0
        %v2795 = vsel %vm2763, 1, 0
        %v2796 = vsel %vm2764, 1, 0
        %v2797 = vsel %vm2765, 1, 0
        %v2798 = vsel %vm2766, 1, 0
        %v2799 = vsel %vm2767, 1, 0
        %v2800 = vsel %vm2768, 1, 0
        %v2801 = vsel %vm2769, 1, 0
        %v2802 = vsel %vm2770, 1, 0
        %v2803 = vsel %vm2771, 1, 0
        %v2804 = vsel %vm2772, 1, 0
        %v2805 = vsel %vm2773, 1, 0
        %v2806 = vsel %vm2774, 1, 0
        %v2807 = vsel %vm2775, 1, 0
        %v2808 = vsel %vm2776, 1, 0
        %v2809 = vsel %vm2777, 1, 0
        %v2810 = vsel %vm2778, 1, 0
        %v2811 = vsel %vm2779, 1, 0
        %v2812 = vsel %vm2780, 1, 0
        %v2813 = vsel %vm2781, 1, 0
        %v2814 = vsel %vm2782, 1, 0
        %v2815 = vsel %vm2783, 1, 0
        %v2816 = vsel %vm2784, 1, 0
        %v2817 = vsel %vm2785, 1, 0
        %v2818 = vsel %vm2786, 1, 0
        %v2819 = vsel %vm2787, 1, 0
        %v2820 = vsel %vm2788, 1, 0
        %v2821 = vsel %vm2789, 1, 0
        %v2822 = vsel %vm2790, 1, 0
        %v2823 = vsel %vm2791, 1, 0
        %v2824 = vsel %vm2792, 1, 0
        %v2825 = vcvt.s32.f32 %v2793
        %v2826 = vcvt.s32.f32 %v2794
        %v2827 = vcvt.s32.f32 %v2795
        %v2828 = vcvt.s32.f32 %v2796
        %v2829 = vcvt.s32.f32 %v2797
        %v2830 = vcvt.s32.f32 %v2798
        %v2831 = vcvt.s32.f32 %v2799
        %v2832 = vcvt.s32.f32 %v2800
        %v2833 = vcvt.s32.f32 %v2801
        %v2834 = vcvt.s32.f32 %v2802
        %v2835 = vcvt.s32.f32 %v2803
        %v2836 = vcvt.s32.f32 %v2804
        %v2837 = vcvt.s32.f32 %v2805
        %v2838 = vcvt.s32.f32 %v2806
        %v2839 = vcvt.s32.f32 %v2807
        %v2840 = vcvt.s32.f32 %v2808
        %v2841 = vcvt.s32.f32 %v2809
        %v2842 = vcvt.s32.f32 %v2810
        %v2843 = vcvt.s32.f32 %v2811
        %v2844 = vcvt.s32.f32 %v2812
        %v2845 = vcvt.s32.f32 %v2813
        %v2846 = vcvt.s32.f32 %v2814
        %v2847 = vcvt.s32.f32 %v2815
        %v2848 = vcvt.s32.f32 %v2816
        %v2849 = vcvt.s32.f32 %v2817
        %v2850 = vcvt.s32.f32 %v2818
        %v2851 = vcvt.s32.f32 %v2819
        %v2852 = vcvt.s32.f32 %v2820
        %v2853 = vcvt.s32.f32 %v2821
        %v2854 = vcvt.s32.f32 %v2822
        %v2855 = vcvt.s32.f32 %v2823
        %v2856 = vcvt.s32.f32 %v2824
        %v2857 = vpack.c.bf16 %v2826, %v2825
        %v2858 = vpack.c.bf16 %v2828, %v2827
        %v2859 = vpack.c.bf16 %v2830, %v2829
        %v2860 = vpack.c.bf16 %v2832, %v2831
        %v2861 = vpack.c.bf16 %v2834, %v2833
        %v2862 = vpack.c.bf16 %v2836, %v2835
        %v2863 = vpack.c.bf16 %v2838, %v2837
        %v2864 = vpack.c.bf16 %v2840, %v2839
        %v2865 = vpack.c.bf16 %v2842, %v2841
        %v2866 = vpack.c.bf16 %v2844, %v2843
        %v2867 = vpack.c.bf16 %v2846, %v2845
        %v2868 = vpack.c.bf16 %v2848, %v2847
        %v2869 = vpack.c.bf16 %v2850, %v2849
        %v2870 = vpack.c.bf16 %v2852, %v2851
        %v2871 = vpack.c.bf16 %v2854, %v2853
        %v2872 = vpack.c.bf16 %v2856, %v2855
        %v2873 = vld [vmem:[#allocation2] sm:$0xf]
        %v2874 = vld [vmem:[#allocation2 + $0x4] sm:$0xf]
        %v2875 = vld [vmem:[#allocation2 + $0x8] sm:$0xf]
        %v2876 = vld [vmem:[#allocation2 + $0xc] sm:$0xf]
        %v2877 = vld [vmem:[#allocation2 + $0x10] sm:$0xf]
        %v2878 = vld [vmem:[#allocation2 + $0x14] sm:$0xf]
        %v2879 = vld [vmem:[#allocation2 + $0x18] sm:$0xf]
        %v2880 = vld [vmem:[#allocation2 + $0x1c] sm:$0xf]
        %v2881 = vld [vmem:[#allocation2 + $0x20] sm:$0xf]
        %v2882 = vld [vmem:[#allocation2 + $0x24] sm:$0xf]
        %v2883 = vld [vmem:[#allocation2 + $0x28] sm:$0xf]
        %v2884 = vld [vmem:[#allocation2 + $0x2c] sm:$0xf]
        %v2885 = vld [vmem:[#allocation2 + $0x30] sm:$0xf]
        %v2886 = vld [vmem:[#allocation2 + $0x34] sm:$0xf]
        %v2887 = vld [vmem:[#allocation2 + $0x38] sm:$0xf]
        %v2888 = vld [vmem:[#allocation2 + $0x3c] sm:$0xf]
        %s2889 = scalar_lea.vmem [#allocation2], 64
        %v2890 = vld [vmem:[%s2889] sm:$0xf]
        %v2891 = vld [vmem:[%s2889 + $0x4] sm:$0xf]
        %v2892 = vld [vmem:[%s2889 + $0x8] sm:$0xf]
        %v2893 = vld [vmem:[%s2889 + $0xc] sm:$0xf]
        %v2894 = vld [vmem:[%s2889 + $0x10] sm:$0xf]
        %v2895 = vld [vmem:[%s2889 + $0x14] sm:$0xf]
        %v2896 = vld [vmem:[%s2889 + $0x18] sm:$0xf]
        %v2897 = vld [vmem:[%s2889 + $0x1c] sm:$0xf]
        %v2898 = vld [vmem:[%s2889 + $0x20] sm:$0xf]
        %v2899 = vld [vmem:[%s2889 + $0x24] sm:$0xf]
        %v2900 = vld [vmem:[%s2889 + $0x28] sm:$0xf]
        %v2901 = vld [vmem:[%s2889 + $0x2c] sm:$0xf]
        %v2902 = vld [vmem:[%s2889 + $0x30] sm:$0xf]
        %v2903 = vld [vmem:[%s2889 + $0x34] sm:$0xf]
        %v2904 = vld [vmem:[%s2889 + $0x38] sm:$0xf]
        %v2905 = vld [vmem:[%s2889 + $0x3c] sm:$0xf]
        %v2922 = vunpack.c.l.b16 %v2890
        %v2923 = vunpack.c.l.b16 %v2891
        %v2924 = vunpack.c.l.b16 %v2892
        %v2925 = vunpack.c.l.b16 %v2893
        %v2926 = vunpack.c.l.b16 %v2894
        %v2927 = vunpack.c.l.b16 %v2895
        %v2928 = vunpack.c.l.b16 %v2896
        %v2929 = vunpack.c.l.b16 %v2897
        %v2930 = vunpack.c.l.b16 %v2898
        %v2931 = vunpack.c.l.b16 %v2899
        %v2932 = vunpack.c.l.b16 %v2900
        %v2933 = vunpack.c.l.b16 %v2901
        %v2934 = vunpack.c.l.b16 %v2902
        %v2935 = vunpack.c.l.b16 %v2903
        %v2936 = vunpack.c.l.b16 %v2904
        %v2937 = vunpack.c.l.b16 %v2905
        %v2938 = vpack.c.b16 %v2923, %v2922
        %v2939 = vpack.c.b16 %v2925, %v2924
        %v2940 = vpack.c.b16 %v2927, %v2926
        %v2941 = vpack.c.b16 %v2929, %v2928
        %v2942 = vpack.c.b16 %v2931, %v2930
        %v2943 = vpack.c.b16 %v2933, %v2932
        %v2944 = vpack.c.b16 %v2935, %v2934
        %v2945 = vpack.c.b16 %v2937, %v2936
        %2954 = vmatprep.subr.bf16.mxu0 0
        %2955 = vmatpush1.bf16.msra.mxu0 %v2938
        %2956 = vmatprep.subr.bf16.mxu0 0
        %2957 = vmatpush1.bf16.msra.mxu0 %v2939
        %2958 = vmatprep.subr.bf16.mxu0 0
        %2959 = vmatpush1.bf16.msra.mxu0 %v2940
        %2960 = vmatprep.subr.bf16.mxu0 0
        %2961 = vmatpush1.bf16.msra.mxu0 %v2941
        %2962 = vmatprep.subr.bf16.mxu0 0
        %2963 = vmatpush1.bf16.msra.mxu0 %v2942
        %2964 = vmatprep.subr.bf16.mxu0 0
        %2965 = vmatpush1.bf16.msra.mxu0 %v2943
        %2966 = vmatprep.subr.bf16.mxu0 0
        %2967 = vmatpush1.bf16.msra.mxu0 %v2944
        %2968 = vmatprep.subr.bf16.mxu0 0
        %2969 = vmatpush1.bf16.msra.mxu0 %v2945
        %2970 = vmatprep.subr.bf16.mxu0 0
        %2971 = vmatpush1.bf16.msra.mxu0 0
        %2972 = vmatprep.subr.bf16.mxu0 0
        %2973 = vmatpush1.bf16.msra.mxu0 0
        %2974 = vmatprep.subr.bf16.mxu0 0
        %2975 = vmatpush1.bf16.msra.mxu0 0
        %2976 = vmatprep.subr.bf16.mxu0 0
        %2977 = vmatpush1.bf16.msra.mxu0 0
        %2978 = vmatprep.subr.bf16.mxu0 0
        %2979 = vmatpush1.bf16.msra.mxu0 0
        %2980 = vmatprep.subr.bf16.mxu0 0
        %2981 = vmatpush1.bf16.msra.mxu0 0
        %2982 = vmatprep.subr.bf16.mxu0 0
        %2983 = vmatpush1.bf16.msra.mxu0 0
        %2984 = vmatprep.subr.bf16.mxu0 0
        %2985 = vmatpush1.bf16.msra.mxu0 0
        %2986 = vmatprep.mubr.bf16.mxu0 0
        %2987 = vmatmul.mubr.bf16.gmra.mrb[0].mxu0 %v2857
        %v2988 = vpop.f32.mrb[0].mxu0
        %v2989 = vadd.f32 0.0, %v2988
        %v2990 = vpop.f32.mrb[0].mxu0
        %v2991 = vpop.f32.mrb[0].mxu0
        %v2992 = vadd.f32 0.0, %v2991
        %v2993 = vpop.f32.mrb[0].mxu0
        %2994 = vmatprep.mubr.bf16.mxu0 0
        %2995 = vmatmul.mubr.bf16.gmra.mrb[0].mxu0 %v2858
        %v2996 = vpop.f32.mrb[0].mxu0
        %v2997 = vadd.f32 0.0, %v2996
        %v2998 = vpop.f32.mrb[0].mxu0
        %v2999 = vpop.f32.mrb[0].mxu0
        %v3000 = vadd.f32 0.0, %v2999
        %v3001 = vpop.f32.mrb[0].mxu0
        %3002 = vmatprep.mubr.bf16.mxu0 0
        %3003 = vmatmul.mubr.bf16.gmra.mrb[0].mxu0 %v2859
        %v3004 = vpop.f32.mrb[0].mxu0
        %v3005 = vadd.f32 0.0, %v3004
        %v3006 = vpop.f32.mrb[0].mxu0
        %v3007 = vpop.f32.mrb[0].mxu0
        %v3008 = vadd.f32 0.0, %v3007
        %v3009 = vpop.f32.mrb[0].mxu0
        %3010 = vmatprep.mubr.bf16.mxu0 0
        %3011 = vmatmul.mubr.bf16.gmra.mrb[0].mxu0 %v2860
        %v3012 = vpop.f32.mrb[0].mxu0
        %v3013 = vadd.f32 0.0, %v3012
        %v3014 = vpop.f32.mrb[0].mxu0
        %v3015 = vpop.f32.mrb[0].mxu0
        %v3016 = vadd.f32 0.0, %v3015
        %v3017 = vpop.f32.mrb[0].mxu0
        %3018 = vmatprep.mubr.bf16.mxu0 0
        %3019 = vmatmul.mubr.bf16.gmra.mrb[0].mxu0 %v2861
        %v3020 = vpop.f32.mrb[0].mxu0
        %v3021 = vadd.f32 0.0, %v3020
        %v3022 = vpop.f32.mrb[0].mxu0
        %v3023 = vpop.f32.mrb[0].mxu0
        %v3024 = vadd.f32 0.0, %v3023
        %v3025 = vpop.f32.mrb[0].mxu0
        %3026 = vmatprep.mubr.bf16.mxu0 0
        %3027 = vmatmul.mubr.bf16.gmra.mrb[0].mxu0 %v2862
        %v3028 = vpop.f32.mrb[0].mxu0
        %v3029 = vadd.f32 0.0, %v3028
        %v3030 = vpop.f32.mrb[0].mxu0
        %v3031 = vpop.f32.mrb[0].mxu0
        %v3032 = vadd.f32 0.0, %v3031
        %v3033 = vpop.f32.mrb[0].mxu0
        %3034 = vmatprep.mubr.bf16.mxu0 0
        %3035 = vmatmul.mubr.bf16.gmra.mrb[0].mxu0 %v2863
        %v3036 = vpop.f32.mrb[0].mxu0
        %v3037 = vadd.f32 0.0, %v3036
        %v3038 = vpop.f32.mrb[0].mxu0
        %v3039 = vpop.f32.mrb[0].mxu0
        %v3040 = vadd.f32 0.0, %v3039
        %v3041 = vpop.f32.mrb[0].mxu0
        %3042 = vmatprep.mubr.bf16.mxu0 0
        %3043 = vmatmul.mubr.bf16.gmra.mrb[0].mxu0 %v2864
        %v3044 = vpop.f32.mrb[0].mxu0
        %v3045 = vadd.f32 0.0, %v3044
        %v3046 = vpop.f32.mrb[0].mxu0
        %v3047 = vpop.f32.mrb[0].mxu0
        %v3048 = vadd.f32 0.0, %v3047
        %v3049 = vpop.f32.mrb[0].mxu0
        %3050 = vmatprep.mubr.bf16.mxu0 0
        %3051 = vmatmul.mubr.bf16.gmra.mrb[0].mxu0 %v2865
        %v3052 = vpop.f32.mrb[0].mxu0
        %v3053 = vadd.f32 0.0, %v3052
        %v3054 = vpop.f32.mrb[0].mxu0
        %v3055 = vpop.f32.mrb[0].mxu0
        %v3056 = vadd.f32 0.0, %v3055
        %v3057 = vpop.f32.mrb[0].mxu0
        %3058 = vmatprep.mubr.bf16.mxu0 0
        %3059 = vmatmul.mubr.bf16.gmra.mrb[0].mxu0 %v2866
        %v3060 = vpop.f32.mrb[0].mxu0
        %v3061 = vadd.f32 0.0, %v3060
        %v3062 = vpop.f32.mrb[0].mxu0
        %v3063 = vpop.f32.mrb[0].mxu0
        %v3064 = vadd.f32 0.0, %v3063
        %v3065 = vpop.f32.mrb[0].mxu0
        %3066 = vmatprep.mubr.bf16.mxu0 0
        %3067 = vmatmul.mubr.bf16.gmra.mrb[0].mxu0 %v2867
        %v3068 = vpop.f32.mrb[0].mxu0
        %v3069 = vadd.f32 0.0, %v3068
        %v3070 = vpop.f32.mrb[0].mxu0
        %v3071 = vpop.f32.mrb[0].mxu0
        %v3072 = vadd.f32 0.0, %v3071
        %v3073 = vpop.f32.mrb[0].mxu0
        %3074 = vmatprep.mubr.bf16.mxu0 0
        %3075 = vmatmul.mubr.bf16.gmra.mrb[0].mxu0 %v2868
        %v3076 = vpop.f32.mrb[0].mxu0
        %v3077 = vadd.f32 0.0, %v3076
        %v3078 = vpop.f32.mrb[0].mxu0
        %v3079 = vpop.f32.mrb[0].mxu0
        %v3080 = vadd.f32 0.0, %v3079
        %v3081 = vpop.f32.mrb[0].mxu0
        %3082 = vmatprep.mubr.bf16.mxu0 0
        %3083 = vmatmul.mubr.bf16.gmra.mrb[0].mxu0 %v2869
        %v3084 = vpop.f32.mrb[0].mxu0
        %v3085 = vadd.f32 0.0, %v3084
        %v3086 = vpop.f32.mrb[0].mxu0
        %v3087 = vpop.f32.mrb[0].mxu0
        %v3088 = vadd.f32 0.0, %v3087
        %v3089 = vpop.f32.mrb[0].mxu0
        %3090 = vmatprep.mubr.bf16.mxu0 0
        %3091 = vmatmul.mubr.bf16.gmra.mrb[0].mxu0 %v2870
        %v3092 = vpop.f32.mrb[0].mxu0
        %v3093 = vadd.f32 0.0, %v3092
        %v3094 = vpop.f32.mrb[0].mxu0
        %v3095 = vpop.f32.mrb[0].mxu0
        %v3096 = vadd.f32 0.0, %v3095
        %v3097 = vpop.f32.mrb[0].mxu0
        %3098 = vmatprep.mubr.bf16.mxu0 0
        %3099 = vmatmul.mubr.bf16.gmra.mrb[0].mxu0 %v2871
        %v3100 = vpop.f32.mrb[0].mxu0
        %v3101 = vadd.f32 0.0, %v3100
        %v3102 = vpop.f32.mrb[0].mxu0
        %v3103 = vpop.f32.mrb[0].mxu0
        %v3104 = vadd.f32 0.0, %v3103
        %v3105 = vpop.f32.mrb[0].mxu0
        %3106 = vmatprep.mubr.bf16.mxu0 0
        %3107 = vmatmul.mubr.bf16.gmra.mrb[0].mxu0 %v2872
        %v3108 = vpop.f32.mrb[0].mxu0
        %v3109 = vadd.f32 0.0, %v3108
        %v3110 = vpop.f32.mrb[0].mxu0
        %v3111 = vpop.f32.mrb[0].mxu0
        %v3112 = vadd.f32 0.0, %v3111
        %v3113 = vpop.f32.mrb[0].mxu0
        %3114 = vdwg.mxu0
        %v3131 = vunpack.c.l.b16 %v2873
        %v3132 = vunpack.c.l.b16 %v2874
        %v3133 = vunpack.c.l.b16 %v2875
        %v3134 = vunpack.c.l.b16 %v2876
        %v3135 = vunpack.c.l.b16 %v2877
        %v3136 = vunpack.c.l.b16 %v2878
        %v3137 = vunpack.c.l.b16 %v2879
        %v3138 = vunpack.c.l.b16 %v2880
        %v3139 = vunpack.c.l.b16 %v2881
        %v3140 = vunpack.c.l.b16 %v2882
        %v3141 = vunpack.c.l.b16 %v2883
        %v3142 = vunpack.c.l.b16 %v2884
        %v3143 = vunpack.c.l.b16 %v2885
        %v3144 = vunpack.c.l.b16 %v2886
        %v3145 = vunpack.c.l.b16 %v2887
        %v3146 = vunpack.c.l.b16 %v2888
        %v3147 = vpack.c.b16 %v3132, %v3131
        %v3148 = vpack.c.b16 %v3134, %v3133
        %v3149 = vpack.c.b16 %v3136, %v3135
        %v3150 = vpack.c.b16 %v3138, %v3137
        %v3151 = vpack.c.b16 %v3140, %v3139
        %v3152 = vpack.c.b16 %v3142, %v3141
        %v3153 = vpack.c.b16 %v3144, %v3143
        %v3154 = vpack.c.b16 %v3146, %v3145
        %3163 = vmatprep.subr.bf16.mxu0 0
        %3164 = vmatpush1.bf16.msra.mxu0 %v3147
        %3165 = vmatprep.subr.bf16.mxu0 0
        %3166 = vmatpush1.bf16.msra.mxu0 %v3148
        %3167 = vmatprep.subr.bf16.mxu0 0
        %3168 = vmatpush1.bf16.msra.mxu0 %v3149
        %3169 = vmatprep.subr.bf16.mxu0 0
        %3170 = vmatpush1.bf16.msra.mxu0 %v3150
        %3171 = vmatprep.subr.bf16.mxu0 0
        %3172 = vmatpush1.bf16.msra.mxu0 %v3151
        %3173 = vmatprep.subr.bf16.mxu0 0
        %3174 = vmatpush1.bf16.msra.mxu0 %v3152
        %3175 = vmatprep.subr.bf16.mxu0 0
        %3176 = vmatpush1.bf16.msra.mxu0 %v3153
        %3177 = vmatprep.subr.bf16.mxu0 0
        %3178 = vmatpush1.bf16.msra.mxu0 %v3154
        %3179 = vmatprep.subr.bf16.mxu0 0
        %3180 = vmatpush1.bf16.msra.mxu0 0
        %3181 = vmatprep.subr.bf16.mxu0 0
        %3182 = vmatpush1.bf16.msra.mxu0 0
        %3183 = vmatprep.subr.bf16.mxu0 0
        %3184 = vmatpush1.bf16.msra.mxu0 0
        %3185 = vmatprep.subr.bf16.mxu0 0
        %3186 = vmatpush1.bf16.msra.mxu0 0
        %3187 = vmatprep.subr.bf16.mxu0 0
        %3188 = vmatpush1.bf16.msra.mxu0 0
        %3189 = vmatprep.subr.bf16.mxu0 0
        %3190 = vmatpush1.bf16.msra.mxu0 0
        %3191 = vmatprep.subr.bf16.mxu0 0
        %3192 = vmatpush1.bf16.msra.mxu0 0
        %3193 = vmatprep.subr.bf16.mxu0 0
        %3194 = vmatpush1.bf16.msra.mxu0 0
        %3195 = vmatprep.mubr.bf16.mxu0 0
        %3196 = vmatmul.mubr.bf16.gmra.mrb[0].mxu0 %v2857
        %v3197 = vpop.f32.mrb[0].mxu0
        %v3198 = vadd.f32 %v2989, %v3197
        %v3199 = vpop.f32.mrb[0].mxu0
        %v3200 = vpop.f32.mrb[0].mxu0
        %v3201 = vadd.f32 %v2992, %v3200
        %v3202 = vpop.f32.mrb[0].mxu0
        %3203 = vmatprep.mubr.bf16.mxu0 0
        %3204 = vmatmul.mubr.bf16.gmra.mrb[0].mxu0 %v2858
        %v3205 = vpop.f32.mrb[0].mxu0
        %v3206 = vadd.f32 %v2997, %v3205
        %v3207 = vpop.f32.mrb[0].mxu0
        %v3208 = vpop.f32.mrb[0].mxu0
        %v3209 = vadd.f32 %v3000, %v3208
        %v3210 = vpop.f32.mrb[0].mxu0
        %3211 = vmatprep.mubr.bf16.mxu0 0
        %3212 = vmatmul.mubr.bf16.gmra.mrb[0].mxu0 %v2859
        %v3213 = vpop.f32.mrb[0].mxu0
        %v3214 = vadd.f32 %v3005, %v3213
        %v3215 = vpop.f32.mrb[0].mxu0
        %v3216 = vpop.f32.mrb[0].mxu0
        %v3217 = vadd.f32 %v3008, %v3216
        %v3218 = vpop.f32.mrb[0].mxu0
        %3219 = vmatprep.mubr.bf16.mxu0 0
        %3220 = vmatmul.mubr.bf16.gmra.mrb[0].mxu0 %v2860
        %v3221 = vpop.f32.mrb[0].mxu0
        %v3222 = vadd.f32 %v3013, %v3221
        %v3223 = vpop.f32.mrb[0].mxu0
        %v3224 = vpop.f32.mrb[0].mxu0
        %v3225 = vadd.f32 %v3016, %v3224
        %v3226 = vpop.f32.mrb[0].mxu0
        %3227 = vmatprep.mubr.bf16.mxu0 0
        %3228 = vmatmul.mubr.bf16.gmra.mrb[0].mxu0 %v2861
        %v3229 = vpop.f32.mrb[0].mxu0
        %v3230 = vadd.f32 %v3021, %v3229
        %v3231 = vpop.f32.mrb[0].mxu0
        %v3232 = vpop.f32.mrb[0].mxu0
        %v3233 = vadd.f32 %v3024, %v3232
        %v3234 = vpop.f32.mrb[0].mxu0
        %3235 = vmatprep.mubr.bf16.mxu0 0
        %3236 = vmatmul.mubr.bf16.gmra.mrb[0].mxu0 %v2862
        %v3237 = vpop.f32.mrb[0].mxu0
        %v3238 = vadd.f32 %v3029, %v3237
        %v3239 = vpop.f32.mrb[0].mxu0
        %v3240 = vpop.f32.mrb[0].mxu0
        %v3241 = vadd.f32 %v3032, %v3240
        %v3242 = vpop.f32.mrb[0].mxu0
        %3243 = vmatprep.mubr.bf16.mxu0 0
        %3244 = vmatmul.mubr.bf16.gmra.mrb[0].mxu0 %v2863
        %v3245 = vpop.f32.mrb[0].mxu0
        %v3246 = vadd.f32 %v3037, %v3245
        %v3247 = vpop.f32.mrb[0].mxu0
        %v3248 = vpop.f32.mrb[0].mxu0
        %v3249 = vadd.f32 %v3040, %v3248
        %v3250 = vpop.f32.mrb[0].mxu0
        %3251 = vmatprep.mubr.bf16.mxu0 0
        %3252 = vmatmul.mubr.bf16.gmra.mrb[0].mxu0 %v2864
        %v3253 = vpop.f32.mrb[0].mxu0
        %v3254 = vadd.f32 %v3045, %v3253
        %v3255 = vpop.f32.mrb[0].mxu0
        %v3256 = vpop.f32.mrb[0].mxu0
        %v3257 = vadd.f32 %v3048, %v3256
        %v3258 = vpop.f32.mrb[0].mxu0
        %3259 = vmatprep.mubr.bf16.mxu0 0
        %3260 = vmatmul.mubr.bf16.gmra.mrb[0].mxu0 %v2865
        %v3261 = vpop.f32.mrb[0].mxu0
        %v3262 = vadd.f32 %v3053, %v3261
        %v3263 = vpop.f32.mrb[0].mxu0
        %v3264 = vpop.f32.mrb[0].mxu0
        %v3265 = vadd.f32 %v3056, %v3264
        %v3266 = vpop.f32.mrb[0].mxu0
        %3267 = vmatprep.mubr.bf16.mxu0 0
        %3268 = vmatmul.mubr.bf16.gmra.mrb[0].mxu0 %v2866
        %v3269 = vpop.f32.mrb[0].mxu0
        %v3270 = vadd.f32 %v3061, %v3269
        %v3271 = vpop.f32.mrb[0].mxu0
        %v3272 = vpop.f32.mrb[0].mxu0
        %v3273 = vadd.f32 %v3064, %v3272
        %v3274 = vpop.f32.mrb[0].mxu0
        %3275 = vmatprep.mubr.bf16.mxu0 0
        %3276 = vmatmul.mubr.bf16.gmra.mrb[0].mxu0 %v2867
        %v3277 = vpop.f32.mrb[0].mxu0
        %v3278 = vadd.f32 %v3069, %v3277
        %v3279 = vpop.f32.mrb[0].mxu0
        %v3280 = vpop.f32.mrb[0].mxu0
        %v3281 = vadd.f32 %v3072, %v3280
        %v3282 = vpop.f32.mrb[0].mxu0
        %3283 = vmatprep.mubr.bf16.mxu0 0
        %3284 = vmatmul.mubr.bf16.gmra.mrb[0].mxu0 %v2868
        %v3285 = vpop.f32.mrb[0].mxu0
        %v3286 = vadd.f32 %v3077, %v3285
        %v3287 = vpop.f32.mrb[0].mxu0
        %v3288 = vpop.f32.mrb[0].mxu0
        %v3289 = vadd.f32 %v3080, %v3288
        %v3290 = vpop.f32.mrb[0].mxu0
        %3291 = vmatprep.mubr.bf16.mxu0 0
        %3292 = vmatmul.mubr.bf16.gmra.mrb[0].mxu0 %v2869
        %v3293 = vpop.f32.mrb[0].mxu0
        %v3294 = vadd.f32 %v3085, %v3293
        %v3295 = vpop.f32.mrb[0].mxu0
        %v3296 = vpop.f32.mrb[0].mxu0
        %v3297 = vadd.f32 %v3088, %v3296
        %v3298 = vpop.f32.mrb[0].mxu0
        %3299 = vmatprep.mubr.bf16.mxu0 0
        %3300 = vmatmul.mubr.bf16.gmra.mrb[0].mxu0 %v2870
        %v3301 = vpop.f32.mrb[0].mxu0
        %v3302 = vadd.f32 %v3093, %v3301
        %v3303 = vpop.f32.mrb[0].mxu0
        %v3304 = vpop.f32.mrb[0].mxu0
        %v3305 = vadd.f32 %v3096, %v3304
        %v3306 = vpop.f32.mrb[0].mxu0
        %3307 = vmatprep.mubr.bf16.mxu0 0
        %3308 = vmatmul.mubr.bf16.gmra.mrb[0].mxu0 %v2871
        %v3309 = vpop.f32.mrb[0].mxu0
        %v3310 = vadd.f32 %v3101, %v3309
        %v3311 = vpop.f32.mrb[0].mxu0
        %v3312 = vpop.f32.mrb[0].mxu0
        %v3313 = vadd.f32 %v3104, %v3312
        %v3314 = vpop.f32.mrb[0].mxu0
        %3315 = vmatprep.mubr.bf16.mxu0 0
        %3316 = vmatmul.mubr.bf16.gmra.mrb[0].mxu0 %v2872
        %v3317 = vpop.f32.mrb[0].mxu0
        %v3318 = vadd.f32 %v3109, %v3317
        %v3319 = vpop.f32.mrb[0].mxu0
        %v3320 = vpop.f32.mrb[0].mxu0
        %v3321 = vadd.f32 %v3112, %v3320
        %v3322 = vpop.f32.mrb[0].mxu0
        %3323 = vdwg.mxu0
        %s3324 = scalar_lea.vmem [#allocation2], 128
        %v3325 = vld [vmem:[%s3324] sm:$0xf]
        %v3326 = vld [vmem:[%s3324 + $0x4] sm:$0xf]
        %v3327 = vld [vmem:[%s3324 + $0x8] sm:$0xf]
        %v3328 = vld [vmem:[%s3324 + $0xc] sm:$0xf]
        %v3329 = vld [vmem:[%s3324 + $0x10] sm:$0xf]
        %v3330 = vld [vmem:[%s3324 + $0x14] sm:$0xf]
        %v3331 = vld [vmem:[%s3324 + $0x18] sm:$0xf]
        %v3332 = vld [vmem:[%s3324 + $0x1c] sm:$0xf]
        %v3333 = vld [vmem:[%s3324 + $0x20] sm:$0xf]
        %v3334 = vld [vmem:[%s3324 + $0x24] sm:$0xf]
        %v3335 = vld [vmem:[%s3324 + $0x28] sm:$0xf]
        %v3336 = vld [vmem:[%s3324 + $0x2c] sm:$0xf]
        %v3337 = vld [vmem:[%s3324 + $0x30] sm:$0xf]
        %v3338 = vld [vmem:[%s3324 + $0x34] sm:$0xf]
        %v3339 = vld [vmem:[%s3324 + $0x38] sm:$0xf]
        %v3340 = vld [vmem:[%s3324 + $0x3c] sm:$0xf]
        %v3357 = vunpack.c.l.b16 %v3325
        %v3358 = vunpack.c.l.b16 %v3326
        %v3359 = vunpack.c.l.b16 %v3327
        %v3360 = vunpack.c.l.b16 %v3328
        %v3361 = vunpack.c.l.b16 %v3329
        %v3362 = vunpack.c.l.b16 %v3330
        %v3363 = vunpack.c.l.b16 %v3331
        %v3364 = vunpack.c.l.b16 %v3332
        %v3365 = vunpack.c.l.b16 %v3333
        %v3366 = vunpack.c.l.b16 %v3334
        %v3367 = vunpack.c.l.b16 %v3335
        %v3368 = vunpack.c.l.b16 %v3336
        %v3369 = vunpack.c.l.b16 %v3337
        %v3370 = vunpack.c.l.b16 %v3338
        %v3371 = vunpack.c.l.b16 %v3339
        %v3372 = vunpack.c.l.b16 %v3340
        %v3373 = vpack.c.b16 %v3358, %v3357
        %v3374 = vpack.c.b16 %v3360, %v3359
        %v3375 = vpack.c.b16 %v3362, %v3361
        %v3376 = vpack.c.b16 %v3364, %v3363
        %v3377 = vpack.c.b16 %v3366, %v3365
        %v3378 = vpack.c.b16 %v3368, %v3367
        %v3379 = vpack.c.b16 %v3370, %v3369
        %v3380 = vpack.c.b16 %v3372, %v3371
        %3389 = vmatprep.subr.bf16.mxu0 0
        %3390 = vmatpush1.bf16.msra.mxu0 %v3373
        %3391 = vmatprep.subr.bf16.mxu0 0
        %3392 = vmatpush1.bf16.msra.mxu0 %v3374
        %3393 = vmatprep.subr.bf16.mxu0 0
        %3394 = vmatpush1.bf16.msra.mxu0 %v3375
        %3395 = vmatprep.subr.bf16.mxu0 0
        %3396 = vmatpush1.bf16.msra.mxu0 %v3376
        %3397 = vmatprep.subr.bf16.mxu0 0
        %3398 = vmatpush1.bf16.msra.mxu0 %v3377
        %3399 = vmatprep.subr.bf16.mxu0 0
        %3400 = vmatpush1.bf16.msra.mxu0 %v3378
        %3401 = vmatprep.subr.bf16.mxu0 0
        %3402 = vmatpush1.bf16.msra.mxu0 %v3379
        %3403 = vmatprep.subr.bf16.mxu0 0
        %3404 = vmatpush1.bf16.msra.mxu0 %v3380
        %3405 = vmatprep.subr.bf16.mxu0 0
        %3406 = vmatpush1.bf16.msra.mxu0 0
        %3407 = vmatprep.subr.bf16.mxu0 0
        %3408 = vmatpush1.bf16.msra.mxu0 0
        %3409 = vmatprep.subr.bf16.mxu0 0
        %3410 = vmatpush1.bf16.msra.mxu0 0
        %3411 = vmatprep.subr.bf16.mxu0 0
        %3412 = vmatpush1.bf16.msra.mxu0 0
        %3413 = vmatprep.subr.bf16.mxu0 0
        %3414 = vmatpush1.bf16.msra.mxu0 0
        %3415 = vmatprep.subr.bf16.mxu0 0
        %3416 = vmatpush1.bf16.msra.mxu0 0
        %3417 = vmatprep.subr.bf16.mxu0 0
        %3418 = vmatpush1.bf16.msra.mxu0 0
        %3419 = vmatprep.subr.bf16.mxu0 0
        %3420 = vmatpush1.bf16.msra.mxu0 0
        %3421 = vmatprep.mubr.bf16.mxu0 0
        %3422 = vmatmul.mubr.bf16.gmra.mrb[0].mxu0 %v2857
        %v3423 = vpop.f32.mrb[0].mxu0
        %v3424 = vadd.f32 0.0, %v3423
        %v3425 = vpop.f32.mrb[0].mxu0
        %v3426 = vpop.f32.mrb[0].mxu0
        %v3427 = vadd.f32 0.0, %v3426
        %v3428 = vpop.f32.mrb[0].mxu0
        %3429 = vmatprep.mubr.bf16.mxu0 0
        %3430 = vmatmul.mubr.bf16.gmra.mrb[0].mxu0 %v2858
        %v3431 = vpop.f32.mrb[0].mxu0
        %v3432 = vadd.f32 0.0, %v3431
        %v3433 = vpop.f32.mrb[0].mxu0
        %v3434 = vpop.f32.mrb[0].mxu0
        %v3435 = vadd.f32 0.0, %v3434
        %v3436 = vpop.f32.mrb[0].mxu0
        %3437 = vmatprep.mubr.bf16.mxu0 0
        %3438 = vmatmul.mubr.bf16.gmra.mrb[0].mxu0 %v2859
        %v3439 = vpop.f32.mrb[0].mxu0
        %v3440 = vadd.f32 0.0, %v3439
        %v3441 = vpop.f32.mrb[0].mxu0
        %v3442 = vpop.f32.mrb[0].mxu0
        %v3443 = vadd.f32 0.0, %v3442
        %v3444 = vpop.f32.mrb[0].mxu0
        %3445 = vmatprep.mubr.bf16.mxu0 0
        %3446 = vmatmul.mubr.bf16.gmra.mrb[0].mxu0 %v2860
        %v3447 = vpop.f32.mrb[0].mxu0
        %v3448 = vadd.f32 0.0, %v3447
        %v3449 = vpop.f32.mrb[0].mxu0
        %v3450 = vpop.f32.mrb[0].mxu0
        %v3451 = vadd.f32 0.0, %v3450
        %v3452 = vpop.f32.mrb[0].mxu0
        %3453 = vmatprep.mubr.bf16.mxu0 0
        %3454 = vmatmul.mubr.bf16.gmra.mrb[0].mxu0 %v2861
        %v3455 = vpop.f32.mrb[0].mxu0
        %v3456 = vadd.f32 0.0, %v3455
        %v3457 = vpop.f32.mrb[0].mxu0
        %v3458 = vpop.f32.mrb[0].mxu0
        %v3459 = vadd.f32 0.0, %v3458
        %v3460 = vpop.f32.mrb[0].mxu0
        %3461 = vmatprep.mubr.bf16.mxu0 0
        %3462 = vmatmul.mubr.bf16.gmra.mrb[0].mxu0 %v2862
        %v3463 = vpop.f32.mrb[0].mxu0
        %v3464 = vadd.f32 0.0, %v3463
        %v3465 = vpop.f32.mrb[0].mxu0
        %v3466 = vpop.f32.mrb[0].mxu0
        %v3467 = vadd.f32 0.0, %v3466
        %v3468 = vpop.f32.mrb[0].mxu0
        %3469 = vmatprep.mubr.bf16.mxu0 0
        %3470 = vmatmul.mubr.bf16.gmra.mrb[0].mxu0 %v2863
        %v3471 = vpop.f32.mrb[0].mxu0
        %v3472 = vadd.f32 0.0, %v3471
        %v3473 = vpop.f32.mrb[0].mxu0
        %v3474 = vpop.f32.mrb[0].mxu0
        %v3475 = vadd.f32 0.0, %v3474
        %v3476 = vpop.f32.mrb[0].mxu0
        %3477 = vmatprep.mubr.bf16.mxu0 0
        %3478 = vmatmul.mubr.bf16.gmra.mrb[0].mxu0 %v2864
        %v3479 = vpop.f32.mrb[0].mxu0
        %v3480 = vadd.f32 0.0, %v3479
        %v3481 = vpop.f32.mrb[0].mxu0
        %v3482 = vpop.f32.mrb[0].mxu0
        %v3483 = vadd.f32 0.0, %v3482
        %v3484 = vpop.f32.mrb[0].mxu0
        %3485 = vmatprep.mubr.bf16.mxu0 0
        %3486 = vmatmul.mubr.bf16.gmra.mrb[0].mxu0 %v2865
        %v3487 = vpop.f32.mrb[0].mxu0
        %v3488 = vadd.f32 0.0, %v3487
        %v3489 = vpop.f32.mrb[0].mxu0
        %v3490 = vpop.f32.mrb[0].mxu0
        %v3491 = vadd.f32 0.0, %v3490
        %v3492 = vpop.f32.mrb[0].mxu0
        %3493 = vmatprep.mubr.bf16.mxu0 0
        %3494 = vmatmul.mubr.bf16.gmra.mrb[0].mxu0 %v2866
        %v3495 = vpop.f32.mrb[0].mxu0
        %v3496 = vadd.f32 0.0, %v3495
        %v3497 = vpop.f32.mrb[0].mxu0
        %v3498 = vpop.f32.mrb[0].mxu0
        %v3499 = vadd.f32 0.0, %v3498
        %v3500 = vpop.f32.mrb[0].mxu0
        %3501 = vmatprep.mubr.bf16.mxu0 0
        %3502 = vmatmul.mubr.bf16.gmra.mrb[0].mxu0 %v2867
        %v3503 = vpop.f32.mrb[0].mxu0
        %v3504 = vadd.f32 0.0, %v3503
        %v3505 = vpop.f32.mrb[0].mxu0
        %v3506 = vpop.f32.mrb[0].mxu0
        %v3507 = vadd.f32 0.0, %v3506
        %v3508 = vpop.f32.mrb[0].mxu0
        %3509 = vmatprep.mubr.bf16.mxu0 0
        %3510 = vmatmul.mubr.bf16.gmra.mrb[0].mxu0 %v2868
        %v3511 = vpop.f32.mrb[0].mxu0
        %v3512 = vadd.f32 0.0, %v3511
        %v3513 = vpop.f32.mrb[0].mxu0
        %v3514 = vpop.f32.mrb[0].mxu0
        %v3515 = vadd.f32 0.0, %v3514
        %v3516 = vpop.f32.mrb[0].mxu0
        %3517 = vmatprep.mubr.bf16.mxu0 0
        %3518 = vmatmul.mubr.bf16.gmra.mrb[0].mxu0 %v2869
        %v3519 = vpop.f32.mrb[0].mxu0
        %v3520 = vadd.f32 0.0, %v3519
        %v3521 = vpop.f32.mrb[0].mxu0
        %v3522 = vpop.f32.mrb[0].mxu0
        %v3523 = vadd.f32 0.0, %v3522
        %v3524 = vpop.f32.mrb[0].mxu0
        %3525 = vmatprep.mubr.bf16.mxu0 0
        %3526 = vmatmul.mubr.bf16.gmra.mrb[0].mxu0 %v2870
        %v3527 = vpop.f32.mrb[0].mxu0
        %v3528 = vadd.f32 0.0, %v3527
        %v3529 = vpop.f32.mrb[0].mxu0
        %v3530 = vpop.f32.mrb[0].mxu0
        %v3531 = vadd.f32 0.0, %v3530
        %v3532 = vpop.f32.mrb[0].mxu0
        %3533 = vmatprep.mubr.bf16.mxu0 0
        %3534 = vmatmul.mubr.bf16.gmra.mrb[0].mxu0 %v2871
        %v3535 = vpop.f32.mrb[0].mxu0
        %v3536 = vadd.f32 0.0, %v3535
        %v3537 = vpop.f32.mrb[0].mxu0
        %v3538 = vpop.f32.mrb[0].mxu0
        %v3539 = vadd.f32 0.0, %v3538
        %v3540 = vpop.f32.mrb[0].mxu0
        %3541 = vmatprep.mubr.bf16.mxu0 0
        %3542 = vmatmul.mubr.bf16.gmra.mrb[0].mxu0 %v2872
        %v3543 = vpop.f32.mrb[0].mxu0
        %v3544 = vadd.f32 0.0, %v3543
        %v3545 = vpop.f32.mrb[0].mxu0
        %v3546 = vpop.f32.mrb[0].mxu0
        %v3547 = vadd.f32 0.0, %v3546
        %v3548 = vpop.f32.mrb[0].mxu0
        %3549 = vdwg.mxu0
        %v3550 = vadd.f32 %v3198, %v3424
        %v3551 = vadd.f32 %v3201, %v3427
        %v3552 = vadd.f32 %v3206, %v3432
        %v3553 = vadd.f32 %v3209, %v3435
        %v3554 = vadd.f32 %v3214, %v3440
        %v3555 = vadd.f32 %v3217, %v3443
        %v3556 = vadd.f32 %v3222, %v3448
        %v3557 = vadd.f32 %v3225, %v3451
        %v3558 = vadd.f32 %v3230, %v3456
        %v3559 = vadd.f32 %v3233, %v3459
        %v3560 = vadd.f32 %v3238, %v3464
        %v3561 = vadd.f32 %v3241, %v3467
        %v3562 = vadd.f32 %v3246, %v3472
        %v3563 = vadd.f32 %v3249, %v3475
        %v3564 = vadd.f32 %v3254, %v3480
        %v3565 = vadd.f32 %v3257, %v3483
        %v3566 = vadd.f32 %v3262, %v3488
        %v3567 = vadd.f32 %v3265, %v3491
        %v3568 = vadd.f32 %v3270, %v3496
        %v3569 = vadd.f32 %v3273, %v3499
        %v3570 = vadd.f32 %v3278, %v3504
        %v3571 = vadd.f32 %v3281, %v3507
        %v3572 = vadd.f32 %v3286, %v3512
        %v3573 = vadd.f32 %v3289, %v3515
        %v3574 = vadd.f32 %v3294, %v3520
        %v3575 = vadd.f32 %v3297, %v3523
        %v3576 = vadd.f32 %v3302, %v3528
        %v3577 = vadd.f32 %v3305, %v3531
        %v3578 = vadd.f32 %v3310, %v3536
        %v3579 = vadd.f32 %v3313, %v3539
        %v3580 = vadd.f32 %v3318, %v3544
        %v3581 = vadd.f32 %v3321, %v3547
        %vm3582 = vcmp.eq.s32.totalorder %v216, 98
        %v3583 = vsel %vm3582, 1, 0
        %vm3584 = vcmp.eq.s32.totalorder %v3583, 1
        %v3585 = vsel %vm3584, %v3550, 0.0
        %v3586 = vsel %vm3584, %v3551, 0.0
        %v3587 = vsel %vm3584, %v3552, 0.0
        %v3588 = vsel %vm3584, %v3553, 0.0
        %v3589 = vsel %vm3584, %v3554, 0.0
        %v3590 = vsel %vm3584, %v3555, 0.0
        %v3591 = vsel %vm3584, %v3556, 0.0
        %v3592 = vsel %vm3584, %v3557, 0.0
        %v3593 = vsel %vm3584, %v3558, 0.0
        %v3594 = vsel %vm3584, %v3559, 0.0
        %v3595 = vsel %vm3584, %v3560, 0.0
        %v3596 = vsel %vm3584, %v3561, 0.0
        %v3597 = vsel %vm3584, %v3562, 0.0
        %v3598 = vsel %vm3584, %v3563, 0.0
        %v3599 = vsel %vm3584, %v3564, 0.0
        %v3600 = vsel %vm3584, %v3565, 0.0
        %v3601 = vsel %vm3584, %v3566, 0.0
        %v3602 = vsel %vm3584, %v3567, 0.0
        %v3603 = vsel %vm3584, %v3568, 0.0
        %v3604 = vsel %vm3584, %v3569, 0.0
        %v3605 = vsel %vm3584, %v3570, 0.0
        %v3606 = vsel %vm3584, %v3571, 0.0
        %v3607 = vsel %vm3584, %v3572, 0.0
        %v3608 = vsel %vm3584, %v3573, 0.0
        %v3609 = vsel %vm3584, %v3574, 0.0
        %v3610 = vsel %vm3584, %v3575, 0.0
        %v3611 = vsel %vm3584, %v3576, 0.0
        %v3612 = vsel %vm3584, %v3577, 0.0
        %v3613 = vsel %vm3584, %v3578, 0.0
        %v3614 = vsel %vm3584, %v3579, 0.0
        %v3615 = vsel %vm3584, %v3580, 0.0
        %v3616 = vsel %vm3584, %v3581, 0.0
        %v3617 = vsub.f32 %v3550, %v3585
        %v3618 = vsub.f32 %v3551, %v3586
        %v3619 = vsub.f32 %v3552, %v3587
        %v3620 = vsub.f32 %v3553, %v3588
        %v3621 = vsub.f32 %v3554, %v3589
        %v3622 = vsub.f32 %v3555, %v3590
        %v3623 = vsub.f32 %v3556, %v3591
        %v3624 = vsub.f32 %v3557, %v3592
        %v3625 = vsub.f32 %v3558, %v3593
        %v3626 = vsub.f32 %v3559, %v3594
        %v3627 = vsub.f32 %v3560, %v3595
        %v3628 = vsub.f32 %v3561, %v3596
        %v3629 = vsub.f32 %v3562, %v3597
        %v3630 = vsub.f32 %v3563, %v3598
        %v3631 = vsub.f32 %v3564, %v3599
        %v3632 = vsub.f32 %v3565, %v3600
        %v3633 = vsub.f32 %v3566, %v3601
        %v3634 = vsub.f32 %v3567, %v3602
        %v3635 = vsub.f32 %v3568, %v3603
        %v3636 = vsub.f32 %v3569, %v3604
        %v3637 = vsub.f32 %v3570, %v3605
        %v3638 = vsub.f32 %v3571, %v3606
        %v3639 = vsub.f32 %v3572, %v3607
        %v3640 = vsub.f32 %v3573, %v3608
        %v3641 = vsub.f32 %v3574, %v3609
        %v3642 = vsub.f32 %v3575, %v3610
        %v3643 = vsub.f32 %v3576, %v3611
        %v3644 = vsub.f32 %v3577, %v3612
        %v3645 = vsub.f32 %v3578, %v3613
        %v3646 = vsub.f32 %v3579, %v3614
        %v3647 = vsub.f32 %v3580, %v3615
        %v3648 = vsub.f32 %v3581, %v3616
        %v3649 = vmul.f32 %v3617, %v3617
        %v3650 = vmul.f32 %v3618, %v3618
        %v3651 = vmul.f32 %v3619, %v3619
        %v3652 = vmul.f32 %v3620, %v3620
        %v3653 = vmul.f32 %v3621, %v3621
        %v3654 = vmul.f32 %v3622, %v3622
        %v3655 = vmul.f32 %v3623, %v3623
        %v3656 = vmul.f32 %v3624, %v3624
        %v3657 = vmul.f32 %v3625, %v3625
        %v3658 = vmul.f32 %v3626, %v3626
        %v3659 = vmul.f32 %v3627, %v3627
        %v3660 = vmul.f32 %v3628, %v3628
        %v3661 = vmul.f32 %v3629, %v3629
        %v3662 = vmul.f32 %v3630, %v3630
        %v3663 = vmul.f32 %v3631, %v3631
        %v3664 = vmul.f32 %v3632, %v3632
        %v3665 = vmul.f32 %v3633, %v3633
        %v3666 = vmul.f32 %v3634, %v3634
        %v3667 = vmul.f32 %v3635, %v3635
        %v3668 = vmul.f32 %v3636, %v3636
        %v3669 = vmul.f32 %v3637, %v3637
        %v3670 = vmul.f32 %v3638, %v3638
        %v3671 = vmul.f32 %v3639, %v3639
        %v3672 = vmul.f32 %v3640, %v3640
        %v3673 = vmul.f32 %v3641, %v3641
        %v3674 = vmul.f32 %v3642, %v3642
        %v3675 = vmul.f32 %v3643, %v3643
        %v3676 = vmul.f32 %v3644, %v3644
        %v3677 = vmul.f32 %v3645, %v3645
        %v3678 = vmul.f32 %v3646, %v3646
        %v3679 = vmul.f32 %v3647, %v3647
        %v3680 = vmul.f32 %v3648, %v3648
        %3681 = vadd.xlane.f32.xlu0 %v3649
        %v3682 = vpop.xlane.xlu0 %3681
        %3683 = vadd.xlane.f32.xlu0 %v3650
        %v3684 = vpop.xlane.xlu0 %3683
        %3685 = vadd.xlane.f32.xlu0 %v3651
        %v3686 = vpop.xlane.xlu0 %3685
        %3687 = vadd.xlane.f32.xlu0 %v3652
        %v3688 = vpop.xlane.xlu0 %3687
        %3689 = vadd.xlane.f32.xlu0 %v3653
        %v3690 = vpop.xlane.xlu0 %3689
        %3691 = vadd.xlane.f32.xlu0 %v3654
        %v3692 = vpop.xlane.xlu0 %3691
        %3693 = vadd.xlane.f32.xlu0 %v3655
        %v3694 = vpop.xlane.xlu0 %3693
        %3695 = vadd.xlane.f32.xlu0 %v3656
        %v3696 = vpop.xlane.xlu0 %3695
        %3697 = vadd.xlane.f32.xlu0 %v3657
        %v3698 = vpop.xlane.xlu0 %3697
        %3699 = vadd.xlane.f32.xlu0 %v3658
        %v3700 = vpop.xlane.xlu0 %3699
        %3701 = vadd.xlane.f32.xlu0 %v3659
        %v3702 = vpop.xlane.xlu0 %3701
        %3703 = vadd.xlane.f32.xlu0 %v3660
        %v3704 = vpop.xlane.xlu0 %3703
        %3705 = vadd.xlane.f32.xlu0 %v3661
        %v3706 = vpop.xlane.xlu0 %3705
        %3707 = vadd.xlane.f32.xlu0 %v3662
        %v3708 = vpop.xlane.xlu0 %3707
        %3709 = vadd.xlane.f32.xlu0 %v3663
        %v3710 = vpop.xlane.xlu0 %3709
        %3711 = vadd.xlane.f32.xlu0 %v3664
        %v3712 = vpop.xlane.xlu0 %3711
        %3713 = vadd.xlane.f32.xlu0 %v3665
        %v3714 = vpop.xlane.xlu0 %3713
        %3715 = vadd.xlane.f32.xlu0 %v3666
        %v3716 = vpop.xlane.xlu0 %3715
        %3717 = vadd.xlane.f32.xlu0 %v3667
        %v3718 = vpop.xlane.xlu0 %3717
        %3719 = vadd.xlane.f32.xlu0 %v3668
        %v3720 = vpop.xlane.xlu0 %3719
        %3721 = vadd.xlane.f32.xlu0 %v3669
        %v3722 = vpop.xlane.xlu0 %3721
        %3723 = vadd.xlane.f32.xlu0 %v3670
        %v3724 = vpop.xlane.xlu0 %3723
        %3725 = vadd.xlane.f32.xlu0 %v3671
        %v3726 = vpop.xlane.xlu0 %3725
        %3727 = vadd.xlane.f32.xlu0 %v3672
        %v3728 = vpop.xlane.xlu0 %3727
        %3729 = vadd.xlane.f32.xlu0 %v3673
        %v3730 = vpop.xlane.xlu0 %3729
        %3731 = vadd.xlane.f32.xlu0 %v3674
        %v3732 = vpop.xlane.xlu0 %3731
        %3733 = vadd.xlane.f32.xlu0 %v3675
        %v3734 = vpop.xlane.xlu0 %3733
        %3735 = vadd.xlane.f32.xlu0 %v3676
        %v3736 = vpop.xlane.xlu0 %3735
        %3737 = vadd.xlane.f32.xlu0 %v3677
        %v3738 = vpop.xlane.xlu0 %3737
        %3739 = vadd.xlane.f32.xlu0 %v3678
        %v3740 = vpop.xlane.xlu0 %3739
        %3741 = vadd.xlane.f32.xlu0 %v3679
        %v3742 = vpop.xlane.xlu0 %3741
        %3743 = vadd.xlane.f32.xlu0 %v3680
        %v3744 = vpop.xlane.xlu0 %3743
        %v3745 = vmax.f32 %v3682, 1e-24
        %v3746 = vmax.f32 %v3684, 1e-24
        %v3747 = vmax.f32 %v3686, 1e-24
        %v3748 = vmax.f32 %v3688, 1e-24
        %v3749 = vmax.f32 %v3690, 1e-24
        %v3750 = vmax.f32 %v3692, 1e-24
        %v3751 = vmax.f32 %v3694, 1e-24
        %v3752 = vmax.f32 %v3696, 1e-24
        %v3753 = vmax.f32 %v3698, 1e-24
        %v3754 = vmax.f32 %v3700, 1e-24
        %v3755 = vmax.f32 %v3702, 1e-24
        %v3756 = vmax.f32 %v3704, 1e-24
        %v3757 = vmax.f32 %v3706, 1e-24
        %v3758 = vmax.f32 %v3708, 1e-24
        %v3759 = vmax.f32 %v3710, 1e-24
        %v3760 = vmax.f32 %v3712, 1e-24
        %v3761 = vmax.f32 %v3714, 1e-24
        %v3762 = vmax.f32 %v3716, 1e-24
        %v3763 = vmax.f32 %v3718, 1e-24
        %v3764 = vmax.f32 %v3720, 1e-24
        %v3765 = vmax.f32 %v3722, 1e-24
        %v3766 = vmax.f32 %v3724, 1e-24
        %v3767 = vmax.f32 %v3726, 1e-24
        %v3768 = vmax.f32 %v3728, 1e-24
        %v3769 = vmax.f32 %v3730, 1e-24
        %v3770 = vmax.f32 %v3732, 1e-24
        %v3771 = vmax.f32 %v3734, 1e-24
        %v3772 = vmax.f32 %v3736, 1e-24
        %v3773 = vmax.f32 %v3738, 1e-24
        %v3774 = vmax.f32 %v3740, 1e-24
        %v3775 = vmax.f32 %v3742, 1e-24
        %v3776 = vmax.f32 %v3744, 1e-24
        %v3777 = vrsqrt.pop %v3745
        %v3778 = vrsqrt.pop %v3746
        %v3779 = vrsqrt.pop %v3747
        %v3780 = vrsqrt.pop %v3748
        %v3781 = vrsqrt.pop %v3749
        %v3782 = vrsqrt.pop %v3750
        %v3783 = vrsqrt.pop %v3751
        %v3784 = vrsqrt.pop %v3752
        %v3785 = vrsqrt.pop %v3753
        %v3786 = vrsqrt.pop %v3754
        %v3787 = vrsqrt.pop %v3755
        %v3788 = vrsqrt.pop %v3756
        %v3789 = vrsqrt.pop %v3757
        %v3790 = vrsqrt.pop %v3758
        %v3791 = vrsqrt.pop %v3759
        %v3792 = vrsqrt.pop %v3760
        %v3793 = vrsqrt.pop %v3761
        %v3794 = vrsqrt.pop %v3762
        %v3795 = vrsqrt.pop %v3763
        %v3796 = vrsqrt.pop %v3764
        %v3797 = vrsqrt.pop %v3765
        %v3798 = vrsqrt.pop %v3766
        %v3799 = vrsqrt.pop %v3767
        %v3800 = vrsqrt.pop %v3768
        %v3801 = vrsqrt.pop %v3769
        %v3802 = vrsqrt.pop %v3770
        %v3803 = vrsqrt.pop %v3771
        %v3804 = vrsqrt.pop %v3772
        %v3805 = vrsqrt.pop %v3773
        %v3806 = vrsqrt.pop %v3774
        %v3807 = vrsqrt.pop %v3775
        %v3808 = vrsqrt.pop %v3776
        %v3809 = vmul.f32 %v3617, %v3777
        %v3810 = vmul.f32 %v3618, %v3778
        %v3811 = vmul.f32 %v3619, %v3779
        %v3812 = vmul.f32 %v3620, %v3780
        %v3813 = vmul.f32 %v3621, %v3781
        %v3814 = vmul.f32 %v3622, %v3782
        %v3815 = vmul.f32 %v3623, %v3783
        %v3816 = vmul.f32 %v3624, %v3784
        %v3817 = vmul.f32 %v3625, %v3785
        %v3818 = vmul.f32 %v3626, %v3786
        %v3819 = vmul.f32 %v3627, %v3787
        %v3820 = vmul.f32 %v3628, %v3788
        %v3821 = vmul.f32 %v3629, %v3789
        %v3822 = vmul.f32 %v3630, %v3790
        %v3823 = vmul.f32 %v3631, %v3791
        %v3824 = vmul.f32 %v3632, %v3792
        %v3825 = vmul.f32 %v3633, %v3793
        %v3826 = vmul.f32 %v3634, %v3794
        %v3827 = vmul.f32 %v3635, %v3795
        %v3828 = vmul.f32 %v3636, %v3796
        %v3829 = vmul.f32 %v3637, %v3797
        %v3830 = vmul.f32 %v3638, %v3798
        %v3831 = vmul.f32 %v3639, %v3799
        %v3832 = vmul.f32 %v3640, %v3800
        %v3833 = vmul.f32 %v3641, %v3801
        %v3834 = vmul.f32 %v3642, %v3802
        %v3835 = vmul.f32 %v3643, %v3803
        %v3836 = vmul.f32 %v3644, %v3804
        %v3837 = vmul.f32 %v3645, %v3805
        %v3838 = vmul.f32 %v3646, %v3806
        %v3839 = vmul.f32 %v3647, %v3807
        %v3840 = vmul.f32 %v3648, %v3808
        %v3841 = vadd.f32 %v3809, %v3585
        %v3842 = vadd.f32 %v3810, %v3586
        %v3843 = vadd.f32 %v3811, %v3587
        %v3844 = vadd.f32 %v3812, %v3588
        %v3845 = vadd.f32 %v3813, %v3589
        %v3846 = vadd.f32 %v3814, %v3590
        %v3847 = vadd.f32 %v3815, %v3591
        %v3848 = vadd.f32 %v3816, %v3592
        %v3849 = vadd.f32 %v3817, %v3593
        %v3850 = vadd.f32 %v3818, %v3594
        %v3851 = vadd.f32 %v3819, %v3595
        %v3852 = vadd.f32 %v3820, %v3596
        %v3853 = vadd.f32 %v3821, %v3597
        %v3854 = vadd.f32 %v3822, %v3598
        %v3855 = vadd.f32 %v3823, %v3599
        %v3856 = vadd.f32 %v3824, %v3600
        %v3857 = vadd.f32 %v3825, %v3601
        %v3858 = vadd.f32 %v3826, %v3602
        %v3859 = vadd.f32 %v3827, %v3603
        %v3860 = vadd.f32 %v3828, %v3604
        %v3861 = vadd.f32 %v3829, %v3605
        %v3862 = vadd.f32 %v3830, %v3606
        %v3863 = vadd.f32 %v3831, %v3607
        %v3864 = vadd.f32 %v3832, %v3608
        %v3865 = vadd.f32 %v3833, %v3609
        %v3866 = vadd.f32 %v3834, %v3610
        %v3867 = vadd.f32 %v3835, %v3611
        %v3868 = vadd.f32 %v3836, %v3612
        %v3869 = vadd.f32 %v3837, %v3613
        %v3870 = vadd.f32 %v3838, %v3614
        %v3871 = vadd.f32 %v3839, %v3615
        %v3872 = vadd.f32 %v3840, %v3616
        %v3873 = vadd.f32 %v1425, %v2633
        %v3874 = vadd.f32 %v1426, %v2634
        %v3875 = vadd.f32 %v1427, %v2635
        %v3876 = vadd.f32 %v1428, %v2636
        %v3877 = vadd.f32 %v1429, %v2637
        %v3878 = vadd.f32 %v1430, %v2638
        %v3879 = vadd.f32 %v1431, %v2639
        %v3880 = vadd.f32 %v1432, %v2640
        %v3881 = vadd.f32 %v1433, %v2641
        %v3882 = vadd.f32 %v1434, %v2642
        %v3883 = vadd.f32 %v1435, %v2643
        %v3884 = vadd.f32 %v1436, %v2644
        %v3885 = vadd.f32 %v1437, %v2645
        %v3886 = vadd.f32 %v1438, %v2646
        %v3887 = vadd.f32 %v1439, %v2647
        %v3888 = vadd.f32 %v1440, %v2648
        %v3889 = vadd.f32 %v1441, %v2649
        %v3890 = vadd.f32 %v1442, %v2650
        %v3891 = vadd.f32 %v1443, %v2651
        %v3892 = vadd.f32 %v1444, %v2652
        %v3893 = vadd.f32 %v1445, %v2653
        %v3894 = vadd.f32 %v1446, %v2654
        %v3895 = vadd.f32 %v1447, %v2655
        %v3896 = vadd.f32 %v1448, %v2656
        %v3897 = vadd.f32 %v1449, %v2657
        %v3898 = vadd.f32 %v1450, %v2658
        %v3899 = vadd.f32 %v1451, %v2659
        %v3900 = vadd.f32 %v1452, %v2660
        %v3901 = vadd.f32 %v1453, %v2661
        %v3902 = vadd.f32 %v1454, %v2662
        %v3903 = vadd.f32 %v1455, %v2663
        %v3904 = vadd.f32 %v1456, %v2664
        %v3905 = vadd.f32 %v3873, %v3841
        %v3906 = vadd.f32 %v3874, %v3842
        %v3907 = vadd.f32 %v3875, %v3843
        %v3908 = vadd.f32 %v3876, %v3844
        %v3909 = vadd.f32 %v3877, %v3845
        %v3910 = vadd.f32 %v3878, %v3846
        %v3911 = vadd.f32 %v3879, %v3847
        %v3912 = vadd.f32 %v3880, %v3848
        %v3913 = vadd.f32 %v3881, %v3849
        %v3914 = vadd.f32 %v3882, %v3850
        %v3915 = vadd.f32 %v3883, %v3851
        %v3916 = vadd.f32 %v3884, %v3852
        %v3917 = vadd.f32 %v3885, %v3853
        %v3918 = vadd.f32 %v3886, %v3854
        %v3919 = vadd.f32 %v3887, %v3855
        %v3920 = vadd.f32 %v3888, %v3856
        %v3921 = vadd.f32 %v3889, %v3857
        %v3922 = vadd.f32 %v3890, %v3858
        %v3923 = vadd.f32 %v3891, %v3859
        %v3924 = vadd.f32 %v3892, %v3860
        %v3925 = vadd.f32 %v3893, %v3861
        %v3926 = vadd.f32 %v3894, %v3862
        %v3927 = vadd.f32 %v3895, %v3863
        %v3928 = vadd.f32 %v3896, %v3864
        %v3929 = vadd.f32 %v3897, %v3865
        %v3930 = vadd.f32 %v3898, %v3866
        %v3931 = vadd.f32 %v3899, %v3867
        %v3932 = vadd.f32 %v3900, %v3868
        %v3933 = vadd.f32 %v3901, %v3869
        %v3934 = vadd.f32 %v3902, %v3870
        %v3935 = vadd.f32 %v3903, %v3871
        %v3936 = vadd.f32 %v3904, %v3872
        %3937 = vst [vmem:[%s206] sm:$0xff] %v3905
        %3938 = vst [vmem:[%s206 + $0x8] sm:$0xff] %v3906
        %3939 = vst [vmem:[%s206 + $0x10] sm:$0xff] %v3907
        %3940 = vst [vmem:[%s206 + $0x18] sm:$0xff] %v3908
        %3941 = vst [vmem:[%s206 + $0x20] sm:$0xff] %v3909
        %3942 = vst [vmem:[%s206 + $0x28] sm:$0xff] %v3910
        %3943 = vst [vmem:[%s206 + $0x30] sm:$0xff] %v3911
        %3944 = vst [vmem:[%s206 + $0x38] sm:$0xff] %v3912
        %3945 = vst [vmem:[%s206 + $0x40] sm:$0xff] %v3913
        %3946 = vst [vmem:[%s206 + $0x48] sm:$0xff] %v3914
        %3947 = vst [vmem:[%s206 + $0x50] sm:$0xff] %v3915
        %3948 = vst [vmem:[%s206 + $0x58] sm:$0xff] %v3916
        %3949 = vst [vmem:[%s206 + $0x60] sm:$0xff] %v3917
        %3950 = vst [vmem:[%s206 + $0x68] sm:$0xff] %v3918
        %3951 = vst [vmem:[%s206 + $0x70] sm:$0xff] %v3919
        %3952 = vst [vmem:[%s206 + $0x78] sm:$0xff] %v3920
        %3953 = vst [vmem:[%s206 + $0x80] sm:$0xff] %v3921
        %3954 = vst [vmem:[%s206 + $0x88] sm:$0xff] %v3922
        %3955 = vst [vmem:[%s206 + $0x90] sm:$0xff] %v3923
        %3956 = vst [vmem:[%s206 + $0x98] sm:$0xff] %v3924
        %3957 = vst [vmem:[%s206 + $0xa0] sm:$0xff] %v3925
        %3958 = vst [vmem:[%s206 + $0xa8] sm:$0xff] %v3926
        %3959 = vst [vmem:[%s206 + $0xb0] sm:$0xff] %v3927
        %3960 = vst [vmem:[%s206 + $0xb8] sm:$0xff] %v3928
        %3961 = vst [vmem:[%s206 + $0xc0] sm:$0xff] %v3929
        %3962 = vst [vmem:[%s206 + $0xc8] sm:$0xff] %v3930
        %3963 = vst [vmem:[%s206 + $0xd0] sm:$0xff] %v3931
        %3964 = vst [vmem:[%s206 + $0xd8] sm:$0xff] %v3932
        %3965 = vst [vmem:[%s206 + $0xe0] sm:$0xff] %v3933
        %3966 = vst [vmem:[%s206 + $0xe8] sm:$0xff] %v3934
        %3967 = vst [vmem:[%s206 + $0xf0] sm:$0xff] %v3935
        %3968 = vst [vmem:[%s206 + $0xf8] sm:$0xff] %v3936
        %s3969 = sand.u32 %s116, 1
        %s3970 = scalar_lea.sflag [#allocation4], %s3969
        %s3971 = sand.u32 %s116, 1
        %s3972 = smul.addr %s3971, 256
        %s3973 = scalar_lea.vmem [#allocation5], %s3972
        // Predicated region
        $region41: #{tpu_custom_call.1} parent=35 // pred_check
          %p3974 = pneg %p126
        $region42: #{tpu_custom_call.1} parent=35 // pred_check_branch
          %3976 = sbr.rel (%p3974) target = $region44
        $region43: #{tpu_custom_call.1} parent=35 // pred_region
          %s3977 = smul.u32 32, %s19
          %s3979 = ssub.s32 4096, 4096
          %3980 = vsyncadd %s3970, %s3979
          %s3981 = smul.addr %s3977, 128
          %s3982 = scalar_lea.hbm %s4, %s3981
          %s3983 = sshll.u32 %s3973, 4
          %s3984 = int_to_ptr.vmem [resolvable:$true] %s3983
          %3989 = dma.vmem_to_hbm [thread:$0]  %s3984, 4096, %s3982, %s3970, 128, 128, 8
        $region44: #{tpu_custom_call.1} parent=35 // pred_fallthru
          _
      $region36: #{tpu_custom_call.1} parent=5 // pred_fallthru
        _
      %p3990 = scmp.le.s32.totalorder 2, %s14
      // Predicated region
      $region45: #{tpu_custom_call.1} parent=5 // pred_check
        %p3991 = pneg %p3990
      $region46: #{tpu_custom_call.1} parent=5 // pred_check_branch
        %3993 = sbr.rel (%p3991) target = $region48
      $region47: #{tpu_custom_call.1} parent=5 // pred_region
        %s3994 = ssub.s32 %s14, 2
        // Predicated region
        $region49: #{tpu_custom_call.1} parent=47 // pred_check
          %p3995 = pneg %p132
        $region50: #{tpu_custom_call.1} parent=47 // pred_check_branch
          %3997 = sbr.rel (%p3995) target = $region52
        $region51: #{tpu_custom_call.1} parent=47 // pred_region
          %s3998 = sand.u32 %s117, 1
          %s3999 = scalar_lea.sflag [#allocation4], %s3998
          %s4000 = sand.u32 %s117, 1
          %s4001 = smul.addr %s4000, 256
          %s4002 = scalar_lea.vmem [#allocation5], %s4001
          %4003 = dma.done %s3999, 4096
        $region52: #{tpu_custom_call.1} parent=47 // pred_fallthru
          _
      $region48: #{tpu_custom_call.1} parent=5 // pred_fallthru
        _
    $region6: #{tpu_custom_call.1} parent=1 // loop_footer
      %s18 = sadd.s32 1, %s14
    $region7: #{tpu_custom_call.1} parent=1 // loop_footer_branch
      %13 = sbr.rel target = $region3
    $region8: #{tpu_custom_call.1} parent=1 // loop_exit
      _
    %4004 = vsyncpa [#allocation3], 1
    %s4005 = scalar_lea.sflag [#allocation3], 1
    %4006 = vsyncpa %s4005, 1
    %4007 = vsyncpa [#allocation4], 1
    %s4008 = scalar_lea.sflag [#allocation4], 1
    %4009 = vsyncpa %s4008, 1

</llo_original>
